<compile_context>
chip_gen: v6e
topology: v6e:2x2x1
jax: 0.10.0
libtpu: 0.0.40
codegen_flags: <defaults>
</compile_context>

<pallas_src>
import functools

import numpy as np
import jax
import jax.numpy as jnp
from jax.experimental import pallas as pl
from jax.experimental.pallas import tpu as pltpu


def bias_init_with_prob(prior_prob):
    return float(-np.log((1 - prior_prob) / prior_prob))


# ----------------------------------------------------------------------------
# Fused per-level kernel:
#   4 x [conv3x3 (pad=1, no bias) -> fused BN -> ReLU]  +  fused 1x1 heads
# Layout: channels on sublanes, flattened padded pixels (H * Wp) on lanes.
# ----------------------------------------------------------------------------
def _rpn_level_kernel(x_ref, wt_ref, bt_ref, wh_ref, bh_ref, mask_ref,
                      out_ref, buf_a, buf_b, *, H, W, C):
    # x_ref   : (C, (H+2)*Wp)   zero-padded input image, flat row-major layout
    # wt_ref  : (4, C, 9*C)     tower conv weights (BN scale folded in);
    #                           column index = (ky*3 + kx)*C + cin
    # bt_ref  : (4, C, 1)       fused BN bias per tower layer
    # wh_ref  : (n_total, C)    stacked 1x1 heads [cls | box | ctr | occ]
    # bh_ref  : (n_total, 1)    stacked head biases
    # mask_ref: (1, H*Wp)       1.0 on image columns, 0.0 on W-halo columns
    # out_ref : (n_total, H*Wp) fused head outputs (halo columns = garbage,
    #                           sliced off by the wrapper)
    # buf_a/b : (C, (H+2)*Wp)   ping-pong padded feature buffers (VMEM scratch)
    Wp = W + 2
    M = H * Wp

    mask = mask_ref[...]                       # (1, M) -> broadcast over channels

    # Zero only the top/bottom halo rows; interiors are fully rewritten every
    # layer and W-halo columns are re-zeroed via `mask`.  Done unconditionally
    # each grid step (scratch persists across steps / is per-core on v7x).
    zero_row = jnp.zeros((C, Wp), jnp.float32)
    for buf in (buf_a, buf_b):
        buf[:, 0:Wp] = zero_row
        buf[:, (H + 1) * Wp:(H + 2) * Wp] = zero_row

    def conv3x3(src, wl):
        # src: padded ref (C, (H+2)*Wp);  wl: (C, 9*C) packed taps.
        # One contiguous band load per ky; kx = +-1 via a lane rotation (XLU).
        # Row-wraparound / rotation garbage only reaches halo-column outputs.
        acc = None
        for ky in range(3):
            band = src[:, ky * Wp:ky * Wp + M].astype(jnp.float32)    # (C, M)
            for kx, shift in ((0, 1), (1, 0), (2, -1)):
                patch = band if shift == 0 else pltpu.roll(band, shift % M, axis=1)
                tap = ky * 3 + kx
                w_tap = wl[:, tap * C:(tap + 1) * C]                   # (C, C)
                d = jnp.dot(w_tap, patch, preferred_element_type=jnp.float32)
                acc = d if acc is None else acc + d
        return acc                                                     # (C, M)

    srcs = (x_ref, buf_a, buf_b, buf_a)        # conv input of layer l
    dsts = (buf_a, buf_b, buf_a, None)         # padded output buffer of layer l
    feat = None
    for l in range(4):                         # static unroll over tower layers
        acc = conv3x3(srcs[l], wt_ref[l])
        y = jnp.maximum(acc + bt_ref[l], 0.0)  # fused BN bias + ReLU
        if l < 3:
            # Write interior rows only; mask re-zeroes the W-halo columns so the
            # buffer is a valid zero-padded input for the next conv.
            dsts[l][:, Wp:Wp + M] = y * mask
        else:
            feat = y                           # (C, M); halo cols don't matter

    # Fused 1x1 heads: one MXU matmul + one lane-dense store.
    out = jnp.dot(wh_ref[...], feat, preferred_element_type=jnp.float32)
    out_ref[...] = (out + bh_ref[...]).astype(out_ref.dtype)


def rpn_level_fused(x_nchw, tower_w, tower_b, heads_w, heads_b):
    """Whole tower + all four heads for one level in a single pallas_call.

    Returns the fused head tensor in NCHW: (N, n_total, H, W).
    """
    N, C, H, W = x_nchw.shape
    Wp = W + 2
    M = H * Wp
    Lp = (H + 2) * Wp
    n_total = heads_w.shape[0]

    # Zero-pad once in XLA (tiny) and flatten to the kernel's (C, rows*Wp)
    # layout, so the input's halo rows/columns are already zero.
    x_pad = jnp.pad(x_nchw, ((0, 0), (0, 0), (1, 1), (1, 1))).reshape(N, C, Lp)
    # Interior-column mask (a small constant, built on host).
    col = np.arange(M, dtype=np.int32) % Wp
    mask = jnp.asarray(((col >= 1) & (col <= W)).astype(np.float32)).reshape(1, M)

    kernel = functools.partial(_rpn_level_kernel, H=H, W=W, C=C)

    # NOTE: at production feature-map sizes, additionally tile H (with a 1-row
    # halo per conv layer or recompute overlap) so the two (C, (Ht+2)*Wp)
    # buffers stay inside v7x's 64 MiB VMEM, and make that H axis "parallel" so
    # both TensorCores stay busy at small batch.  Unneeded at these demo sizes.
    out_flat = pl.pallas_call(
        kernel,
        out_shape=jax.ShapeDtypeStruct((N, n_total, M), x_nchw.dtype),
        grid_spec=pltpu.PrefetchScalarGridSpec(
            num_scalar_prefetch=0,
            grid=(N,),
            in_specs=[
                pl.BlockSpec((None, C, Lp), lambda n: (n, 0, 0)),
                pl.BlockSpec((4, C, 9 * C), lambda n: (0, 0, 0)),
                pl.BlockSpec((4, C, 1), lambda n: (0, 0, 0)),
                pl.BlockSpec((n_total, C), lambda n: (0, 0)),
                pl.BlockSpec((n_total, 1), lambda n: (0, 0)),
                pl.BlockSpec((1, M), lambda n: (0, 0)),
            ],
            out_specs=pl.BlockSpec((None, n_total, M), lambda n: (n, 0, 0)),
            scratch_shapes=[pltpu.VMEM((C, Lp), jnp.float32)] * 2,
        ),
        compiler_params=pltpu.CompilerParams(
            dimension_semantics=("parallel",)),   # batch across TCs on v7x
    )(x_pad, tower_w, tower_b, heads_w, heads_b, mask)

    # Wrapper-side layout plumbing (cheap XLA ops on small tensors): drop the
    # W-halo columns -> NCHW.
    return out_flat.reshape(N, n_total, H, Wp)[:, :, :, 1:1 + W]


# ----------------------------------------------------------------------------
# Parameter construction (deterministic, synthetic; mirrors RPN_M.init_weights)
# ----------------------------------------------------------------------------
class RPNMParams:
    pass


def _pack_tower_weights(w_pt, bn_scale):
    """PyTorch Conv2d weights (L, Cout, Cin, 3, 3) -> (L, Cout, 9*Cin) with the
    BatchNorm scale folded in; column index = (ky*3 + kx)*Cin + cin."""
    L, Cout, Cin, _, _ = w_pt.shape
    w = jnp.transpose(w_pt, (0, 1, 3, 4, 2)).reshape(L, Cout, 9 * Cin)
    return w * bn_scale[:, :, None]


def init_rpn_m_params(key, channels, width_mult, num_classes, strides, max_joints):
    p = RPNMParams()
    C = int(channels * width_mult)
    p.channels = C
    p.num_classes = num_classes - 1
    p.max_joints = max_joints
    eps = 1e-5

    # Tower conv weights in the native PyTorch Conv2d layout (Cout, Cin, kH, kW);
    # packed (and permuted!) into the kernel layout below.
    key, kt = jax.random.split(key)
    w_pt = (0.01 * jax.random.normal(kt, (4, C, C, 3, 3))).astype(jnp.float32)
    # BatchNorm2d default running stats, fused in eval mode.
    gamma = jnp.ones((4, C), jnp.float32)
    beta = jnp.zeros((4, C), jnp.float32)
    mean = jnp.zeros((4, C), jnp.float32)
    var = jnp.ones((4, C), jnp.float32)
    bn_scale = gamma / jnp.sqrt(var + eps)
    p.tower_w = _pack_tower_weights(w_pt, bn_scale)            # (4, C, 9C)
    p.tower_b = (beta - mean * bn_scale)[:, :, None]           # (4, C, 1)

    # 1x1 heads (PyTorch layout (Cout, Cin)), fused into one stacked matrix.
    n_cls = p.num_classes
    n_box = 2 * max_joints
    n_occ = 2 * max_joints
    p.head_splits = (n_cls, n_box, 1, n_occ)                   # cls, box, ctr, occ
    key, k1, k2, k3, k4 = jax.random.split(key, 5)
    w_cls = (0.01 * jax.random.normal(k1, (n_cls, C))).astype(jnp.float32)
    w_box = (0.01 * jax.random.normal(k2, (n_box, C))).astype(jnp.float32)
    w_ctr = (0.01 * jax.random.normal(k3, (1, C))).astype(jnp.float32)
    w_occ = (0.01 * jax.random.normal(k4, (n_occ, C))).astype(jnp.float32)
    bias_cls = bias_init_with_prob(0.01)   # init_weights: cls AND occlusion prior
    b_cls = jnp.full((n_cls,), bias_cls, jnp.float32)
    b_box = jnp.zeros((n_box,), jnp.float32)
    b_ctr = jnp.zeros((1,), jnp.float32)
    b_occ = jnp.full((n_occ,), bias_cls, jnp.float32)
    p.heads_w = jnp.concatenate([w_cls, w_box, w_ctr, w_occ], axis=0)    # (19, C)
    p.heads_b = jnp.concatenate([b_cls, b_box, b_ctr, b_occ])[:, None]   # (19, 1)

    # Scale modules (one per stride); carried but never applied in
    # forward_single — exactly like the reference module.
    p.scales = [jnp.float32(1.0) for _ in strides]
    return p


# ----------------------------------------------------------------------------
# Forward pass (multi_apply over feature levels)
# ----------------------------------------------------------------------------
def rpn_m_forward_single(params, x_nchw, scale):
    del scale  # forward_single in the reference never applies `scale`
    fused = rpn_level_fused(x_nchw, params.tower_w, params.tower_b,
                            params.heads_w, params.heads_b)
    o = [int(v) for v in np.cumsum((0,) + params.head_splits)]
    cls_score = fused[:, o[0]:o[1]]
    bbox_pred = fused[:, o[1]:o[2]]
    centerness = fused[:, o[2]:o[3]]
    occlusion = fused[:, o[3]:o[4]]
    return cls_score, bbox_pred, centerness, occlusion


def rpn_m_forward(params, feats):
    # multi_apply semantics: map forward_single over (feats, scales),
    # return a tuple of per-level lists.
    results = [rpn_m_forward_single(params, x, s)
               for x, s in zip(feats, params.scales)]
    return tuple(map(list, zip(*results)))


# ----------------------------------------------------------------------------
if __name__ == "__main__":
    key = jax.random.PRNGKey(0)

    # Small hyper-params: channels=16, width_mult=0.5 -> C=8; num_classes=3 ->
    # 2 cls channels; max_joints=4 -> 8 bbox/occ channels; 2 feature levels.
    channels, width_mult, num_classes, max_joints = 16, 0.5, 3, 4
    strides = (8, 16)

    key, kp = jax.random.split(key)
    params = init_rpn_m_params(kp, channels, width_mult, num_classes,
                               strides, max_joints)

    # Feature maps in NCHW (PyTorch convention): (2, 8, 16, 16) and (2, 8, 8, 8)
    key, k1, k2 = jax.random.split(key, 3)
    feats = [
        jax.random.normal(k1, (2, params.channels, 16, 16), jnp.float32),
        jax.random.normal(k2, (2, params.channels, 8, 8), jnp.float32),
    ]

    cls_scores, bbox_preds, centernesses, occlusions = rpn_m_forward(params, feats)
    for t in cls_scores + bbox_preds + centernesses + occlusions:
        jax.block_until_ready(t)

    # shape checks (NCHW, matching the PyTorch module)
    assert cls_scores[0].shape == (2, num_classes - 1, 16, 16)
    assert bbox_preds[0].shape == (2, 2 * max_joints, 16, 16)
    assert centernesses[0].shape == (2, 1, 16, 16)
    assert occlusions[0].shape == (2, 2 * max_joints, 16, 16)
    assert cls_scores[1].shape == (2, num_classes - 1, 8, 8)
    assert bbox_preds[1].shape == (2, 2 * max_joints, 8, 8)
    assert centernesses[1].shape == (2, 1, 8, 8)
    assert occlusions[1].shape == (2, 2 * max_joints, 8, 8)

    print("KERNEL_OK")
</pallas_src>

<mosaic_0001>
module attributes {stable_mosaic.version = 11 : i64} {
  func.func @_rpn_level_kernel(%arg0: i32, %arg1: memref<1x8x324xf32, #tpu.memory_space<vmem>>, %arg2: memref<4x8x72xf32, #tpu.memory_space<vmem>>, %arg3: memref<4x8x1xf32, #tpu.memory_space<vmem>>, %arg4: memref<19x8xf32, #tpu.memory_space<vmem>>, %arg5: memref<19x1xf32, #tpu.memory_space<vmem>>, %arg6: memref<1x288xf32, #tpu.memory_space<vmem>>, %arg7: memref<1x19x288xf32, #tpu.memory_space<vmem>>, %arg8: memref<8x324xf32, #tpu.memory_space<vmem>>, %arg9: memref<8x324xf32, #tpu.memory_space<vmem>>) attributes {dimension_semantics = [#tpu.dimension_semantics<parallel>], iteration_bounds = array<i64: 2>, scalar_prefetch = 0 : i64, scratch_operands = 2 : i64, tpu.core_type = #tpu.core_type<tc>, window_params = [{transform_indices = @transform_0, window_bounds = array<i64: 1, 8, 324>}, {pipeline_mode = #tpu.pipeline_mode<synchronous>, transform_indices = @transform_1, window_bounds = array<i64: 4, 8, 72>}, {pipeline_mode = #tpu.pipeline_mode<synchronous>, transform_indices = @transform_2, window_bounds = array<i64: 4, 8, 1>}, {pipeline_mode = #tpu.pipeline_mode<synchronous>, transform_indices = @transform_3, window_bounds = array<i64: 19, 8>}, {pipeline_mode = #tpu.pipeline_mode<synchronous>, transform_indices = @transform_4, window_bounds = array<i64: 19, 1>}, {pipeline_mode = #tpu.pipeline_mode<synchronous>, transform_indices = @transform_5, window_bounds = array<i64: 1, 288>}, {transform_indices = @transform_6, window_bounds = array<i64: 1, 19, 288>}]} {
    %c0 = arith.constant 0 : index
    %c0_0 = arith.constant 0 : index
    %0 = vector.load %arg6[%c0, %c0_0] : memref<1x288xf32, #tpu.memory_space<vmem>>, vector<1x288xf32>
    %cst = arith.constant 0.000000e+00 : f32
    %1 = vector.broadcast %cst : f32 to vector<8x18xf32>
    %c0_1 = arith.constant 0 : index
    %c0_2 = arith.constant 0 : index
    %2 = vector.load %arg8[%c0_1, %c0_2] : memref<8x324xf32, #tpu.memory_space<vmem>>, vector<8x18xf32>
    tpu.vector_store %arg8[%c0_1, %c0_2], %1 {strides = array<i32>} : memref<8x324xf32, #tpu.memory_space<vmem>>, vector<8x18xf32>,
    %c0_3 = arith.constant 0 : index
    %c306 = arith.constant 306 : index
    %3 = vector.load %arg8[%c0_3, %c306] : memref<8x324xf32, #tpu.memory_space<vmem>>, vector<8x18xf32>
    tpu.vector_store %arg8[%c0_3, %c306], %1 {strides = array<i32>} : memref<8x324xf32, #tpu.memory_space<vmem>>, vector<8x18xf32>,
    %c0_4 = arith.constant 0 : index
    %c0_5 = arith.constant 0 : index
    %4 = vector.load %arg9[%c0_4, %c0_5] : memref<8x324xf32, #tpu.memory_space<vmem>>, vector<8x18xf32>
    tpu.vector_store %arg9[%c0_4, %c0_5], %1 {strides = array<i32>} : memref<8x324xf32, #tpu.memory_space<vmem>>, vector<8x18xf32>,
    %c0_6 = arith.constant 0 : index
    %c306_7 = arith.constant 306 : index
    %5 = vector.load %arg9[%c0_6, %c306_7] : memref<8x324xf32, #tpu.memory_space<vmem>>, vector<8x18xf32>
    tpu.vector_store %arg9[%c0_6, %c306_7], %1 {strides = array<i32>} : memref<8x324xf32, #tpu.memory_space<vmem>>, vector<8x18xf32>,
    %c0_8 = arith.constant 0 : index
    %c0_9 = arith.constant 0 : index
    %c0_10 = arith.constant 0 : index
    %6 = vector.load %arg2[%c0_8, %c0_9, %c0_10] : memref<4x8x72xf32, #tpu.memory_space<vmem>>, vector<1x8x72xf32>
    %7 = vector.shape_cast %6 : vector<1x8x72xf32> to vector<8x72xf32>
    %c0_11 = arith.constant 0 : index
    %c0_12 = arith.constant 0 : index
    %c0_13 = arith.constant 0 : index
    %8 = vector.load %arg1[%c0_11, %c0_12, %c0_13] : memref<1x8x324xf32, #tpu.memory_space<vmem>>, vector<1x8x288xf32>
    %9 = vector.shape_cast %8 : vector<1x8x288xf32> to vector<8x288xf32>
    %c1_i32 = arith.constant 1 : i32
    %10 = tpu.dynamic_rotate %9 by %c1_i32 dim 1 : vector<8x288xf32>, i32 -> vector<8x288xf32>
    %11 = vector.extract_strided_slice %7 {offsets = [0, 0], sizes = [8, 8], strides = [1, 1]} : vector<8x72xf32> to vector<8x8xf32>
    %cst_14 = arith.constant dense<0.000000e+00> : vector<8x288xf32>
    %12 = tpu.matmul %11, %10, %cst_14 {dimension_numbers = #tpu.dot_dimension_numbers<[1], [0], [0], [1], [0, 0, 1, 1], [], []>} : vector<8x8xf32>, vector<8x288xf32>, vector<8x288xf32> -> vector<8x288xf32>
    %13 = vector.extract_strided_slice %7 {offsets = [0, 8], sizes = [8, 8], strides = [1, 1]} : vector<8x72xf32> to vector<8x8xf32>
    %cst_15 = arith.constant dense<0.000000e+00> : vector<8x288xf32>
    %14 = tpu.matmul %13, %9, %cst_15 {dimension_numbers = #tpu.dot_dimension_numbers<[1], [0], [0], [1], [0, 0, 1, 1], [], []>} : vector<8x8xf32>, vector<8x288xf32>, vector<8x288xf32> -> vector<8x288xf32>
    %15 = arith.addf %12, %14 : vector<8x288xf32>
    %c287_i32 = arith.constant 287 : i32
    %16 = tpu.dynamic_rotate %9 by %c287_i32 dim 1 : vector<8x288xf32>, i32 -> vector<8x288xf32>
    %17 = vector.extract_strided_slice %7 {offsets = [0, 16], sizes = [8, 8], strides = [1, 1]} : vector<8x72xf32> to vector<8x8xf32>
    %cst_16 = arith.constant dense<0.000000e+00> : vector<8x288xf32>
    %18 = tpu.matmul %17, %16, %cst_16 {dimension_numbers = #tpu.dot_dimension_numbers<[1], [0], [0], [1], [0, 0, 1, 1], [], []>} : vector<8x8xf32>, vector<8x288xf32>, vector<8x288xf32> -> vector<8x288xf32>
    %19 = arith.addf %15, %18 : vector<8x288xf32>
    %c0_17 = arith.constant 0 : index
    %c0_18 = arith.constant 0 : index
    %c18 = arith.constant 18 : index
    %20 = vector.load %arg1[%c0_17, %c0_18, %c18] : memref<1x8x324xf32, #tpu.memory_space<vmem>>, vector<1x8x288xf32>
    %21 = vector.shape_cast %20 : vector<1x8x288xf32> to vector<8x288xf32>
    %c1_i32_19 = arith.constant 1 : i32
    %22 = tpu.dynamic_rotate %21 by %c1_i32_19 dim 1 : vector<8x288xf32>, i32 -> vector<8x288xf32>
    %23 = vector.extract_strided_slice %7 {offsets = [0, 24], sizes = [8, 8], strides = [1, 1]} : vector<8x72xf32> to vector<8x8xf32>
    %cst_20 = arith.constant dense<0.000000e+00> : vector<8x288xf32>
    %24 = tpu.matmul %23, %22, %cst_20 {dimension_numbers = #tpu.dot_dimension_numbers<[1], [0], [0], [1], [0, 0, 1, 1], [], []>} : vector<8x8xf32>, vector<8x288xf32>, vector<8x288xf32> -> vector<8x288xf32>
    %25 = arith.addf %19, %24 : vector<8x288xf32>
    %26 = vector.extract_strided_slice %7 {offsets = [0, 32], sizes = [8, 8], strides = [1, 1]} : vector<8x72xf32> to vector<8x8xf32>
    %cst_21 = arith.constant dense<0.000000e+00> : vector<8x288xf32>
    %27 = tpu.matmul %26, %21, %cst_21 {dimension_numbers = #tpu.dot_dimension_numbers<[1], [0], [0], [1], [0, 0, 1, 1], [], []>} : vector<8x8xf32>, vector<8x288xf32>, vector<8x288xf32> -> vector<8x288xf32>
    %28 = arith.addf %25, %27 : vector<8x288xf32>
    %c287_i32_22 = arith.constant 287 : i32
    %29 = tpu.dynamic_rotate %21 by %c287_i32_22 dim 1 : vector<8x288xf32>, i32 -> vector<8x288xf32>
    %30 = vector.extract_strided_slice %7 {offsets = [0, 40], sizes = [8, 8], strides = [1, 1]} : vector<8x72xf32> to vector<8x8xf32>
    %cst_23 = arith.constant dense<0.000000e+00> : vector<8x288xf32>
    %31 = tpu.matmul %30, %29, %cst_23 {dimension_numbers = #tpu.dot_dimension_numbers<[1], [0], [0], [1], [0, 0, 1, 1], [], []>} : vector<8x8xf32>, vector<8x288xf32>, vector<8x288xf32> -> vector<8x288xf32>
    %32 = arith.addf %28, %31 : vector<8x288xf32>
    %c0_24 = arith.constant 0 : index
    %c0_25 = arith.constant 0 : index
    %c36 = arith.constant 36 : index
    %33 = vector.load %arg1[%c0_24, %c0_25, %c36] : memref<1x8x324xf32, #tpu.memory_space<vmem>>, vector<1x8x288xf32>
    %34 = vector.shape_cast %33 : vector<1x8x288xf32> to vector<8x288xf32>
    %c1_i32_26 = arith.constant 1 : i32
    %35 = tpu.dynamic_rotate %34 by %c1_i32_26 dim 1 : vector<8x288xf32>, i32 -> vector<8x288xf32>
    %36 = vector.extract_strided_slice %7 {offsets = [0, 48], sizes = [8, 8], strides = [1, 1]} : vector<8x72xf32> to vector<8x8xf32>
    %cst_27 = arith.constant dense<0.000000e+00> : vector<8x288xf32>
    %37 = tpu.matmul %36, %35, %cst_27 {dimension_numbers = #tpu.dot_dimension_numbers<[1], [0], [0], [1], [0, 0, 1, 1], [], []>} : vector<8x8xf32>, vector<8x288xf32>, vector<8x288xf32> -> vector<8x288xf32>
    %38 = arith.addf %32, %37 : vector<8x288xf32>
    %39 = vector.extract_strided_slice %7 {offsets = [0, 56], sizes = [8, 8], strides = [1, 1]} : vector<8x72xf32> to vector<8x8xf32>
    %cst_28 = arith.constant dense<0.000000e+00> : vector<8x288xf32>
    %40 = tpu.matmul %39, %34, %cst_28 {dimension_numbers = #tpu.dot_dimension_numbers<[1], [0], [0], [1], [0, 0, 1, 1], [], []>} : vector<8x8xf32>, vector<8x288xf32>, vector<8x288xf32> -> vector<8x288xf32>
    %41 = arith.addf %38, %40 : vector<8x288xf32>
    %c287_i32_29 = arith.constant 287 : i32
    %42 = tpu.dynamic_rotate %34 by %c287_i32_29 dim 1 : vector<8x288xf32>, i32 -> vector<8x288xf32>
    %43 = vector.extract_strided_slice %7 {offsets = [0, 64], sizes = [8, 8], strides = [1, 1]} : vector<8x72xf32> to vector<8x8xf32>
    %cst_30 = arith.constant dense<0.000000e+00> : vector<8x288xf32>
    %44 = tpu.matmul %43, %42, %cst_30 {dimension_numbers = #tpu.dot_dimension_numbers<[1], [0], [0], [1], [0, 0, 1, 1], [], []>} : vector<8x8xf32>, vector<8x288xf32>, vector<8x288xf32> -> vector<8x288xf32>
    %45 = arith.addf %41, %44 : vector<8x288xf32>
    %c0_31 = arith.constant 0 : index
    %c0_32 = arith.constant 0 : index
    %c0_33 = arith.constant 0 : index
    %46 = vector.load %arg3[%c0_31, %c0_32, %c0_33] : memref<4x8x1xf32, #tpu.memory_space<vmem>>, vector<1x8x1xf32>
    %47 = vector.shape_cast %46 : vector<1x8x1xf32> to vector<8x1xf32>
    %48 = vector.broadcast %47 : vector<8x1xf32> to vector<8x288xf32>
    %49 = arith.addf %45, %48 : vector<8x288xf32>
    %cst_34 = arith.constant 0.000000e+00 : f32
    %50 = vector.broadcast %cst_34 : f32 to vector<8x288xf32>
    %51 = arith.maximumf %49, %50 : vector<8x288xf32>
    %52 = vector.broadcast %0 : vector<1x288xf32> to vector<8x288xf32>
    %53 = arith.mulf %51, %52 : vector<8x288xf32>
    %c0_35 = arith.constant 0 : index
    %c18_36 = arith.constant 18 : index
    %54 = vector.load %arg8[%c0_35, %c18_36] : memref<8x324xf32, #tpu.memory_space<vmem>>, vector<8x288xf32>
    tpu.vector_store %arg8[%c0_35, %c18_36], %53 {strides = array<i32>} : memref<8x324xf32, #tpu.memory_space<vmem>>, vector<8x288xf32>,
    %c1 = arith.constant 1 : index
    %c0_37 = arith.constant 0 : index
    %c0_38 = arith.constant 0 : index
    %55 = vector.load %arg2[%c1, %c0_37, %c0_38] : memref<4x8x72xf32, #tpu.memory_space<vmem>>, vector<1x8x72xf32>
    %56 = vector.shape_cast %55 : vector<1x8x72xf32> to vector<8x72xf32>
    %c0_39 = arith.constant 0 : index
    %c0_40 = arith.constant 0 : index
    %57 = vector.load %arg8[%c0_39, %c0_40] : memref<8x324xf32, #tpu.memory_space<vmem>>, vector<8x288xf32>
    %c1_i32_41 = arith.constant 1 : i32
    %58 = tpu.dynamic_rotate %57 by %c1_i32_41 dim 1 : vector<8x288xf32>, i32 -> vector<8x288xf32>
    %59 = vector.extract_strided_slice %56 {offsets = [0, 0], sizes = [8, 8], strides = [1, 1]} : vector<8x72xf32> to vector<8x8xf32>
    %cst_42 = arith.constant dense<0.000000e+00> : vector<8x288xf32>
    %60 = tpu.matmul %59, %58, %cst_42 {dimension_numbers = #tpu.dot_dimension_numbers<[1], [0], [0], [1], [0, 0, 1, 1], [], []>} : vector<8x8xf32>, vector<8x288xf32>, vector<8x288xf32> -> vector<8x288xf32>
    %61 = vector.extract_strided_slice %56 {offsets = [0, 8], sizes = [8, 8], strides = [1, 1]} : vector<8x72xf32> to vector<8x8xf32>
    %cst_43 = arith.constant dense<0.000000e+00> : vector<8x288xf32>
    %62 = tpu.matmul %61, %57, %cst_43 {dimension_numbers = #tpu.dot_dimension_numbers<[1], [0], [0], [1], [0, 0, 1, 1], [], []>} : vector<8x8xf32>, vector<8x288xf32>, vector<8x288xf32> -> vector<8x288xf32>
    %63 = arith.addf %60, %62 : vector<8x288xf32>
    %c287_i32_44 = arith.constant 287 : i32
    %64 = tpu.dynamic_rotate %57 by %c287_i32_44 dim 1 : vector<8x288xf32>, i32 -> vector<8x288xf32>
    %65 = vector.extract_strided_slice %56 {offsets = [0, 16], sizes = [8, 8], strides = [1, 1]} : vector<8x72xf32> to vector<8x8xf32>
    %cst_45 = arith.constant dense<0.000000e+00> : vector<8x288xf32>
    %66 = tpu.matmul %65, %64, %cst_45 {dimension_numbers = #tpu.dot_dimension_numbers<[1], [0], [0], [1], [0, 0, 1, 1], [], []>} : vector<8x8xf32>, vector<8x288xf32>, vector<8x288xf32> -> vector<8x288xf32>
    %67 = arith.addf %63, %66 : vector<8x288xf32>
    %c0_46 = arith.constant 0 : index
    %c18_47 = arith.constant 18 : index
    %68 = vector.load %arg8[%c0_46, %c18_47] : memref<8x324xf32, #tpu.memory_space<vmem>>, vector<8x288xf32>
    %c1_i32_48 = arith.constant 1 : i32
    %69 = tpu.dynamic_rotate %68 by %c1_i32_48 dim 1 : vector<8x288xf32>, i32 -> vector<8x288xf32>
    %70 = vector.extract_strided_slice %56 {offsets = [0, 24], sizes = [8, 8], strides = [1, 1]} : vector<8x72xf32> to vector<8x8xf32>
    %cst_49 = arith.constant dense<0.000000e+00> : vector<8x288xf32>
    %71 = tpu.matmul %70, %69, %cst_49 {dimension_numbers = #tpu.dot_dimension_numbers<[1], [0], [0], [1], [0, 0, 1, 1], [], []>} : vector<8x8xf32>, vector<8x288xf32>, vector<8x288xf32> -> vector<8x288xf32>
    %72 = arith.addf %67, %71 : vector<8x288xf32>
    %73 = vector.extract_strided_slice %56 {offsets = [0, 32], sizes = [8, 8], strides = [1, 1]} : vector<8x72xf32> to vector<8x8xf32>
    %cst_50 = arith.constant dense<0.000000e+00> : vector<8x288xf32>
    %74 = tpu.matmul %73, %68, %cst_50 {dimension_numbers = #tpu.dot_dimension_numbers<[1], [0], [0], [1], [0, 0, 1, 1], [], []>} : vector<8x8xf32>, vector<8x288xf32>, vector<8x288xf32> -> vector<8x288xf32>
    %75 = arith.addf %72, %74 : vector<8x288xf32>
    %c287_i32_51 = arith.constant 287 : i32
    %76 = tpu.dynamic_rotate %68 by %c287_i32_51 dim 1 : vector<8x288xf32>, i32 -> vector<8x288xf32>
    %77 = vector.extract_strided_slice %56 {offsets = [0, 40], sizes = [8, 8], strides = [1, 1]} : vector<8x72xf32> to vector<8x8xf32>
    %cst_52 = arith.constant dense<0.000000e+00> : vector<8x288xf32>
    %78 = tpu.matmul %77, %76, %cst_52 {dimension_numbers = #tpu.dot_dimension_numbers<[1], [0], [0], [1], [0, 0, 1, 1], [], []>} : vector<8x8xf32>, vector<8x288xf32>, vector<8x288xf32> -> vector<8x288xf32>
    %79 = arith.addf %75, %78 : vector<8x288xf32>
    %c0_53 = arith.constant 0 : index
    %c36_54 = arith.constant 36 : index
    %80 = vector.load %arg8[%c0_53, %c36_54] : memref<8x324xf32, #tpu.memory_space<vmem>>, vector<8x288xf32>
    %c1_i32_55 = arith.constant 1 : i32
    %81 = tpu.dynamic_rotate %80 by %c1_i32_55 dim 1 : vector<8x288xf32>, i32 -> vector<8x288xf32>
    %82 = vector.extract_strided_slice %56 {offsets = [0, 48], sizes = [8, 8], strides = [1, 1]} : vector<8x72xf32> to vector<8x8xf32>
    %cst_56 = arith.constant dense<0.000000e+00> : vector<8x288xf32>
    %83 = tpu.matmul %82, %81, %cst_56 {dimension_numbers = #tpu.dot_dimension_numbers<[1], [0], [0], [1], [0, 0, 1, 1], [], []>} : vector<8x8xf32>, vector<8x288xf32>, vector<8x288xf32> -> vector<8x288xf32>
    %84 = arith.addf %79, %83 : vector<8x288xf32>
    %85 = vector.extract_strided_slice %56 {offsets = [0, 56], sizes = [8, 8], strides = [1, 1]} : vector<8x72xf32> to vector<8x8xf32>
    %cst_57 = arith.constant dense<0.000000e+00> : vector<8x288xf32>
    %86 = tpu.matmul %85, %80, %cst_57 {dimension_numbers = #tpu.dot_dimension_numbers<[1], [0], [0], [1], [0, 0, 1, 1], [], []>} : vector<8x8xf32>, vector<8x288xf32>, vector<8x288xf32> -> vector<8x288xf32>
    %87 = arith.addf %84, %86 : vector<8x288xf32>
    %c287_i32_58 = arith.constant 287 : i32
    %88 = tpu.dynamic_rotate %80 by %c287_i32_58 dim 1 : vector<8x288xf32>, i32 -> vector<8x288xf32>
    %89 = vector.extract_strided_slice %56 {offsets = [0, 64], sizes = [8, 8], strides = [1, 1]} : vector<8x72xf32> to vector<8x8xf32>
    %cst_59 = arith.constant dense<0.000000e+00> : vector<8x288xf32>
    %90 = tpu.matmul %89, %88, %cst_59 {dimension_numbers = #tpu.dot_dimension_numbers<[1], [0], [0], [1], [0, 0, 1, 1], [], []>} : vector<8x8xf32>, vector<8x288xf32>, vector<8x288xf32> -> vector<8x288xf32>
    %91 = arith.addf %87, %90 : vector<8x288xf32>
    %c1_60 = arith.constant 1 : index
    %c0_61 = arith.constant 0 : index
    %c0_62 = arith.constant 0 : index
    %92 = vector.load %arg3[%c1_60, %c0_61, %c0_62] : memref<4x8x1xf32, #tpu.memory_space<vmem>>, vector<1x8x1xf32>
    %93 = vector.shape_cast %92 : vector<1x8x1xf32> to vector<8x1xf32>
    %94 = vector.broadcast %93 : vector<8x1xf32> to vector<8x288xf32>
    %95 = arith.addf %91, %94 : vector<8x288xf32>
    %cst_63 = arith.constant 0.000000e+00 : f32
    %96 = vector.broadcast %cst_63 : f32 to vector<8x288xf32>
    %97 = arith.maximumf %95, %96 : vector<8x288xf32>
    %98 = vector.broadcast %0 : vector<1x288xf32> to vector<8x288xf32>
    %99 = arith.mulf %97, %98 : vector<8x288xf32>
    %c0_64 = arith.constant 0 : index
    %c18_65 = arith.constant 18 : index
    %100 = vector.load %arg9[%c0_64, %c18_65] : memref<8x324xf32, #tpu.memory_space<vmem>>, vector<8x288xf32>
    tpu.vector_store %arg9[%c0_64, %c18_65], %99 {strides = array<i32>} : memref<8x324xf32, #tpu.memory_space<vmem>>, vector<8x288xf32>,
    %c2 = arith.constant 2 : index
    %c0_66 = arith.constant 0 : index
    %c0_67 = arith.constant 0 : index
    %101 = vector.load %arg2[%c2, %c0_66, %c0_67] : memref<4x8x72xf32, #tpu.memory_space<vmem>>, vector<1x8x72xf32>
    %102 = vector.shape_cast %101 : vector<1x8x72xf32> to vector<8x72xf32>
    %c0_68 = arith.constant 0 : index
    %c0_69 = arith.constant 0 : index
    %103 = vector.load %arg9[%c0_68, %c0_69] : memref<8x324xf32, #tpu.memory_space<vmem>>, vector<8x288xf32>
    %c1_i32_70 = arith.constant 1 : i32
    %104 = tpu.dynamic_rotate %103 by %c1_i32_70 dim 1 : vector<8x288xf32>, i32 -> vector<8x288xf32>
    %105 = vector.extract_strided_slice %102 {offsets = [0, 0], sizes = [8, 8], strides = [1, 1]} : vector<8x72xf32> to vector<8x8xf32>
    %cst_71 = arith.constant dense<0.000000e+00> : vector<8x288xf32>
    %106 = tpu.matmul %105, %104, %cst_71 {dimension_numbers = #tpu.dot_dimension_numbers<[1], [0], [0], [1], [0, 0, 1, 1], [], []>} : vector<8x8xf32>, vector<8x288xf32>, vector<8x288xf32> -> vector<8x288xf32>
    %107 = vector.extract_strided_slice %102 {offsets = [0, 8], sizes = [8, 8], strides = [1, 1]} : vector<8x72xf32> to vector<8x8xf32>
    %cst_72 = arith.constant dense<0.000000e+00> : vector<8x288xf32>
    %108 = tpu.matmul %107, %103, %cst_72 {dimension_numbers = #tpu.dot_dimension_numbers<[1], [0], [0], [1], [0, 0, 1, 1], [], []>} : vector<8x8xf32>, vector<8x288xf32>, vector<8x288xf32> -> vector<8x288xf32>
    %109 = arith.addf %106, %108 : vector<8x288xf32>
    %c287_i32_73 = arith.constant 287 : i32
    %110 = tpu.dynamic_rotate %103 by %c287_i32_73 dim 1 : vector<8x288xf32>, i32 -> vector<8x288xf32>
    %111 = vector.extract_strided_slice %102 {offsets = [0, 16], sizes = [8, 8], strides = [1, 1]} : vector<8x72xf32> to vector<8x8xf32>
    %cst_74 = arith.constant dense<0.000000e+00> : vector<8x288xf32>
    %112 = tpu.matmul %111, %110, %cst_74 {dimension_numbers = #tpu.dot_dimension_numbers<[1], [0], [0], [1], [0, 0, 1, 1], [], []>} : vector<8x8xf32>, vector<8x288xf32>, vector<8x288xf32> -> vector<8x288xf32>
    %113 = arith.addf %109, %112 : vector<8x288xf32>
    %c0_75 = arith.constant 0 : index
    %c18_76 = arith.constant 18 : index
    %114 = vector.load %arg9[%c0_75, %c18_76] : memref<8x324xf32, #tpu.memory_space<vmem>>, vector<8x288xf32>
    %c1_i32_77 = arith.constant 1 : i32
    %115 = tpu.dynamic_rotate %114 by %c1_i32_77 dim 1 : vector<8x288xf32>, i32 -> vector<8x288xf32>
    %116 = vector.extract_strided_slice %102 {offsets = [0, 24], sizes = [8, 8], strides = [1, 1]} : vector<8x72xf32> to vector<8x8xf32>
    %cst_78 = arith.constant dense<0.000000e+00> : vector<8x288xf32>
    %117 = tpu.matmul %116, %115, %cst_78 {dimension_numbers = #tpu.dot_dimension_numbers<[1], [0], [0], [1], [0, 0, 1, 1], [], []>} : vector<8x8xf32>, vector<8x288xf32>, vector<8x288xf32> -> vector<8x288xf32>
    %118 = arith.addf %113, %117 : vector<8x288xf32>
    %119 = vector.extract_strided_slice %102 {offsets = [0, 32], sizes = [8, 8], strides = [1, 1]} : vector<8x72xf32> to vector<8x8xf32>
    %cst_79 = arith.constant dense<0.000000e+00> : vector<8x288xf32>
    %120 = tpu.matmul %119, %114, %cst_79 {dimension_numbers = #tpu.dot_dimension_numbers<[1], [0], [0], [1], [0, 0, 1, 1], [], []>} : vector<8x8xf32>, vector<8x288xf32>, vector<8x288xf32> -> vector<8x288xf32>
    %121 = arith.addf %118, %120 : vector<8x288xf32>
    %c287_i32_80 = arith.constant 287 : i32
    %122 = tpu.dynamic_rotate %114 by %c287_i32_80 dim 1 : vector<8x288xf32>, i32 -> vector<8x288xf32>
    %123 = vector.extract_strided_slice %102 {offsets = [0, 40], sizes = [8, 8], strides = [1, 1]} : vector<8x72xf32> to vector<8x8xf32>
    %cst_81 = arith.constant dense<0.000000e+00> : vector<8x288xf32>
    %124 = tpu.matmul %123, %122, %cst_81 {dimension_numbers = #tpu.dot_dimension_numbers<[1], [0], [0], [1], [0, 0, 1, 1], [], []>} : vector<8x8xf32>, vector<8x288xf32>, vector<8x288xf32> -> vector<8x288xf32>
    %125 = arith.addf %121, %124 : vector<8x288xf32>
    %c0_82 = arith.constant 0 : index
    %c36_83 = arith.constant 36 : index
    %126 = vector.load %arg9[%c0_82, %c36_83] : memref<8x324xf32, #tpu.memory_space<vmem>>, vector<8x288xf32>
    %c1_i32_84 = arith.constant 1 : i32
    %127 = tpu.dynamic_rotate %126 by %c1_i32_84 dim 1 : vector<8x288xf32>, i32 -> vector<8x288xf32>
    %128 = vector.extract_strided_slice %102 {offsets = [0, 48], sizes = [8, 8], strides = [1, 1]} : vector<8x72xf32> to vector<8x8xf32>
    %cst_85 = arith.constant dense<0.000000e+00> : vector<8x288xf32>
    %129 = tpu.matmul %128, %127, %cst_85 {dimension_numbers = #tpu.dot_dimension_numbers<[1], [0], [0], [1], [0, 0, 1, 1], [], []>} : vector<8x8xf32>, vector<8x288xf32>, vector<8x288xf32> -> vector<8x288xf32>
    %130 = arith.addf %125, %129 : vector<8x288xf32>
    %131 = vector.extract_strided_slice %102 {offsets = [0, 56], sizes = [8, 8], strides = [1, 1]} : vector<8x72xf32> to vector<8x8xf32>
    %cst_86 = arith.constant dense<0.000000e+00> : vector<8x288xf32>
    %132 = tpu.matmul %131, %126, %cst_86 {dimension_numbers = #tpu.dot_dimension_numbers<[1], [0], [0], [1], [0, 0, 1, 1], [], []>} : vector<8x8xf32>, vector<8x288xf32>, vector<8x288xf32> -> vector<8x288xf32>
    %133 = arith.addf %130, %132 : vector<8x288xf32>
    %c287_i32_87 = arith.constant 287 : i32
    %134 = tpu.dynamic_rotate %126 by %c287_i32_87 dim 1 : vector<8x288xf32>, i32 -> vector<8x288xf32>
    %135 = vector.extract_strided_slice %102 {offsets = [0, 64], sizes = [8, 8], strides = [1, 1]} : vector<8x72xf32> to vector<8x8xf32>
    %cst_88 = arith.constant dense<0.000000e+00> : vector<8x288xf32>
    %136 = tpu.matmul %135, %134, %cst_88 {dimension_numbers = #tpu.dot_dimension_numbers<[1], [0], [0], [1], [0, 0, 1, 1], [], []>} : vector<8x8xf32>, vector<8x288xf32>, vector<8x288xf32> -> vector<8x288xf32>
    %137 = arith.addf %133, %136 : vector<8x288xf32>
    %c2_89 = arith.constant 2 : index
    %c0_90 = arith.constant 0 : index
    %c0_91 = arith.constant 0 : index
    %138 = vector.load %arg3[%c2_89, %c0_90, %c0_91] : memref<4x8x1xf32, #tpu.memory_space<vmem>>, vector<1x8x1xf32>
    %139 = vector.shape_cast %138 : vector<1x8x1xf32> to vector<8x1xf32>
    %140 = vector.broadcast %139 : vector<8x1xf32> to vector<8x288xf32>
    %141 = arith.addf %137, %140 : vector<8x288xf32>
    %cst_92 = arith.constant 0.000000e+00 : f32
    %142 = vector.broadcast %cst_92 : f32 to vector<8x288xf32>
    %143 = arith.maximumf %141, %142 : vector<8x288xf32>
    %144 = vector.broadcast %0 : vector<1x288xf32> to vector<8x288xf32>
    %145 = arith.mulf %143, %144 : vector<8x288xf32>
    %c0_93 = arith.constant 0 : index
    %c18_94 = arith.constant 18 : index
    %146 = vector.load %arg8[%c0_93, %c18_94] : memref<8x324xf32, #tpu.memory_space<vmem>>, vector<8x288xf32>
    tpu.vector_store %arg8[%c0_93, %c18_94], %145 {strides = array<i32>} : memref<8x324xf32, #tpu.memory_space<vmem>>, vector<8x288xf32>,
    %c3 = arith.constant 3 : index
    %c0_95 = arith.constant 0 : index
    %c0_96 = arith.constant 0 : index
    %147 = vector.load %arg2[%c3, %c0_95, %c0_96] : memref<4x8x72xf32, #tpu.memory_space<vmem>>, vector<1x8x72xf32>
    %148 = vector.shape_cast %147 : vector<1x8x72xf32> to vector<8x72xf32>
    %c0_97 = arith.constant 0 : index
    %c0_98 = arith.constant 0 : index
    %149 = vector.load %arg8[%c0_97, %c0_98] : memref<8x324xf32, #tpu.memory_space<vmem>>, vector<8x288xf32>
    %c1_i32_99 = arith.constant 1 : i32
    %150 = tpu.dynamic_rotate %149 by %c1_i32_99 dim 1 : vector<8x288xf32>, i32 -> vector<8x288xf32>
    %151 = vector.extract_strided_slice %148 {offsets = [0, 0], sizes = [8, 8], strides = [1, 1]} : vector<8x72xf32> to vector<8x8xf32>
    %cst_100 = arith.constant dense<0.000000e+00> : vector<8x288xf32>
    %152 = tpu.matmul %151, %150, %cst_100 {dimension_numbers = #tpu.dot_dimension_numbers<[1], [0], [0], [1], [0, 0, 1, 1], [], []>} : vector<8x8xf32>, vector<8x288xf32>, vector<8x288xf32> -> vector<8x288xf32>
    %153 = vector.extract_strided_slice %148 {offsets = [0, 8], sizes = [8, 8], strides = [1, 1]} : vector<8x72xf32> to vector<8x8xf32>
    %cst_101 = arith.constant dense<0.000000e+00> : vector<8x288xf32>
    %154 = tpu.matmul %153, %149, %cst_101 {dimension_numbers = #tpu.dot_dimension_numbers<[1], [0], [0], [1], [0, 0, 1, 1], [], []>} : vector<8x8xf32>, vector<8x288xf32>, vector<8x288xf32> -> vector<8x288xf32>
    %155 = arith.addf %152, %154 : vector<8x288xf32>
    %c287_i32_102 = arith.constant 287 : i32
    %156 = tpu.dynamic_rotate %149 by %c287_i32_102 dim 1 : vector<8x288xf32>, i32 -> vector<8x288xf32>
    %157 = vector.extract_strided_slice %148 {offsets = [0, 16], sizes = [8, 8], strides = [1, 1]} : vector<8x72xf32> to vector<8x8xf32>
    %cst_103 = arith.constant dense<0.000000e+00> : vector<8x288xf32>
    %158 = tpu.matmul %157, %156, %cst_103 {dimension_numbers = #tpu.dot_dimension_numbers<[1], [0], [0], [1], [0, 0, 1, 1], [], []>} : vector<8x8xf32>, vector<8x288xf32>, vector<8x288xf32> -> vector<8x288xf32>
    %159 = arith.addf %155, %158 : vector<8x288xf32>
    %c0_104 = arith.constant 0 : index
    %c18_105 = arith.constant 18 : index
    %160 = vector.load %arg8[%c0_104, %c18_105] : memref<8x324xf32, #tpu.memory_space<vmem>>, vector<8x288xf32>
    %c1_i32_106 = arith.constant 1 : i32
    %161 = tpu.dynamic_rotate %160 by %c1_i32_106 dim 1 : vector<8x288xf32>, i32 -> vector<8x288xf32>
    %162 = vector.extract_strided_slice %148 {offsets = [0, 24], sizes = [8, 8], strides = [1, 1]} : vector<8x72xf32> to vector<8x8xf32>
    %cst_107 = arith.constant dense<0.000000e+00> : vector<8x288xf32>
    %163 = tpu.matmul %162, %161, %cst_107 {dimension_numbers = #tpu.dot_dimension_numbers<[1], [0], [0], [1], [0, 0, 1, 1], [], []>} : vector<8x8xf32>, vector<8x288xf32>, vector<8x288xf32> -> vector<8x288xf32>
    %164 = arith.addf %159, %163 : vector<8x288xf32>
    %165 = vector.extract_strided_slice %148 {offsets = [0, 32], sizes = [8, 8], strides = [1, 1]} : vector<8x72xf32> to vector<8x8xf32>
    %cst_108 = arith.constant dense<0.000000e+00> : vector<8x288xf32>
    %166 = tpu.matmul %165, %160, %cst_108 {dimension_numbers = #tpu.dot_dimension_numbers<[1], [0], [0], [1], [0, 0, 1, 1], [], []>} : vector<8x8xf32>, vector<8x288xf32>, vector<8x288xf32> -> vector<8x288xf32>
    %167 = arith.addf %164, %166 : vector<8x288xf32>
    %c287_i32_109 = arith.constant 287 : i32
    %168 = tpu.dynamic_rotate %160 by %c287_i32_109 dim 1 : vector<8x288xf32>, i32 -> vector<8x288xf32>
    %169 = vector.extract_strided_slice %148 {offsets = [0, 40], sizes = [8, 8], strides = [1, 1]} : vector<8x72xf32> to vector<8x8xf32>
    %cst_110 = arith.constant dense<0.000000e+00> : vector<8x288xf32>
    %170 = tpu.matmul %169, %168, %cst_110 {dimension_numbers = #tpu.dot_dimension_numbers<[1], [0], [0], [1], [0, 0, 1, 1], [], []>} : vector<8x8xf32>, vector<8x288xf32>, vector<8x288xf32> -> vector<8x288xf32>
    %171 = arith.addf %167, %170 : vector<8x288xf32>
    %c0_111 = arith.constant 0 : index
    %c36_112 = arith.constant 36 : index
    %172 = vector.load %arg8[%c0_111, %c36_112] : memref<8x324xf32, #tpu.memory_space<vmem>>, vector<8x288xf32>
    %c1_i32_113 = arith.constant 1 : i32
    %173 = tpu.dynamic_rotate %172 by %c1_i32_113 dim 1 : vector<8x288xf32>, i32 -> vector<8x288xf32>
    %174 = vector.extract_strided_slice %148 {offsets = [0, 48], sizes = [8, 8], strides = [1, 1]} : vector<8x72xf32> to vector<8x8xf32>
    %cst_114 = arith.constant dense<0.000000e+00> : vector<8x288xf32>
    %175 = tpu.matmul %174, %173, %cst_114 {dimension_numbers = #tpu.dot_dimension_numbers<[1], [0], [0], [1], [0, 0, 1, 1], [], []>} : vector<8x8xf32>, vector<8x288xf32>, vector<8x288xf32> -> vector<8x288xf32>
    %176 = arith.addf %171, %175 : vector<8x288xf32>
    %177 = vector.extract_strided_slice %148 {offsets = [0, 56], sizes = [8, 8], strides = [1, 1]} : vector<8x72xf32> to vector<8x8xf32>
    %cst_115 = arith.constant dense<0.000000e+00> : vector<8x288xf32>
    %178 = tpu.matmul %177, %172, %cst_115 {dimension_numbers = #tpu.dot_dimension_numbers<[1], [0], [0], [1], [0, 0, 1, 1], [], []>} : vector<8x8xf32>, vector<8x288xf32>, vector<8x288xf32> -> vector<8x288xf32>
    %179 = arith.addf %176, %178 : vector<8x288xf32>
    %c287_i32_116 = arith.constant 287 : i32
    %180 = tpu.dynamic_rotate %172 by %c287_i32_116 dim 1 : vector<8x288xf32>, i32 -> vector<8x288xf32>
    %181 = vector.extract_strided_slice %148 {offsets = [0, 64], sizes = [8, 8], strides = [1, 1]} : vector<8x72xf32> to vector<8x8xf32>
    %cst_117 = arith.constant dense<0.000000e+00> : vector<8x288xf32>
    %182 = tpu.matmul %181, %180, %cst_117 {dimension_numbers = #tpu.dot_dimension_numbers<[1], [0], [0], [1], [0, 0, 1, 1], [], []>} : vector<8x8xf32>, vector<8x288xf32>, vector<8x288xf32> -> vector<8x288xf32>
    %183 = arith.addf %179, %182 : vector<8x288xf32>
    %c3_118 = arith.constant 3 : index
    %c0_119 = arith.constant 0 : index
    %c0_120 = arith.constant 0 : index
    %184 = vector.load %arg3[%c3_118, %c0_119, %c0_120] : memref<4x8x1xf32, #tpu.memory_space<vmem>>, vector<1x8x1xf32>
    %185 = vector.shape_cast %184 : vector<1x8x1xf32> to vector<8x1xf32>
    %186 = vector.broadcast %185 : vector<8x1xf32> to vector<8x288xf32>
    %187 = arith.addf %183, %186 : vector<8x288xf32>
    %cst_121 = arith.constant 0.000000e+00 : f32
    %188 = vector.broadcast %cst_121 : f32 to vector<8x288xf32>
    %189 = arith.maximumf %187, %188 : vector<8x288xf32>
    %c0_122 = arith.constant 0 : index
    %c0_123 = arith.constant 0 : index
    %190 = vector.load %arg4[%c0_122, %c0_123] : memref<19x8xf32, #tpu.memory_space<vmem>>, vector<19x8xf32>
    %cst_124 = arith.constant dense<0.000000e+00> : vector<19x288xf32>
    %191 = tpu.matmul %190, %189, %cst_124 {dimension_numbers = #tpu.dot_dimension_numbers<[1], [0], [0], [1], [0, 0, 1, 1], [], []>} : vector<19x8xf32>, vector<8x288xf32>, vector<19x288xf32> -> vector<19x288xf32>
    %c0_125 = arith.constant 0 : index
    %c0_126 = arith.constant 0 : index
    %192 = vector.load %arg5[%c0_125, %c0_126] : memref<19x1xf32, #tpu.memory_space<vmem>>, vector<19x1xf32>
    %193 = vector.broadcast %192 : vector<19x1xf32> to vector<19x288xf32>
    %194 = arith.addf %191, %193 : vector<19x288xf32>
    %c0_127 = arith.constant 0 : index
    %c0_128 = arith.constant 0 : index
    %c0_129 = arith.constant 0 : index
    %195 = vector.load %arg7[%c0_127, %c0_128, %c0_129] : memref<1x19x288xf32, #tpu.memory_space<vmem>>, vector<1x19x288xf32>
    %196 = vector.shape_cast %195 : vector<1x19x288xf32> to vector<19x288xf32>
    %197 = vector.shape_cast %194 : vector<19x288xf32> to vector<1x19x288xf32>
    tpu.vector_store %arg7[%c0_127, %c0_128, %c0_129], %197 {strides = array<i32>} : memref<1x19x288xf32, #tpu.memory_space<vmem>>, vector<1x19x288xf32>,
    return
  }
  func.func @transform_0(%arg0: i32) -> (i32, i32, i32) {
    %c0_i32 = arith.constant 0 : i32
    %c0_i32_0 = arith.constant 0 : i32
    %c0_i32_1 = arith.constant 0 : i32
    return %arg0, %c0_i32, %c0_i32_0 : i32, i32, i32
  }
  func.func @transform_1(%arg0: i32) -> (i32, i32, i32) {
    %c0_i32 = arith.constant 0 : i32
    %c0_i32_0 = arith.constant 0 : i32
    %c0_i32_1 = arith.constant 0 : i32
    %c0_i32_2 = arith.constant 0 : i32
    return %c0_i32, %c0_i32_0, %c0_i32_1 : i32, i32, i32
  }
  func.func @transform_2(%arg0: i32) -> (i32, i32, i32) {
    %c0_i32 = arith.constant 0 : i32
    %c0_i32_0 = arith.constant 0 : i32
    %c0_i32_1 = arith.constant 0 : i32
    %c0_i32_2 = arith.constant 0 : i32
    return %c0_i32, %c0_i32_0, %c0_i32_1 : i32, i32, i32
  }
  func.func @transform_3(%arg0: i32) -> (i32, i32) {
    %c0_i32 = arith.constant 0 : i32
    %c0_i32_0 = arith.constant 0 : i32
    %c0_i32_1 = arith.constant 0 : i32
    return %c0_i32, %c0_i32_0 : i32, i32
  }
  func.func @transform_4(%arg0: i32) -> (i32, i32) {
    %c0_i32 = arith.constant 0 : i32
    %c0_i32_0 = arith.constant 0 : i32
    %c0_i32_1 = arith.constant 0 : i32
    return %c0_i32, %c0_i32_0 : i32, i32
  }
  func.func @transform_5(%arg0: i32) -> (i32, i32) {
    %c0_i32 = arith.constant 0 : i32
    %c0_i32_0 = arith.constant 0 : i32
    %c0_i32_1 = arith.constant 0 : i32
    return %c0_i32, %c0_i32_0 : i32, i32
  }
  func.func @transform_6(%arg0: i32) -> (i32, i32, i32) {
    %c0_i32 = arith.constant 0 : i32
    %c0_i32_0 = arith.constant 0 : i32
    %c0_i32_1 = arith.constant 0 : i32
    return %arg0, %c0_i32, %c0_i32_0 : i32, i32, i32
  }
}

</mosaic_0001>

<llo_original>
// kernel: tpu_custom_call.1
$region0: #{tpu_custom_call.1}
  #allocation0 [shape = 'u32[]', space=smem, size = 0x4, offset = 0x4, fixed_abs, tag = 'smem constant byte address 0x4 - core index']
  #allocation1 [shape = 'u32[144,128]{1,0:T(1,128)}', space=vmem, size = 0x12000, scoped, tag = 'internal scratch']
  #allocation2 [shape = 'f32[8,324]{1,0:T(8,128)}', space=vmem, size = 0x3000, scoped, tag = 'scratch operand']
  #allocation3 [shape = 'f32[8,324]{1,0:T(8,128)}', space=vmem, size = 0x3000, scoped, tag = 'scratch operand']
  %s0 = inlined_call_operand.vmem [shape: f32[2,8,324], index: 0, kind: input, shape index: {}]
  %s1 = inlined_call_operand.vmem [shape: f32[4,8,72], index: 1, kind: input, shape index: {}]
  %s2 = inlined_call_operand.vmem [shape: f32[4,8,1], index: 2, kind: input, shape index: {}]
  %s3 = inlined_call_operand.vmem [shape: f32[19,8], index: 3, kind: input, shape index: {}]
  %s4 = inlined_call_operand.vmem [shape: f32[19,1], index: 4, kind: input, shape index: {}]
  %s5 = inlined_call_operand.vmem [shape: f32[1,288], index: 5, kind: input, shape index: {}]
  %s6 = inlined_call_operand.vmem [shape: f32[2,19,288], index: 6, kind: output, shape index: {}]
  %s7 = sld [smem:[#allocation0]]
  $region57: #{tpu_custom_call.1} parent=0
    _
  %s9 = ssub.s32 1, %s7
  %s10 = scalar_select 0, %s9, %s7
  loop: start=0, step=1, limit=4
  $region2: #{tpu_custom_call.1} parent=0 // loop_pre_header
    _
  $region3: #{tpu_custom_call.1} parent=0 // loop_header
    %s12 = sphi 0, %s16
    %p13 = scmp.ge.s32.totalorder %s12, 4
    %s22 = sphi 0, %s24
    %s25 = sphi 0, %s22
    %s26 = sphi 0, %s25
    %s42 = sphi 0, %s26
    %s46 = sphi 0, %s46
    %s48 = sphi 0, %s46
    %s49 = sphi 0, %s48
    %s63 = sphi 0, %s49
    %s67 = sphi 0, %s67
    %s69 = sphi 0, %s67
    %s70 = sphi 0, %s69
    %s84 = sphi 0, %s70
    %s88 = sphi 0, %s88
    %s90 = sphi 0, %s88
    %s91 = sphi 0, %s90
    %s105 = sphi 0, %s91
    %s109 = sphi 0, %s109
    %s111 = sphi 0, %s109
    %s112 = sphi 0, %s111
    %s126 = sphi 0, %s112
    %s130 = sphi 0, %s130
    %s132 = sphi 0, %s130
    %s133 = sphi 0, %s132
    %s147 = sphi 0, %s133
    %s153 = sphi 0, %s155
    %s156 = sphi 0, %s153
    %s157 = sphi 0, %s156
    %s173 = sphi 0, %s157
  $region4: #{tpu_custom_call.1} parent=0 // loop_header_branch
    %15 = sbr.rel (%p13) target = $region8
  $region5: #{tpu_custom_call.1} parent=0 // loop_body
    %s17 = ssub.s32 %s12, 1
    %s18 = ssub.s32 %s12, 2
    %s19 = sadd.s32 %s12, 1
    %s20 = ssub.s32 %s12, %s19
    %p21 = scmp.eq.s32.totalorder %s20, 0
    %s23 = sadd.s32 %s22, 1
    %s24 = scalar_select %p21, %s22, %s23
    %p27 = pneg %p21
    %p28 = scmp.eq.s32.totalorder %s12, 1
    %p29 = por %p27, %p28
    %p30 = scmp.ne.s32.totalorder %s22, %s25
    %p31 = scmp.eq.s32.totalorder %s12, 0
    %p32 = por %p30, %p31
    %p33 = scmp.ne.s32.totalorder %s22, %s25
    %p34 = scmp.eq.s32.totalorder %s17, 1
    %p35 = por %p33, %p34
    %p36 = scmp.ne.s32.totalorder %s25, %s26
    %p37 = scmp.eq.s32.totalorder %s17, 0
    %p38 = por %p36, %p37
    %p39 = scmp.ne.s32.totalorder %s25, %s26
    %p40 = scmp.eq.s32.totalorder %s18, 1
    %p41 = por %p39, %p40
    %p43 = scmp.ne.s32.totalorder %s26, %s42
    %p44 = scmp.eq.s32.totalorder %s18, 0
    %p45 = por %p43, %p44
    %s47 = sadd.s32 %s46, 1
    %p50 = scmp.eq.s32.totalorder %s12, 1
    %p51 = scmp.ne.s32.totalorder %s46, %s48
    %p52 = scmp.eq.s32.totalorder %s12, 0
    %p53 = por %p51, %p52
    %p54 = scmp.ne.s32.totalorder %s46, %s48
    %p55 = scmp.eq.s32.totalorder %s17, 1
    %p56 = por %p54, %p55
    %p57 = scmp.ne.s32.totalorder %s48, %s49
    %p58 = scmp.eq.s32.totalorder %s17, 0
    %p59 = por %p57, %p58
    %p60 = scmp.ne.s32.totalorder %s48, %s49
    %p61 = scmp.eq.s32.totalorder %s18, 1
    %p62 = por %p60, %p61
    %p64 = scmp.ne.s32.totalorder %s49, %s63
    %p65 = scmp.eq.s32.totalorder %s18, 0
    %p66 = por %p64, %p65
    %s68 = sadd.s32 %s67, 1
    %p71 = scmp.eq.s32.totalorder %s12, 1
    %p72 = scmp.ne.s32.totalorder %s67, %s69
    %p73 = scmp.eq.s32.totalorder %s12, 0
    %p74 = por %p72, %p73
    %p75 = scmp.ne.s32.totalorder %s67, %s69
    %p76 = scmp.eq.s32.totalorder %s17, 1
    %p77 = por %p75, %p76
    %p78 = scmp.ne.s32.totalorder %s69, %s70
    %p79 = scmp.eq.s32.totalorder %s17, 0
    %p80 = por %p78, %p79
    %p81 = scmp.ne.s32.totalorder %s69, %s70
    %p82 = scmp.eq.s32.totalorder %s18, 1
    %p83 = por %p81, %p82
    %p85 = scmp.ne.s32.totalorder %s70, %s84
    %p86 = scmp.eq.s32.totalorder %s18, 0
    %p87 = por %p85, %p86
    %s89 = sadd.s32 %s88, 1
    %p92 = scmp.eq.s32.totalorder %s12, 1
    %p93 = scmp.ne.s32.totalorder %s88, %s90
    %p94 = scmp.eq.s32.totalorder %s12, 0
    %p95 = por %p93, %p94
    %p96 = scmp.ne.s32.totalorder %s88, %s90
    %p97 = scmp.eq.s32.totalorder %s17, 1
    %p98 = por %p96, %p97
    %p99 = scmp.ne.s32.totalorder %s90, %s91
    %p100 = scmp.eq.s32.totalorder %s17, 0
    %p101 = por %p99, %p100
    %p102 = scmp.ne.s32.totalorder %s90, %s91
    %p103 = scmp.eq.s32.totalorder %s18, 1
    %p104 = por %p102, %p103
    %p106 = scmp.ne.s32.totalorder %s91, %s105
    %p107 = scmp.eq.s32.totalorder %s18, 0
    %p108 = por %p106, %p107
    %s110 = sadd.s32 %s109, 1
    %p113 = scmp.eq.s32.totalorder %s12, 1
    %p114 = scmp.ne.s32.totalorder %s109, %s111
    %p115 = scmp.eq.s32.totalorder %s12, 0
    %p116 = por %p114, %p115
    %p117 = scmp.ne.s32.totalorder %s109, %s111
    %p118 = scmp.eq.s32.totalorder %s17, 1
    %p119 = por %p117, %p118
    %p120 = scmp.ne.s32.totalorder %s111, %s112
    %p121 = scmp.eq.s32.totalorder %s17, 0
    %p122 = por %p120, %p121
    %p123 = scmp.ne.s32.totalorder %s111, %s112
    %p124 = scmp.eq.s32.totalorder %s18, 1
    %p125 = por %p123, %p124
    %p127 = scmp.ne.s32.totalorder %s112, %s126
    %p128 = scmp.eq.s32.totalorder %s18, 0
    %p129 = por %p127, %p128
    %s131 = sadd.s32 %s130, 1
    %p134 = scmp.eq.s32.totalorder %s12, 1
    %p135 = scmp.ne.s32.totalorder %s130, %s132
    %p136 = scmp.eq.s32.totalorder %s12, 0
    %p137 = por %p135, %p136
    %p138 = scmp.ne.s32.totalorder %s130, %s132
    %p139 = scmp.eq.s32.totalorder %s17, 1
    %p140 = por %p138, %p139
    %p141 = scmp.ne.s32.totalorder %s132, %s133
    %p142 = scmp.eq.s32.totalorder %s17, 0
    %p143 = por %p141, %p142
    %p144 = scmp.ne.s32.totalorder %s132, %s133
    %p145 = scmp.eq.s32.totalorder %s18, 1
    %p146 = por %p144, %p145
    %p148 = scmp.ne.s32.totalorder %s133, %s147
    %p149 = scmp.eq.s32.totalorder %s18, 0
    %p150 = por %p148, %p149
    %s151 = ssub.s32 %s12, %s19
    %p152 = scmp.eq.s32.totalorder %s151, 0
    %s154 = sadd.s32 %s153, 1
    %s155 = scalar_select %p152, %s153, %s154
    %p158 = pneg %p152
    %p159 = scmp.eq.s32.totalorder %s12, 1
    %p160 = por %p158, %p159
    %p161 = scmp.ne.s32.totalorder %s153, %s156
    %p162 = scmp.eq.s32.totalorder %s12, 0
    %p163 = por %p161, %p162
    %p164 = scmp.ne.s32.totalorder %s153, %s156
    %p165 = scmp.eq.s32.totalorder %s17, 1
    %p166 = por %p164, %p165
    %p167 = scmp.ne.s32.totalorder %s156, %s157
    %p168 = scmp.eq.s32.totalorder %s17, 0
    %p169 = por %p167, %p168
    %p170 = scmp.ne.s32.totalorder %s156, %s157
    %p171 = scmp.eq.s32.totalorder %s18, 1
    %p172 = por %p170, %p171
    %p174 = scmp.ne.s32.totalorder %s157, %s173
    %p175 = scmp.eq.s32.totalorder %s18, 0
    %p176 = por %p174, %p175
    %p177 = scmp.le.s32.totalorder 1, %s12
    %p178 = scmp.lt.s32.totalorder %s12, 3
    %p179 = pnand %p177, %p178
    %p180 = pneg %p179
    // Predicated region
    $region9: #{tpu_custom_call.1} parent=5 // pred_check
      _
    $region10: #{tpu_custom_call.1} parent=5 // pred_check_branch
      %182 = sbr.rel (%p179) target = $region12
    $region11: #{tpu_custom_call.1} parent=5 // pred_region
      %s183 = ssub.s32 %s12, 1
      // Predicated region
      $region13: #{tpu_custom_call.1} parent=11 // pred_check
        %p184 = pneg %p59
      $region14: #{tpu_custom_call.1} parent=11 // pred_check_branch
        %186 = sbr.rel (%p184) target = $region16
      $region15: #{tpu_custom_call.1} parent=11 // pred_region
        _
      $region16: #{tpu_custom_call.1} parent=11 // pred_fallthru
        _
      // Predicated region
      $region17: #{tpu_custom_call.1} parent=11 // pred_check
        %p187 = pneg %p80
      $region18: #{tpu_custom_call.1} parent=11 // pred_check_branch
        %189 = sbr.rel (%p187) target = $region20
      $region19: #{tpu_custom_call.1} parent=11 // pred_region
        _
      $region20: #{tpu_custom_call.1} parent=11 // pred_fallthru
        _
      // Predicated region
      $region21: #{tpu_custom_call.1} parent=11 // pred_check
        %p190 = pneg %p101
      $region22: #{tpu_custom_call.1} parent=11 // pred_check_branch
        %192 = sbr.rel (%p190) target = $region24
      $region23: #{tpu_custom_call.1} parent=11 // pred_region
        _
      $region24: #{tpu_custom_call.1} parent=11 // pred_fallthru
        _
      // Predicated region
      $region25: #{tpu_custom_call.1} parent=11 // pred_check
        %p193 = pneg %p122
      $region26: #{tpu_custom_call.1} parent=11 // pred_check_branch
        %195 = sbr.rel (%p193) target = $region28
      $region27: #{tpu_custom_call.1} parent=11 // pred_region
        _
      $region28: #{tpu_custom_call.1} parent=11 // pred_fallthru
        _
      // Predicated region
      $region29: #{tpu_custom_call.1} parent=11 // pred_check
        %p196 = pneg %p143
      $region30: #{tpu_custom_call.1} parent=11 // pred_check_branch
        %198 = sbr.rel (%p196) target = $region32
      $region31: #{tpu_custom_call.1} parent=11 // pred_region
        _
      $region32: #{tpu_custom_call.1} parent=11 // pred_fallthru
        _
    $region12: #{tpu_custom_call.1} parent=5 // pred_fallthru
      _
    %p199 = scmp.lt.s32.totalorder %s12, 2
    // Predicated region
    $region33: #{tpu_custom_call.1} parent=5 // pred_check
      %p200 = pneg %p199
    $region34: #{tpu_custom_call.1} parent=5 // pred_check_branch
      %202 = sbr.rel (%p200) target = $region36
    $region35: #{tpu_custom_call.1} parent=5 // pred_region
      // Predicated region
      $region37: #{tpu_custom_call.1} parent=35 // pred_check
        %p203 = pneg %p32
      $region38: #{tpu_custom_call.1} parent=35 // pred_check_branch
        %205 = sbr.rel (%p203) target = $region40
      $region39: #{tpu_custom_call.1} parent=35 // pred_region
        %p206 = scmp.lt.s32.totalorder %s12, 1
        %s207 = scalar_select %p206, %s12, 1
        %s208 = smul.addr %s207, 3
        %s209 = smul.addr %s208, 8
        %s210 = scalar_lea.vmem %s0, %s209
      $region40: #{tpu_custom_call.1} parent=35 // pred_fallthru
        _
    $region36: #{tpu_custom_call.1} parent=5 // pred_fallthru
      _
    %p211 = scmp.le.s32.totalorder 1, %s12
    %p212 = scmp.lt.s32.totalorder %s12, 3
    %p213 = pnand %p211, %p212
    %p214 = pneg %p213
    // Predicated region
    $region41: #{tpu_custom_call.1} parent=5 // pred_check
      _
    $region42: #{tpu_custom_call.1} parent=5 // pred_check_branch
      %216 = sbr.rel (%p213) target = $region44
    $region43: #{tpu_custom_call.1} parent=5 // pred_region
      %s217 = ssub.s32 %s12, 1
      %p218 = scmp.lt.s32.totalorder %s17, 1
      %s219 = scalar_select %p218, %s17, 1
      %s220 = smul.addr %s219, 3
      %s221 = smul.addr %s220, 8
      %s222 = scalar_lea.vmem %s0, %s221
      %p223 = pneg %p38
      %p224 = pneg %p35
      %p225 = pneg %p59
      %p226 = pneg %p56
      %p227 = pneg %p80
      %p228 = pneg %p77
      %p229 = pneg %p101
      %p230 = pneg %p98
      %p231 = pneg %p122
      %p232 = pneg %p119
      %p233 = pneg %p143
      %p234 = pneg %p140
      %p235 = pneg %p169
      %p236 = pneg %p166
      %p237 = scmp.lt.s32.totalorder %s17, 1
      %s238 = scalar_select %p237, %s17, 1
      %s239 = smul.addr %s238, 9
      %s240 = smul.addr %s239, 8
      %s241 = scalar_lea.vmem %s6, %s240
      %p242 = scmp.lt.s32.totalorder %s17, 1
      %s243 = scalar_select %p242, %s17, 1
      %s244 = smul.addr %s243, 3
      %s245 = smul.addr %s244, 8
      %s246 = scalar_lea.vmem %s0, %s245
      %p247 = scmp.lt.s32.totalorder %s17, 1
      %s248 = scalar_select %p247, %s17, 1
      %s249 = smul.addr %s248, 9
      %s250 = smul.addr %s249, 8
      %s251 = scalar_lea.vmem %s6, %s250
      %v252 = vld [vmem:[%s5] sm:$0x7]
      %vm253 = vcmask 146432
      %254 = vst.msk [vmem:[#allocation2] sm:$0xff] %vm253, 0.0
      %vm255 = vcmask 556432
      %256 = vst.msk [vmem:[#allocation2 + $0x10] sm:$0xff] %vm255, 0.0
      %257 = vst.msk [vmem:[#allocation3] sm:$0xff] %vm253, 0.0
      %258 = vst.msk [vmem:[#allocation3 + $0x10] sm:$0xff] %vm255, 0.0
      %v259 = vld [vmem:[%s1] sm:$0xff]
      %v260 = vld [vmem:[%s246] sm:$0xff]
      %v261 = vld [vmem:[%s246 + $0x8] sm:$0xff]
      %v262 = vld [vmem:[%s246 + $0x10] sm:$0xff]
      %vm263 = vcmask 1047808
      %264 = vrot.lane.b32.xlu0 %v260, 32
      %v265 = vpop.permute.xlu0 %264
      %v266 = vsel %vm263, %v265, %v262
      %267 = vrot.lane.b32.xlu0 %v261, 32
      %v268 = vpop.permute.xlu0 %267
      %269 = vrot.lane.b32.xlu0 %v266, 32
      %v270 = vpop.permute.xlu0 %269
      %v271 = vsel %vm263, %v268, %v265
      %v272 = vsel %vm263, %v270, %v268
      %274 = vrot.lane.b32.xlu0 %v259, 120
      %v275 = vpop.permute.xlu0 %274
      %vm276 = vcmask 64512
      %v277 = vsel %vm276, %v275, 0
      %279 = vmatprep.subr.mxu0 0.0
      %280 = vmatpush1.msra.mxu0 0.0
      %281 = vmatprep.subr.mxu0 0.0
      %282 = vmatpush1.msra.mxu0 0.0
      %283 = vmatprep.subr.mxu0 0.0
      %284 = vmatpush1.msra.mxu0 0.0
      %285 = vmatprep.subr.mxu0 0.0
      %286 = vmatpush1.msra.mxu0 0.0
      %287 = vmatprep.subr.mxu0 0.0
      %288 = vmatpush1.msra.mxu0 0.0
      %289 = vmatprep.subr.mxu0 0.0
      %290 = vmatpush1.msra.mxu0 0.0
      %291 = vmatprep.subr.mxu0 0.0
      %292 = vmatpush1.msra.mxu0 0.0
      %293 = vmatprep.subr.mxu0 0.0
      %294 = vmatpush1.msra.mxu0 0.0
      %295 = vmatprep.subr.mxu0 0.0
      %296 = vmatpush1.msra.mxu0 0.0
      %297 = vmatprep.subr.mxu0 0.0
      %298 = vmatpush1.msra.mxu0 0.0
      %299 = vmatprep.subr.mxu0 0.0
      %300 = vmatpush1.msra.mxu0 0.0
      %301 = vmatprep.subr.mxu0 0.0
      %302 = vmatpush1.msra.mxu0 0.0
      %303 = vmatprep.subr.mxu0 0.0
      %304 = vmatpush1.msra.mxu0 0.0
      %305 = vmatprep.subr.mxu0 0.0
      %306 = vmatpush1.msra.mxu0 0.0
      %307 = vmatprep.subr.mxu0 0.0
      %308 = vmatpush1.msra.mxu0 0.0
      %309 = vmatprep.subr.mxu0 %v261
      %310 = vmatpush1.msra.mxu0 %v260
      %311 = vmatprep.subr.mxu0 0.0
      %312 = vmatpush2.msra.mxu0 0.0
      %313 = vmatprep.subr.mxu0 0.0
      %314 = vmatpush2.msra.mxu0 0.0
      %315 = vmatprep.subr.mxu0 0.0
      %316 = vmatpush2.msra.mxu0 0.0
      %317 = vmatprep.subr.mxu0 0.0
      %318 = vmatpush2.msra.mxu0 0.0
      %319 = vmatprep.subr.mxu0 0.0
      %320 = vmatpush2.msra.mxu0 0.0
      %321 = vmatprep.subr.mxu0 0.0
      %322 = vmatpush2.msra.mxu0 0.0
      %323 = vmatprep.subr.mxu0 0.0
      %324 = vmatpush2.msra.mxu0 0.0
      %325 = vmatprep.subr.mxu0 0.0
      %326 = vmatpush2.msra.mxu0 0.0
      %327 = vmatprep.subr.mxu0 0.0
      %328 = vmatpush2.msra.mxu0 0.0
      %329 = vmatprep.subr.mxu0 0.0
      %330 = vmatpush2.msra.mxu0 0.0
      %331 = vmatprep.subr.mxu0 0.0
      %332 = vmatpush2.msra.mxu0 0.0
      %333 = vmatprep.subr.mxu0 0.0
      %334 = vmatpush2.msra.mxu0 0.0
      %335 = vmatprep.subr.mxu0 0.0
      %336 = vmatpush2.msra.mxu0 0.0
      %337 = vmatprep.subr.mxu0 0.0
      %338 = vmatpush2.msra.mxu0 0.0
      %339 = vmatprep.subr.mxu0 0.0
      %340 = vmatpush2.msra.mxu0 0.0
      %341 = vmatprep.subr.mxu0 0.0
      %342 = vmatpush2.msra.mxu0 0.0
      %343 = vmatprep.mubr.f32.mxu0 0.0
      %344 = vmatmul.mubr.f32.gmra.mxu0 %v277
      %v345 = vpop.f32.mrf.mxu0
      %v346 = vadd.f32 0.0, %v345
      %v347 = vpop.f32.mrf.mxu0
      %v348 = vadd.f32 0.0, %v347
      %349 = vdwg.mxu0
      %350 = vmatprep.subr.mxu0 0.0
      %351 = vmatpush1.msra.mxu0 0.0
      %352 = vmatprep.subr.mxu0 0.0
      %353 = vmatpush1.msra.mxu0 0.0
      %354 = vmatprep.subr.mxu0 0.0
      %355 = vmatpush1.msra.mxu0 0.0
      %356 = vmatprep.subr.mxu0 0.0
      %357 = vmatpush1.msra.mxu0 0.0
      %358 = vmatprep.subr.mxu0 0.0
      %359 = vmatpush1.msra.mxu0 0.0
      %360 = vmatprep.subr.mxu0 0.0
      %361 = vmatpush1.msra.mxu0 0.0
      %362 = vmatprep.subr.mxu0 0.0
      %363 = vmatpush1.msra.mxu0 0.0
      %364 = vmatprep.subr.mxu0 0.0
      %365 = vmatpush1.msra.mxu0 0.0
      %366 = vmatprep.subr.mxu0 0.0
      %367 = vmatpush1.msra.mxu0 0.0
      %368 = vmatprep.subr.mxu0 0.0
      %369 = vmatpush1.msra.mxu0 0.0
      %370 = vmatprep.subr.mxu0 0.0
      %371 = vmatpush1.msra.mxu0 0.0
      %372 = vmatprep.subr.mxu0 0.0
      %373 = vmatpush1.msra.mxu0 0.0
      %374 = vmatprep.subr.mxu0 0.0
      %375 = vmatpush1.msra.mxu0 0.0
      %376 = vmatprep.subr.mxu0 0.0
      %377 = vmatpush1.msra.mxu0 0.0
      %378 = vmatprep.subr.mxu0 0.0
      %379 = vmatpush1.msra.mxu0 0.0
      %380 = vmatprep.subr.mxu0 0.0
      %381 = vmatpush1.msra.mxu0 %v262
      %382 = vmatprep.subr.mxu0 0.0
      %383 = vmatpush2.msra.mxu0 0.0
      %384 = vmatprep.subr.mxu0 0.0
      %385 = vmatpush2.msra.mxu0 0.0
      %386 = vmatprep.subr.mxu0 0.0
      %387 = vmatpush2.msra.mxu0 0.0
      %388 = vmatprep.subr.mxu0 0.0
      %389 = vmatpush2.msra.mxu0 0.0
      %390 = vmatprep.subr.mxu0 0.0
      %391 = vmatpush2.msra.mxu0 0.0
      %392 = vmatprep.subr.mxu0 0.0
      %393 = vmatpush2.msra.mxu0 0.0
      %394 = vmatprep.subr.mxu0 0.0
      %395 = vmatpush2.msra.mxu0 0.0
      %396 = vmatprep.subr.mxu0 0.0
      %397 = vmatpush2.msra.mxu0 0.0
      %398 = vmatprep.subr.mxu0 0.0
      %399 = vmatpush2.msra.mxu0 0.0
      %400 = vmatprep.subr.mxu0 0.0
      %401 = vmatpush2.msra.mxu0 0.0
      %402 = vmatprep.subr.mxu0 0.0
      %403 = vmatpush2.msra.mxu0 0.0
      %404 = vmatprep.subr.mxu0 0.0
      %405 = vmatpush2.msra.mxu0 0.0
      %406 = vmatprep.subr.mxu0 0.0
      %407 = vmatpush2.msra.mxu0 0.0
      %408 = vmatprep.subr.mxu0 0.0
      %409 = vmatpush2.msra.mxu0 0.0
      %410 = vmatprep.subr.mxu0 0.0
      %411 = vmatpush2.msra.mxu0 0.0
      %412 = vmatprep.subr.mxu0 0.0
      %413 = vmatpush2.msra.mxu0 0.0
      %414 = vmatprep.mubr.f32.mxu0 0.0
      %415 = vmatmul.mubr.f32.gmra.mxu0 %v277
      %v416 = vpop.f32.mrf.mxu0
      %v417 = vadd.f32 0.0, %v416
      %v418 = vpop.f32.mrf.mxu0
      %419 = vdwg.mxu0
      %423 = vrot.lane.b32.xlu0 %v266, 97
      %v424 = vpop.permute.xlu0 %423
      %425 = vrot.lane.b32.xlu0 %v271, 97
      %v426 = vpop.permute.xlu0 %425
      %427 = vrot.lane.b32.xlu0 %v272, 97
      %v428 = vpop.permute.xlu0 %427
      %vm429 = vcmask 793600
      %v430 = vsel %vm429, %v424, %v426
      %v431 = vsel %vm429, %v426, %v428
      %v435 = vsel %vm276, %v259, 0
      %437 = vmatprep.subr.mxu0 0.0
      %438 = vmatpush1.msra.mxu0 0.0
      %439 = vmatprep.subr.mxu0 0.0
      %440 = vmatpush1.msra.mxu0 0.0
      %441 = vmatprep.subr.mxu0 0.0
      %442 = vmatpush1.msra.mxu0 0.0
      %443 = vmatprep.subr.mxu0 0.0
      %444 = vmatpush1.msra.mxu0 0.0
      %445 = vmatprep.subr.mxu0 0.0
      %446 = vmatpush1.msra.mxu0 0.0
      %447 = vmatprep.subr.mxu0 0.0
      %448 = vmatpush1.msra.mxu0 0.0
      %449 = vmatprep.subr.mxu0 0.0
      %450 = vmatpush1.msra.mxu0 0.0
      %451 = vmatprep.subr.mxu0 0.0
      %452 = vmatpush1.msra.mxu0 0.0
      %453 = vmatprep.subr.mxu0 0.0
      %454 = vmatpush1.msra.mxu0 0.0
      %455 = vmatprep.subr.mxu0 0.0
      %456 = vmatpush1.msra.mxu0 0.0
      %457 = vmatprep.subr.mxu0 0.0
      %458 = vmatpush1.msra.mxu0 0.0
      %459 = vmatprep.subr.mxu0 0.0
      %460 = vmatpush1.msra.mxu0 0.0
      %461 = vmatprep.subr.mxu0 0.0
      %462 = vmatpush1.msra.mxu0 0.0
      %463 = vmatprep.subr.mxu0 0.0
      %464 = vmatpush1.msra.mxu0 0.0
      %465 = vmatprep.subr.mxu0 0.0
      %466 = vmatpush1.msra.mxu0 0.0
      %467 = vmatprep.subr.mxu0 %v431
      %468 = vmatpush1.msra.mxu0 %v430
      %469 = vmatprep.subr.mxu0 0.0
      %470 = vmatpush2.msra.mxu0 0.0
      %471 = vmatprep.subr.mxu0 0.0
      %472 = vmatpush2.msra.mxu0 0.0
      %473 = vmatprep.subr.mxu0 0.0
      %474 = vmatpush2.msra.mxu0 0.0
      %475 = vmatprep.subr.mxu0 0.0
      %476 = vmatpush2.msra.mxu0 0.0
      %477 = vmatprep.subr.mxu0 0.0
      %478 = vmatpush2.msra.mxu0 0.0
      %479 = vmatprep.subr.mxu0 0.0
      %480 = vmatpush2.msra.mxu0 0.0
      %481 = vmatprep.subr.mxu0 0.0
      %482 = vmatpush2.msra.mxu0 0.0
      %483 = vmatprep.subr.mxu0 0.0
      %484 = vmatpush2.msra.mxu0 0.0
      %485 = vmatprep.subr.mxu0 0.0
      %486 = vmatpush2.msra.mxu0 0.0
      %487 = vmatprep.subr.mxu0 0.0
      %488 = vmatpush2.msra.mxu0 0.0
      %489 = vmatprep.subr.mxu0 0.0
      %490 = vmatpush2.msra.mxu0 0.0
      %491 = vmatprep.subr.mxu0 0.0
      %492 = vmatpush2.msra.mxu0 0.0
      %493 = vmatprep.subr.mxu0 0.0
      %494 = vmatpush2.msra.mxu0 0.0
      %495 = vmatprep.subr.mxu0 0.0
      %496 = vmatpush2.msra.mxu0 0.0
      %497 = vmatprep.subr.mxu0 0.0
      %498 = vmatpush2.msra.mxu0 0.0
      %499 = vmatprep.subr.mxu0 0.0
      %500 = vmatpush2.msra.mxu0 0.0
      %501 = vmatprep.mubr.f32.mxu0 0.0
      %502 = vmatmul.mubr.f32.gmra.mxu0 %v435
      %v503 = vpop.f32.mrf.mxu0
      %v504 = vadd.f32 %v346, %v503
      %v505 = vpop.f32.mrf.mxu0
      %v506 = vadd.f32 %v348, %v505
      %507 = vdwg.mxu0
      %508 = vmatprep.subr.mxu0 0.0
      %509 = vmatpush1.msra.mxu0 0.0
      %510 = vmatprep.subr.mxu0 0.0
      %511 = vmatpush1.msra.mxu0 0.0
      %512 = vmatprep.subr.mxu0 0.0
      %513 = vmatpush1.msra.mxu0 0.0
      %514 = vmatprep.subr.mxu0 0.0
      %515 = vmatpush1.msra.mxu0 0.0
      %516 = vmatprep.subr.mxu0 0.0
      %517 = vmatpush1.msra.mxu0 0.0
      %518 = vmatprep.subr.mxu0 0.0
      %519 = vmatpush1.msra.mxu0 0.0
      %520 = vmatprep.subr.mxu0 0.0
      %521 = vmatpush1.msra.mxu0 0.0
      %522 = vmatprep.subr.mxu0 0.0
      %523 = vmatpush1.msra.mxu0 0.0
      %524 = vmatprep.subr.mxu0 0.0
      %525 = vmatpush1.msra.mxu0 0.0
      %526 = vmatprep.subr.mxu0 0.0
      %527 = vmatpush1.msra.mxu0 0.0
      %528 = vmatprep.subr.mxu0 0.0
      %529 = vmatpush1.msra.mxu0 0.0
      %530 = vmatprep.subr.mxu0 0.0
      %531 = vmatpush1.msra.mxu0 0.0
      %532 = vmatprep.subr.mxu0 0.0
      %533 = vmatpush1.msra.mxu0 0.0
      %534 = vmatprep.subr.mxu0 0.0
      %535 = vmatpush1.msra.mxu0 0.0
      %536 = vmatprep.subr.mxu0 0.0
      %537 = vmatpush1.msra.mxu0 0.0
      %538 = vmatprep.subr.mxu0 0.0
      %539 = vmatpush1.msra.mxu0 %v428
      %540 = vmatprep.subr.mxu0 0.0
      %541 = vmatpush2.msra.mxu0 0.0
      %542 = vmatprep.subr.mxu0 0.0
      %543 = vmatpush2.msra.mxu0 0.0
      %544 = vmatprep.subr.mxu0 0.0
      %545 = vmatpush2.msra.mxu0 0.0
      %546 = vmatprep.subr.mxu0 0.0
      %547 = vmatpush2.msra.mxu0 0.0
      %548 = vmatprep.subr.mxu0 0.0
      %549 = vmatpush2.msra.mxu0 0.0
      %550 = vmatprep.subr.mxu0 0.0
      %551 = vmatpush2.msra.mxu0 0.0
      %552 = vmatprep.subr.mxu0 0.0
      %553 = vmatpush2.msra.mxu0 0.0
      %554 = vmatprep.subr.mxu0 0.0
      %555 = vmatpush2.msra.mxu0 0.0
      %556 = vmatprep.subr.mxu0 0.0
      %557 = vmatpush2.msra.mxu0 0.0
      %558 = vmatprep.subr.mxu0 0.0
      %559 = vmatpush2.msra.mxu0 0.0
      %560 = vmatprep.subr.mxu0 0.0
      %561 = vmatpush2.msra.mxu0 0.0
      %562 = vmatprep.subr.mxu0 0.0
      %563 = vmatpush2.msra.mxu0 0.0
      %564 = vmatprep.subr.mxu0 0.0
      %565 = vmatpush2.msra.mxu0 0.0
      %566 = vmatprep.subr.mxu0 0.0
      %567 = vmatpush2.msra.mxu0 0.0
      %568 = vmatprep.subr.mxu0 0.0
      %569 = vmatpush2.msra.mxu0 0.0
      %570 = vmatprep.subr.mxu0 0.0
      %571 = vmatpush2.msra.mxu0 0.0
      %572 = vmatprep.mubr.f32.mxu0 0.0
      %573 = vmatmul.mubr.f32.gmra.mxu0 %v435
      %v574 = vpop.f32.mrf.mxu0
      %v575 = vadd.f32 %v417, %v574
      %v576 = vpop.f32.mrf.mxu0
      %577 = vdwg.mxu0
      %578 = vrot.lane.b32.xlu0 %v259, 112
      %v579 = vpop.permute.xlu0 %578
      %582 = vrot.lane.b32.xlu0 %v260, 127
      %v583 = vpop.permute.xlu0 %582
      %584 = vrot.lane.b32.xlu0 %v261, 127
      %v585 = vpop.permute.xlu0 %584
      %586 = vrot.lane.b32.xlu0 %v266, 127
      %v587 = vpop.permute.xlu0 %586
      %vm588 = vcmask 1039360
      %v589 = vsel %vm588, %v583, %v585
      %v590 = vsel %vm588, %v585, %v587
      %v594 = vsel %vm276, %v579, 0
      %596 = vmatprep.subr.mxu0 0.0
      %597 = vmatpush1.msra.mxu0 0.0
      %598 = vmatprep.subr.mxu0 0.0
      %599 = vmatpush1.msra.mxu0 0.0
      %600 = vmatprep.subr.mxu0 0.0
      %601 = vmatpush1.msra.mxu0 0.0
      %602 = vmatprep.subr.mxu0 0.0
      %603 = vmatpush1.msra.mxu0 0.0
      %604 = vmatprep.subr.mxu0 0.0
      %605 = vmatpush1.msra.mxu0 0.0
      %606 = vmatprep.subr.mxu0 0.0
      %607 = vmatpush1.msra.mxu0 0.0
      %608 = vmatprep.subr.mxu0 0.0
      %609 = vmatpush1.msra.mxu0 0.0
      %610 = vmatprep.subr.mxu0 0.0
      %611 = vmatpush1.msra.mxu0 0.0
      %612 = vmatprep.subr.mxu0 0.0
      %613 = vmatpush1.msra.mxu0 0.0
      %614 = vmatprep.subr.mxu0 0.0
      %615 = vmatpush1.msra.mxu0 0.0
      %616 = vmatprep.subr.mxu0 0.0
      %617 = vmatpush1.msra.mxu0 0.0
      %618 = vmatprep.subr.mxu0 0.0
      %619 = vmatpush1.msra.mxu0 0.0
      %620 = vmatprep.subr.mxu0 0.0
      %621 = vmatpush1.msra.mxu0 0.0
      %622 = vmatprep.subr.mxu0 0.0
      %623 = vmatpush1.msra.mxu0 0.0
      %624 = vmatprep.subr.mxu0 0.0
      %625 = vmatpush1.msra.mxu0 0.0
      %626 = vmatprep.subr.mxu0 %v590
      %627 = vmatpush1.msra.mxu0 %v589
      %628 = vmatprep.subr.mxu0 0.0
      %629 = vmatpush2.msra.mxu0 0.0
      %630 = vmatprep.subr.mxu0 0.0
      %631 = vmatpush2.msra.mxu0 0.0
      %632 = vmatprep.subr.mxu0 0.0
      %633 = vmatpush2.msra.mxu0 0.0
      %634 = vmatprep.subr.mxu0 0.0
      %635 = vmatpush2.msra.mxu0 0.0
      %636 = vmatprep.subr.mxu0 0.0
      %637 = vmatpush2.msra.mxu0 0.0
      %638 = vmatprep.subr.mxu0 0.0
      %639 = vmatpush2.msra.mxu0 0.0
      %640 = vmatprep.subr.mxu0 0.0
      %641 = vmatpush2.msra.mxu0 0.0
      %642 = vmatprep.subr.mxu0 0.0
      %643 = vmatpush2.msra.mxu0 0.0
      %644 = vmatprep.subr.mxu0 0.0
      %645 = vmatpush2.msra.mxu0 0.0
      %646 = vmatprep.subr.mxu0 0.0
      %647 = vmatpush2.msra.mxu0 0.0
      %648 = vmatprep.subr.mxu0 0.0
      %649 = vmatpush2.msra.mxu0 0.0
      %650 = vmatprep.subr.mxu0 0.0
      %651 = vmatpush2.msra.mxu0 0.0
      %652 = vmatprep.subr.mxu0 0.0
      %653 = vmatpush2.msra.mxu0 0.0
      %654 = vmatprep.subr.mxu0 0.0
      %655 = vmatpush2.msra.mxu0 0.0
      %656 = vmatprep.subr.mxu0 0.0
      %657 = vmatpush2.msra.mxu0 0.0
      %658 = vmatprep.subr.mxu0 0.0
      %659 = vmatpush2.msra.mxu0 0.0
      %660 = vmatprep.mubr.f32.mxu0 0.0
      %661 = vmatmul.mubr.f32.gmra.mxu0 %v594
      %v662 = vpop.f32.mrf.mxu0
      %v663 = vadd.f32 0.0, %v662
      %v664 = vpop.f32.mrf.mxu0
      %v665 = vadd.f32 0.0, %v664
      %666 = vdwg.mxu0
      %667 = vmatprep.subr.mxu0 0.0
      %668 = vmatpush1.msra.mxu0 0.0
      %669 = vmatprep.subr.mxu0 0.0
      %670 = vmatpush1.msra.mxu0 0.0
      %671 = vmatprep.subr.mxu0 0.0
      %672 = vmatpush1.msra.mxu0 0.0
      %673 = vmatprep.subr.mxu0 0.0
      %674 = vmatpush1.msra.mxu0 0.0
      %675 = vmatprep.subr.mxu0 0.0
      %676 = vmatpush1.msra.mxu0 0.0
      %677 = vmatprep.subr.mxu0 0.0
      %678 = vmatpush1.msra.mxu0 0.0
      %679 = vmatprep.subr.mxu0 0.0
      %680 = vmatpush1.msra.mxu0 0.0
      %681 = vmatprep.subr.mxu0 0.0
      %682 = vmatpush1.msra.mxu0 0.0
      %683 = vmatprep.subr.mxu0 0.0
      %684 = vmatpush1.msra.mxu0 0.0
      %685 = vmatprep.subr.mxu0 0.0
      %686 = vmatpush1.msra.mxu0 0.0
      %687 = vmatprep.subr.mxu0 0.0
      %688 = vmatpush1.msra.mxu0 0.0
      %689 = vmatprep.subr.mxu0 0.0
      %690 = vmatpush1.msra.mxu0 0.0
      %691 = vmatprep.subr.mxu0 0.0
      %692 = vmatpush1.msra.mxu0 0.0
      %693 = vmatprep.subr.mxu0 0.0
      %694 = vmatpush1.msra.mxu0 0.0
      %695 = vmatprep.subr.mxu0 0.0
      %696 = vmatpush1.msra.mxu0 0.0
      %697 = vmatprep.subr.mxu0 0.0
      %698 = vmatpush1.msra.mxu0 %v587
      %699 = vmatprep.subr.mxu0 0.0
      %700 = vmatpush2.msra.mxu0 0.0
      %701 = vmatprep.subr.mxu0 0.0
      %702 = vmatpush2.msra.mxu0 0.0
      %703 = vmatprep.subr.mxu0 0.0
      %704 = vmatpush2.msra.mxu0 0.0
      %705 = vmatprep.subr.mxu0 0.0
      %706 = vmatpush2.msra.mxu0 0.0
      %707 = vmatprep.subr.mxu0 0.0
      %708 = vmatpush2.msra.mxu0 0.0
      %709 = vmatprep.subr.mxu0 0.0
      %710 = vmatpush2.msra.mxu0 0.0
      %711 = vmatprep.subr.mxu0 0.0
      %712 = vmatpush2.msra.mxu0 0.0
      %713 = vmatprep.subr.mxu0 0.0
      %714 = vmatpush2.msra.mxu0 0.0
      %715 = vmatprep.subr.mxu0 0.0
      %716 = vmatpush2.msra.mxu0 0.0
      %717 = vmatprep.subr.mxu0 0.0
      %718 = vmatpush2.msra.mxu0 0.0
      %719 = vmatprep.subr.mxu0 0.0
      %720 = vmatpush2.msra.mxu0 0.0
      %721 = vmatprep.subr.mxu0 0.0
      %722 = vmatpush2.msra.mxu0 0.0
      %723 = vmatprep.subr.mxu0 0.0
      %724 = vmatpush2.msra.mxu0 0.0
      %725 = vmatprep.subr.mxu0 0.0
      %726 = vmatpush2.msra.mxu0 0.0
      %727 = vmatprep.subr.mxu0 0.0
      %728 = vmatpush2.msra.mxu0 0.0
      %729 = vmatprep.subr.mxu0 0.0
      %730 = vmatpush2.msra.mxu0 0.0
      %731 = vmatprep.mubr.f32.mxu0 0.0
      %732 = vmatmul.mubr.f32.gmra.mxu0 %v594
      %v733 = vpop.f32.mrf.mxu0
      %v734 = vadd.f32 0.0, %v733
      %v735 = vpop.f32.mrf.mxu0
      %736 = vdwg.mxu0
      %v737 = vadd.f32 %v504, %v663
      %v738 = vadd.f32 %v506, %v665
      %v739 = vadd.f32 %v575, %v734
      %741 = vrot.lane.b32.xlu0 %v260, 110
      %v742 = vpop.permute.xlu0 %741
      %743 = vrot.lane.b32.xlu0 %v261, 110
      %v744 = vpop.permute.xlu0 %743
      %745 = vrot.lane.b32.xlu0 %v262, 110
      %v746 = vpop.permute.xlu0 %745
      %vm747 = vcmask 900096
      %v748 = vsel %vm747, %v742, %v744
      %v749 = vsel %vm747, %v744, %v746
      %753 = vrot.lane.b32.xlu0 %v748, 32
      %v754 = vpop.permute.xlu0 %753
      %v755 = vsel %vm263, %v754, %v746
      %756 = vrot.lane.b32.xlu0 %v749, 32
      %v757 = vpop.permute.xlu0 %756
      %758 = vrot.lane.b32.xlu0 %v755, 32
      %v759 = vpop.permute.xlu0 %758
      %v760 = vsel %vm263, %v757, %v754
      %v761 = vsel %vm263, %v759, %v757
      %762 = vrot.lane.b32.xlu0 %v259, 104
      %v763 = vpop.permute.xlu0 %762
      %767 = vrot.lane.b32.xlu0 %v755, 97
      %v768 = vpop.permute.xlu0 %767
      %769 = vrot.lane.b32.xlu0 %v760, 97
      %v770 = vpop.permute.xlu0 %769
      %771 = vrot.lane.b32.xlu0 %v761, 97
      %v772 = vpop.permute.xlu0 %771
      %v773 = vsel %vm429, %v768, %v770
      %v774 = vsel %vm429, %v770, %v772
      %v778 = vsel %vm276, %v763, 0
      %780 = vmatprep.subr.mxu0 0.0
      %781 = vmatpush1.msra.mxu0 0.0
      %782 = vmatprep.subr.mxu0 0.0
      %783 = vmatpush1.msra.mxu0 0.0
      %784 = vmatprep.subr.mxu0 0.0
      %785 = vmatpush1.msra.mxu0 0.0
      %786 = vmatprep.subr.mxu0 0.0
      %787 = vmatpush1.msra.mxu0 0.0
      %788 = vmatprep.subr.mxu0 0.0
      %789 = vmatpush1.msra.mxu0 0.0
      %790 = vmatprep.subr.mxu0 0.0
      %791 = vmatpush1.msra.mxu0 0.0
      %792 = vmatprep.subr.mxu0 0.0
      %793 = vmatpush1.msra.mxu0 0.0
      %794 = vmatprep.subr.mxu0 0.0
      %795 = vmatpush1.msra.mxu0 0.0
      %796 = vmatprep.subr.mxu0 0.0
      %797 = vmatpush1.msra.mxu0 0.0
      %798 = vmatprep.subr.mxu0 0.0
      %799 = vmatpush1.msra.mxu0 0.0
      %800 = vmatprep.subr.mxu0 0.0
      %801 = vmatpush1.msra.mxu0 0.0
      %802 = vmatprep.subr.mxu0 0.0
      %803 = vmatpush1.msra.mxu0 0.0
      %804 = vmatprep.subr.mxu0 0.0
      %805 = vmatpush1.msra.mxu0 0.0
      %806 = vmatprep.subr.mxu0 0.0
      %807 = vmatpush1.msra.mxu0 0.0
      %808 = vmatprep.subr.mxu0 0.0
      %809 = vmatpush1.msra.mxu0 0.0
      %810 = vmatprep.subr.mxu0 %v774
      %811 = vmatpush1.msra.mxu0 %v773
      %812 = vmatprep.subr.mxu0 0.0
      %813 = vmatpush2.msra.mxu0 0.0
      %814 = vmatprep.subr.mxu0 0.0
      %815 = vmatpush2.msra.mxu0 0.0
      %816 = vmatprep.subr.mxu0 0.0
      %817 = vmatpush2.msra.mxu0 0.0
      %818 = vmatprep.subr.mxu0 0.0
      %819 = vmatpush2.msra.mxu0 0.0
      %820 = vmatprep.subr.mxu0 0.0
      %821 = vmatpush2.msra.mxu0 0.0
      %822 = vmatprep.subr.mxu0 0.0
      %823 = vmatpush2.msra.mxu0 0.0
      %824 = vmatprep.subr.mxu0 0.0
      %825 = vmatpush2.msra.mxu0 0.0
      %826 = vmatprep.subr.mxu0 0.0
      %827 = vmatpush2.msra.mxu0 0.0
      %828 = vmatprep.subr.mxu0 0.0
      %829 = vmatpush2.msra.mxu0 0.0
      %830 = vmatprep.subr.mxu0 0.0
      %831 = vmatpush2.msra.mxu0 0.0
      %832 = vmatprep.subr.mxu0 0.0
      %833 = vmatpush2.msra.mxu0 0.0
      %834 = vmatprep.subr.mxu0 0.0
      %835 = vmatpush2.msra.mxu0 0.0
      %836 = vmatprep.subr.mxu0 0.0
      %837 = vmatpush2.msra.mxu0 0.0
      %838 = vmatprep.subr.mxu0 0.0
      %839 = vmatpush2.msra.mxu0 0.0
      %840 = vmatprep.subr.mxu0 0.0
      %841 = vmatpush2.msra.mxu0 0.0
      %842 = vmatprep.subr.mxu0 0.0
      %843 = vmatpush2.msra.mxu0 0.0
      %844 = vmatprep.mubr.f32.mxu0 0.0
      %845 = vmatmul.mubr.f32.gmra.mxu0 %v778
      %v846 = vpop.f32.mrf.mxu0
      %v847 = vadd.f32 0.0, %v846
      %v848 = vpop.f32.mrf.mxu0
      %v849 = vadd.f32 0.0, %v848
      %850 = vdwg.mxu0
      %851 = vmatprep.subr.mxu0 0.0
      %852 = vmatpush1.msra.mxu0 0.0
      %853 = vmatprep.subr.mxu0 0.0
      %854 = vmatpush1.msra.mxu0 0.0
      %855 = vmatprep.subr.mxu0 0.0
      %856 = vmatpush1.msra.mxu0 0.0
      %857 = vmatprep.subr.mxu0 0.0
      %858 = vmatpush1.msra.mxu0 0.0
      %859 = vmatprep.subr.mxu0 0.0
      %860 = vmatpush1.msra.mxu0 0.0
      %861 = vmatprep.subr.mxu0 0.0
      %862 = vmatpush1.msra.mxu0 0.0
      %863 = vmatprep.subr.mxu0 0.0
      %864 = vmatpush1.msra.mxu0 0.0
      %865 = vmatprep.subr.mxu0 0.0
      %866 = vmatpush1.msra.mxu0 0.0
      %867 = vmatprep.subr.mxu0 0.0
      %868 = vmatpush1.msra.mxu0 0.0
      %869 = vmatprep.subr.mxu0 0.0
      %870 = vmatpush1.msra.mxu0 0.0
      %871 = vmatprep.subr.mxu0 0.0
      %872 = vmatpush1.msra.mxu0 0.0
      %873 = vmatprep.subr.mxu0 0.0
      %874 = vmatpush1.msra.mxu0 0.0
      %875 = vmatprep.subr.mxu0 0.0
      %876 = vmatpush1.msra.mxu0 0.0
      %877 = vmatprep.subr.mxu0 0.0
      %878 = vmatpush1.msra.mxu0 0.0
      %879 = vmatprep.subr.mxu0 0.0
      %880 = vmatpush1.msra.mxu0 0.0
      %881 = vmatprep.subr.mxu0 0.0
      %882 = vmatpush1.msra.mxu0 %v772
      %883 = vmatprep.subr.mxu0 0.0
      %884 = vmatpush2.msra.mxu0 0.0
      %885 = vmatprep.subr.mxu0 0.0
      %886 = vmatpush2.msra.mxu0 0.0
      %887 = vmatprep.subr.mxu0 0.0
      %888 = vmatpush2.msra.mxu0 0.0
      %889 = vmatprep.subr.mxu0 0.0
      %890 = vmatpush2.msra.mxu0 0.0
      %891 = vmatprep.subr.mxu0 0.0
      %892 = vmatpush2.msra.mxu0 0.0
      %893 = vmatprep.subr.mxu0 0.0
      %894 = vmatpush2.msra.mxu0 0.0
      %895 = vmatprep.subr.mxu0 0.0
      %896 = vmatpush2.msra.mxu0 0.0
      %897 = vmatprep.subr.mxu0 0.0
      %898 = vmatpush2.msra.mxu0 0.0
      %899 = vmatprep.subr.mxu0 0.0
      %900 = vmatpush2.msra.mxu0 0.0
      %901 = vmatprep.subr.mxu0 0.0
      %902 = vmatpush2.msra.mxu0 0.0
      %903 = vmatprep.subr.mxu0 0.0
      %904 = vmatpush2.msra.mxu0 0.0
      %905 = vmatprep.subr.mxu0 0.0
      %906 = vmatpush2.msra.mxu0 0.0
      %907 = vmatprep.subr.mxu0 0.0
      %908 = vmatpush2.msra.mxu0 0.0
      %909 = vmatprep.subr.mxu0 0.0
      %910 = vmatpush2.msra.mxu0 0.0
      %911 = vmatprep.subr.mxu0 0.0
      %912 = vmatpush2.msra.mxu0 0.0
      %913 = vmatprep.subr.mxu0 0.0
      %914 = vmatpush2.msra.mxu0 0.0
      %915 = vmatprep.mubr.f32.mxu0 0.0
      %916 = vmatmul.mubr.f32.gmra.mxu0 %v778
      %v917 = vpop.f32.mrf.mxu0
      %v918 = vadd.f32 0.0, %v917
      %v919 = vpop.f32.mrf.mxu0
      %920 = vdwg.mxu0
      %v921 = vadd.f32 %v737, %v847
      %v922 = vadd.f32 %v738, %v849
      %v923 = vadd.f32 %v739, %v918
      %924 = vrot.lane.b32.xlu0 %v259, 96
      %v925 = vpop.permute.xlu0 %924
      %v926 = vsel %vm276, %v925, 0
      %928 = vmatprep.subr.mxu0 0.0
      %929 = vmatpush1.msra.mxu0 0.0
      %930 = vmatprep.subr.mxu0 0.0
      %931 = vmatpush1.msra.mxu0 0.0
      %932 = vmatprep.subr.mxu0 0.0
      %933 = vmatpush1.msra.mxu0 0.0
      %934 = vmatprep.subr.mxu0 0.0
      %935 = vmatpush1.msra.mxu0 0.0
      %936 = vmatprep.subr.mxu0 0.0
      %937 = vmatpush1.msra.mxu0 0.0
      %938 = vmatprep.subr.mxu0 0.0
      %939 = vmatpush1.msra.mxu0 0.0
      %940 = vmatprep.subr.mxu0 0.0
      %941 = vmatpush1.msra.mxu0 0.0
      %942 = vmatprep.subr.mxu0 0.0
      %943 = vmatpush1.msra.mxu0 0.0
      %944 = vmatprep.subr.mxu0 0.0
      %945 = vmatpush1.msra.mxu0 0.0
      %946 = vmatprep.subr.mxu0 0.0
      %947 = vmatpush1.msra.mxu0 0.0
      %948 = vmatprep.subr.mxu0 0.0
      %949 = vmatpush1.msra.mxu0 0.0
      %950 = vmatprep.subr.mxu0 0.0
      %951 = vmatpush1.msra.mxu0 0.0
      %952 = vmatprep.subr.mxu0 0.0
      %953 = vmatpush1.msra.mxu0 0.0
      %954 = vmatprep.subr.mxu0 0.0
      %955 = vmatpush1.msra.mxu0 0.0
      %956 = vmatprep.subr.mxu0 0.0
      %957 = vmatpush1.msra.mxu0 0.0
      %958 = vmatprep.subr.mxu0 %v749
      %959 = vmatpush1.msra.mxu0 %v748
      %960 = vmatprep.subr.mxu0 0.0
      %961 = vmatpush2.msra.mxu0 0.0
      %962 = vmatprep.subr.mxu0 0.0
      %963 = vmatpush2.msra.mxu0 0.0
      %964 = vmatprep.subr.mxu0 0.0
      %965 = vmatpush2.msra.mxu0 0.0
      %966 = vmatprep.subr.mxu0 0.0
      %967 = vmatpush2.msra.mxu0 0.0
      %968 = vmatprep.subr.mxu0 0.0
      %969 = vmatpush2.msra.mxu0 0.0
      %970 = vmatprep.subr.mxu0 0.0
      %971 = vmatpush2.msra.mxu0 0.0
      %972 = vmatprep.subr.mxu0 0.0
      %973 = vmatpush2.msra.mxu0 0.0
      %974 = vmatprep.subr.mxu0 0.0
      %975 = vmatpush2.msra.mxu0 0.0
      %976 = vmatprep.subr.mxu0 0.0
      %977 = vmatpush2.msra.mxu0 0.0
      %978 = vmatprep.subr.mxu0 0.0
      %979 = vmatpush2.msra.mxu0 0.0
      %980 = vmatprep.subr.mxu0 0.0
      %981 = vmatpush2.msra.mxu0 0.0
      %982 = vmatprep.subr.mxu0 0.0
      %983 = vmatpush2.msra.mxu0 0.0
      %984 = vmatprep.subr.mxu0 0.0
      %985 = vmatpush2.msra.mxu0 0.0
      %986 = vmatprep.subr.mxu0 0.0
      %987 = vmatpush2.msra.mxu0 0.0
      %988 = vmatprep.subr.mxu0 0.0
      %989 = vmatpush2.msra.mxu0 0.0
      %990 = vmatprep.subr.mxu0 0.0
      %991 = vmatpush2.msra.mxu0 0.0
      %992 = vmatprep.mubr.f32.mxu0 0.0
      %993 = vmatmul.mubr.f32.gmra.mxu0 %v926
      %v994 = vpop.f32.mrf.mxu0
      %v995 = vadd.f32 0.0, %v994
      %v996 = vpop.f32.mrf.mxu0
      %v997 = vadd.f32 0.0, %v996
      %998 = vdwg.mxu0
      %999 = vmatprep.subr.mxu0 0.0
      %1000 = vmatpush1.msra.mxu0 0.0
      %1001 = vmatprep.subr.mxu0 0.0
      %1002 = vmatpush1.msra.mxu0 0.0
      %1003 = vmatprep.subr.mxu0 0.0
      %1004 = vmatpush1.msra.mxu0 0.0
      %1005 = vmatprep.subr.mxu0 0.0
      %1006 = vmatpush1.msra.mxu0 0.0
      %1007 = vmatprep.subr.mxu0 0.0
      %1008 = vmatpush1.msra.mxu0 0.0
      %1009 = vmatprep.subr.mxu0 0.0
      %1010 = vmatpush1.msra.mxu0 0.0
      %1011 = vmatprep.subr.mxu0 0.0
      %1012 = vmatpush1.msra.mxu0 0.0
      %1013 = vmatprep.subr.mxu0 0.0
      %1014 = vmatpush1.msra.mxu0 0.0
      %1015 = vmatprep.subr.mxu0 0.0
      %1016 = vmatpush1.msra.mxu0 0.0
      %1017 = vmatprep.subr.mxu0 0.0
      %1018 = vmatpush1.msra.mxu0 0.0
      %1019 = vmatprep.subr.mxu0 0.0
      %1020 = vmatpush1.msra.mxu0 0.0
      %1021 = vmatprep.subr.mxu0 0.0
      %1022 = vmatpush1.msra.mxu0 0.0
      %1023 = vmatprep.subr.mxu0 0.0
      %1024 = vmatpush1.msra.mxu0 0.0
      %1025 = vmatprep.subr.mxu0 0.0
      %1026 = vmatpush1.msra.mxu0 0.0
      %1027 = vmatprep.subr.mxu0 0.0
      %1028 = vmatpush1.msra.mxu0 0.0
      %1029 = vmatprep.subr.mxu0 0.0
      %1030 = vmatpush1.msra.mxu0 %v746
      %1031 = vmatprep.subr.mxu0 0.0
      %1032 = vmatpush2.msra.mxu0 0.0
      %1033 = vmatprep.subr.mxu0 0.0
      %1034 = vmatpush2.msra.mxu0 0.0
      %1035 = vmatprep.subr.mxu0 0.0
      %1036 = vmatpush2.msra.mxu0 0.0
      %1037 = vmatprep.subr.mxu0 0.0
      %1038 = vmatpush2.msra.mxu0 0.0
      %1039 = vmatprep.subr.mxu0 0.0
      %1040 = vmatpush2.msra.mxu0 0.0
      %1041 = vmatprep.subr.mxu0 0.0
      %1042 = vmatpush2.msra.mxu0 0.0
      %1043 = vmatprep.subr.mxu0 0.0
      %1044 = vmatpush2.msra.mxu0 0.0
      %1045 = vmatprep.subr.mxu0 0.0
      %1046 = vmatpush2.msra.mxu0 0.0
      %1047 = vmatprep.subr.mxu0 0.0
      %1048 = vmatpush2.msra.mxu0 0.0
      %1049 = vmatprep.subr.mxu0 0.0
      %1050 = vmatpush2.msra.mxu0 0.0
      %1051 = vmatprep.subr.mxu0 0.0
      %1052 = vmatpush2.msra.mxu0 0.0
      %1053 = vmatprep.subr.mxu0 0.0
      %1054 = vmatpush2.msra.mxu0 0.0
      %1055 = vmatprep.subr.mxu0 0.0
      %1056 = vmatpush2.msra.mxu0 0.0
      %1057 = vmatprep.subr.mxu0 0.0
      %1058 = vmatpush2.msra.mxu0 0.0
      %1059 = vmatprep.subr.mxu0 0.0
      %1060 = vmatpush2.msra.mxu0 0.0
      %1061 = vmatprep.subr.mxu0 0.0
      %1062 = vmatpush2.msra.mxu0 0.0
      %1063 = vmatprep.mubr.f32.mxu0 0.0
      %1064 = vmatmul.mubr.f32.gmra.mxu0 %v926
      %v1065 = vpop.f32.mrf.mxu0
      %v1066 = vadd.f32 0.0, %v1065
      %v1067 = vpop.f32.mrf.mxu0
      %1068 = vdwg.mxu0
      %v1069 = vadd.f32 %v921, %v995
      %v1070 = vadd.f32 %v922, %v997
      %v1071 = vadd.f32 %v923, %v1066
      %1072 = vrot.lane.b32.xlu0 %v259, 88
      %v1073 = vpop.permute.xlu0 %1072
      %1074 = vrot.lane.b32.xlu0 %v748, 127
      %v1075 = vpop.permute.xlu0 %1074
      %1076 = vrot.lane.b32.xlu0 %v749, 127
      %v1077 = vpop.permute.xlu0 %1076
      %1078 = vrot.lane.b32.xlu0 %v755, 127
      %v1079 = vpop.permute.xlu0 %1078
      %v1080 = vsel %vm588, %v1075, %v1077
      %v1081 = vsel %vm588, %v1077, %v1079
      %v1085 = vsel %vm276, %v1073, 0
      %1087 = vmatprep.subr.mxu0 0.0
      %1088 = vmatpush1.msra.mxu0 0.0
      %1089 = vmatprep.subr.mxu0 0.0
      %1090 = vmatpush1.msra.mxu0 0.0
      %1091 = vmatprep.subr.mxu0 0.0
      %1092 = vmatpush1.msra.mxu0 0.0
      %1093 = vmatprep.subr.mxu0 0.0
      %1094 = vmatpush1.msra.mxu0 0.0
      %1095 = vmatprep.subr.mxu0 0.0
      %1096 = vmatpush1.msra.mxu0 0.0
      %1097 = vmatprep.subr.mxu0 0.0
      %1098 = vmatpush1.msra.mxu0 0.0
      %1099 = vmatprep.subr.mxu0 0.0
      %1100 = vmatpush1.msra.mxu0 0.0
      %1101 = vmatprep.subr.mxu0 0.0
      %1102 = vmatpush1.msra.mxu0 0.0
      %1103 = vmatprep.subr.mxu0 0.0
      %1104 = vmatpush1.msra.mxu0 0.0
      %1105 = vmatprep.subr.mxu0 0.0
      %1106 = vmatpush1.msra.mxu0 0.0
      %1107 = vmatprep.subr.mxu0 0.0
      %1108 = vmatpush1.msra.mxu0 0.0
      %1109 = vmatprep.subr.mxu0 0.0
      %1110 = vmatpush1.msra.mxu0 0.0
      %1111 = vmatprep.subr.mxu0 0.0
      %1112 = vmatpush1.msra.mxu0 0.0
      %1113 = vmatprep.subr.mxu0 0.0
      %1114 = vmatpush1.msra.mxu0 0.0
      %1115 = vmatprep.subr.mxu0 0.0
      %1116 = vmatpush1.msra.mxu0 0.0
      %1117 = vmatprep.subr.mxu0 %v1081
      %1118 = vmatpush1.msra.mxu0 %v1080
      %1119 = vmatprep.subr.mxu0 0.0
      %1120 = vmatpush2.msra.mxu0 0.0
      %1121 = vmatprep.subr.mxu0 0.0
      %1122 = vmatpush2.msra.mxu0 0.0
      %1123 = vmatprep.subr.mxu0 0.0
      %1124 = vmatpush2.msra.mxu0 0.0
      %1125 = vmatprep.subr.mxu0 0.0
      %1126 = vmatpush2.msra.mxu0 0.0
      %1127 = vmatprep.subr.mxu0 0.0
      %1128 = vmatpush2.msra.mxu0 0.0
      %1129 = vmatprep.subr.mxu0 0.0
      %1130 = vmatpush2.msra.mxu0 0.0
      %1131 = vmatprep.subr.mxu0 0.0
      %1132 = vmatpush2.msra.mxu0 0.0
      %1133 = vmatprep.subr.mxu0 0.0
      %1134 = vmatpush2.msra.mxu0 0.0
      %1135 = vmatprep.subr.mxu0 0.0
      %1136 = vmatpush2.msra.mxu0 0.0
      %1137 = vmatprep.subr.mxu0 0.0
      %1138 = vmatpush2.msra.mxu0 0.0
      %1139 = vmatprep.subr.mxu0 0.0
      %1140 = vmatpush2.msra.mxu0 0.0
      %1141 = vmatprep.subr.mxu0 0.0
      %1142 = vmatpush2.msra.mxu0 0.0
      %1143 = vmatprep.subr.mxu0 0.0
      %1144 = vmatpush2.msra.mxu0 0.0
      %1145 = vmatprep.subr.mxu0 0.0
      %1146 = vmatpush2.msra.mxu0 0.0
      %1147 = vmatprep.subr.mxu0 0.0
      %1148 = vmatpush2.msra.mxu0 0.0
      %1149 = vmatprep.subr.mxu0 0.0
      %1150 = vmatpush2.msra.mxu0 0.0
      %1151 = vmatprep.mubr.f32.mxu0 0.0
      %1152 = vmatmul.mubr.f32.gmra.mxu0 %v1085
      %v1153 = vpop.f32.mrf.mxu0
      %v1154 = vadd.f32 0.0, %v1153
      %v1155 = vpop.f32.mrf.mxu0
      %v1156 = vadd.f32 0.0, %v1155
      %1157 = vdwg.mxu0
      %1158 = vmatprep.subr.mxu0 0.0
      %1159 = vmatpush1.msra.mxu0 0.0
      %1160 = vmatprep.subr.mxu0 0.0
      %1161 = vmatpush1.msra.mxu0 0.0
      %1162 = vmatprep.subr.mxu0 0.0
      %1163 = vmatpush1.msra.mxu0 0.0
      %1164 = vmatprep.subr.mxu0 0.0
      %1165 = vmatpush1.msra.mxu0 0.0
      %1166 = vmatprep.subr.mxu0 0.0
      %1167 = vmatpush1.msra.mxu0 0.0
      %1168 = vmatprep.subr.mxu0 0.0
      %1169 = vmatpush1.msra.mxu0 0.0
      %1170 = vmatprep.subr.mxu0 0.0
      %1171 = vmatpush1.msra.mxu0 0.0
      %1172 = vmatprep.subr.mxu0 0.0
      %1173 = vmatpush1.msra.mxu0 0.0
      %1174 = vmatprep.subr.mxu0 0.0
      %1175 = vmatpush1.msra.mxu0 0.0
      %1176 = vmatprep.subr.mxu0 0.0
      %1177 = vmatpush1.msra.mxu0 0.0
      %1178 = vmatprep.subr.mxu0 0.0
      %1179 = vmatpush1.msra.mxu0 0.0
      %1180 = vmatprep.subr.mxu0 0.0
      %1181 = vmatpush1.msra.mxu0 0.0
      %1182 = vmatprep.subr.mxu0 0.0
      %1183 = vmatpush1.msra.mxu0 0.0
      %1184 = vmatprep.subr.mxu0 0.0
      %1185 = vmatpush1.msra.mxu0 0.0
      %1186 = vmatprep.subr.mxu0 0.0
      %1187 = vmatpush1.msra.mxu0 0.0
      %1188 = vmatprep.subr.mxu0 0.0
      %1189 = vmatpush1.msra.mxu0 %v1079
      %1190 = vmatprep.subr.mxu0 0.0
      %1191 = vmatpush2.msra.mxu0 0.0
      %1192 = vmatprep.subr.mxu0 0.0
      %1193 = vmatpush2.msra.mxu0 0.0
      %1194 = vmatprep.subr.mxu0 0.0
      %1195 = vmatpush2.msra.mxu0 0.0
      %1196 = vmatprep.subr.mxu0 0.0
      %1197 = vmatpush2.msra.mxu0 0.0
      %1198 = vmatprep.subr.mxu0 0.0
      %1199 = vmatpush2.msra.mxu0 0.0
      %1200 = vmatprep.subr.mxu0 0.0
      %1201 = vmatpush2.msra.mxu0 0.0
      %1202 = vmatprep.subr.mxu0 0.0
      %1203 = vmatpush2.msra.mxu0 0.0
      %1204 = vmatprep.subr.mxu0 0.0
      %1205 = vmatpush2.msra.mxu0 0.0
      %1206 = vmatprep.subr.mxu0 0.0
      %1207 = vmatpush2.msra.mxu0 0.0
      %1208 = vmatprep.subr.mxu0 0.0
      %1209 = vmatpush2.msra.mxu0 0.0
      %1210 = vmatprep.subr.mxu0 0.0
      %1211 = vmatpush2.msra.mxu0 0.0
      %1212 = vmatprep.subr.mxu0 0.0
      %1213 = vmatpush2.msra.mxu0 0.0
      %1214 = vmatprep.subr.mxu0 0.0
      %1215 = vmatpush2.msra.mxu0 0.0
      %1216 = vmatprep.subr.mxu0 0.0
      %1217 = vmatpush2.msra.mxu0 0.0
      %1218 = vmatprep.subr.mxu0 0.0
      %1219 = vmatpush2.msra.mxu0 0.0
      %1220 = vmatprep.subr.mxu0 0.0
      %1221 = vmatpush2.msra.mxu0 0.0
      %1222 = vmatprep.mubr.f32.mxu0 0.0
      %1223 = vmatmul.mubr.f32.gmra.mxu0 %v1085
      %v1224 = vpop.f32.mrf.mxu0
      %v1225 = vadd.f32 0.0, %v1224
      %v1226 = vpop.f32.mrf.mxu0
      %1227 = vdwg.mxu0
      %v1228 = vadd.f32 %v1069, %v1154
      %v1229 = vadd.f32 %v1070, %v1156
      %v1230 = vadd.f32 %v1071, %v1225
      %1231 = vrot.lane.b32.xlu0 %v260, 92
      %v1232 = vpop.permute.xlu0 %1231
      %1233 = vrot.lane.b32.xlu0 %v261, 92
      %v1234 = vpop.permute.xlu0 %1233
      %1235 = vrot.lane.b32.xlu0 %v262, 92
      %v1236 = vpop.permute.xlu0 %1235
      %vm1237 = vcmask 752640
      %v1238 = vsel %vm1237, %v1232, %v1234
      %v1239 = vsel %vm1237, %v1234, %v1236
      %1243 = vrot.lane.b32.xlu0 %v1238, 32
      %v1244 = vpop.permute.xlu0 %1243
      %v1245 = vsel %vm263, %v1244, %v1236
      %1246 = vrot.lane.b32.xlu0 %v1239, 32
      %v1247 = vpop.permute.xlu0 %1246
      %1248 = vrot.lane.b32.xlu0 %v1245, 32
      %v1249 = vpop.permute.xlu0 %1248
      %v1250 = vsel %vm263, %v1247, %v1244
      %v1251 = vsel %vm263, %v1249, %v1247
      %1252 = vrot.lane.b32.xlu0 %v259, 80
      %v1253 = vpop.permute.xlu0 %1252
      %1257 = vrot.lane.b32.xlu0 %v1245, 97
      %v1258 = vpop.permute.xlu0 %1257
      %1259 = vrot.lane.b32.xlu0 %v1250, 97
      %v1260 = vpop.permute.xlu0 %1259
      %1261 = vrot.lane.b32.xlu0 %v1251, 97
      %v1262 = vpop.permute.xlu0 %1261
      %v1263 = vsel %vm429, %v1258, %v1260
      %v1264 = vsel %vm429, %v1260, %v1262
      %v1268 = vsel %vm276, %v1253, 0
      %1270 = vmatprep.subr.mxu0 0.0
      %1271 = vmatpush1.msra.mxu0 0.0
      %1272 = vmatprep.subr.mxu0 0.0
      %1273 = vmatpush1.msra.mxu0 0.0
      %1274 = vmatprep.subr.mxu0 0.0
      %1275 = vmatpush1.msra.mxu0 0.0
      %1276 = vmatprep.subr.mxu0 0.0
      %1277 = vmatpush1.msra.mxu0 0.0
      %1278 = vmatprep.subr.mxu0 0.0
      %1279 = vmatpush1.msra.mxu0 0.0
      %1280 = vmatprep.subr.mxu0 0.0
      %1281 = vmatpush1.msra.mxu0 0.0
      %1282 = vmatprep.subr.mxu0 0.0
      %1283 = vmatpush1.msra.mxu0 0.0
      %1284 = vmatprep.subr.mxu0 0.0
      %1285 = vmatpush1.msra.mxu0 0.0
      %1286 = vmatprep.subr.mxu0 0.0
      %1287 = vmatpush1.msra.mxu0 0.0
      %1288 = vmatprep.subr.mxu0 0.0
      %1289 = vmatpush1.msra.mxu0 0.0
      %1290 = vmatprep.subr.mxu0 0.0
      %1291 = vmatpush1.msra.mxu0 0.0
      %1292 = vmatprep.subr.mxu0 0.0
      %1293 = vmatpush1.msra.mxu0 0.0
      %1294 = vmatprep.subr.mxu0 0.0
      %1295 = vmatpush1.msra.mxu0 0.0
      %1296 = vmatprep.subr.mxu0 0.0
      %1297 = vmatpush1.msra.mxu0 0.0
      %1298 = vmatprep.subr.mxu0 0.0
      %1299 = vmatpush1.msra.mxu0 0.0
      %1300 = vmatprep.subr.mxu0 %v1264
      %1301 = vmatpush1.msra.mxu0 %v1263
      %1302 = vmatprep.subr.mxu0 0.0
      %1303 = vmatpush2.msra.mxu0 0.0
      %1304 = vmatprep.subr.mxu0 0.0
      %1305 = vmatpush2.msra.mxu0 0.0
      %1306 = vmatprep.subr.mxu0 0.0
      %1307 = vmatpush2.msra.mxu0 0.0
      %1308 = vmatprep.subr.mxu0 0.0
      %1309 = vmatpush2.msra.mxu0 0.0
      %1310 = vmatprep.subr.mxu0 0.0
      %1311 = vmatpush2.msra.mxu0 0.0
      %1312 = vmatprep.subr.mxu0 0.0
      %1313 = vmatpush2.msra.mxu0 0.0
      %1314 = vmatprep.subr.mxu0 0.0
      %1315 = vmatpush2.msra.mxu0 0.0
      %1316 = vmatprep.subr.mxu0 0.0
      %1317 = vmatpush2.msra.mxu0 0.0
      %1318 = vmatprep.subr.mxu0 0.0
      %1319 = vmatpush2.msra.mxu0 0.0
      %1320 = vmatprep.subr.mxu0 0.0
      %1321 = vmatpush2.msra.mxu0 0.0
      %1322 = vmatprep.subr.mxu0 0.0
      %1323 = vmatpush2.msra.mxu0 0.0
      %1324 = vmatprep.subr.mxu0 0.0
      %1325 = vmatpush2.msra.mxu0 0.0
      %1326 = vmatprep.subr.mxu0 0.0
      %1327 = vmatpush2.msra.mxu0 0.0
      %1328 = vmatprep.subr.mxu0 0.0
      %1329 = vmatpush2.msra.mxu0 0.0
      %1330 = vmatprep.subr.mxu0 0.0
      %1331 = vmatpush2.msra.mxu0 0.0
      %1332 = vmatprep.subr.mxu0 0.0
      %1333 = vmatpush2.msra.mxu0 0.0
      %1334 = vmatprep.mubr.f32.mxu0 0.0
      %1335 = vmatmul.mubr.f32.gmra.mxu0 %v1268
      %v1336 = vpop.f32.mrf.mxu0
      %v1337 = vadd.f32 0.0, %v1336
      %v1338 = vpop.f32.mrf.mxu0
      %v1339 = vadd.f32 0.0, %v1338
      %1340 = vdwg.mxu0
      %1341 = vmatprep.subr.mxu0 0.0
      %1342 = vmatpush1.msra.mxu0 0.0
      %1343 = vmatprep.subr.mxu0 0.0
      %1344 = vmatpush1.msra.mxu0 0.0
      %1345 = vmatprep.subr.mxu0 0.0
      %1346 = vmatpush1.msra.mxu0 0.0
      %1347 = vmatprep.subr.mxu0 0.0
      %1348 = vmatpush1.msra.mxu0 0.0
      %1349 = vmatprep.subr.mxu0 0.0
      %1350 = vmatpush1.msra.mxu0 0.0
      %1351 = vmatprep.subr.mxu0 0.0
      %1352 = vmatpush1.msra.mxu0 0.0
      %1353 = vmatprep.subr.mxu0 0.0
      %1354 = vmatpush1.msra.mxu0 0.0
      %1355 = vmatprep.subr.mxu0 0.0
      %1356 = vmatpush1.msra.mxu0 0.0
      %1357 = vmatprep.subr.mxu0 0.0
      %1358 = vmatpush1.msra.mxu0 0.0
      %1359 = vmatprep.subr.mxu0 0.0
      %1360 = vmatpush1.msra.mxu0 0.0
      %1361 = vmatprep.subr.mxu0 0.0
      %1362 = vmatpush1.msra.mxu0 0.0
      %1363 = vmatprep.subr.mxu0 0.0
      %1364 = vmatpush1.msra.mxu0 0.0
      %1365 = vmatprep.subr.mxu0 0.0
      %1366 = vmatpush1.msra.mxu0 0.0
      %1367 = vmatprep.subr.mxu0 0.0
      %1368 = vmatpush1.msra.mxu0 0.0
      %1369 = vmatprep.subr.mxu0 0.0
      %1370 = vmatpush1.msra.mxu0 0.0
      %1371 = vmatprep.subr.mxu0 0.0
      %1372 = vmatpush1.msra.mxu0 %v1262
      %1373 = vmatprep.subr.mxu0 0.0
      %1374 = vmatpush2.msra.mxu0 0.0
      %1375 = vmatprep.subr.mxu0 0.0
      %1376 = vmatpush2.msra.mxu0 0.0
      %1377 = vmatprep.subr.mxu0 0.0
      %1378 = vmatpush2.msra.mxu0 0.0
      %1379 = vmatprep.subr.mxu0 0.0
      %1380 = vmatpush2.msra.mxu0 0.0
      %1381 = vmatprep.subr.mxu0 0.0
      %1382 = vmatpush2.msra.mxu0 0.0
      %1383 = vmatprep.subr.mxu0 0.0
      %1384 = vmatpush2.msra.mxu0 0.0
      %1385 = vmatprep.subr.mxu0 0.0
      %1386 = vmatpush2.msra.mxu0 0.0
      %1387 = vmatprep.subr.mxu0 0.0
      %1388 = vmatpush2.msra.mxu0 0.0
      %1389 = vmatprep.subr.mxu0 0.0
      %1390 = vmatpush2.msra.mxu0 0.0
      %1391 = vmatprep.subr.mxu0 0.0
      %1392 = vmatpush2.msra.mxu0 0.0
      %1393 = vmatprep.subr.mxu0 0.0
      %1394 = vmatpush2.msra.mxu0 0.0
      %1395 = vmatprep.subr.mxu0 0.0
      %1396 = vmatpush2.msra.mxu0 0.0
      %1397 = vmatprep.subr.mxu0 0.0
      %1398 = vmatpush2.msra.mxu0 0.0
      %1399 = vmatprep.subr.mxu0 0.0
      %1400 = vmatpush2.msra.mxu0 0.0
      %1401 = vmatprep.subr.mxu0 0.0
      %1402 = vmatpush2.msra.mxu0 0.0
      %1403 = vmatprep.subr.mxu0 0.0
      %1404 = vmatpush2.msra.mxu0 0.0
      %1405 = vmatprep.mubr.f32.mxu0 0.0
      %1406 = vmatmul.mubr.f32.gmra.mxu0 %v1268
      %v1407 = vpop.f32.mrf.mxu0
      %v1408 = vadd.f32 0.0, %v1407
      %v1409 = vpop.f32.mrf.mxu0
      %1410 = vdwg.mxu0
      %v1411 = vadd.f32 %v1228, %v1337
      %v1412 = vadd.f32 %v1229, %v1339
      %v1413 = vadd.f32 %v1230, %v1408
      %1414 = vrot.lane.b32.xlu0 %v259, 72
      %v1415 = vpop.permute.xlu0 %1414
      %v1416 = vsel %vm276, %v1415, 0
      %1418 = vmatprep.subr.mxu0 0.0
      %1419 = vmatpush1.msra.mxu0 0.0
      %1420 = vmatprep.subr.mxu0 0.0
      %1421 = vmatpush1.msra.mxu0 0.0
      %1422 = vmatprep.subr.mxu0 0.0
      %1423 = vmatpush1.msra.mxu0 0.0
      %1424 = vmatprep.subr.mxu0 0.0
      %1425 = vmatpush1.msra.mxu0 0.0
      %1426 = vmatprep.subr.mxu0 0.0
      %1427 = vmatpush1.msra.mxu0 0.0
      %1428 = vmatprep.subr.mxu0 0.0
      %1429 = vmatpush1.msra.mxu0 0.0
      %1430 = vmatprep.subr.mxu0 0.0
      %1431 = vmatpush1.msra.mxu0 0.0
      %1432 = vmatprep.subr.mxu0 0.0
      %1433 = vmatpush1.msra.mxu0 0.0
      %1434 = vmatprep.subr.mxu0 0.0
      %1435 = vmatpush1.msra.mxu0 0.0
      %1436 = vmatprep.subr.mxu0 0.0
      %1437 = vmatpush1.msra.mxu0 0.0
      %1438 = vmatprep.subr.mxu0 0.0
      %1439 = vmatpush1.msra.mxu0 0.0
      %1440 = vmatprep.subr.mxu0 0.0
      %1441 = vmatpush1.msra.mxu0 0.0
      %1442 = vmatprep.subr.mxu0 0.0
      %1443 = vmatpush1.msra.mxu0 0.0
      %1444 = vmatprep.subr.mxu0 0.0
      %1445 = vmatpush1.msra.mxu0 0.0
      %1446 = vmatprep.subr.mxu0 0.0
      %1447 = vmatpush1.msra.mxu0 0.0
      %1448 = vmatprep.subr.mxu0 %v1239
      %1449 = vmatpush1.msra.mxu0 %v1238
      %1450 = vmatprep.subr.mxu0 0.0
      %1451 = vmatpush2.msra.mxu0 0.0
      %1452 = vmatprep.subr.mxu0 0.0
      %1453 = vmatpush2.msra.mxu0 0.0
      %1454 = vmatprep.subr.mxu0 0.0
      %1455 = vmatpush2.msra.mxu0 0.0
      %1456 = vmatprep.subr.mxu0 0.0
      %1457 = vmatpush2.msra.mxu0 0.0
      %1458 = vmatprep.subr.mxu0 0.0
      %1459 = vmatpush2.msra.mxu0 0.0
      %1460 = vmatprep.subr.mxu0 0.0
      %1461 = vmatpush2.msra.mxu0 0.0
      %1462 = vmatprep.subr.mxu0 0.0
      %1463 = vmatpush2.msra.mxu0 0.0
      %1464 = vmatprep.subr.mxu0 0.0
      %1465 = vmatpush2.msra.mxu0 0.0
      %1466 = vmatprep.subr.mxu0 0.0
      %1467 = vmatpush2.msra.mxu0 0.0
      %1468 = vmatprep.subr.mxu0 0.0
      %1469 = vmatpush2.msra.mxu0 0.0
      %1470 = vmatprep.subr.mxu0 0.0
      %1471 = vmatpush2.msra.mxu0 0.0
      %1472 = vmatprep.subr.mxu0 0.0
      %1473 = vmatpush2.msra.mxu0 0.0
      %1474 = vmatprep.subr.mxu0 0.0
      %1475 = vmatpush2.msra.mxu0 0.0
      %1476 = vmatprep.subr.mxu0 0.0
      %1477 = vmatpush2.msra.mxu0 0.0
      %1478 = vmatprep.subr.mxu0 0.0
      %1479 = vmatpush2.msra.mxu0 0.0
      %1480 = vmatprep.subr.mxu0 0.0
      %1481 = vmatpush2.msra.mxu0 0.0
      %1482 = vmatprep.mubr.f32.mxu0 0.0
      %1483 = vmatmul.mubr.f32.gmra.mxu0 %v1416
      %v1484 = vpop.f32.mrf.mxu0
      %v1485 = vadd.f32 0.0, %v1484
      %v1486 = vpop.f32.mrf.mxu0
      %v1487 = vadd.f32 0.0, %v1486
      %1488 = vdwg.mxu0
      %1489 = vmatprep.subr.mxu0 0.0
      %1490 = vmatpush1.msra.mxu0 0.0
      %1491 = vmatprep.subr.mxu0 0.0
      %1492 = vmatpush1.msra.mxu0 0.0
      %1493 = vmatprep.subr.mxu0 0.0
      %1494 = vmatpush1.msra.mxu0 0.0
      %1495 = vmatprep.subr.mxu0 0.0
      %1496 = vmatpush1.msra.mxu0 0.0
      %1497 = vmatprep.subr.mxu0 0.0
      %1498 = vmatpush1.msra.mxu0 0.0
      %1499 = vmatprep.subr.mxu0 0.0
      %1500 = vmatpush1.msra.mxu0 0.0
      %1501 = vmatprep.subr.mxu0 0.0
      %1502 = vmatpush1.msra.mxu0 0.0
      %1503 = vmatprep.subr.mxu0 0.0
      %1504 = vmatpush1.msra.mxu0 0.0
      %1505 = vmatprep.subr.mxu0 0.0
      %1506 = vmatpush1.msra.mxu0 0.0
      %1507 = vmatprep.subr.mxu0 0.0
      %1508 = vmatpush1.msra.mxu0 0.0
      %1509 = vmatprep.subr.mxu0 0.0
      %1510 = vmatpush1.msra.mxu0 0.0
      %1511 = vmatprep.subr.mxu0 0.0
      %1512 = vmatpush1.msra.mxu0 0.0
      %1513 = vmatprep.subr.mxu0 0.0
      %1514 = vmatpush1.msra.mxu0 0.0
      %1515 = vmatprep.subr.mxu0 0.0
      %1516 = vmatpush1.msra.mxu0 0.0
      %1517 = vmatprep.subr.mxu0 0.0
      %1518 = vmatpush1.msra.mxu0 0.0
      %1519 = vmatprep.subr.mxu0 0.0
      %1520 = vmatpush1.msra.mxu0 %v1236
      %1521 = vmatprep.subr.mxu0 0.0
      %1522 = vmatpush2.msra.mxu0 0.0
      %1523 = vmatprep.subr.mxu0 0.0
      %1524 = vmatpush2.msra.mxu0 0.0
      %1525 = vmatprep.subr.mxu0 0.0
      %1526 = vmatpush2.msra.mxu0 0.0
      %1527 = vmatprep.subr.mxu0 0.0
      %1528 = vmatpush2.msra.mxu0 0.0
      %1529 = vmatprep.subr.mxu0 0.0
      %1530 = vmatpush2.msra.mxu0 0.0
      %1531 = vmatprep.subr.mxu0 0.0
      %1532 = vmatpush2.msra.mxu0 0.0
      %1533 = vmatprep.subr.mxu0 0.0
      %1534 = vmatpush2.msra.mxu0 0.0
      %1535 = vmatprep.subr.mxu0 0.0
      %1536 = vmatpush2.msra.mxu0 0.0
      %1537 = vmatprep.subr.mxu0 0.0
      %1538 = vmatpush2.msra.mxu0 0.0
      %1539 = vmatprep.subr.mxu0 0.0
      %1540 = vmatpush2.msra.mxu0 0.0
      %1541 = vmatprep.subr.mxu0 0.0
      %1542 = vmatpush2.msra.mxu0 0.0
      %1543 = vmatprep.subr.mxu0 0.0
      %1544 = vmatpush2.msra.mxu0 0.0
      %1545 = vmatprep.subr.mxu0 0.0
      %1546 = vmatpush2.msra.mxu0 0.0
      %1547 = vmatprep.subr.mxu0 0.0
      %1548 = vmatpush2.msra.mxu0 0.0
      %1549 = vmatprep.subr.mxu0 0.0
      %1550 = vmatpush2.msra.mxu0 0.0
      %1551 = vmatprep.subr.mxu0 0.0
      %1552 = vmatpush2.msra.mxu0 0.0
      %1553 = vmatprep.mubr.f32.mxu0 0.0
      %1554 = vmatmul.mubr.f32.gmra.mxu0 %v1416
      %v1555 = vpop.f32.mrf.mxu0
      %v1556 = vadd.f32 0.0, %v1555
      %v1557 = vpop.f32.mrf.mxu0
      %1558 = vdwg.mxu0
      %v1559 = vadd.f32 %v1411, %v1485
      %v1560 = vadd.f32 %v1412, %v1487
      %v1561 = vadd.f32 %v1413, %v1556
      %1562 = vrot.lane.b32.xlu0 %v259, 64
      %v1563 = vpop.permute.xlu0 %1562
      %1564 = vrot.lane.b32.xlu0 %v1238, 127
      %v1565 = vpop.permute.xlu0 %1564
      %1566 = vrot.lane.b32.xlu0 %v1239, 127
      %v1567 = vpop.permute.xlu0 %1566
      %1568 = vrot.lane.b32.xlu0 %v1245, 127
      %v1569 = vpop.permute.xlu0 %1568
      %v1570 = vsel %vm588, %v1565, %v1567
      %v1571 = vsel %vm588, %v1567, %v1569
      %v1575 = vsel %vm276, %v1563, 0
      %1577 = vmatprep.subr.mxu0 0.0
      %1578 = vmatpush1.msra.mxu0 0.0
      %1579 = vmatprep.subr.mxu0 0.0
      %1580 = vmatpush1.msra.mxu0 0.0
      %1581 = vmatprep.subr.mxu0 0.0
      %1582 = vmatpush1.msra.mxu0 0.0
      %1583 = vmatprep.subr.mxu0 0.0
      %1584 = vmatpush1.msra.mxu0 0.0
      %1585 = vmatprep.subr.mxu0 0.0
      %1586 = vmatpush1.msra.mxu0 0.0
      %1587 = vmatprep.subr.mxu0 0.0
      %1588 = vmatpush1.msra.mxu0 0.0
      %1589 = vmatprep.subr.mxu0 0.0
      %1590 = vmatpush1.msra.mxu0 0.0
      %1591 = vmatprep.subr.mxu0 0.0
      %1592 = vmatpush1.msra.mxu0 0.0
      %1593 = vmatprep.subr.mxu0 0.0
      %1594 = vmatpush1.msra.mxu0 0.0
      %1595 = vmatprep.subr.mxu0 0.0
      %1596 = vmatpush1.msra.mxu0 0.0
      %1597 = vmatprep.subr.mxu0 0.0
      %1598 = vmatpush1.msra.mxu0 0.0
      %1599 = vmatprep.subr.mxu0 0.0
      %1600 = vmatpush1.msra.mxu0 0.0
      %1601 = vmatprep.subr.mxu0 0.0
      %1602 = vmatpush1.msra.mxu0 0.0
      %1603 = vmatprep.subr.mxu0 0.0
      %1604 = vmatpush1.msra.mxu0 0.0
      %1605 = vmatprep.subr.mxu0 0.0
      %1606 = vmatpush1.msra.mxu0 0.0
      %1607 = vmatprep.subr.mxu0 %v1571
      %1608 = vmatpush1.msra.mxu0 %v1570
      %1609 = vmatprep.subr.mxu0 0.0
      %1610 = vmatpush2.msra.mxu0 0.0
      %1611 = vmatprep.subr.mxu0 0.0
      %1612 = vmatpush2.msra.mxu0 0.0
      %1613 = vmatprep.subr.mxu0 0.0
      %1614 = vmatpush2.msra.mxu0 0.0
      %1615 = vmatprep.subr.mxu0 0.0
      %1616 = vmatpush2.msra.mxu0 0.0
      %1617 = vmatprep.subr.mxu0 0.0
      %1618 = vmatpush2.msra.mxu0 0.0
      %1619 = vmatprep.subr.mxu0 0.0
      %1620 = vmatpush2.msra.mxu0 0.0
      %1621 = vmatprep.subr.mxu0 0.0
      %1622 = vmatpush2.msra.mxu0 0.0
      %1623 = vmatprep.subr.mxu0 0.0
      %1624 = vmatpush2.msra.mxu0 0.0
      %1625 = vmatprep.subr.mxu0 0.0
      %1626 = vmatpush2.msra.mxu0 0.0
      %1627 = vmatprep.subr.mxu0 0.0
      %1628 = vmatpush2.msra.mxu0 0.0
      %1629 = vmatprep.subr.mxu0 0.0
      %1630 = vmatpush2.msra.mxu0 0.0
      %1631 = vmatprep.subr.mxu0 0.0
      %1632 = vmatpush2.msra.mxu0 0.0
      %1633 = vmatprep.subr.mxu0 0.0
      %1634 = vmatpush2.msra.mxu0 0.0
      %1635 = vmatprep.subr.mxu0 0.0
      %1636 = vmatpush2.msra.mxu0 0.0
      %1637 = vmatprep.subr.mxu0 0.0
      %1638 = vmatpush2.msra.mxu0 0.0
      %1639 = vmatprep.subr.mxu0 0.0
      %1640 = vmatpush2.msra.mxu0 0.0
      %1641 = vmatprep.mubr.f32.mxu0 0.0
      %1642 = vmatmul.mubr.f32.gmra.mxu0 %v1575
      %v1643 = vpop.f32.mrf.mxu0
      %v1644 = vadd.f32 0.0, %v1643
      %v1645 = vpop.f32.mrf.mxu0
      %v1646 = vadd.f32 0.0, %v1645
      %1647 = vdwg.mxu0
      %1648 = vmatprep.subr.mxu0 0.0
      %1649 = vmatpush1.msra.mxu0 0.0
      %1650 = vmatprep.subr.mxu0 0.0
      %1651 = vmatpush1.msra.mxu0 0.0
      %1652 = vmatprep.subr.mxu0 0.0
      %1653 = vmatpush1.msra.mxu0 0.0
      %1654 = vmatprep.subr.mxu0 0.0
      %1655 = vmatpush1.msra.mxu0 0.0
      %1656 = vmatprep.subr.mxu0 0.0
      %1657 = vmatpush1.msra.mxu0 0.0
      %1658 = vmatprep.subr.mxu0 0.0
      %1659 = vmatpush1.msra.mxu0 0.0
      %1660 = vmatprep.subr.mxu0 0.0
      %1661 = vmatpush1.msra.mxu0 0.0
      %1662 = vmatprep.subr.mxu0 0.0
      %1663 = vmatpush1.msra.mxu0 0.0
      %1664 = vmatprep.subr.mxu0 0.0
      %1665 = vmatpush1.msra.mxu0 0.0
      %1666 = vmatprep.subr.mxu0 0.0
      %1667 = vmatpush1.msra.mxu0 0.0
      %1668 = vmatprep.subr.mxu0 0.0
      %1669 = vmatpush1.msra.mxu0 0.0
      %1670 = vmatprep.subr.mxu0 0.0
      %1671 = vmatpush1.msra.mxu0 0.0
      %1672 = vmatprep.subr.mxu0 0.0
      %1673 = vmatpush1.msra.mxu0 0.0
      %1674 = vmatprep.subr.mxu0 0.0
      %1675 = vmatpush1.msra.mxu0 0.0
      %1676 = vmatprep.subr.mxu0 0.0
      %1677 = vmatpush1.msra.mxu0 0.0
      %1678 = vmatprep.subr.mxu0 0.0
      %1679 = vmatpush1.msra.mxu0 %v1569
      %1680 = vmatprep.subr.mxu0 0.0
      %1681 = vmatpush2.msra.mxu0 0.0
      %1682 = vmatprep.subr.mxu0 0.0
      %1683 = vmatpush2.msra.mxu0 0.0
      %1684 = vmatprep.subr.mxu0 0.0
      %1685 = vmatpush2.msra.mxu0 0.0
      %1686 = vmatprep.subr.mxu0 0.0
      %1687 = vmatpush2.msra.mxu0 0.0
      %1688 = vmatprep.subr.mxu0 0.0
      %1689 = vmatpush2.msra.mxu0 0.0
      %1690 = vmatprep.subr.mxu0 0.0
      %1691 = vmatpush2.msra.mxu0 0.0
      %1692 = vmatprep.subr.mxu0 0.0
      %1693 = vmatpush2.msra.mxu0 0.0
      %1694 = vmatprep.subr.mxu0 0.0
      %1695 = vmatpush2.msra.mxu0 0.0
      %1696 = vmatprep.subr.mxu0 0.0
      %1697 = vmatpush2.msra.mxu0 0.0
      %1698 = vmatprep.subr.mxu0 0.0
      %1699 = vmatpush2.msra.mxu0 0.0
      %1700 = vmatprep.subr.mxu0 0.0
      %1701 = vmatpush2.msra.mxu0 0.0
      %1702 = vmatprep.subr.mxu0 0.0
      %1703 = vmatpush2.msra.mxu0 0.0
      %1704 = vmatprep.subr.mxu0 0.0
      %1705 = vmatpush2.msra.mxu0 0.0
      %1706 = vmatprep.subr.mxu0 0.0
      %1707 = vmatpush2.msra.mxu0 0.0
      %1708 = vmatprep.subr.mxu0 0.0
      %1709 = vmatpush2.msra.mxu0 0.0
      %1710 = vmatprep.subr.mxu0 0.0
      %1711 = vmatpush2.msra.mxu0 0.0
      %1712 = vmatprep.mubr.f32.mxu0 0.0
      %1713 = vmatmul.mubr.f32.gmra.mxu0 %v1575
      %v1714 = vpop.f32.mrf.mxu0
      %v1715 = vadd.f32 0.0, %v1714
      %v1716 = vpop.f32.mrf.mxu0
      %1717 = vdwg.mxu0
      %v1718 = vadd.f32 %v1559, %v1644
      %v1719 = vadd.f32 %v1560, %v1646
      %v1720 = vadd.f32 %v1561, %v1715
      %v1721 = vld [vmem:[%s2] sm:$0xff]
      %1723 = vset.pattern.permute.xlu0 0
      %1724 = vperm.xlu0 %1723, %v1721
      %v1725 = vpop.permute.xlu0 %1724
      %v1727 = vadd.f32 %v1718, %v1725
      %v1728 = vadd.f32 %v1719, %v1725
      %v1729 = vadd.f32 %v1720, %v1725
      %v1730 = vmax.f32 %v1727, 0.0
      %v1731 = vmax.f32 %v1728, 0.0
      %v1732 = vmax.f32 %v1729, 0.0
      %v1734 = vlaneseq
      %v1735 = vshrl.u32 %v1734, 7
      %v1736 = vsub.s32 0, %v1735
      %v1737 = vrot.slane %v252, %v1736
      %v1738 = vlaneseq
      %v1739 = vshrl.u32 %v1738, 7
      %v1740 = vsub.s32 1, %v1739
      %v1741 = vrot.slane %v252, %v1740
      %v1742 = vlaneseq
      %v1743 = vshrl.u32 %v1742, 7
      %v1744 = vsub.s32 2, %v1743
      %v1745 = vrot.slane %v252, %v1744
      %v1749 = vmul.f32 %v1730, %v1737
      %v1750 = vmul.f32 %v1731, %v1741
      %v1751 = vmul.f32 %v1732, %v1745
      %1755 = vrot.lane.b32.xlu0 %v1749, 18
      %v1756 = vpop.permute.xlu0 %1755
      %1757 = vrot.lane.b32.xlu0 %v1750, 18
      %v1758 = vpop.permute.xlu0 %1757
      %1759 = vrot.lane.b32.xlu0 %v1751, 18
      %v1760 = vpop.permute.xlu0 %1759
      %v1761 = vsel %vm253, %v1756, %v1758
      %v1762 = vsel %vm253, %v1758, %v1760
      %vm1766 = vcmask 1047696
      %1767 = vst.msk [vmem:[#allocation2] sm:$0xff] %vm1766, %v1756
      %1768 = vst [vmem:[#allocation2 + $0x8] sm:$0xff] %v1761
      %vm1769 = vcmask 408576
      %1770 = vst.msk [vmem:[#allocation2 + $0x10] sm:$0xff] %vm1769, %v1762
      %s1771 = scalar_lea.vmem %s1, 8
      %v1772 = vld [vmem:[%s1771] sm:$0xff]
      %v1773 = vld [vmem:[#allocation2] sm:$0xff]
      %v1774 = vld [vmem:[#allocation2 + $0x8] sm:$0xff]
      %v1775 = vld [vmem:[#allocation2 + $0x10] sm:$0xff]
      %1776 = vrot.lane.b32.xlu0 %v1773, 32
      %v1777 = vpop.permute.xlu0 %1776
      %v1778 = vsel %vm263, %v1777, %v1775
      %1779 = vrot.lane.b32.xlu0 %v1774, 32
      %v1780 = vpop.permute.xlu0 %1779
      %1781 = vrot.lane.b32.xlu0 %v1778, 32
      %v1782 = vpop.permute.xlu0 %1781
      %v1783 = vsel %vm263, %v1780, %v1777
      %v1784 = vsel %vm263, %v1782, %v1780
      %1786 = vrot.lane.b32.xlu0 %v1772, 120
      %v1787 = vpop.permute.xlu0 %1786
      %v1788 = vsel %vm276, %v1787, 0
      %1790 = vmatprep.subr.mxu0 0.0
      %1791 = vmatpush1.msra.mxu0 0.0
      %1792 = vmatprep.subr.mxu0 0.0
      %1793 = vmatpush1.msra.mxu0 0.0
      %1794 = vmatprep.subr.mxu0 0.0
      %1795 = vmatpush1.msra.mxu0 0.0
      %1796 = vmatprep.subr.mxu0 0.0
      %1797 = vmatpush1.msra.mxu0 0.0
      %1798 = vmatprep.subr.mxu0 0.0
      %1799 = vmatpush1.msra.mxu0 0.0
      %1800 = vmatprep.subr.mxu0 0.0
      %1801 = vmatpush1.msra.mxu0 0.0
      %1802 = vmatprep.subr.mxu0 0.0
      %1803 = vmatpush1.msra.mxu0 0.0
      %1804 = vmatprep.subr.mxu0 0.0
      %1805 = vmatpush1.msra.mxu0 0.0
      %1806 = vmatprep.subr.mxu0 0.0
      %1807 = vmatpush1.msra.mxu0 0.0
      %1808 = vmatprep.subr.mxu0 0.0
      %1809 = vmatpush1.msra.mxu0 0.0
      %1810 = vmatprep.subr.mxu0 0.0
      %1811 = vmatpush1.msra.mxu0 0.0
      %1812 = vmatprep.subr.mxu0 0.0
      %1813 = vmatpush1.msra.mxu0 0.0
      %1814 = vmatprep.subr.mxu0 0.0
      %1815 = vmatpush1.msra.mxu0 0.0
      %1816 = vmatprep.subr.mxu0 0.0
      %1817 = vmatpush1.msra.mxu0 0.0
      %1818 = vmatprep.subr.mxu0 0.0
      %1819 = vmatpush1.msra.mxu0 0.0
      %1820 = vmatprep.subr.mxu0 %v1774
      %1821 = vmatpush1.msra.mxu0 %v1773
      %1822 = vmatprep.subr.mxu0 0.0
      %1823 = vmatpush2.msra.mxu0 0.0
      %1824 = vmatprep.subr.mxu0 0.0
      %1825 = vmatpush2.msra.mxu0 0.0
      %1826 = vmatprep.subr.mxu0 0.0
      %1827 = vmatpush2.msra.mxu0 0.0
      %1828 = vmatprep.subr.mxu0 0.0
      %1829 = vmatpush2.msra.mxu0 0.0
      %1830 = vmatprep.subr.mxu0 0.0
      %1831 = vmatpush2.msra.mxu0 0.0
      %1832 = vmatprep.subr.mxu0 0.0
      %1833 = vmatpush2.msra.mxu0 0.0
      %1834 = vmatprep.subr.mxu0 0.0
      %1835 = vmatpush2.msra.mxu0 0.0
      %1836 = vmatprep.subr.mxu0 0.0
      %1837 = vmatpush2.msra.mxu0 0.0
      %1838 = vmatprep.subr.mxu0 0.0
      %1839 = vmatpush2.msra.mxu0 0.0
      %1840 = vmatprep.subr.mxu0 0.0
      %1841 = vmatpush2.msra.mxu0 0.0
      %1842 = vmatprep.subr.mxu0 0.0
      %1843 = vmatpush2.msra.mxu0 0.0
      %1844 = vmatprep.subr.mxu0 0.0
      %1845 = vmatpush2.msra.mxu0 0.0
      %1846 = vmatprep.subr.mxu0 0.0
      %1847 = vmatpush2.msra.mxu0 0.0
      %1848 = vmatprep.subr.mxu0 0.0
      %1849 = vmatpush2.msra.mxu0 0.0
      %1850 = vmatprep.subr.mxu0 0.0
      %1851 = vmatpush2.msra.mxu0 0.0
      %1852 = vmatprep.subr.mxu0 0.0
      %1853 = vmatpush2.msra.mxu0 0.0
      %1854 = vmatprep.mubr.f32.mxu0 0.0
      %1855 = vmatmul.mubr.f32.gmra.mxu0 %v1788
      %v1856 = vpop.f32.mrf.mxu0
      %v1857 = vadd.f32 0.0, %v1856
      %v1858 = vpop.f32.mrf.mxu0
      %v1859 = vadd.f32 0.0, %v1858
      %1860 = vdwg.mxu0
      %1861 = vmatprep.subr.mxu0 0.0
      %1862 = vmatpush1.msra.mxu0 0.0
      %1863 = vmatprep.subr.mxu0 0.0
      %1864 = vmatpush1.msra.mxu0 0.0
      %1865 = vmatprep.subr.mxu0 0.0
      %1866 = vmatpush1.msra.mxu0 0.0
      %1867 = vmatprep.subr.mxu0 0.0
      %1868 = vmatpush1.msra.mxu0 0.0
      %1869 = vmatprep.subr.mxu0 0.0
      %1870 = vmatpush1.msra.mxu0 0.0
      %1871 = vmatprep.subr.mxu0 0.0
      %1872 = vmatpush1.msra.mxu0 0.0
      %1873 = vmatprep.subr.mxu0 0.0
      %1874 = vmatpush1.msra.mxu0 0.0
      %1875 = vmatprep.subr.mxu0 0.0
      %1876 = vmatpush1.msra.mxu0 0.0
      %1877 = vmatprep.subr.mxu0 0.0
      %1878 = vmatpush1.msra.mxu0 0.0
      %1879 = vmatprep.subr.mxu0 0.0
      %1880 = vmatpush1.msra.mxu0 0.0
      %1881 = vmatprep.subr.mxu0 0.0
      %1882 = vmatpush1.msra.mxu0 0.0
      %1883 = vmatprep.subr.mxu0 0.0
      %1884 = vmatpush1.msra.mxu0 0.0
      %1885 = vmatprep.subr.mxu0 0.0
      %1886 = vmatpush1.msra.mxu0 0.0
      %1887 = vmatprep.subr.mxu0 0.0
      %1888 = vmatpush1.msra.mxu0 0.0
      %1889 = vmatprep.subr.mxu0 0.0
      %1890 = vmatpush1.msra.mxu0 0.0
      %1891 = vmatprep.subr.mxu0 0.0
      %1892 = vmatpush1.msra.mxu0 %v1775
      %1893 = vmatprep.subr.mxu0 0.0
      %1894 = vmatpush2.msra.mxu0 0.0
      %1895 = vmatprep.subr.mxu0 0.0
      %1896 = vmatpush2.msra.mxu0 0.0
      %1897 = vmatprep.subr.mxu0 0.0
      %1898 = vmatpush2.msra.mxu0 0.0
      %1899 = vmatprep.subr.mxu0 0.0
      %1900 = vmatpush2.msra.mxu0 0.0
      %1901 = vmatprep.subr.mxu0 0.0
      %1902 = vmatpush2.msra.mxu0 0.0
      %1903 = vmatprep.subr.mxu0 0.0
      %1904 = vmatpush2.msra.mxu0 0.0
      %1905 = vmatprep.subr.mxu0 0.0
      %1906 = vmatpush2.msra.mxu0 0.0
      %1907 = vmatprep.subr.mxu0 0.0
      %1908 = vmatpush2.msra.mxu0 0.0
      %1909 = vmatprep.subr.mxu0 0.0
      %1910 = vmatpush2.msra.mxu0 0.0
      %1911 = vmatprep.subr.mxu0 0.0
      %1912 = vmatpush2.msra.mxu0 0.0
      %1913 = vmatprep.subr.mxu0 0.0
      %1914 = vmatpush2.msra.mxu0 0.0
      %1915 = vmatprep.subr.mxu0 0.0
      %1916 = vmatpush2.msra.mxu0 0.0
      %1917 = vmatprep.subr.mxu0 0.0
      %1918 = vmatpush2.msra.mxu0 0.0
      %1919 = vmatprep.subr.mxu0 0.0
      %1920 = vmatpush2.msra.mxu0 0.0
      %1921 = vmatprep.subr.mxu0 0.0
      %1922 = vmatpush2.msra.mxu0 0.0
      %1923 = vmatprep.subr.mxu0 0.0
      %1924 = vmatpush2.msra.mxu0 0.0
      %1925 = vmatprep.mubr.f32.mxu0 0.0
      %1926 = vmatmul.mubr.f32.gmra.mxu0 %v1788
      %v1927 = vpop.f32.mrf.mxu0
      %v1928 = vadd.f32 0.0, %v1927
      %v1929 = vpop.f32.mrf.mxu0
      %1930 = vdwg.mxu0
      %1934 = vrot.lane.b32.xlu0 %v1778, 97
      %v1935 = vpop.permute.xlu0 %1934
      %1936 = vrot.lane.b32.xlu0 %v1783, 97
      %v1937 = vpop.permute.xlu0 %1936
      %1938 = vrot.lane.b32.xlu0 %v1784, 97
      %v1939 = vpop.permute.xlu0 %1938
      %v1940 = vsel %vm429, %v1935, %v1937
      %v1941 = vsel %vm429, %v1937, %v1939
      %v1945 = vsel %vm276, %v1772, 0
      %1947 = vmatprep.subr.mxu0 0.0
      %1948 = vmatpush1.msra.mxu0 0.0
      %1949 = vmatprep.subr.mxu0 0.0
      %1950 = vmatpush1.msra.mxu0 0.0
      %1951 = vmatprep.subr.mxu0 0.0
      %1952 = vmatpush1.msra.mxu0 0.0
      %1953 = vmatprep.subr.mxu0 0.0
      %1954 = vmatpush1.msra.mxu0 0.0
      %1955 = vmatprep.subr.mxu0 0.0
      %1956 = vmatpush1.msra.mxu0 0.0
      %1957 = vmatprep.subr.mxu0 0.0
      %1958 = vmatpush1.msra.mxu0 0.0
      %1959 = vmatprep.subr.mxu0 0.0
      %1960 = vmatpush1.msra.mxu0 0.0
      %1961 = vmatprep.subr.mxu0 0.0
      %1962 = vmatpush1.msra.mxu0 0.0
      %1963 = vmatprep.subr.mxu0 0.0
      %1964 = vmatpush1.msra.mxu0 0.0
      %1965 = vmatprep.subr.mxu0 0.0
      %1966 = vmatpush1.msra.mxu0 0.0
      %1967 = vmatprep.subr.mxu0 0.0
      %1968 = vmatpush1.msra.mxu0 0.0
      %1969 = vmatprep.subr.mxu0 0.0
      %1970 = vmatpush1.msra.mxu0 0.0
      %1971 = vmatprep.subr.mxu0 0.0
      %1972 = vmatpush1.msra.mxu0 0.0
      %1973 = vmatprep.subr.mxu0 0.0
      %1974 = vmatpush1.msra.mxu0 0.0
      %1975 = vmatprep.subr.mxu0 0.0
      %1976 = vmatpush1.msra.mxu0 0.0
      %1977 = vmatprep.subr.mxu0 %v1941
      %1978 = vmatpush1.msra.mxu0 %v1940
      %1979 = vmatprep.subr.mxu0 0.0
      %1980 = vmatpush2.msra.mxu0 0.0
      %1981 = vmatprep.subr.mxu0 0.0
      %1982 = vmatpush2.msra.mxu0 0.0
      %1983 = vmatprep.subr.mxu0 0.0
      %1984 = vmatpush2.msra.mxu0 0.0
      %1985 = vmatprep.subr.mxu0 0.0
      %1986 = vmatpush2.msra.mxu0 0.0
      %1987 = vmatprep.subr.mxu0 0.0
      %1988 = vmatpush2.msra.mxu0 0.0
      %1989 = vmatprep.subr.mxu0 0.0
      %1990 = vmatpush2.msra.mxu0 0.0
      %1991 = vmatprep.subr.mxu0 0.0
      %1992 = vmatpush2.msra.mxu0 0.0
      %1993 = vmatprep.subr.mxu0 0.0
      %1994 = vmatpush2.msra.mxu0 0.0
      %1995 = vmatprep.subr.mxu0 0.0
      %1996 = vmatpush2.msra.mxu0 0.0
      %1997 = vmatprep.subr.mxu0 0.0
      %1998 = vmatpush2.msra.mxu0 0.0
      %1999 = vmatprep.subr.mxu0 0.0
      %2000 = vmatpush2.msra.mxu0 0.0
      %2001 = vmatprep.subr.mxu0 0.0
      %2002 = vmatpush2.msra.mxu0 0.0
      %2003 = vmatprep.subr.mxu0 0.0
      %2004 = vmatpush2.msra.mxu0 0.0
      %2005 = vmatprep.subr.mxu0 0.0
      %2006 = vmatpush2.msra.mxu0 0.0
      %2007 = vmatprep.subr.mxu0 0.0
      %2008 = vmatpush2.msra.mxu0 0.0
      %2009 = vmatprep.subr.mxu0 0.0
      %2010 = vmatpush2.msra.mxu0 0.0
      %2011 = vmatprep.mubr.f32.mxu0 0.0
      %2012 = vmatmul.mubr.f32.gmra.mxu0 %v1945
      %v2013 = vpop.f32.mrf.mxu0
      %v2014 = vadd.f32 %v1857, %v2013
      %v2015 = vpop.f32.mrf.mxu0
      %v2016 = vadd.f32 %v1859, %v2015
      %2017 = vdwg.mxu0
      %2018 = vmatprep.subr.mxu0 0.0
      %2019 = vmatpush1.msra.mxu0 0.0
      %2020 = vmatprep.subr.mxu0 0.0
      %2021 = vmatpush1.msra.mxu0 0.0
      %2022 = vmatprep.subr.mxu0 0.0
      %2023 = vmatpush1.msra.mxu0 0.0
      %2024 = vmatprep.subr.mxu0 0.0
      %2025 = vmatpush1.msra.mxu0 0.0
      %2026 = vmatprep.subr.mxu0 0.0
      %2027 = vmatpush1.msra.mxu0 0.0
      %2028 = vmatprep.subr.mxu0 0.0
      %2029 = vmatpush1.msra.mxu0 0.0
      %2030 = vmatprep.subr.mxu0 0.0
      %2031 = vmatpush1.msra.mxu0 0.0
      %2032 = vmatprep.subr.mxu0 0.0
      %2033 = vmatpush1.msra.mxu0 0.0
      %2034 = vmatprep.subr.mxu0 0.0
      %2035 = vmatpush1.msra.mxu0 0.0
      %2036 = vmatprep.subr.mxu0 0.0
      %2037 = vmatpush1.msra.mxu0 0.0
      %2038 = vmatprep.subr.mxu0 0.0
      %2039 = vmatpush1.msra.mxu0 0.0
      %2040 = vmatprep.subr.mxu0 0.0
      %2041 = vmatpush1.msra.mxu0 0.0
      %2042 = vmatprep.subr.mxu0 0.0
      %2043 = vmatpush1.msra.mxu0 0.0
      %2044 = vmatprep.subr.mxu0 0.0
      %2045 = vmatpush1.msra.mxu0 0.0
      %2046 = vmatprep.subr.mxu0 0.0
      %2047 = vmatpush1.msra.mxu0 0.0
      %2048 = vmatprep.subr.mxu0 0.0
      %2049 = vmatpush1.msra.mxu0 %v1939
      %2050 = vmatprep.subr.mxu0 0.0
      %2051 = vmatpush2.msra.mxu0 0.0
      %2052 = vmatprep.subr.mxu0 0.0
      %2053 = vmatpush2.msra.mxu0 0.0
      %2054 = vmatprep.subr.mxu0 0.0
      %2055 = vmatpush2.msra.mxu0 0.0
      %2056 = vmatprep.subr.mxu0 0.0
      %2057 = vmatpush2.msra.mxu0 0.0
      %2058 = vmatprep.subr.mxu0 0.0
      %2059 = vmatpush2.msra.mxu0 0.0
      %2060 = vmatprep.subr.mxu0 0.0
      %2061 = vmatpush2.msra.mxu0 0.0
      %2062 = vmatprep.subr.mxu0 0.0
      %2063 = vmatpush2.msra.mxu0 0.0
      %2064 = vmatprep.subr.mxu0 0.0
      %2065 = vmatpush2.msra.mxu0 0.0
      %2066 = vmatprep.subr.mxu0 0.0
      %2067 = vmatpush2.msra.mxu0 0.0
      %2068 = vmatprep.subr.mxu0 0.0
      %2069 = vmatpush2.msra.mxu0 0.0
      %2070 = vmatprep.subr.mxu0 0.0
      %2071 = vmatpush2.msra.mxu0 0.0
      %2072 = vmatprep.subr.mxu0 0.0
      %2073 = vmatpush2.msra.mxu0 0.0
      %2074 = vmatprep.subr.mxu0 0.0
      %2075 = vmatpush2.msra.mxu0 0.0
      %2076 = vmatprep.subr.mxu0 0.0
      %2077 = vmatpush2.msra.mxu0 0.0
      %2078 = vmatprep.subr.mxu0 0.0
      %2079 = vmatpush2.msra.mxu0 0.0
      %2080 = vmatprep.subr.mxu0 0.0
      %2081 = vmatpush2.msra.mxu0 0.0
      %2082 = vmatprep.mubr.f32.mxu0 0.0
      %2083 = vmatmul.mubr.f32.gmra.mxu0 %v1945
      %v2084 = vpop.f32.mrf.mxu0
      %v2085 = vadd.f32 %v1928, %v2084
      %v2086 = vpop.f32.mrf.mxu0
      %2087 = vdwg.mxu0
      %2088 = vrot.lane.b32.xlu0 %v1772, 112
      %v2089 = vpop.permute.xlu0 %2088
      %2092 = vrot.lane.b32.xlu0 %v1773, 127
      %v2093 = vpop.permute.xlu0 %2092
      %2094 = vrot.lane.b32.xlu0 %v1774, 127
      %v2095 = vpop.permute.xlu0 %2094
      %2096 = vrot.lane.b32.xlu0 %v1778, 127
      %v2097 = vpop.permute.xlu0 %2096
      %v2098 = vsel %vm588, %v2093, %v2095
      %v2099 = vsel %vm588, %v2095, %v2097
      %v2103 = vsel %vm276, %v2089, 0
      %2105 = vmatprep.subr.mxu0 0.0
      %2106 = vmatpush1.msra.mxu0 0.0
      %2107 = vmatprep.subr.mxu0 0.0
      %2108 = vmatpush1.msra.mxu0 0.0
      %2109 = vmatprep.subr.mxu0 0.0
      %2110 = vmatpush1.msra.mxu0 0.0
      %2111 = vmatprep.subr.mxu0 0.0
      %2112 = vmatpush1.msra.mxu0 0.0
      %2113 = vmatprep.subr.mxu0 0.0
      %2114 = vmatpush1.msra.mxu0 0.0
      %2115 = vmatprep.subr.mxu0 0.0
      %2116 = vmatpush1.msra.mxu0 0.0
      %2117 = vmatprep.subr.mxu0 0.0
      %2118 = vmatpush1.msra.mxu0 0.0
      %2119 = vmatprep.subr.mxu0 0.0
      %2120 = vmatpush1.msra.mxu0 0.0
      %2121 = vmatprep.subr.mxu0 0.0
      %2122 = vmatpush1.msra.mxu0 0.0
      %2123 = vmatprep.subr.mxu0 0.0
      %2124 = vmatpush1.msra.mxu0 0.0
      %2125 = vmatprep.subr.mxu0 0.0
      %2126 = vmatpush1.msra.mxu0 0.0
      %2127 = vmatprep.subr.mxu0 0.0
      %2128 = vmatpush1.msra.mxu0 0.0
      %2129 = vmatprep.subr.mxu0 0.0
      %2130 = vmatpush1.msra.mxu0 0.0
      %2131 = vmatprep.subr.mxu0 0.0
      %2132 = vmatpush1.msra.mxu0 0.0
      %2133 = vmatprep.subr.mxu0 0.0
      %2134 = vmatpush1.msra.mxu0 0.0
      %2135 = vmatprep.subr.mxu0 %v2099
      %2136 = vmatpush1.msra.mxu0 %v2098
      %2137 = vmatprep.subr.mxu0 0.0
      %2138 = vmatpush2.msra.mxu0 0.0
      %2139 = vmatprep.subr.mxu0 0.0
      %2140 = vmatpush2.msra.mxu0 0.0
      %2141 = vmatprep.subr.mxu0 0.0
      %2142 = vmatpush2.msra.mxu0 0.0
      %2143 = vmatprep.subr.mxu0 0.0
      %2144 = vmatpush2.msra.mxu0 0.0
      %2145 = vmatprep.subr.mxu0 0.0
      %2146 = vmatpush2.msra.mxu0 0.0
      %2147 = vmatprep.subr.mxu0 0.0
      %2148 = vmatpush2.msra.mxu0 0.0
      %2149 = vmatprep.subr.mxu0 0.0
      %2150 = vmatpush2.msra.mxu0 0.0
      %2151 = vmatprep.subr.mxu0 0.0
      %2152 = vmatpush2.msra.mxu0 0.0
      %2153 = vmatprep.subr.mxu0 0.0
      %2154 = vmatpush2.msra.mxu0 0.0
      %2155 = vmatprep.subr.mxu0 0.0
      %2156 = vmatpush2.msra.mxu0 0.0
      %2157 = vmatprep.subr.mxu0 0.0
      %2158 = vmatpush2.msra.mxu0 0.0
      %2159 = vmatprep.subr.mxu0 0.0
      %2160 = vmatpush2.msra.mxu0 0.0
      %2161 = vmatprep.subr.mxu0 0.0
      %2162 = vmatpush2.msra.mxu0 0.0
      %2163 = vmatprep.subr.mxu0 0.0
      %2164 = vmatpush2.msra.mxu0 0.0
      %2165 = vmatprep.subr.mxu0 0.0
      %2166 = vmatpush2.msra.mxu0 0.0
      %2167 = vmatprep.subr.mxu0 0.0
      %2168 = vmatpush2.msra.mxu0 0.0
      %2169 = vmatprep.mubr.f32.mxu0 0.0
      %2170 = vmatmul.mubr.f32.gmra.mxu0 %v2103
      %v2171 = vpop.f32.mrf.mxu0
      %v2172 = vadd.f32 0.0, %v2171
      %v2173 = vpop.f32.mrf.mxu0
      %v2174 = vadd.f32 0.0, %v2173
      %2175 = vdwg.mxu0
      %2176 = vmatprep.subr.mxu0 0.0
      %2177 = vmatpush1.msra.mxu0 0.0
      %2178 = vmatprep.subr.mxu0 0.0
      %2179 = vmatpush1.msra.mxu0 0.0
      %2180 = vmatprep.subr.mxu0 0.0
      %2181 = vmatpush1.msra.mxu0 0.0
      %2182 = vmatprep.subr.mxu0 0.0
      %2183 = vmatpush1.msra.mxu0 0.0
      %2184 = vmatprep.subr.mxu0 0.0
      %2185 = vmatpush1.msra.mxu0 0.0
      %2186 = vmatprep.subr.mxu0 0.0
      %2187 = vmatpush1.msra.mxu0 0.0
      %2188 = vmatprep.subr.mxu0 0.0
      %2189 = vmatpush1.msra.mxu0 0.0
      %2190 = vmatprep.subr.mxu0 0.0
      %2191 = vmatpush1.msra.mxu0 0.0
      %2192 = vmatprep.subr.mxu0 0.0
      %2193 = vmatpush1.msra.mxu0 0.0
      %2194 = vmatprep.subr.mxu0 0.0
      %2195 = vmatpush1.msra.mxu0 0.0
      %2196 = vmatprep.subr.mxu0 0.0
      %2197 = vmatpush1.msra.mxu0 0.0
      %2198 = vmatprep.subr.mxu0 0.0
      %2199 = vmatpush1.msra.mxu0 0.0
      %2200 = vmatprep.subr.mxu0 0.0
      %2201 = vmatpush1.msra.mxu0 0.0
      %2202 = vmatprep.subr.mxu0 0.0
      %2203 = vmatpush1.msra.mxu0 0.0
      %2204 = vmatprep.subr.mxu0 0.0
      %2205 = vmatpush1.msra.mxu0 0.0
      %2206 = vmatprep.subr.mxu0 0.0
      %2207 = vmatpush1.msra.mxu0 %v2097
      %2208 = vmatprep.subr.mxu0 0.0
      %2209 = vmatpush2.msra.mxu0 0.0
      %2210 = vmatprep.subr.mxu0 0.0
      %2211 = vmatpush2.msra.mxu0 0.0
      %2212 = vmatprep.subr.mxu0 0.0
      %2213 = vmatpush2.msra.mxu0 0.0
      %2214 = vmatprep.subr.mxu0 0.0
      %2215 = vmatpush2.msra.mxu0 0.0
      %2216 = vmatprep.subr.mxu0 0.0
      %2217 = vmatpush2.msra.mxu0 0.0
      %2218 = vmatprep.subr.mxu0 0.0
      %2219 = vmatpush2.msra.mxu0 0.0
      %2220 = vmatprep.subr.mxu0 0.0
      %2221 = vmatpush2.msra.mxu0 0.0
      %2222 = vmatprep.subr.mxu0 0.0
      %2223 = vmatpush2.msra.mxu0 0.0
      %2224 = vmatprep.subr.mxu0 0.0
      %2225 = vmatpush2.msra.mxu0 0.0
      %2226 = vmatprep.subr.mxu0 0.0
      %2227 = vmatpush2.msra.mxu0 0.0
      %2228 = vmatprep.subr.mxu0 0.0
      %2229 = vmatpush2.msra.mxu0 0.0
      %2230 = vmatprep.subr.mxu0 0.0
      %2231 = vmatpush2.msra.mxu0 0.0
      %2232 = vmatprep.subr.mxu0 0.0
      %2233 = vmatpush2.msra.mxu0 0.0
      %2234 = vmatprep.subr.mxu0 0.0
      %2235 = vmatpush2.msra.mxu0 0.0
      %2236 = vmatprep.subr.mxu0 0.0
      %2237 = vmatpush2.msra.mxu0 0.0
      %2238 = vmatprep.subr.mxu0 0.0
      %2239 = vmatpush2.msra.mxu0 0.0
      %2240 = vmatprep.mubr.f32.mxu0 0.0
      %2241 = vmatmul.mubr.f32.gmra.mxu0 %v2103
      %v2242 = vpop.f32.mrf.mxu0
      %v2243 = vadd.f32 0.0, %v2242
      %v2244 = vpop.f32.mrf.mxu0
      %2245 = vdwg.mxu0
      %v2246 = vadd.f32 %v2014, %v2172
      %v2247 = vadd.f32 %v2016, %v2174
      %v2248 = vadd.f32 %v2085, %v2243
      %2250 = vrot.lane.b32.xlu0 %v1773, 110
      %v2251 = vpop.permute.xlu0 %2250
      %2252 = vrot.lane.b32.xlu0 %v1774, 110
      %v2253 = vpop.permute.xlu0 %2252
      %2254 = vrot.lane.b32.xlu0 %v1775, 110
      %v2255 = vpop.permute.xlu0 %2254
      %v2256 = vsel %vm747, %v2251, %v2253
      %v2257 = vsel %vm747, %v2253, %v2255
      %2261 = vrot.lane.b32.xlu0 %v2256, 32
      %v2262 = vpop.permute.xlu0 %2261
      %v2263 = vsel %vm263, %v2262, %v2255
      %2264 = vrot.lane.b32.xlu0 %v2257, 32
      %v2265 = vpop.permute.xlu0 %2264
      %2266 = vrot.lane.b32.xlu0 %v2263, 32
      %v2267 = vpop.permute.xlu0 %2266
      %v2268 = vsel %vm263, %v2265, %v2262
      %v2269 = vsel %vm263, %v2267, %v2265
      %2270 = vrot.lane.b32.xlu0 %v1772, 104
      %v2271 = vpop.permute.xlu0 %2270
      %2275 = vrot.lane.b32.xlu0 %v2263, 97
      %v2276 = vpop.permute.xlu0 %2275
      %2277 = vrot.lane.b32.xlu0 %v2268, 97
      %v2278 = vpop.permute.xlu0 %2277
      %2279 = vrot.lane.b32.xlu0 %v2269, 97
      %v2280 = vpop.permute.xlu0 %2279
      %v2281 = vsel %vm429, %v2276, %v2278
      %v2282 = vsel %vm429, %v2278, %v2280
      %v2286 = vsel %vm276, %v2271, 0
      %2288 = vmatprep.subr.mxu0 0.0
      %2289 = vmatpush1.msra.mxu0 0.0
      %2290 = vmatprep.subr.mxu0 0.0
      %2291 = vmatpush1.msra.mxu0 0.0
      %2292 = vmatprep.subr.mxu0 0.0
      %2293 = vmatpush1.msra.mxu0 0.0
      %2294 = vmatprep.subr.mxu0 0.0
      %2295 = vmatpush1.msra.mxu0 0.0
      %2296 = vmatprep.subr.mxu0 0.0
      %2297 = vmatpush1.msra.mxu0 0.0
      %2298 = vmatprep.subr.mxu0 0.0
      %2299 = vmatpush1.msra.mxu0 0.0
      %2300 = vmatprep.subr.mxu0 0.0
      %2301 = vmatpush1.msra.mxu0 0.0
      %2302 = vmatprep.subr.mxu0 0.0
      %2303 = vmatpush1.msra.mxu0 0.0
      %2304 = vmatprep.subr.mxu0 0.0
      %2305 = vmatpush1.msra.mxu0 0.0
      %2306 = vmatprep.subr.mxu0 0.0
      %2307 = vmatpush1.msra.mxu0 0.0
      %2308 = vmatprep.subr.mxu0 0.0
      %2309 = vmatpush1.msra.mxu0 0.0
      %2310 = vmatprep.subr.mxu0 0.0
      %2311 = vmatpush1.msra.mxu0 0.0
      %2312 = vmatprep.subr.mxu0 0.0
      %2313 = vmatpush1.msra.mxu0 0.0
      %2314 = vmatprep.subr.mxu0 0.0
      %2315 = vmatpush1.msra.mxu0 0.0
      %2316 = vmatprep.subr.mxu0 0.0
      %2317 = vmatpush1.msra.mxu0 0.0
      %2318 = vmatprep.subr.mxu0 %v2282
      %2319 = vmatpush1.msra.mxu0 %v2281
      %2320 = vmatprep.subr.mxu0 0.0
      %2321 = vmatpush2.msra.mxu0 0.0
      %2322 = vmatprep.subr.mxu0 0.0
      %2323 = vmatpush2.msra.mxu0 0.0
      %2324 = vmatprep.subr.mxu0 0.0
      %2325 = vmatpush2.msra.mxu0 0.0
      %2326 = vmatprep.subr.mxu0 0.0
      %2327 = vmatpush2.msra.mxu0 0.0
      %2328 = vmatprep.subr.mxu0 0.0
      %2329 = vmatpush2.msra.mxu0 0.0
      %2330 = vmatprep.subr.mxu0 0.0
      %2331 = vmatpush2.msra.mxu0 0.0
      %2332 = vmatprep.subr.mxu0 0.0
      %2333 = vmatpush2.msra.mxu0 0.0
      %2334 = vmatprep.subr.mxu0 0.0
      %2335 = vmatpush2.msra.mxu0 0.0
      %2336 = vmatprep.subr.mxu0 0.0
      %2337 = vmatpush2.msra.mxu0 0.0
      %2338 = vmatprep.subr.mxu0 0.0
      %2339 = vmatpush2.msra.mxu0 0.0
      %2340 = vmatprep.subr.mxu0 0.0
      %2341 = vmatpush2.msra.mxu0 0.0
      %2342 = vmatprep.subr.mxu0 0.0
      %2343 = vmatpush2.msra.mxu0 0.0
      %2344 = vmatprep.subr.mxu0 0.0
      %2345 = vmatpush2.msra.mxu0 0.0
      %2346 = vmatprep.subr.mxu0 0.0
      %2347 = vmatpush2.msra.mxu0 0.0
      %2348 = vmatprep.subr.mxu0 0.0
      %2349 = vmatpush2.msra.mxu0 0.0
      %2350 = vmatprep.subr.mxu0 0.0
      %2351 = vmatpush2.msra.mxu0 0.0
      %2352 = vmatprep.mubr.f32.mxu0 0.0
      %2353 = vmatmul.mubr.f32.gmra.mxu0 %v2286
      %v2354 = vpop.f32.mrf.mxu0
      %v2355 = vadd.f32 0.0, %v2354
      %v2356 = vpop.f32.mrf.mxu0
      %v2357 = vadd.f32 0.0, %v2356
      %2358 = vdwg.mxu0
      %2359 = vmatprep.subr.mxu0 0.0
      %2360 = vmatpush1.msra.mxu0 0.0
      %2361 = vmatprep.subr.mxu0 0.0
      %2362 = vmatpush1.msra.mxu0 0.0
      %2363 = vmatprep.subr.mxu0 0.0
      %2364 = vmatpush1.msra.mxu0 0.0
      %2365 = vmatprep.subr.mxu0 0.0
      %2366 = vmatpush1.msra.mxu0 0.0
      %2367 = vmatprep.subr.mxu0 0.0
      %2368 = vmatpush1.msra.mxu0 0.0
      %2369 = vmatprep.subr.mxu0 0.0
      %2370 = vmatpush1.msra.mxu0 0.0
      %2371 = vmatprep.subr.mxu0 0.0
      %2372 = vmatpush1.msra.mxu0 0.0
      %2373 = vmatprep.subr.mxu0 0.0
      %2374 = vmatpush1.msra.mxu0 0.0
      %2375 = vmatprep.subr.mxu0 0.0
      %2376 = vmatpush1.msra.mxu0 0.0
      %2377 = vmatprep.subr.mxu0 0.0
      %2378 = vmatpush1.msra.mxu0 0.0
      %2379 = vmatprep.subr.mxu0 0.0
      %2380 = vmatpush1.msra.mxu0 0.0
      %2381 = vmatprep.subr.mxu0 0.0
      %2382 = vmatpush1.msra.mxu0 0.0
      %2383 = vmatprep.subr.mxu0 0.0
      %2384 = vmatpush1.msra.mxu0 0.0
      %2385 = vmatprep.subr.mxu0 0.0
      %2386 = vmatpush1.msra.mxu0 0.0
      %2387 = vmatprep.subr.mxu0 0.0
      %2388 = vmatpush1.msra.mxu0 0.0
      %2389 = vmatprep.subr.mxu0 0.0
      %2390 = vmatpush1.msra.mxu0 %v2280
      %2391 = vmatprep.subr.mxu0 0.0
      %2392 = vmatpush2.msra.mxu0 0.0
      %2393 = vmatprep.subr.mxu0 0.0
      %2394 = vmatpush2.msra.mxu0 0.0
      %2395 = vmatprep.subr.mxu0 0.0
      %2396 = vmatpush2.msra.mxu0 0.0
      %2397 = vmatprep.subr.mxu0 0.0
      %2398 = vmatpush2.msra.mxu0 0.0
      %2399 = vmatprep.subr.mxu0 0.0
      %2400 = vmatpush2.msra.mxu0 0.0
      %2401 = vmatprep.subr.mxu0 0.0
      %2402 = vmatpush2.msra.mxu0 0.0
      %2403 = vmatprep.subr.mxu0 0.0
      %2404 = vmatpush2.msra.mxu0 0.0
      %2405 = vmatprep.subr.mxu0 0.0
      %2406 = vmatpush2.msra.mxu0 0.0
      %2407 = vmatprep.subr.mxu0 0.0
      %2408 = vmatpush2.msra.mxu0 0.0
      %2409 = vmatprep.subr.mxu0 0.0
      %2410 = vmatpush2.msra.mxu0 0.0
      %2411 = vmatprep.subr.mxu0 0.0
      %2412 = vmatpush2.msra.mxu0 0.0
      %2413 = vmatprep.subr.mxu0 0.0
      %2414 = vmatpush2.msra.mxu0 0.0
      %2415 = vmatprep.subr.mxu0 0.0
      %2416 = vmatpush2.msra.mxu0 0.0
      %2417 = vmatprep.subr.mxu0 0.0
      %2418 = vmatpush2.msra.mxu0 0.0
      %2419 = vmatprep.subr.mxu0 0.0
      %2420 = vmatpush2.msra.mxu0 0.0
      %2421 = vmatprep.subr.mxu0 0.0
      %2422 = vmatpush2.msra.mxu0 0.0
      %2423 = vmatprep.mubr.f32.mxu0 0.0
      %2424 = vmatmul.mubr.f32.gmra.mxu0 %v2286
      %v2425 = vpop.f32.mrf.mxu0
      %v2426 = vadd.f32 0.0, %v2425
      %v2427 = vpop.f32.mrf.mxu0
      %2428 = vdwg.mxu0
      %v2429 = vadd.f32 %v2246, %v2355
      %v2430 = vadd.f32 %v2247, %v2357
      %v2431 = vadd.f32 %v2248, %v2426
      %2432 = vrot.lane.b32.xlu0 %v1772, 96
      %v2433 = vpop.permute.xlu0 %2432
      %v2434 = vsel %vm276, %v2433, 0
      %2436 = vmatprep.subr.mxu0 0.0
      %2437 = vmatpush1.msra.mxu0 0.0
      %2438 = vmatprep.subr.mxu0 0.0
      %2439 = vmatpush1.msra.mxu0 0.0
      %2440 = vmatprep.subr.mxu0 0.0
      %2441 = vmatpush1.msra.mxu0 0.0
      %2442 = vmatprep.subr.mxu0 0.0
      %2443 = vmatpush1.msra.mxu0 0.0
      %2444 = vmatprep.subr.mxu0 0.0
      %2445 = vmatpush1.msra.mxu0 0.0
      %2446 = vmatprep.subr.mxu0 0.0
      %2447 = vmatpush1.msra.mxu0 0.0
      %2448 = vmatprep.subr.mxu0 0.0
      %2449 = vmatpush1.msra.mxu0 0.0
      %2450 = vmatprep.subr.mxu0 0.0
      %2451 = vmatpush1.msra.mxu0 0.0
      %2452 = vmatprep.subr.mxu0 0.0
      %2453 = vmatpush1.msra.mxu0 0.0
      %2454 = vmatprep.subr.mxu0 0.0
      %2455 = vmatpush1.msra.mxu0 0.0
      %2456 = vmatprep.subr.mxu0 0.0
      %2457 = vmatpush1.msra.mxu0 0.0
      %2458 = vmatprep.subr.mxu0 0.0
      %2459 = vmatpush1.msra.mxu0 0.0
      %2460 = vmatprep.subr.mxu0 0.0
      %2461 = vmatpush1.msra.mxu0 0.0
      %2462 = vmatprep.subr.mxu0 0.0
      %2463 = vmatpush1.msra.mxu0 0.0
      %2464 = vmatprep.subr.mxu0 0.0
      %2465 = vmatpush1.msra.mxu0 0.0
      %2466 = vmatprep.subr.mxu0 %v2257
      %2467 = vmatpush1.msra.mxu0 %v2256
      %2468 = vmatprep.subr.mxu0 0.0
      %2469 = vmatpush2.msra.mxu0 0.0
      %2470 = vmatprep.subr.mxu0 0.0
      %2471 = vmatpush2.msra.mxu0 0.0
      %2472 = vmatprep.subr.mxu0 0.0
      %2473 = vmatpush2.msra.mxu0 0.0
      %2474 = vmatprep.subr.mxu0 0.0
      %2475 = vmatpush2.msra.mxu0 0.0
      %2476 = vmatprep.subr.mxu0 0.0
      %2477 = vmatpush2.msra.mxu0 0.0
      %2478 = vmatprep.subr.mxu0 0.0
      %2479 = vmatpush2.msra.mxu0 0.0
      %2480 = vmatprep.subr.mxu0 0.0
      %2481 = vmatpush2.msra.mxu0 0.0
      %2482 = vmatprep.subr.mxu0 0.0
      %2483 = vmatpush2.msra.mxu0 0.0
      %2484 = vmatprep.subr.mxu0 0.0
      %2485 = vmatpush2.msra.mxu0 0.0
      %2486 = vmatprep.subr.mxu0 0.0
      %2487 = vmatpush2.msra.mxu0 0.0
      %2488 = vmatprep.subr.mxu0 0.0
      %2489 = vmatpush2.msra.mxu0 0.0
      %2490 = vmatprep.subr.mxu0 0.0
      %2491 = vmatpush2.msra.mxu0 0.0
      %2492 = vmatprep.subr.mxu0 0.0
      %2493 = vmatpush2.msra.mxu0 0.0
      %2494 = vmatprep.subr.mxu0 0.0
      %2495 = vmatpush2.msra.mxu0 0.0
      %2496 = vmatprep.subr.mxu0 0.0
      %2497 = vmatpush2.msra.mxu0 0.0
      %2498 = vmatprep.subr.mxu0 0.0
      %2499 = vmatpush2.msra.mxu0 0.0
      %2500 = vmatprep.mubr.f32.mxu0 0.0
      %2501 = vmatmul.mubr.f32.gmra.mxu0 %v2434
      %v2502 = vpop.f32.mrf.mxu0
      %v2503 = vadd.f32 0.0, %v2502
      %v2504 = vpop.f32.mrf.mxu0
      %v2505 = vadd.f32 0.0, %v2504
      %2506 = vdwg.mxu0
      %2507 = vmatprep.subr.mxu0 0.0
      %2508 = vmatpush1.msra.mxu0 0.0
      %2509 = vmatprep.subr.mxu0 0.0
      %2510 = vmatpush1.msra.mxu0 0.0
      %2511 = vmatprep.subr.mxu0 0.0
      %2512 = vmatpush1.msra.mxu0 0.0
      %2513 = vmatprep.subr.mxu0 0.0
      %2514 = vmatpush1.msra.mxu0 0.0
      %2515 = vmatprep.subr.mxu0 0.0
      %2516 = vmatpush1.msra.mxu0 0.0
      %2517 = vmatprep.subr.mxu0 0.0
      %2518 = vmatpush1.msra.mxu0 0.0
      %2519 = vmatprep.subr.mxu0 0.0
      %2520 = vmatpush1.msra.mxu0 0.0
      %2521 = vmatprep.subr.mxu0 0.0
      %2522 = vmatpush1.msra.mxu0 0.0
      %2523 = vmatprep.subr.mxu0 0.0
      %2524 = vmatpush1.msra.mxu0 0.0
      %2525 = vmatprep.subr.mxu0 0.0
      %2526 = vmatpush1.msra.mxu0 0.0
      %2527 = vmatprep.subr.mxu0 0.0
      %2528 = vmatpush1.msra.mxu0 0.0
      %2529 = vmatprep.subr.mxu0 0.0
      %2530 = vmatpush1.msra.mxu0 0.0
      %2531 = vmatprep.subr.mxu0 0.0
      %2532 = vmatpush1.msra.mxu0 0.0
      %2533 = vmatprep.subr.mxu0 0.0
      %2534 = vmatpush1.msra.mxu0 0.0
      %2535 = vmatprep.subr.mxu0 0.0
      %2536 = vmatpush1.msra.mxu0 0.0
      %2537 = vmatprep.subr.mxu0 0.0
      %2538 = vmatpush1.msra.mxu0 %v2255
      %2539 = vmatprep.subr.mxu0 0.0
      %2540 = vmatpush2.msra.mxu0 0.0
      %2541 = vmatprep.subr.mxu0 0.0
      %2542 = vmatpush2.msra.mxu0 0.0
      %2543 = vmatprep.subr.mxu0 0.0
      %2544 = vmatpush2.msra.mxu0 0.0
      %2545 = vmatprep.subr.mxu0 0.0
      %2546 = vmatpush2.msra.mxu0 0.0
      %2547 = vmatprep.subr.mxu0 0.0
      %2548 = vmatpush2.msra.mxu0 0.0
      %2549 = vmatprep.subr.mxu0 0.0
      %2550 = vmatpush2.msra.mxu0 0.0
      %2551 = vmatprep.subr.mxu0 0.0
      %2552 = vmatpush2.msra.mxu0 0.0
      %2553 = vmatprep.subr.mxu0 0.0
      %2554 = vmatpush2.msra.mxu0 0.0
      %2555 = vmatprep.subr.mxu0 0.0
      %2556 = vmatpush2.msra.mxu0 0.0
      %2557 = vmatprep.subr.mxu0 0.0
      %2558 = vmatpush2.msra.mxu0 0.0
      %2559 = vmatprep.subr.mxu0 0.0
      %2560 = vmatpush2.msra.mxu0 0.0
      %2561 = vmatprep.subr.mxu0 0.0
      %2562 = vmatpush2.msra.mxu0 0.0
      %2563 = vmatprep.subr.mxu0 0.0
      %2564 = vmatpush2.msra.mxu0 0.0
      %2565 = vmatprep.subr.mxu0 0.0
      %2566 = vmatpush2.msra.mxu0 0.0
      %2567 = vmatprep.subr.mxu0 0.0
      %2568 = vmatpush2.msra.mxu0 0.0
      %2569 = vmatprep.subr.mxu0 0.0
      %2570 = vmatpush2.msra.mxu0 0.0
      %2571 = vmatprep.mubr.f32.mxu0 0.0
      %2572 = vmatmul.mubr.f32.gmra.mxu0 %v2434
      %v2573 = vpop.f32.mrf.mxu0
      %v2574 = vadd.f32 0.0, %v2573
      %v2575 = vpop.f32.mrf.mxu0
      %2576 = vdwg.mxu0
      %v2577 = vadd.f32 %v2429, %v2503
      %v2578 = vadd.f32 %v2430, %v2505
      %v2579 = vadd.f32 %v2431, %v2574
      %2580 = vrot.lane.b32.xlu0 %v1772, 88
      %v2581 = vpop.permute.xlu0 %2580
      %2582 = vrot.lane.b32.xlu0 %v2256, 127
      %v2583 = vpop.permute.xlu0 %2582
      %2584 = vrot.lane.b32.xlu0 %v2257, 127
      %v2585 = vpop.permute.xlu0 %2584
      %2586 = vrot.lane.b32.xlu0 %v2263, 127
      %v2587 = vpop.permute.xlu0 %2586
      %v2588 = vsel %vm588, %v2583, %v2585
      %v2589 = vsel %vm588, %v2585, %v2587
      %v2593 = vsel %vm276, %v2581, 0
      %2595 = vmatprep.subr.mxu0 0.0
      %2596 = vmatpush1.msra.mxu0 0.0
      %2597 = vmatprep.subr.mxu0 0.0
      %2598 = vmatpush1.msra.mxu0 0.0
      %2599 = vmatprep.subr.mxu0 0.0
      %2600 = vmatpush1.msra.mxu0 0.0
      %2601 = vmatprep.subr.mxu0 0.0
      %2602 = vmatpush1.msra.mxu0 0.0
      %2603 = vmatprep.subr.mxu0 0.0
      %2604 = vmatpush1.msra.mxu0 0.0
      %2605 = vmatprep.subr.mxu0 0.0
      %2606 = vmatpush1.msra.mxu0 0.0
      %2607 = vmatprep.subr.mxu0 0.0
      %2608 = vmatpush1.msra.mxu0 0.0
      %2609 = vmatprep.subr.mxu0 0.0
      %2610 = vmatpush1.msra.mxu0 0.0
      %2611 = vmatprep.subr.mxu0 0.0
      %2612 = vmatpush1.msra.mxu0 0.0
      %2613 = vmatprep.subr.mxu0 0.0
      %2614 = vmatpush1.msra.mxu0 0.0
      %2615 = vmatprep.subr.mxu0 0.0
      %2616 = vmatpush1.msra.mxu0 0.0
      %2617 = vmatprep.subr.mxu0 0.0
      %2618 = vmatpush1.msra.mxu0 0.0
      %2619 = vmatprep.subr.mxu0 0.0
      %2620 = vmatpush1.msra.mxu0 0.0
      %2621 = vmatprep.subr.mxu0 0.0
      %2622 = vmatpush1.msra.mxu0 0.0
      %2623 = vmatprep.subr.mxu0 0.0
      %2624 = vmatpush1.msra.mxu0 0.0
      %2625 = vmatprep.subr.mxu0 %v2589
      %2626 = vmatpush1.msra.mxu0 %v2588
      %2627 = vmatprep.subr.mxu0 0.0
      %2628 = vmatpush2.msra.mxu0 0.0
      %2629 = vmatprep.subr.mxu0 0.0
      %2630 = vmatpush2.msra.mxu0 0.0
      %2631 = vmatprep.subr.mxu0 0.0
      %2632 = vmatpush2.msra.mxu0 0.0
      %2633 = vmatprep.subr.mxu0 0.0
      %2634 = vmatpush2.msra.mxu0 0.0
      %2635 = vmatprep.subr.mxu0 0.0
      %2636 = vmatpush2.msra.mxu0 0.0
      %2637 = vmatprep.subr.mxu0 0.0
      %2638 = vmatpush2.msra.mxu0 0.0
      %2639 = vmatprep.subr.mxu0 0.0
      %2640 = vmatpush2.msra.mxu0 0.0
      %2641 = vmatprep.subr.mxu0 0.0
      %2642 = vmatpush2.msra.mxu0 0.0
      %2643 = vmatprep.subr.mxu0 0.0
      %2644 = vmatpush2.msra.mxu0 0.0
      %2645 = vmatprep.subr.mxu0 0.0
      %2646 = vmatpush2.msra.mxu0 0.0
      %2647 = vmatprep.subr.mxu0 0.0
      %2648 = vmatpush2.msra.mxu0 0.0
      %2649 = vmatprep.subr.mxu0 0.0
      %2650 = vmatpush2.msra.mxu0 0.0
      %2651 = vmatprep.subr.mxu0 0.0
      %2652 = vmatpush2.msra.mxu0 0.0
      %2653 = vmatprep.subr.mxu0 0.0
      %2654 = vmatpush2.msra.mxu0 0.0
      %2655 = vmatprep.subr.mxu0 0.0
      %2656 = vmatpush2.msra.mxu0 0.0
      %2657 = vmatprep.subr.mxu0 0.0
      %2658 = vmatpush2.msra.mxu0 0.0
      %2659 = vmatprep.mubr.f32.mxu0 0.0
      %2660 = vmatmul.mubr.f32.gmra.mxu0 %v2593
      %v2661 = vpop.f32.mrf.mxu0
      %v2662 = vadd.f32 0.0, %v2661
      %v2663 = vpop.f32.mrf.mxu0
      %v2664 = vadd.f32 0.0, %v2663
      %2665 = vdwg.mxu0
      %2666 = vmatprep.subr.mxu0 0.0
      %2667 = vmatpush1.msra.mxu0 0.0
      %2668 = vmatprep.subr.mxu0 0.0
      %2669 = vmatpush1.msra.mxu0 0.0
      %2670 = vmatprep.subr.mxu0 0.0
      %2671 = vmatpush1.msra.mxu0 0.0
      %2672 = vmatprep.subr.mxu0 0.0
      %2673 = vmatpush1.msra.mxu0 0.0
      %2674 = vmatprep.subr.mxu0 0.0
      %2675 = vmatpush1.msra.mxu0 0.0
      %2676 = vmatprep.subr.mxu0 0.0
      %2677 = vmatpush1.msra.mxu0 0.0
      %2678 = vmatprep.subr.mxu0 0.0
      %2679 = vmatpush1.msra.mxu0 0.0
      %2680 = vmatprep.subr.mxu0 0.0
      %2681 = vmatpush1.msra.mxu0 0.0
      %2682 = vmatprep.subr.mxu0 0.0
      %2683 = vmatpush1.msra.mxu0 0.0
      %2684 = vmatprep.subr.mxu0 0.0
      %2685 = vmatpush1.msra.mxu0 0.0
      %2686 = vmatprep.subr.mxu0 0.0
      %2687 = vmatpush1.msra.mxu0 0.0
      %2688 = vmatprep.subr.mxu0 0.0
      %2689 = vmatpush1.msra.mxu0 0.0
      %2690 = vmatprep.subr.mxu0 0.0
      %2691 = vmatpush1.msra.mxu0 0.0
      %2692 = vmatprep.subr.mxu0 0.0
      %2693 = vmatpush1.msra.mxu0 0.0
      %2694 = vmatprep.subr.mxu0 0.0
      %2695 = vmatpush1.msra.mxu0 0.0
      %2696 = vmatprep.subr.mxu0 0.0
      %2697 = vmatpush1.msra.mxu0 %v2587
      %2698 = vmatprep.subr.mxu0 0.0
      %2699 = vmatpush2.msra.mxu0 0.0
      %2700 = vmatprep.subr.mxu0 0.0
      %2701 = vmatpush2.msra.mxu0 0.0
      %2702 = vmatprep.subr.mxu0 0.0
      %2703 = vmatpush2.msra.mxu0 0.0
      %2704 = vmatprep.subr.mxu0 0.0
      %2705 = vmatpush2.msra.mxu0 0.0
      %2706 = vmatprep.subr.mxu0 0.0
      %2707 = vmatpush2.msra.mxu0 0.0
      %2708 = vmatprep.subr.mxu0 0.0
      %2709 = vmatpush2.msra.mxu0 0.0
      %2710 = vmatprep.subr.mxu0 0.0
      %2711 = vmatpush2.msra.mxu0 0.0
      %2712 = vmatprep.subr.mxu0 0.0
      %2713 = vmatpush2.msra.mxu0 0.0
      %2714 = vmatprep.subr.mxu0 0.0
      %2715 = vmatpush2.msra.mxu0 0.0
      %2716 = vmatprep.subr.mxu0 0.0
      %2717 = vmatpush2.msra.mxu0 0.0
      %2718 = vmatprep.subr.mxu0 0.0
      %2719 = vmatpush2.msra.mxu0 0.0
      %2720 = vmatprep.subr.mxu0 0.0
      %2721 = vmatpush2.msra.mxu0 0.0
      %2722 = vmatprep.subr.mxu0 0.0
      %2723 = vmatpush2.msra.mxu0 0.0
      %2724 = vmatprep.subr.mxu0 0.0
      %2725 = vmatpush2.msra.mxu0 0.0
      %2726 = vmatprep.subr.mxu0 0.0
      %2727 = vmatpush2.msra.mxu0 0.0
      %2728 = vmatprep.subr.mxu0 0.0
      %2729 = vmatpush2.msra.mxu0 0.0
      %2730 = vmatprep.mubr.f32.mxu0 0.0
      %2731 = vmatmul.mubr.f32.gmra.mxu0 %v2593
      %v2732 = vpop.f32.mrf.mxu0
      %v2733 = vadd.f32 0.0, %v2732
      %v2734 = vpop.f32.mrf.mxu0
      %2735 = vdwg.mxu0
      %v2736 = vadd.f32 %v2577, %v2662
      %v2737 = vadd.f32 %v2578, %v2664
      %v2738 = vadd.f32 %v2579, %v2733
      %2739 = vrot.lane.b32.xlu0 %v1773, 92
      %v2740 = vpop.permute.xlu0 %2739
      %2741 = vrot.lane.b32.xlu0 %v1774, 92
      %v2742 = vpop.permute.xlu0 %2741
      %2743 = vrot.lane.b32.xlu0 %v1775, 92
      %v2744 = vpop.permute.xlu0 %2743
      %v2745 = vsel %vm1237, %v2740, %v2742
      %v2746 = vsel %vm1237, %v2742, %v2744
      %2750 = vrot.lane.b32.xlu0 %v2745, 32
      %v2751 = vpop.permute.xlu0 %2750
      %v2752 = vsel %vm263, %v2751, %v2744
      %2753 = vrot.lane.b32.xlu0 %v2746, 32
      %v2754 = vpop.permute.xlu0 %2753
      %2755 = vrot.lane.b32.xlu0 %v2752, 32
      %v2756 = vpop.permute.xlu0 %2755
      %v2757 = vsel %vm263, %v2754, %v2751
      %v2758 = vsel %vm263, %v2756, %v2754
      %2759 = vrot.lane.b32.xlu0 %v1772, 80
      %v2760 = vpop.permute.xlu0 %2759
      %2764 = vrot.lane.b32.xlu0 %v2752, 97
      %v2765 = vpop.permute.xlu0 %2764
      %2766 = vrot.lane.b32.xlu0 %v2757, 97
      %v2767 = vpop.permute.xlu0 %2766
      %2768 = vrot.lane.b32.xlu0 %v2758, 97
      %v2769 = vpop.permute.xlu0 %2768
      %v2770 = vsel %vm429, %v2765, %v2767
      %v2771 = vsel %vm429, %v2767, %v2769
      %v2775 = vsel %vm276, %v2760, 0
      %2777 = vmatprep.subr.mxu0 0.0
      %2778 = vmatpush1.msra.mxu0 0.0
      %2779 = vmatprep.subr.mxu0 0.0
      %2780 = vmatpush1.msra.mxu0 0.0
      %2781 = vmatprep.subr.mxu0 0.0
      %2782 = vmatpush1.msra.mxu0 0.0
      %2783 = vmatprep.subr.mxu0 0.0
      %2784 = vmatpush1.msra.mxu0 0.0
      %2785 = vmatprep.subr.mxu0 0.0
      %2786 = vmatpush1.msra.mxu0 0.0
      %2787 = vmatprep.subr.mxu0 0.0
      %2788 = vmatpush1.msra.mxu0 0.0
      %2789 = vmatprep.subr.mxu0 0.0
      %2790 = vmatpush1.msra.mxu0 0.0
      %2791 = vmatprep.subr.mxu0 0.0
      %2792 = vmatpush1.msra.mxu0 0.0
      %2793 = vmatprep.subr.mxu0 0.0
      %2794 = vmatpush1.msra.mxu0 0.0
      %2795 = vmatprep.subr.mxu0 0.0
      %2796 = vmatpush1.msra.mxu0 0.0
      %2797 = vmatprep.subr.mxu0 0.0
      %2798 = vmatpush1.msra.mxu0 0.0
      %2799 = vmatprep.subr.mxu0 0.0
      %2800 = vmatpush1.msra.mxu0 0.0
      %2801 = vmatprep.subr.mxu0 0.0
      %2802 = vmatpush1.msra.mxu0 0.0
      %2803 = vmatprep.subr.mxu0 0.0
      %2804 = vmatpush1.msra.mxu0 0.0
      %2805 = vmatprep.subr.mxu0 0.0
      %2806 = vmatpush1.msra.mxu0 0.0
      %2807 = vmatprep.subr.mxu0 %v2771
      %2808 = vmatpush1.msra.mxu0 %v2770
      %2809 = vmatprep.subr.mxu0 0.0
      %2810 = vmatpush2.msra.mxu0 0.0
      %2811 = vmatprep.subr.mxu0 0.0
      %2812 = vmatpush2.msra.mxu0 0.0
      %2813 = vmatprep.subr.mxu0 0.0
      %2814 = vmatpush2.msra.mxu0 0.0
      %2815 = vmatprep.subr.mxu0 0.0
      %2816 = vmatpush2.msra.mxu0 0.0
      %2817 = vmatprep.subr.mxu0 0.0
      %2818 = vmatpush2.msra.mxu0 0.0
      %2819 = vmatprep.subr.mxu0 0.0
      %2820 = vmatpush2.msra.mxu0 0.0
      %2821 = vmatprep.subr.mxu0 0.0
      %2822 = vmatpush2.msra.mxu0 0.0
      %2823 = vmatprep.subr.mxu0 0.0
      %2824 = vmatpush2.msra.mxu0 0.0
      %2825 = vmatprep.subr.mxu0 0.0
      %2826 = vmatpush2.msra.mxu0 0.0
      %2827 = vmatprep.subr.mxu0 0.0
      %2828 = vmatpush2.msra.mxu0 0.0
      %2829 = vmatprep.subr.mxu0 0.0
      %2830 = vmatpush2.msra.mxu0 0.0
      %2831 = vmatprep.subr.mxu0 0.0
      %2832 = vmatpush2.msra.mxu0 0.0
      %2833 = vmatprep.subr.mxu0 0.0
      %2834 = vmatpush2.msra.mxu0 0.0
      %2835 = vmatprep.subr.mxu0 0.0
      %2836 = vmatpush2.msra.mxu0 0.0
      %2837 = vmatprep.subr.mxu0 0.0
      %2838 = vmatpush2.msra.mxu0 0.0
      %2839 = vmatprep.subr.mxu0 0.0
      %2840 = vmatpush2.msra.mxu0 0.0
      %2841 = vmatprep.mubr.f32.mxu0 0.0
      %2842 = vmatmul.mubr.f32.gmra.mxu0 %v2775
      %v2843 = vpop.f32.mrf.mxu0
      %v2844 = vadd.f32 0.0, %v2843
      %v2845 = vpop.f32.mrf.mxu0
      %v2846 = vadd.f32 0.0, %v2845
      %2847 = vdwg.mxu0
      %2848 = vmatprep.subr.mxu0 0.0
      %2849 = vmatpush1.msra.mxu0 0.0
      %2850 = vmatprep.subr.mxu0 0.0
      %2851 = vmatpush1.msra.mxu0 0.0
      %2852 = vmatprep.subr.mxu0 0.0
      %2853 = vmatpush1.msra.mxu0 0.0
      %2854 = vmatprep.subr.mxu0 0.0
      %2855 = vmatpush1.msra.mxu0 0.0
      %2856 = vmatprep.subr.mxu0 0.0
      %2857 = vmatpush1.msra.mxu0 0.0
      %2858 = vmatprep.subr.mxu0 0.0
      %2859 = vmatpush1.msra.mxu0 0.0
      %2860 = vmatprep.subr.mxu0 0.0
      %2861 = vmatpush1.msra.mxu0 0.0
      %2862 = vmatprep.subr.mxu0 0.0
      %2863 = vmatpush1.msra.mxu0 0.0
      %2864 = vmatprep.subr.mxu0 0.0
      %2865 = vmatpush1.msra.mxu0 0.0
      %2866 = vmatprep.subr.mxu0 0.0
      %2867 = vmatpush1.msra.mxu0 0.0
      %2868 = vmatprep.subr.mxu0 0.0
      %2869 = vmatpush1.msra.mxu0 0.0
      %2870 = vmatprep.subr.mxu0 0.0
      %2871 = vmatpush1.msra.mxu0 0.0
      %2872 = vmatprep.subr.mxu0 0.0
      %2873 = vmatpush1.msra.mxu0 0.0
      %2874 = vmatprep.subr.mxu0 0.0
      %2875 = vmatpush1.msra.mxu0 0.0
      %2876 = vmatprep.subr.mxu0 0.0
      %2877 = vmatpush1.msra.mxu0 0.0
      %2878 = vmatprep.subr.mxu0 0.0
      %2879 = vmatpush1.msra.mxu0 %v2769
      %2880 = vmatprep.subr.mxu0 0.0
      %2881 = vmatpush2.msra.mxu0 0.0
      %2882 = vmatprep.subr.mxu0 0.0
      %2883 = vmatpush2.msra.mxu0 0.0
      %2884 = vmatprep.subr.mxu0 0.0
      %2885 = vmatpush2.msra.mxu0 0.0
      %2886 = vmatprep.subr.mxu0 0.0
      %2887 = vmatpush2.msra.mxu0 0.0
      %2888 = vmatprep.subr.mxu0 0.0
      %2889 = vmatpush2.msra.mxu0 0.0
      %2890 = vmatprep.subr.mxu0 0.0
      %2891 = vmatpush2.msra.mxu0 0.0
      %2892 = vmatprep.subr.mxu0 0.0
      %2893 = vmatpush2.msra.mxu0 0.0
      %2894 = vmatprep.subr.mxu0 0.0
      %2895 = vmatpush2.msra.mxu0 0.0
      %2896 = vmatprep.subr.mxu0 0.0
      %2897 = vmatpush2.msra.mxu0 0.0
      %2898 = vmatprep.subr.mxu0 0.0
      %2899 = vmatpush2.msra.mxu0 0.0
      %2900 = vmatprep.subr.mxu0 0.0
      %2901 = vmatpush2.msra.mxu0 0.0
      %2902 = vmatprep.subr.mxu0 0.0
      %2903 = vmatpush2.msra.mxu0 0.0
      %2904 = vmatprep.subr.mxu0 0.0
      %2905 = vmatpush2.msra.mxu0 0.0
      %2906 = vmatprep.subr.mxu0 0.0
      %2907 = vmatpush2.msra.mxu0 0.0
      %2908 = vmatprep.subr.mxu0 0.0
      %2909 = vmatpush2.msra.mxu0 0.0
      %2910 = vmatprep.subr.mxu0 0.0
      %2911 = vmatpush2.msra.mxu0 0.0
      %2912 = vmatprep.mubr.f32.mxu0 0.0
      %2913 = vmatmul.mubr.f32.gmra.mxu0 %v2775
      %v2914 = vpop.f32.mrf.mxu0
      %v2915 = vadd.f32 0.0, %v2914
      %v2916 = vpop.f32.mrf.mxu0
      %2917 = vdwg.mxu0
      %v2918 = vadd.f32 %v2736, %v2844
      %v2919 = vadd.f32 %v2737, %v2846
      %v2920 = vadd.f32 %v2738, %v2915
      %2921 = vrot.lane.b32.xlu0 %v1772, 72
      %v2922 = vpop.permute.xlu0 %2921
      %v2923 = vsel %vm276, %v2922, 0
      %2925 = vmatprep.subr.mxu0 0.0
      %2926 = vmatpush1.msra.mxu0 0.0
      %2927 = vmatprep.subr.mxu0 0.0
      %2928 = vmatpush1.msra.mxu0 0.0
      %2929 = vmatprep.subr.mxu0 0.0
      %2930 = vmatpush1.msra.mxu0 0.0
      %2931 = vmatprep.subr.mxu0 0.0
      %2932 = vmatpush1.msra.mxu0 0.0
      %2933 = vmatprep.subr.mxu0 0.0
      %2934 = vmatpush1.msra.mxu0 0.0
      %2935 = vmatprep.subr.mxu0 0.0
      %2936 = vmatpush1.msra.mxu0 0.0
      %2937 = vmatprep.subr.mxu0 0.0
      %2938 = vmatpush1.msra.mxu0 0.0
      %2939 = vmatprep.subr.mxu0 0.0
      %2940 = vmatpush1.msra.mxu0 0.0
      %2941 = vmatprep.subr.mxu0 0.0
      %2942 = vmatpush1.msra.mxu0 0.0
      %2943 = vmatprep.subr.mxu0 0.0
      %2944 = vmatpush1.msra.mxu0 0.0
      %2945 = vmatprep.subr.mxu0 0.0
      %2946 = vmatpush1.msra.mxu0 0.0
      %2947 = vmatprep.subr.mxu0 0.0
      %2948 = vmatpush1.msra.mxu0 0.0
      %2949 = vmatprep.subr.mxu0 0.0
      %2950 = vmatpush1.msra.mxu0 0.0
      %2951 = vmatprep.subr.mxu0 0.0
      %2952 = vmatpush1.msra.mxu0 0.0
      %2953 = vmatprep.subr.mxu0 0.0
      %2954 = vmatpush1.msra.mxu0 0.0
      %2955 = vmatprep.subr.mxu0 %v2746
      %2956 = vmatpush1.msra.mxu0 %v2745
      %2957 = vmatprep.subr.mxu0 0.0
      %2958 = vmatpush2.msra.mxu0 0.0
      %2959 = vmatprep.subr.mxu0 0.0
      %2960 = vmatpush2.msra.mxu0 0.0
      %2961 = vmatprep.subr.mxu0 0.0
      %2962 = vmatpush2.msra.mxu0 0.0
      %2963 = vmatprep.subr.mxu0 0.0
      %2964 = vmatpush2.msra.mxu0 0.0
      %2965 = vmatprep.subr.mxu0 0.0
      %2966 = vmatpush2.msra.mxu0 0.0
      %2967 = vmatprep.subr.mxu0 0.0
      %2968 = vmatpush2.msra.mxu0 0.0
      %2969 = vmatprep.subr.mxu0 0.0
      %2970 = vmatpush2.msra.mxu0 0.0
      %2971 = vmatprep.subr.mxu0 0.0
      %2972 = vmatpush2.msra.mxu0 0.0
      %2973 = vmatprep.subr.mxu0 0.0
      %2974 = vmatpush2.msra.mxu0 0.0
      %2975 = vmatprep.subr.mxu0 0.0
      %2976 = vmatpush2.msra.mxu0 0.0
      %2977 = vmatprep.subr.mxu0 0.0
      %2978 = vmatpush2.msra.mxu0 0.0
      %2979 = vmatprep.subr.mxu0 0.0
      %2980 = vmatpush2.msra.mxu0 0.0
      %2981 = vmatprep.subr.mxu0 0.0
      %2982 = vmatpush2.msra.mxu0 0.0
      %2983 = vmatprep.subr.mxu0 0.0
      %2984 = vmatpush2.msra.mxu0 0.0
      %2985 = vmatprep.subr.mxu0 0.0
      %2986 = vmatpush2.msra.mxu0 0.0
      %2987 = vmatprep.subr.mxu0 0.0
      %2988 = vmatpush2.msra.mxu0 0.0
      %2989 = vmatprep.mubr.f32.mxu0 0.0
      %2990 = vmatmul.mubr.f32.gmra.mxu0 %v2923
      %v2991 = vpop.f32.mrf.mxu0
      %v2992 = vadd.f32 0.0, %v2991
      %v2993 = vpop.f32.mrf.mxu0
      %v2994 = vadd.f32 0.0, %v2993
      %2995 = vdwg.mxu0
      %2996 = vmatprep.subr.mxu0 0.0
      %2997 = vmatpush1.msra.mxu0 0.0
      %2998 = vmatprep.subr.mxu0 0.0
      %2999 = vmatpush1.msra.mxu0 0.0
      %3000 = vmatprep.subr.mxu0 0.0
      %3001 = vmatpush1.msra.mxu0 0.0
      %3002 = vmatprep.subr.mxu0 0.0
      %3003 = vmatpush1.msra.mxu0 0.0
      %3004 = vmatprep.subr.mxu0 0.0
      %3005 = vmatpush1.msra.mxu0 0.0
      %3006 = vmatprep.subr.mxu0 0.0
      %3007 = vmatpush1.msra.mxu0 0.0
      %3008 = vmatprep.subr.mxu0 0.0
      %3009 = vmatpush1.msra.mxu0 0.0
      %3010 = vmatprep.subr.mxu0 0.0
      %3011 = vmatpush1.msra.mxu0 0.0
      %3012 = vmatprep.subr.mxu0 0.0
      %3013 = vmatpush1.msra.mxu0 0.0
      %3014 = vmatprep.subr.mxu0 0.0
      %3015 = vmatpush1.msra.mxu0 0.0
      %3016 = vmatprep.subr.mxu0 0.0
      %3017 = vmatpush1.msra.mxu0 0.0
      %3018 = vmatprep.subr.mxu0 0.0
      %3019 = vmatpush1.msra.mxu0 0.0
      %3020 = vmatprep.subr.mxu0 0.0
      %3021 = vmatpush1.msra.mxu0 0.0
      %3022 = vmatprep.subr.mxu0 0.0
      %3023 = vmatpush1.msra.mxu0 0.0
      %3024 = vmatprep.subr.mxu0 0.0
      %3025 = vmatpush1.msra.mxu0 0.0
      %3026 = vmatprep.subr.mxu0 0.0
      %3027 = vmatpush1.msra.mxu0 %v2744
      %3028 = vmatprep.subr.mxu0 0.0
      %3029 = vmatpush2.msra.mxu0 0.0
      %3030 = vmatprep.subr.mxu0 0.0
      %3031 = vmatpush2.msra.mxu0 0.0
      %3032 = vmatprep.subr.mxu0 0.0
      %3033 = vmatpush2.msra.mxu0 0.0
      %3034 = vmatprep.subr.mxu0 0.0
      %3035 = vmatpush2.msra.mxu0 0.0
      %3036 = vmatprep.subr.mxu0 0.0
      %3037 = vmatpush2.msra.mxu0 0.0
      %3038 = vmatprep.subr.mxu0 0.0
      %3039 = vmatpush2.msra.mxu0 0.0
      %3040 = vmatprep.subr.mxu0 0.0
      %3041 = vmatpush2.msra.mxu0 0.0
      %3042 = vmatprep.subr.mxu0 0.0
      %3043 = vmatpush2.msra.mxu0 0.0
      %3044 = vmatprep.subr.mxu0 0.0
      %3045 = vmatpush2.msra.mxu0 0.0
      %3046 = vmatprep.subr.mxu0 0.0
      %3047 = vmatpush2.msra.mxu0 0.0
      %3048 = vmatprep.subr.mxu0 0.0
      %3049 = vmatpush2.msra.mxu0 0.0
      %3050 = vmatprep.subr.mxu0 0.0
      %3051 = vmatpush2.msra.mxu0 0.0
      %3052 = vmatprep.subr.mxu0 0.0
      %3053 = vmatpush2.msra.mxu0 0.0
      %3054 = vmatprep.subr.mxu0 0.0
      %3055 = vmatpush2.msra.mxu0 0.0
      %3056 = vmatprep.subr.mxu0 0.0
      %3057 = vmatpush2.msra.mxu0 0.0
      %3058 = vmatprep.subr.mxu0 0.0
      %3059 = vmatpush2.msra.mxu0 0.0
      %3060 = vmatprep.mubr.f32.mxu0 0.0
      %3061 = vmatmul.mubr.f32.gmra.mxu0 %v2923
      %v3062 = vpop.f32.mrf.mxu0
      %v3063 = vadd.f32 0.0, %v3062
      %v3064 = vpop.f32.mrf.mxu0
      %3065 = vdwg.mxu0
      %v3066 = vadd.f32 %v2918, %v2992
      %v3067 = vadd.f32 %v2919, %v2994
      %v3068 = vadd.f32 %v2920, %v3063
      %3069 = vrot.lane.b32.xlu0 %v1772, 64
      %v3070 = vpop.permute.xlu0 %3069
      %3071 = vrot.lane.b32.xlu0 %v2745, 127
      %v3072 = vpop.permute.xlu0 %3071
      %3073 = vrot.lane.b32.xlu0 %v2746, 127
      %v3074 = vpop.permute.xlu0 %3073
      %3075 = vrot.lane.b32.xlu0 %v2752, 127
      %v3076 = vpop.permute.xlu0 %3075
      %v3077 = vsel %vm588, %v3072, %v3074
      %v3078 = vsel %vm588, %v3074, %v3076
      %v3082 = vsel %vm276, %v3070, 0
      %3084 = vmatprep.subr.mxu0 0.0
      %3085 = vmatpush1.msra.mxu0 0.0
      %3086 = vmatprep.subr.mxu0 0.0
      %3087 = vmatpush1.msra.mxu0 0.0
      %3088 = vmatprep.subr.mxu0 0.0
      %3089 = vmatpush1.msra.mxu0 0.0
      %3090 = vmatprep.subr.mxu0 0.0
      %3091 = vmatpush1.msra.mxu0 0.0
      %3092 = vmatprep.subr.mxu0 0.0
      %3093 = vmatpush1.msra.mxu0 0.0
      %3094 = vmatprep.subr.mxu0 0.0
      %3095 = vmatpush1.msra.mxu0 0.0
      %3096 = vmatprep.subr.mxu0 0.0
      %3097 = vmatpush1.msra.mxu0 0.0
      %3098 = vmatprep.subr.mxu0 0.0
      %3099 = vmatpush1.msra.mxu0 0.0
      %3100 = vmatprep.subr.mxu0 0.0
      %3101 = vmatpush1.msra.mxu0 0.0
      %3102 = vmatprep.subr.mxu0 0.0
      %3103 = vmatpush1.msra.mxu0 0.0
      %3104 = vmatprep.subr.mxu0 0.0
      %3105 = vmatpush1.msra.mxu0 0.0
      %3106 = vmatprep.subr.mxu0 0.0
      %3107 = vmatpush1.msra.mxu0 0.0
      %3108 = vmatprep.subr.mxu0 0.0
      %3109 = vmatpush1.msra.mxu0 0.0
      %3110 = vmatprep.subr.mxu0 0.0
      %3111 = vmatpush1.msra.mxu0 0.0
      %3112 = vmatprep.subr.mxu0 0.0
      %3113 = vmatpush1.msra.mxu0 0.0
      %3114 = vmatprep.subr.mxu0 %v3078
      %3115 = vmatpush1.msra.mxu0 %v3077
      %3116 = vmatprep.subr.mxu0 0.0
      %3117 = vmatpush2.msra.mxu0 0.0
      %3118 = vmatprep.subr.mxu0 0.0
      %3119 = vmatpush2.msra.mxu0 0.0
      %3120 = vmatprep.subr.mxu0 0.0
      %3121 = vmatpush2.msra.mxu0 0.0
      %3122 = vmatprep.subr.mxu0 0.0
      %3123 = vmatpush2.msra.mxu0 0.0
      %3124 = vmatprep.subr.mxu0 0.0
      %3125 = vmatpush2.msra.mxu0 0.0
      %3126 = vmatprep.subr.mxu0 0.0
      %3127 = vmatpush2.msra.mxu0 0.0
      %3128 = vmatprep.subr.mxu0 0.0
      %3129 = vmatpush2.msra.mxu0 0.0
      %3130 = vmatprep.subr.mxu0 0.0
      %3131 = vmatpush2.msra.mxu0 0.0
      %3132 = vmatprep.subr.mxu0 0.0
      %3133 = vmatpush2.msra.mxu0 0.0
      %3134 = vmatprep.subr.mxu0 0.0
      %3135 = vmatpush2.msra.mxu0 0.0
      %3136 = vmatprep.subr.mxu0 0.0
      %3137 = vmatpush2.msra.mxu0 0.0
      %3138 = vmatprep.subr.mxu0 0.0
      %3139 = vmatpush2.msra.mxu0 0.0
      %3140 = vmatprep.subr.mxu0 0.0
      %3141 = vmatpush2.msra.mxu0 0.0
      %3142 = vmatprep.subr.mxu0 0.0
      %3143 = vmatpush2.msra.mxu0 0.0
      %3144 = vmatprep.subr.mxu0 0.0
      %3145 = vmatpush2.msra.mxu0 0.0
      %3146 = vmatprep.subr.mxu0 0.0
      %3147 = vmatpush2.msra.mxu0 0.0
      %3148 = vmatprep.mubr.f32.mxu0 0.0
      %3149 = vmatmul.mubr.f32.gmra.mxu0 %v3082
      %v3150 = vpop.f32.mrf.mxu0
      %v3151 = vadd.f32 0.0, %v3150
      %v3152 = vpop.f32.mrf.mxu0
      %v3153 = vadd.f32 0.0, %v3152
      %3154 = vdwg.mxu0
      %3155 = vmatprep.subr.mxu0 0.0
      %3156 = vmatpush1.msra.mxu0 0.0
      %3157 = vmatprep.subr.mxu0 0.0
      %3158 = vmatpush1.msra.mxu0 0.0
      %3159 = vmatprep.subr.mxu0 0.0
      %3160 = vmatpush1.msra.mxu0 0.0
      %3161 = vmatprep.subr.mxu0 0.0
      %3162 = vmatpush1.msra.mxu0 0.0
      %3163 = vmatprep.subr.mxu0 0.0
      %3164 = vmatpush1.msra.mxu0 0.0
      %3165 = vmatprep.subr.mxu0 0.0
      %3166 = vmatpush1.msra.mxu0 0.0
      %3167 = vmatprep.subr.mxu0 0.0
      %3168 = vmatpush1.msra.mxu0 0.0
      %3169 = vmatprep.subr.mxu0 0.0
      %3170 = vmatpush1.msra.mxu0 0.0
      %3171 = vmatprep.subr.mxu0 0.0
      %3172 = vmatpush1.msra.mxu0 0.0
      %3173 = vmatprep.subr.mxu0 0.0
      %3174 = vmatpush1.msra.mxu0 0.0
      %3175 = vmatprep.subr.mxu0 0.0
      %3176 = vmatpush1.msra.mxu0 0.0
      %3177 = vmatprep.subr.mxu0 0.0
      %3178 = vmatpush1.msra.mxu0 0.0
      %3179 = vmatprep.subr.mxu0 0.0
      %3180 = vmatpush1.msra.mxu0 0.0
      %3181 = vmatprep.subr.mxu0 0.0
      %3182 = vmatpush1.msra.mxu0 0.0
      %3183 = vmatprep.subr.mxu0 0.0
      %3184 = vmatpush1.msra.mxu0 0.0
      %3185 = vmatprep.subr.mxu0 0.0
      %3186 = vmatpush1.msra.mxu0 %v3076
      %3187 = vmatprep.subr.mxu0 0.0
      %3188 = vmatpush2.msra.mxu0 0.0
      %3189 = vmatprep.subr.mxu0 0.0
      %3190 = vmatpush2.msra.mxu0 0.0
      %3191 = vmatprep.subr.mxu0 0.0
      %3192 = vmatpush2.msra.mxu0 0.0
      %3193 = vmatprep.subr.mxu0 0.0
      %3194 = vmatpush2.msra.mxu0 0.0
      %3195 = vmatprep.subr.mxu0 0.0
      %3196 = vmatpush2.msra.mxu0 0.0
      %3197 = vmatprep.subr.mxu0 0.0
      %3198 = vmatpush2.msra.mxu0 0.0
      %3199 = vmatprep.subr.mxu0 0.0
      %3200 = vmatpush2.msra.mxu0 0.0
      %3201 = vmatprep.subr.mxu0 0.0
      %3202 = vmatpush2.msra.mxu0 0.0
      %3203 = vmatprep.subr.mxu0 0.0
      %3204 = vmatpush2.msra.mxu0 0.0
      %3205 = vmatprep.subr.mxu0 0.0
      %3206 = vmatpush2.msra.mxu0 0.0
      %3207 = vmatprep.subr.mxu0 0.0
      %3208 = vmatpush2.msra.mxu0 0.0
      %3209 = vmatprep.subr.mxu0 0.0
      %3210 = vmatpush2.msra.mxu0 0.0
      %3211 = vmatprep.subr.mxu0 0.0
      %3212 = vmatpush2.msra.mxu0 0.0
      %3213 = vmatprep.subr.mxu0 0.0
      %3214 = vmatpush2.msra.mxu0 0.0
      %3215 = vmatprep.subr.mxu0 0.0
      %3216 = vmatpush2.msra.mxu0 0.0
      %3217 = vmatprep.subr.mxu0 0.0
      %3218 = vmatpush2.msra.mxu0 0.0
      %3219 = vmatprep.mubr.f32.mxu0 0.0
      %3220 = vmatmul.mubr.f32.gmra.mxu0 %v3082
      %v3221 = vpop.f32.mrf.mxu0
      %v3222 = vadd.f32 0.0, %v3221
      %v3223 = vpop.f32.mrf.mxu0
      %3224 = vdwg.mxu0
      %v3225 = vadd.f32 %v3066, %v3151
      %v3226 = vadd.f32 %v3067, %v3153
      %v3227 = vadd.f32 %v3068, %v3222
      %s3228 = scalar_lea.vmem %s2, 8
      %v3229 = vld [vmem:[%s3228] sm:$0xff]
      %3231 = vset.pattern.permute.xlu0 0
      %3232 = vperm.xlu0 %3231, %v3229
      %v3233 = vpop.permute.xlu0 %3232
      %v3235 = vadd.f32 %v3225, %v3233
      %v3236 = vadd.f32 %v3226, %v3233
      %v3237 = vadd.f32 %v3227, %v3233
      %v3238 = vmax.f32 %v3235, 0.0
      %v3239 = vmax.f32 %v3236, 0.0
      %v3240 = vmax.f32 %v3237, 0.0
      %v3241 = vmul.f32 %v3238, %v1737
      %v3242 = vmul.f32 %v3239, %v1741
      %v3243 = vmul.f32 %v3240, %v1745
      %3247 = vrot.lane.b32.xlu0 %v3241, 18
      %v3248 = vpop.permute.xlu0 %3247
      %3249 = vrot.lane.b32.xlu0 %v3242, 18
      %v3250 = vpop.permute.xlu0 %3249
      %3251 = vrot.lane.b32.xlu0 %v3243, 18
      %v3252 = vpop.permute.xlu0 %3251
      %v3253 = vsel %vm253, %v3248, %v3250
      %v3254 = vsel %vm253, %v3250, %v3252
      %3258 = vst.msk [vmem:[#allocation3] sm:$0xff] %vm1766, %v3248
      %3259 = vst [vmem:[#allocation3 + $0x8] sm:$0xff] %v3253
      %3260 = vst.msk [vmem:[#allocation3 + $0x10] sm:$0xff] %vm1769, %v3254
      %s3261 = scalar_lea.vmem %s1, 16
      %v3262 = vld [vmem:[%s3261] sm:$0xff]
      %v3263 = vld [vmem:[#allocation3] sm:$0xff]
      %v3264 = vld [vmem:[#allocation3 + $0x8] sm:$0xff]
      %v3265 = vld [vmem:[#allocation3 + $0x10] sm:$0xff]
      %3266 = vrot.lane.b32.xlu0 %v3263, 32
      %v3267 = vpop.permute.xlu0 %3266
      %v3268 = vsel %vm263, %v3267, %v3265
      %3269 = vrot.lane.b32.xlu0 %v3264, 32
      %v3270 = vpop.permute.xlu0 %3269
      %3271 = vrot.lane.b32.xlu0 %v3268, 32
      %v3272 = vpop.permute.xlu0 %3271
      %v3273 = vsel %vm263, %v3270, %v3267
      %v3274 = vsel %vm263, %v3272, %v3270
      %3276 = vrot.lane.b32.xlu0 %v3262, 120
      %v3277 = vpop.permute.xlu0 %3276
      %v3278 = vsel %vm276, %v3277, 0
      %3280 = vmatprep.subr.mxu0 0.0
      %3281 = vmatpush1.msra.mxu0 0.0
      %3282 = vmatprep.subr.mxu0 0.0
      %3283 = vmatpush1.msra.mxu0 0.0
      %3284 = vmatprep.subr.mxu0 0.0
      %3285 = vmatpush1.msra.mxu0 0.0
      %3286 = vmatprep.subr.mxu0 0.0
      %3287 = vmatpush1.msra.mxu0 0.0
      %3288 = vmatprep.subr.mxu0 0.0
      %3289 = vmatpush1.msra.mxu0 0.0
      %3290 = vmatprep.subr.mxu0 0.0
      %3291 = vmatpush1.msra.mxu0 0.0
      %3292 = vmatprep.subr.mxu0 0.0
      %3293 = vmatpush1.msra.mxu0 0.0
      %3294 = vmatprep.subr.mxu0 0.0
      %3295 = vmatpush1.msra.mxu0 0.0
      %3296 = vmatprep.subr.mxu0 0.0
      %3297 = vmatpush1.msra.mxu0 0.0
      %3298 = vmatprep.subr.mxu0 0.0
      %3299 = vmatpush1.msra.mxu0 0.0
      %3300 = vmatprep.subr.mxu0 0.0
      %3301 = vmatpush1.msra.mxu0 0.0
      %3302 = vmatprep.subr.mxu0 0.0
      %3303 = vmatpush1.msra.mxu0 0.0
      %3304 = vmatprep.subr.mxu0 0.0
      %3305 = vmatpush1.msra.mxu0 0.0
      %3306 = vmatprep.subr.mxu0 0.0
      %3307 = vmatpush1.msra.mxu0 0.0
      %3308 = vmatprep.subr.mxu0 0.0
      %3309 = vmatpush1.msra.mxu0 0.0
      %3310 = vmatprep.subr.mxu0 %v3264
      %3311 = vmatpush1.msra.mxu0 %v3263
      %3312 = vmatprep.subr.mxu0 0.0
      %3313 = vmatpush2.msra.mxu0 0.0
      %3314 = vmatprep.subr.mxu0 0.0
      %3315 = vmatpush2.msra.mxu0 0.0
      %3316 = vmatprep.subr.mxu0 0.0
      %3317 = vmatpush2.msra.mxu0 0.0
      %3318 = vmatprep.subr.mxu0 0.0
      %3319 = vmatpush2.msra.mxu0 0.0
      %3320 = vmatprep.subr.mxu0 0.0
      %3321 = vmatpush2.msra.mxu0 0.0
      %3322 = vmatprep.subr.mxu0 0.0
      %3323 = vmatpush2.msra.mxu0 0.0
      %3324 = vmatprep.subr.mxu0 0.0
      %3325 = vmatpush2.msra.mxu0 0.0
      %3326 = vmatprep.subr.mxu0 0.0
      %3327 = vmatpush2.msra.mxu0 0.0
      %3328 = vmatprep.subr.mxu0 0.0
      %3329 = vmatpush2.msra.mxu0 0.0
      %3330 = vmatprep.subr.mxu0 0.0
      %3331 = vmatpush2.msra.mxu0 0.0
      %3332 = vmatprep.subr.mxu0 0.0
      %3333 = vmatpush2.msra.mxu0 0.0
      %3334 = vmatprep.subr.mxu0 0.0
      %3335 = vmatpush2.msra.mxu0 0.0
      %3336 = vmatprep.subr.mxu0 0.0
      %3337 = vmatpush2.msra.mxu0 0.0
      %3338 = vmatprep.subr.mxu0 0.0
      %3339 = vmatpush2.msra.mxu0 0.0
      %3340 = vmatprep.subr.mxu0 0.0
      %3341 = vmatpush2.msra.mxu0 0.0
      %3342 = vmatprep.subr.mxu0 0.0
      %3343 = vmatpush2.msra.mxu0 0.0
      %3344 = vmatprep.mubr.f32.mxu0 0.0
      %3345 = vmatmul.mubr.f32.gmra.mxu0 %v3278
      %v3346 = vpop.f32.mrf.mxu0
      %v3347 = vadd.f32 0.0, %v3346
      %v3348 = vpop.f32.mrf.mxu0
      %v3349 = vadd.f32 0.0, %v3348
      %3350 = vdwg.mxu0
      %3351 = vmatprep.subr.mxu0 0.0
      %3352 = vmatpush1.msra.mxu0 0.0
      %3353 = vmatprep.subr.mxu0 0.0
      %3354 = vmatpush1.msra.mxu0 0.0
      %3355 = vmatprep.subr.mxu0 0.0
      %3356 = vmatpush1.msra.mxu0 0.0
      %3357 = vmatprep.subr.mxu0 0.0
      %3358 = vmatpush1.msra.mxu0 0.0
      %3359 = vmatprep.subr.mxu0 0.0
      %3360 = vmatpush1.msra.mxu0 0.0
      %3361 = vmatprep.subr.mxu0 0.0
      %3362 = vmatpush1.msra.mxu0 0.0
      %3363 = vmatprep.subr.mxu0 0.0
      %3364 = vmatpush1.msra.mxu0 0.0
      %3365 = vmatprep.subr.mxu0 0.0
      %3366 = vmatpush1.msra.mxu0 0.0
      %3367 = vmatprep.subr.mxu0 0.0
      %3368 = vmatpush1.msra.mxu0 0.0
      %3369 = vmatprep.subr.mxu0 0.0
      %3370 = vmatpush1.msra.mxu0 0.0
      %3371 = vmatprep.subr.mxu0 0.0
      %3372 = vmatpush1.msra.mxu0 0.0
      %3373 = vmatprep.subr.mxu0 0.0
      %3374 = vmatpush1.msra.mxu0 0.0
      %3375 = vmatprep.subr.mxu0 0.0
      %3376 = vmatpush1.msra.mxu0 0.0
      %3377 = vmatprep.subr.mxu0 0.0
      %3378 = vmatpush1.msra.mxu0 0.0
      %3379 = vmatprep.subr.mxu0 0.0
      %3380 = vmatpush1.msra.mxu0 0.0
      %3381 = vmatprep.subr.mxu0 0.0
      %3382 = vmatpush1.msra.mxu0 %v3265
      %3383 = vmatprep.subr.mxu0 0.0
      %3384 = vmatpush2.msra.mxu0 0.0
      %3385 = vmatprep.subr.mxu0 0.0
      %3386 = vmatpush2.msra.mxu0 0.0
      %3387 = vmatprep.subr.mxu0 0.0
      %3388 = vmatpush2.msra.mxu0 0.0
      %3389 = vmatprep.subr.mxu0 0.0
      %3390 = vmatpush2.msra.mxu0 0.0
      %3391 = vmatprep.subr.mxu0 0.0
      %3392 = vmatpush2.msra.mxu0 0.0
      %3393 = vmatprep.subr.mxu0 0.0
      %3394 = vmatpush2.msra.mxu0 0.0
      %3395 = vmatprep.subr.mxu0 0.0
      %3396 = vmatpush2.msra.mxu0 0.0
      %3397 = vmatprep.subr.mxu0 0.0
      %3398 = vmatpush2.msra.mxu0 0.0
      %3399 = vmatprep.subr.mxu0 0.0
      %3400 = vmatpush2.msra.mxu0 0.0
      %3401 = vmatprep.subr.mxu0 0.0
      %3402 = vmatpush2.msra.mxu0 0.0
      %3403 = vmatprep.subr.mxu0 0.0
      %3404 = vmatpush2.msra.mxu0 0.0
      %3405 = vmatprep.subr.mxu0 0.0
      %3406 = vmatpush2.msra.mxu0 0.0
      %3407 = vmatprep.subr.mxu0 0.0
      %3408 = vmatpush2.msra.mxu0 0.0
      %3409 = vmatprep.subr.mxu0 0.0
      %3410 = vmatpush2.msra.mxu0 0.0
      %3411 = vmatprep.subr.mxu0 0.0
      %3412 = vmatpush2.msra.mxu0 0.0
      %3413 = vmatprep.subr.mxu0 0.0
      %3414 = vmatpush2.msra.mxu0 0.0
      %3415 = vmatprep.mubr.f32.mxu0 0.0
      %3416 = vmatmul.mubr.f32.gmra.mxu0 %v3278
      %v3417 = vpop.f32.mrf.mxu0
      %v3418 = vadd.f32 0.0, %v3417
      %v3419 = vpop.f32.mrf.mxu0
      %3420 = vdwg.mxu0
      %3424 = vrot.lane.b32.xlu0 %v3268, 97
      %v3425 = vpop.permute.xlu0 %3424
      %3426 = vrot.lane.b32.xlu0 %v3273, 97
      %v3427 = vpop.permute.xlu0 %3426
      %3428 = vrot.lane.b32.xlu0 %v3274, 97
      %v3429 = vpop.permute.xlu0 %3428
      %v3430 = vsel %vm429, %v3425, %v3427
      %v3431 = vsel %vm429, %v3427, %v3429
      %v3435 = vsel %vm276, %v3262, 0
      %3437 = vmatprep.subr.mxu0 0.0
      %3438 = vmatpush1.msra.mxu0 0.0
      %3439 = vmatprep.subr.mxu0 0.0
      %3440 = vmatpush1.msra.mxu0 0.0
      %3441 = vmatprep.subr.mxu0 0.0
      %3442 = vmatpush1.msra.mxu0 0.0
      %3443 = vmatprep.subr.mxu0 0.0
      %3444 = vmatpush1.msra.mxu0 0.0
      %3445 = vmatprep.subr.mxu0 0.0
      %3446 = vmatpush1.msra.mxu0 0.0
      %3447 = vmatprep.subr.mxu0 0.0
      %3448 = vmatpush1.msra.mxu0 0.0
      %3449 = vmatprep.subr.mxu0 0.0
      %3450 = vmatpush1.msra.mxu0 0.0
      %3451 = vmatprep.subr.mxu0 0.0
      %3452 = vmatpush1.msra.mxu0 0.0
      %3453 = vmatprep.subr.mxu0 0.0
      %3454 = vmatpush1.msra.mxu0 0.0
      %3455 = vmatprep.subr.mxu0 0.0
      %3456 = vmatpush1.msra.mxu0 0.0
      %3457 = vmatprep.subr.mxu0 0.0
      %3458 = vmatpush1.msra.mxu0 0.0
      %3459 = vmatprep.subr.mxu0 0.0
      %3460 = vmatpush1.msra.mxu0 0.0
      %3461 = vmatprep.subr.mxu0 0.0
      %3462 = vmatpush1.msra.mxu0 0.0
      %3463 = vmatprep.subr.mxu0 0.0
      %3464 = vmatpush1.msra.mxu0 0.0
      %3465 = vmatprep.subr.mxu0 0.0
      %3466 = vmatpush1.msra.mxu0 0.0
      %3467 = vmatprep.subr.mxu0 %v3431
      %3468 = vmatpush1.msra.mxu0 %v3430
      %3469 = vmatprep.subr.mxu0 0.0
      %3470 = vmatpush2.msra.mxu0 0.0
      %3471 = vmatprep.subr.mxu0 0.0
      %3472 = vmatpush2.msra.mxu0 0.0
      %3473 = vmatprep.subr.mxu0 0.0
      %3474 = vmatpush2.msra.mxu0 0.0
      %3475 = vmatprep.subr.mxu0 0.0
      %3476 = vmatpush2.msra.mxu0 0.0
      %3477 = vmatprep.subr.mxu0 0.0
      %3478 = vmatpush2.msra.mxu0 0.0
      %3479 = vmatprep.subr.mxu0 0.0
      %3480 = vmatpush2.msra.mxu0 0.0
      %3481 = vmatprep.subr.mxu0 0.0
      %3482 = vmatpush2.msra.mxu0 0.0
      %3483 = vmatprep.subr.mxu0 0.0
      %3484 = vmatpush2.msra.mxu0 0.0
      %3485 = vmatprep.subr.mxu0 0.0
      %3486 = vmatpush2.msra.mxu0 0.0
      %3487 = vmatprep.subr.mxu0 0.0
      %3488 = vmatpush2.msra.mxu0 0.0
      %3489 = vmatprep.subr.mxu0 0.0
      %3490 = vmatpush2.msra.mxu0 0.0
      %3491 = vmatprep.subr.mxu0 0.0
      %3492 = vmatpush2.msra.mxu0 0.0
      %3493 = vmatprep.subr.mxu0 0.0
      %3494 = vmatpush2.msra.mxu0 0.0
      %3495 = vmatprep.subr.mxu0 0.0
      %3496 = vmatpush2.msra.mxu0 0.0
      %3497 = vmatprep.subr.mxu0 0.0
      %3498 = vmatpush2.msra.mxu0 0.0
      %3499 = vmatprep.subr.mxu0 0.0
      %3500 = vmatpush2.msra.mxu0 0.0
      %3501 = vmatprep.mubr.f32.mxu0 0.0
      %3502 = vmatmul.mubr.f32.gmra.mxu0 %v3435
      %v3503 = vpop.f32.mrf.mxu0
      %v3504 = vadd.f32 %v3347, %v3503
      %v3505 = vpop.f32.mrf.mxu0
      %v3506 = vadd.f32 %v3349, %v3505
      %3507 = vdwg.mxu0
      %3508 = vmatprep.subr.mxu0 0.0
      %3509 = vmatpush1.msra.mxu0 0.0
      %3510 = vmatprep.subr.mxu0 0.0
      %3511 = vmatpush1.msra.mxu0 0.0
      %3512 = vmatprep.subr.mxu0 0.0
      %3513 = vmatpush1.msra.mxu0 0.0
      %3514 = vmatprep.subr.mxu0 0.0
      %3515 = vmatpush1.msra.mxu0 0.0
      %3516 = vmatprep.subr.mxu0 0.0
      %3517 = vmatpush1.msra.mxu0 0.0
      %3518 = vmatprep.subr.mxu0 0.0
      %3519 = vmatpush1.msra.mxu0 0.0
      %3520 = vmatprep.subr.mxu0 0.0
      %3521 = vmatpush1.msra.mxu0 0.0
      %3522 = vmatprep.subr.mxu0 0.0
      %3523 = vmatpush1.msra.mxu0 0.0
      %3524 = vmatprep.subr.mxu0 0.0
      %3525 = vmatpush1.msra.mxu0 0.0
      %3526 = vmatprep.subr.mxu0 0.0
      %3527 = vmatpush1.msra.mxu0 0.0
      %3528 = vmatprep.subr.mxu0 0.0
      %3529 = vmatpush1.msra.mxu0 0.0
      %3530 = vmatprep.subr.mxu0 0.0
      %3531 = vmatpush1.msra.mxu0 0.0
      %3532 = vmatprep.subr.mxu0 0.0
      %3533 = vmatpush1.msra.mxu0 0.0
      %3534 = vmatprep.subr.mxu0 0.0
      %3535 = vmatpush1.msra.mxu0 0.0
      %3536 = vmatprep.subr.mxu0 0.0
      %3537 = vmatpush1.msra.mxu0 0.0
      %3538 = vmatprep.subr.mxu0 0.0
      %3539 = vmatpush1.msra.mxu0 %v3429
      %3540 = vmatprep.subr.mxu0 0.0
      %3541 = vmatpush2.msra.mxu0 0.0
      %3542 = vmatprep.subr.mxu0 0.0
      %3543 = vmatpush2.msra.mxu0 0.0
      %3544 = vmatprep.subr.mxu0 0.0
      %3545 = vmatpush2.msra.mxu0 0.0
      %3546 = vmatprep.subr.mxu0 0.0
      %3547 = vmatpush2.msra.mxu0 0.0
      %3548 = vmatprep.subr.mxu0 0.0
      %3549 = vmatpush2.msra.mxu0 0.0
      %3550 = vmatprep.subr.mxu0 0.0
      %3551 = vmatpush2.msra.mxu0 0.0
      %3552 = vmatprep.subr.mxu0 0.0
      %3553 = vmatpush2.msra.mxu0 0.0
      %3554 = vmatprep.subr.mxu0 0.0
      %3555 = vmatpush2.msra.mxu0 0.0
      %3556 = vmatprep.subr.mxu0 0.0
      %3557 = vmatpush2.msra.mxu0 0.0
      %3558 = vmatprep.subr.mxu0 0.0
      %3559 = vmatpush2.msra.mxu0 0.0
      %3560 = vmatprep.subr.mxu0 0.0
      %3561 = vmatpush2.msra.mxu0 0.0
      %3562 = vmatprep.subr.mxu0 0.0
      %3563 = vmatpush2.msra.mxu0 0.0
      %3564 = vmatprep.subr.mxu0 0.0
      %3565 = vmatpush2.msra.mxu0 0.0
      %3566 = vmatprep.subr.mxu0 0.0
      %3567 = vmatpush2.msra.mxu0 0.0
      %3568 = vmatprep.subr.mxu0 0.0
      %3569 = vmatpush2.msra.mxu0 0.0
      %3570 = vmatprep.subr.mxu0 0.0
      %3571 = vmatpush2.msra.mxu0 0.0
      %3572 = vmatprep.mubr.f32.mxu0 0.0
      %3573 = vmatmul.mubr.f32.gmra.mxu0 %v3435
      %v3574 = vpop.f32.mrf.mxu0
      %v3575 = vadd.f32 %v3418, %v3574
      %v3576 = vpop.f32.mrf.mxu0
      %3577 = vdwg.mxu0
      %3578 = vrot.lane.b32.xlu0 %v3262, 112
      %v3579 = vpop.permute.xlu0 %3578
      %3582 = vrot.lane.b32.xlu0 %v3263, 127
      %v3583 = vpop.permute.xlu0 %3582
      %3584 = vrot.lane.b32.xlu0 %v3264, 127
      %v3585 = vpop.permute.xlu0 %3584
      %3586 = vrot.lane.b32.xlu0 %v3268, 127
      %v3587 = vpop.permute.xlu0 %3586
      %v3588 = vsel %vm588, %v3583, %v3585
      %v3589 = vsel %vm588, %v3585, %v3587
      %v3593 = vsel %vm276, %v3579, 0
      %3595 = vmatprep.subr.mxu0 0.0
      %3596 = vmatpush1.msra.mxu0 0.0
      %3597 = vmatprep.subr.mxu0 0.0
      %3598 = vmatpush1.msra.mxu0 0.0
      %3599 = vmatprep.subr.mxu0 0.0
      %3600 = vmatpush1.msra.mxu0 0.0
      %3601 = vmatprep.subr.mxu0 0.0
      %3602 = vmatpush1.msra.mxu0 0.0
      %3603 = vmatprep.subr.mxu0 0.0
      %3604 = vmatpush1.msra.mxu0 0.0
      %3605 = vmatprep.subr.mxu0 0.0
      %3606 = vmatpush1.msra.mxu0 0.0
      %3607 = vmatprep.subr.mxu0 0.0
      %3608 = vmatpush1.msra.mxu0 0.0
      %3609 = vmatprep.subr.mxu0 0.0
      %3610 = vmatpush1.msra.mxu0 0.0
      %3611 = vmatprep.subr.mxu0 0.0
      %3612 = vmatpush1.msra.mxu0 0.0
      %3613 = vmatprep.subr.mxu0 0.0
      %3614 = vmatpush1.msra.mxu0 0.0
      %3615 = vmatprep.subr.mxu0 0.0
      %3616 = vmatpush1.msra.mxu0 0.0
      %3617 = vmatprep.subr.mxu0 0.0
      %3618 = vmatpush1.msra.mxu0 0.0
      %3619 = vmatprep.subr.mxu0 0.0
      %3620 = vmatpush1.msra.mxu0 0.0
      %3621 = vmatprep.subr.mxu0 0.0
      %3622 = vmatpush1.msra.mxu0 0.0
      %3623 = vmatprep.subr.mxu0 0.0
      %3624 = vmatpush1.msra.mxu0 0.0
      %3625 = vmatprep.subr.mxu0 %v3589
      %3626 = vmatpush1.msra.mxu0 %v3588
      %3627 = vmatprep.subr.mxu0 0.0
      %3628 = vmatpush2.msra.mxu0 0.0
      %3629 = vmatprep.subr.mxu0 0.0
      %3630 = vmatpush2.msra.mxu0 0.0
      %3631 = vmatprep.subr.mxu0 0.0
      %3632 = vmatpush2.msra.mxu0 0.0
      %3633 = vmatprep.subr.mxu0 0.0
      %3634 = vmatpush2.msra.mxu0 0.0
      %3635 = vmatprep.subr.mxu0 0.0
      %3636 = vmatpush2.msra.mxu0 0.0
      %3637 = vmatprep.subr.mxu0 0.0
      %3638 = vmatpush2.msra.mxu0 0.0
      %3639 = vmatprep.subr.mxu0 0.0
      %3640 = vmatpush2.msra.mxu0 0.0
      %3641 = vmatprep.subr.mxu0 0.0
      %3642 = vmatpush2.msra.mxu0 0.0
      %3643 = vmatprep.subr.mxu0 0.0
      %3644 = vmatpush2.msra.mxu0 0.0
      %3645 = vmatprep.subr.mxu0 0.0
      %3646 = vmatpush2.msra.mxu0 0.0
      %3647 = vmatprep.subr.mxu0 0.0
      %3648 = vmatpush2.msra.mxu0 0.0
      %3649 = vmatprep.subr.mxu0 0.0
      %3650 = vmatpush2.msra.mxu0 0.0
      %3651 = vmatprep.subr.mxu0 0.0
      %3652 = vmatpush2.msra.mxu0 0.0
      %3653 = vmatprep.subr.mxu0 0.0
      %3654 = vmatpush2.msra.mxu0 0.0
      %3655 = vmatprep.subr.mxu0 0.0
      %3656 = vmatpush2.msra.mxu0 0.0
      %3657 = vmatprep.subr.mxu0 0.0
      %3658 = vmatpush2.msra.mxu0 0.0
      %3659 = vmatprep.mubr.f32.mxu0 0.0
      %3660 = vmatmul.mubr.f32.gmra.mxu0 %v3593
      %v3661 = vpop.f32.mrf.mxu0
      %v3662 = vadd.f32 0.0, %v3661
      %v3663 = vpop.f32.mrf.mxu0
      %v3664 = vadd.f32 0.0, %v3663
      %3665 = vdwg.mxu0
      %3666 = vmatprep.subr.mxu0 0.0
      %3667 = vmatpush1.msra.mxu0 0.0
      %3668 = vmatprep.subr.mxu0 0.0
      %3669 = vmatpush1.msra.mxu0 0.0
      %3670 = vmatprep.subr.mxu0 0.0
      %3671 = vmatpush1.msra.mxu0 0.0
      %3672 = vmatprep.subr.mxu0 0.0
      %3673 = vmatpush1.msra.mxu0 0.0
      %3674 = vmatprep.subr.mxu0 0.0
      %3675 = vmatpush1.msra.mxu0 0.0
      %3676 = vmatprep.subr.mxu0 0.0
      %3677 = vmatpush1.msra.mxu0 0.0
      %3678 = vmatprep.subr.mxu0 0.0
      %3679 = vmatpush1.msra.mxu0 0.0
      %3680 = vmatprep.subr.mxu0 0.0
      %3681 = vmatpush1.msra.mxu0 0.0
      %3682 = vmatprep.subr.mxu0 0.0
      %3683 = vmatpush1.msra.mxu0 0.0
      %3684 = vmatprep.subr.mxu0 0.0
      %3685 = vmatpush1.msra.mxu0 0.0
      %3686 = vmatprep.subr.mxu0 0.0
      %3687 = vmatpush1.msra.mxu0 0.0
      %3688 = vmatprep.subr.mxu0 0.0
      %3689 = vmatpush1.msra.mxu0 0.0
      %3690 = vmatprep.subr.mxu0 0.0
      %3691 = vmatpush1.msra.mxu0 0.0
      %3692 = vmatprep.subr.mxu0 0.0
      %3693 = vmatpush1.msra.mxu0 0.0
      %3694 = vmatprep.subr.mxu0 0.0
      %3695 = vmatpush1.msra.mxu0 0.0
      %3696 = vmatprep.subr.mxu0 0.0
      %3697 = vmatpush1.msra.mxu0 %v3587
      %3698 = vmatprep.subr.mxu0 0.0
      %3699 = vmatpush2.msra.mxu0 0.0
      %3700 = vmatprep.subr.mxu0 0.0
      %3701 = vmatpush2.msra.mxu0 0.0
      %3702 = vmatprep.subr.mxu0 0.0
      %3703 = vmatpush2.msra.mxu0 0.0
      %3704 = vmatprep.subr.mxu0 0.0
      %3705 = vmatpush2.msra.mxu0 0.0
      %3706 = vmatprep.subr.mxu0 0.0
      %3707 = vmatpush2.msra.mxu0 0.0
      %3708 = vmatprep.subr.mxu0 0.0
      %3709 = vmatpush2.msra.mxu0 0.0
      %3710 = vmatprep.subr.mxu0 0.0
      %3711 = vmatpush2.msra.mxu0 0.0
      %3712 = vmatprep.subr.mxu0 0.0
      %3713 = vmatpush2.msra.mxu0 0.0
      %3714 = vmatprep.subr.mxu0 0.0
      %3715 = vmatpush2.msra.mxu0 0.0
      %3716 = vmatprep.subr.mxu0 0.0
      %3717 = vmatpush2.msra.mxu0 0.0
      %3718 = vmatprep.subr.mxu0 0.0
      %3719 = vmatpush2.msra.mxu0 0.0
      %3720 = vmatprep.subr.mxu0 0.0
      %3721 = vmatpush2.msra.mxu0 0.0
      %3722 = vmatprep.subr.mxu0 0.0
      %3723 = vmatpush2.msra.mxu0 0.0
      %3724 = vmatprep.subr.mxu0 0.0
      %3725 = vmatpush2.msra.mxu0 0.0
      %3726 = vmatprep.subr.mxu0 0.0
      %3727 = vmatpush2.msra.mxu0 0.0
      %3728 = vmatprep.subr.mxu0 0.0
      %3729 = vmatpush2.msra.mxu0 0.0
      %3730 = vmatprep.mubr.f32.mxu0 0.0
      %3731 = vmatmul.mubr.f32.gmra.mxu0 %v3593
      %v3732 = vpop.f32.mrf.mxu0
      %v3733 = vadd.f32 0.0, %v3732
      %v3734 = vpop.f32.mrf.mxu0
      %3735 = vdwg.mxu0
      %v3736 = vadd.f32 %v3504, %v3662
      %v3737 = vadd.f32 %v3506, %v3664
      %v3738 = vadd.f32 %v3575, %v3733
      %3740 = vrot.lane.b32.xlu0 %v3263, 110
      %v3741 = vpop.permute.xlu0 %3740
      %3742 = vrot.lane.b32.xlu0 %v3264, 110
      %v3743 = vpop.permute.xlu0 %3742
      %3744 = vrot.lane.b32.xlu0 %v3265, 110
      %v3745 = vpop.permute.xlu0 %3744
      %v3746 = vsel %vm747, %v3741, %v3743
      %v3747 = vsel %vm747, %v3743, %v3745
      %3751 = vrot.lane.b32.xlu0 %v3746, 32
      %v3752 = vpop.permute.xlu0 %3751
      %v3753 = vsel %vm263, %v3752, %v3745
      %3754 = vrot.lane.b32.xlu0 %v3747, 32
      %v3755 = vpop.permute.xlu0 %3754
      %3756 = vrot.lane.b32.xlu0 %v3753, 32
      %v3757 = vpop.permute.xlu0 %3756
      %v3758 = vsel %vm263, %v3755, %v3752
      %v3759 = vsel %vm263, %v3757, %v3755
      %3760 = vrot.lane.b32.xlu0 %v3262, 104
      %v3761 = vpop.permute.xlu0 %3760
      %3765 = vrot.lane.b32.xlu0 %v3753, 97
      %v3766 = vpop.permute.xlu0 %3765
      %3767 = vrot.lane.b32.xlu0 %v3758, 97
      %v3768 = vpop.permute.xlu0 %3767
      %3769 = vrot.lane.b32.xlu0 %v3759, 97
      %v3770 = vpop.permute.xlu0 %3769
      %v3771 = vsel %vm429, %v3766, %v3768
      %v3772 = vsel %vm429, %v3768, %v3770
      %v3776 = vsel %vm276, %v3761, 0
      %3778 = vmatprep.subr.mxu0 0.0
      %3779 = vmatpush1.msra.mxu0 0.0
      %3780 = vmatprep.subr.mxu0 0.0
      %3781 = vmatpush1.msra.mxu0 0.0
      %3782 = vmatprep.subr.mxu0 0.0
      %3783 = vmatpush1.msra.mxu0 0.0
      %3784 = vmatprep.subr.mxu0 0.0
      %3785 = vmatpush1.msra.mxu0 0.0
      %3786 = vmatprep.subr.mxu0 0.0
      %3787 = vmatpush1.msra.mxu0 0.0
      %3788 = vmatprep.subr.mxu0 0.0
      %3789 = vmatpush1.msra.mxu0 0.0
      %3790 = vmatprep.subr.mxu0 0.0
      %3791 = vmatpush1.msra.mxu0 0.0
      %3792 = vmatprep.subr.mxu0 0.0
      %3793 = vmatpush1.msra.mxu0 0.0
      %3794 = vmatprep.subr.mxu0 0.0
      %3795 = vmatpush1.msra.mxu0 0.0
      %3796 = vmatprep.subr.mxu0 0.0
      %3797 = vmatpush1.msra.mxu0 0.0
      %3798 = vmatprep.subr.mxu0 0.0
      %3799 = vmatpush1.msra.mxu0 0.0
      %3800 = vmatprep.subr.mxu0 0.0
      %3801 = vmatpush1.msra.mxu0 0.0
      %3802 = vmatprep.subr.mxu0 0.0
      %3803 = vmatpush1.msra.mxu0 0.0
      %3804 = vmatprep.subr.mxu0 0.0
      %3805 = vmatpush1.msra.mxu0 0.0
      %3806 = vmatprep.subr.mxu0 0.0
      %3807 = vmatpush1.msra.mxu0 0.0
      %3808 = vmatprep.subr.mxu0 %v3772
      %3809 = vmatpush1.msra.mxu0 %v3771
      %3810 = vmatprep.subr.mxu0 0.0
      %3811 = vmatpush2.msra.mxu0 0.0
      %3812 = vmatprep.subr.mxu0 0.0
      %3813 = vmatpush2.msra.mxu0 0.0
      %3814 = vmatprep.subr.mxu0 0.0
      %3815 = vmatpush2.msra.mxu0 0.0
      %3816 = vmatprep.subr.mxu0 0.0
      %3817 = vmatpush2.msra.mxu0 0.0
      %3818 = vmatprep.subr.mxu0 0.0
      %3819 = vmatpush2.msra.mxu0 0.0
      %3820 = vmatprep.subr.mxu0 0.0
      %3821 = vmatpush2.msra.mxu0 0.0
      %3822 = vmatprep.subr.mxu0 0.0
      %3823 = vmatpush2.msra.mxu0 0.0
      %3824 = vmatprep.subr.mxu0 0.0
      %3825 = vmatpush2.msra.mxu0 0.0
      %3826 = vmatprep.subr.mxu0 0.0
      %3827 = vmatpush2.msra.mxu0 0.0
      %3828 = vmatprep.subr.mxu0 0.0
      %3829 = vmatpush2.msra.mxu0 0.0
      %3830 = vmatprep.subr.mxu0 0.0
      %3831 = vmatpush2.msra.mxu0 0.0
      %3832 = vmatprep.subr.mxu0 0.0
      %3833 = vmatpush2.msra.mxu0 0.0
      %3834 = vmatprep.subr.mxu0 0.0
      %3835 = vmatpush2.msra.mxu0 0.0
      %3836 = vmatprep.subr.mxu0 0.0
      %3837 = vmatpush2.msra.mxu0 0.0
      %3838 = vmatprep.subr.mxu0 0.0
      %3839 = vmatpush2.msra.mxu0 0.0
      %3840 = vmatprep.subr.mxu0 0.0
      %3841 = vmatpush2.msra.mxu0 0.0
      %3842 = vmatprep.mubr.f32.mxu0 0.0
      %3843 = vmatmul.mubr.f32.gmra.mxu0 %v3776
      %v3844 = vpop.f32.mrf.mxu0
      %v3845 = vadd.f32 0.0, %v3844
      %v3846 = vpop.f32.mrf.mxu0
      %v3847 = vadd.f32 0.0, %v3846
      %3848 = vdwg.mxu0
      %3849 = vmatprep.subr.mxu0 0.0
      %3850 = vmatpush1.msra.mxu0 0.0
      %3851 = vmatprep.subr.mxu0 0.0
      %3852 = vmatpush1.msra.mxu0 0.0
      %3853 = vmatprep.subr.mxu0 0.0
      %3854 = vmatpush1.msra.mxu0 0.0
      %3855 = vmatprep.subr.mxu0 0.0
      %3856 = vmatpush1.msra.mxu0 0.0
      %3857 = vmatprep.subr.mxu0 0.0
      %3858 = vmatpush1.msra.mxu0 0.0
      %3859 = vmatprep.subr.mxu0 0.0
      %3860 = vmatpush1.msra.mxu0 0.0
      %3861 = vmatprep.subr.mxu0 0.0
      %3862 = vmatpush1.msra.mxu0 0.0
      %3863 = vmatprep.subr.mxu0 0.0
      %3864 = vmatpush1.msra.mxu0 0.0
      %3865 = vmatprep.subr.mxu0 0.0
      %3866 = vmatpush1.msra.mxu0 0.0
      %3867 = vmatprep.subr.mxu0 0.0
      %3868 = vmatpush1.msra.mxu0 0.0
      %3869 = vmatprep.subr.mxu0 0.0
      %3870 = vmatpush1.msra.mxu0 0.0
      %3871 = vmatprep.subr.mxu0 0.0
      %3872 = vmatpush1.msra.mxu0 0.0
      %3873 = vmatprep.subr.mxu0 0.0
      %3874 = vmatpush1.msra.mxu0 0.0
      %3875 = vmatprep.subr.mxu0 0.0
      %3876 = vmatpush1.msra.mxu0 0.0
      %3877 = vmatprep.subr.mxu0 0.0
      %3878 = vmatpush1.msra.mxu0 0.0
      %3879 = vmatprep.subr.mxu0 0.0
      %3880 = vmatpush1.msra.mxu0 %v3770
      %3881 = vmatprep.subr.mxu0 0.0
      %3882 = vmatpush2.msra.mxu0 0.0
      %3883 = vmatprep.subr.mxu0 0.0
      %3884 = vmatpush2.msra.mxu0 0.0
      %3885 = vmatprep.subr.mxu0 0.0
      %3886 = vmatpush2.msra.mxu0 0.0
      %3887 = vmatprep.subr.mxu0 0.0
      %3888 = vmatpush2.msra.mxu0 0.0
      %3889 = vmatprep.subr.mxu0 0.0
      %3890 = vmatpush2.msra.mxu0 0.0
      %3891 = vmatprep.subr.mxu0 0.0
      %3892 = vmatpush2.msra.mxu0 0.0
      %3893 = vmatprep.subr.mxu0 0.0
      %3894 = vmatpush2.msra.mxu0 0.0
      %3895 = vmatprep.subr.mxu0 0.0
      %3896 = vmatpush2.msra.mxu0 0.0
      %3897 = vmatprep.subr.mxu0 0.0
      %3898 = vmatpush2.msra.mxu0 0.0
      %3899 = vmatprep.subr.mxu0 0.0
      %3900 = vmatpush2.msra.mxu0 0.0
      %3901 = vmatprep.subr.mxu0 0.0
      %3902 = vmatpush2.msra.mxu0 0.0
      %3903 = vmatprep.subr.mxu0 0.0
      %3904 = vmatpush2.msra.mxu0 0.0
      %3905 = vmatprep.subr.mxu0 0.0
      %3906 = vmatpush2.msra.mxu0 0.0
      %3907 = vmatprep.subr.mxu0 0.0
      %3908 = vmatpush2.msra.mxu0 0.0
      %3909 = vmatprep.subr.mxu0 0.0
      %3910 = vmatpush2.msra.mxu0 0.0
      %3911 = vmatprep.subr.mxu0 0.0
      %3912 = vmatpush2.msra.mxu0 0.0
      %3913 = vmatprep.mubr.f32.mxu0 0.0
      %3914 = vmatmul.mubr.f32.gmra.mxu0 %v3776
      %v3915 = vpop.f32.mrf.mxu0
      %v3916 = vadd.f32 0.0, %v3915
      %v3917 = vpop.f32.mrf.mxu0
      %3918 = vdwg.mxu0
      %v3919 = vadd.f32 %v3736, %v3845
      %v3920 = vadd.f32 %v3737, %v3847
      %v3921 = vadd.f32 %v3738, %v3916
      %3922 = vrot.lane.b32.xlu0 %v3262, 96
      %v3923 = vpop.permute.xlu0 %3922
      %v3924 = vsel %vm276, %v3923, 0
      %3926 = vmatprep.subr.mxu0 0.0
      %3927 = vmatpush1.msra.mxu0 0.0
      %3928 = vmatprep.subr.mxu0 0.0
      %3929 = vmatpush1.msra.mxu0 0.0
      %3930 = vmatprep.subr.mxu0 0.0
      %3931 = vmatpush1.msra.mxu0 0.0
      %3932 = vmatprep.subr.mxu0 0.0
      %3933 = vmatpush1.msra.mxu0 0.0
      %3934 = vmatprep.subr.mxu0 0.0
      %3935 = vmatpush1.msra.mxu0 0.0
      %3936 = vmatprep.subr.mxu0 0.0
      %3937 = vmatpush1.msra.mxu0 0.0
      %3938 = vmatprep.subr.mxu0 0.0
      %3939 = vmatpush1.msra.mxu0 0.0
      %3940 = vmatprep.subr.mxu0 0.0
      %3941 = vmatpush1.msra.mxu0 0.0
      %3942 = vmatprep.subr.mxu0 0.0
      %3943 = vmatpush1.msra.mxu0 0.0
      %3944 = vmatprep.subr.mxu0 0.0
      %3945 = vmatpush1.msra.mxu0 0.0
      %3946 = vmatprep.subr.mxu0 0.0
      %3947 = vmatpush1.msra.mxu0 0.0
      %3948 = vmatprep.subr.mxu0 0.0
      %3949 = vmatpush1.msra.mxu0 0.0
      %3950 = vmatprep.subr.mxu0 0.0
      %3951 = vmatpush1.msra.mxu0 0.0
      %3952 = vmatprep.subr.mxu0 0.0
      %3953 = vmatpush1.msra.mxu0 0.0
      %3954 = vmatprep.subr.mxu0 0.0
      %3955 = vmatpush1.msra.mxu0 0.0
      %3956 = vmatprep.subr.mxu0 %v3747
      %3957 = vmatpush1.msra.mxu0 %v3746
      %3958 = vmatprep.subr.mxu0 0.0
      %3959 = vmatpush2.msra.mxu0 0.0
      %3960 = vmatprep.subr.mxu0 0.0
      %3961 = vmatpush2.msra.mxu0 0.0
      %3962 = vmatprep.subr.mxu0 0.0
      %3963 = vmatpush2.msra.mxu0 0.0
      %3964 = vmatprep.subr.mxu0 0.0
      %3965 = vmatpush2.msra.mxu0 0.0
      %3966 = vmatprep.subr.mxu0 0.0
      %3967 = vmatpush2.msra.mxu0 0.0
      %3968 = vmatprep.subr.mxu0 0.0
      %3969 = vmatpush2.msra.mxu0 0.0
      %3970 = vmatprep.subr.mxu0 0.0
      %3971 = vmatpush2.msra.mxu0 0.0
      %3972 = vmatprep.subr.mxu0 0.0
      %3973 = vmatpush2.msra.mxu0 0.0
      %3974 = vmatprep.subr.mxu0 0.0
      %3975 = vmatpush2.msra.mxu0 0.0
      %3976 = vmatprep.subr.mxu0 0.0
      %3977 = vmatpush2.msra.mxu0 0.0
      %3978 = vmatprep.subr.mxu0 0.0
      %3979 = vmatpush2.msra.mxu0 0.0
      %3980 = vmatprep.subr.mxu0 0.0
      %3981 = vmatpush2.msra.mxu0 0.0
      %3982 = vmatprep.subr.mxu0 0.0
      %3983 = vmatpush2.msra.mxu0 0.0
      %3984 = vmatprep.subr.mxu0 0.0
      %3985 = vmatpush2.msra.mxu0 0.0
      %3986 = vmatprep.subr.mxu0 0.0
      %3987 = vmatpush2.msra.mxu0 0.0
      %3988 = vmatprep.subr.mxu0 0.0
      %3989 = vmatpush2.msra.mxu0 0.0
      %3990 = vmatprep.mubr.f32.mxu0 0.0
      %3991 = vmatmul.mubr.f32.gmra.mxu0 %v3924
      %v3992 = vpop.f32.mrf.mxu0
      %v3993 = vadd.f32 0.0, %v3992
      %v3994 = vpop.f32.mrf.mxu0
      %v3995 = vadd.f32 0.0, %v3994
      %3996 = vdwg.mxu0
      %3997 = vmatprep.subr.mxu0 0.0
      %3998 = vmatpush1.msra.mxu0 0.0
      %3999 = vmatprep.subr.mxu0 0.0
      %4000 = vmatpush1.msra.mxu0 0.0
      %4001 = vmatprep.subr.mxu0 0.0
      %4002 = vmatpush1.msra.mxu0 0.0
      %4003 = vmatprep.subr.mxu0 0.0
      %4004 = vmatpush1.msra.mxu0 0.0
      %4005 = vmatprep.subr.mxu0 0.0
      %4006 = vmatpush1.msra.mxu0 0.0
      %4007 = vmatprep.subr.mxu0 0.0
      %4008 = vmatpush1.msra.mxu0 0.0
      %4009 = vmatprep.subr.mxu0 0.0
      %4010 = vmatpush1.msra.mxu0 0.0
      %4011 = vmatprep.subr.mxu0 0.0
      %4012 = vmatpush1.msra.mxu0 0.0
      %4013 = vmatprep.subr.mxu0 0.0
      %4014 = vmatpush1.msra.mxu0 0.0
      %4015 = vmatprep.subr.mxu0 0.0
      %4016 = vmatpush1.msra.mxu0 0.0
      %4017 = vmatprep.subr.mxu0 0.0
      %4018 = vmatpush1.msra.mxu0 0.0
      %4019 = vmatprep.subr.mxu0 0.0
      %4020 = vmatpush1.msra.mxu0 0.0
      %4021 = vmatprep.subr.mxu0 0.0
      %4022 = vmatpush1.msra.mxu0 0.0
      %4023 = vmatprep.subr.mxu0 0.0
      %4024 = vmatpush1.msra.mxu0 0.0
      %4025 = vmatprep.subr.mxu0 0.0
      %4026 = vmatpush1.msra.mxu0 0.0
      %4027 = vmatprep.subr.mxu0 0.0
      %4028 = vmatpush1.msra.mxu0 %v3745
      %4029 = vmatprep.subr.mxu0 0.0
      %4030 = vmatpush2.msra.mxu0 0.0
      %4031 = vmatprep.subr.mxu0 0.0
      %4032 = vmatpush2.msra.mxu0 0.0
      %4033 = vmatprep.subr.mxu0 0.0
      %4034 = vmatpush2.msra.mxu0 0.0
      %4035 = vmatprep.subr.mxu0 0.0
      %4036 = vmatpush2.msra.mxu0 0.0
      %4037 = vmatprep.subr.mxu0 0.0
      %4038 = vmatpush2.msra.mxu0 0.0
      %4039 = vmatprep.subr.mxu0 0.0
      %4040 = vmatpush2.msra.mxu0 0.0
      %4041 = vmatprep.subr.mxu0 0.0
      %4042 = vmatpush2.msra.mxu0 0.0
      %4043 = vmatprep.subr.mxu0 0.0
      %4044 = vmatpush2.msra.mxu0 0.0
      %4045 = vmatprep.subr.mxu0 0.0
      %4046 = vmatpush2.msra.mxu0 0.0
      %4047 = vmatprep.subr.mxu0 0.0
      %4048 = vmatpush2.msra.mxu0 0.0
      %4049 = vmatprep.subr.mxu0 0.0
      %4050 = vmatpush2.msra.mxu0 0.0
      %4051 = vmatprep.subr.mxu0 0.0
      %4052 = vmatpush2.msra.mxu0 0.0
      %4053 = vmatprep.subr.mxu0 0.0
      %4054 = vmatpush2.msra.mxu0 0.0
      %4055 = vmatprep.subr.mxu0 0.0
      %4056 = vmatpush2.msra.mxu0 0.0
      %4057 = vmatprep.subr.mxu0 0.0
      %4058 = vmatpush2.msra.mxu0 0.0
      %4059 = vmatprep.subr.mxu0 0.0
      %4060 = vmatpush2.msra.mxu0 0.0
      %4061 = vmatprep.mubr.f32.mxu0 0.0
      %4062 = vmatmul.mubr.f32.gmra.mxu0 %v3924
      %v4063 = vpop.f32.mrf.mxu0
      %v4064 = vadd.f32 0.0, %v4063
      %v4065 = vpop.f32.mrf.mxu0
      %4066 = vdwg.mxu0
      %v4067 = vadd.f32 %v3919, %v3993
      %v4068 = vadd.f32 %v3920, %v3995
      %v4069 = vadd.f32 %v3921, %v4064
      %4070 = vrot.lane.b32.xlu0 %v3262, 88
      %v4071 = vpop.permute.xlu0 %4070
      %4072 = vrot.lane.b32.xlu0 %v3746, 127
      %v4073 = vpop.permute.xlu0 %4072
      %4074 = vrot.lane.b32.xlu0 %v3747, 127
      %v4075 = vpop.permute.xlu0 %4074
      %4076 = vrot.lane.b32.xlu0 %v3753, 127
      %v4077 = vpop.permute.xlu0 %4076
      %v4078 = vsel %vm588, %v4073, %v4075
      %v4079 = vsel %vm588, %v4075, %v4077
      %v4083 = vsel %vm276, %v4071, 0
      %4085 = vmatprep.subr.mxu0 0.0
      %4086 = vmatpush1.msra.mxu0 0.0
      %4087 = vmatprep.subr.mxu0 0.0
      %4088 = vmatpush1.msra.mxu0 0.0
      %4089 = vmatprep.subr.mxu0 0.0
      %4090 = vmatpush1.msra.mxu0 0.0
      %4091 = vmatprep.subr.mxu0 0.0
      %4092 = vmatpush1.msra.mxu0 0.0
      %4093 = vmatprep.subr.mxu0 0.0
      %4094 = vmatpush1.msra.mxu0 0.0
      %4095 = vmatprep.subr.mxu0 0.0
      %4096 = vmatpush1.msra.mxu0 0.0
      %4097 = vmatprep.subr.mxu0 0.0
      %4098 = vmatpush1.msra.mxu0 0.0
      %4099 = vmatprep.subr.mxu0 0.0
      %4100 = vmatpush1.msra.mxu0 0.0
      %4101 = vmatprep.subr.mxu0 0.0
      %4102 = vmatpush1.msra.mxu0 0.0
      %4103 = vmatprep.subr.mxu0 0.0
      %4104 = vmatpush1.msra.mxu0 0.0
      %4105 = vmatprep.subr.mxu0 0.0
      %4106 = vmatpush1.msra.mxu0 0.0
      %4107 = vmatprep.subr.mxu0 0.0
      %4108 = vmatpush1.msra.mxu0 0.0
      %4109 = vmatprep.subr.mxu0 0.0
      %4110 = vmatpush1.msra.mxu0 0.0
      %4111 = vmatprep.subr.mxu0 0.0
      %4112 = vmatpush1.msra.mxu0 0.0
      %4113 = vmatprep.subr.mxu0 0.0
      %4114 = vmatpush1.msra.mxu0 0.0
      %4115 = vmatprep.subr.mxu0 %v4079
      %4116 = vmatpush1.msra.mxu0 %v4078
      %4117 = vmatprep.subr.mxu0 0.0
      %4118 = vmatpush2.msra.mxu0 0.0
      %4119 = vmatprep.subr.mxu0 0.0
      %4120 = vmatpush2.msra.mxu0 0.0
      %4121 = vmatprep.subr.mxu0 0.0
      %4122 = vmatpush2.msra.mxu0 0.0
      %4123 = vmatprep.subr.mxu0 0.0
      %4124 = vmatpush2.msra.mxu0 0.0
      %4125 = vmatprep.subr.mxu0 0.0
      %4126 = vmatpush2.msra.mxu0 0.0
      %4127 = vmatprep.subr.mxu0 0.0
      %4128 = vmatpush2.msra.mxu0 0.0
      %4129 = vmatprep.subr.mxu0 0.0
      %4130 = vmatpush2.msra.mxu0 0.0
      %4131 = vmatprep.subr.mxu0 0.0
      %4132 = vmatpush2.msra.mxu0 0.0
      %4133 = vmatprep.subr.mxu0 0.0
      %4134 = vmatpush2.msra.mxu0 0.0
      %4135 = vmatprep.subr.mxu0 0.0
      %4136 = vmatpush2.msra.mxu0 0.0
      %4137 = vmatprep.subr.mxu0 0.0
      %4138 = vmatpush2.msra.mxu0 0.0
      %4139 = vmatprep.subr.mxu0 0.0
      %4140 = vmatpush2.msra.mxu0 0.0
      %4141 = vmatprep.subr.mxu0 0.0
      %4142 = vmatpush2.msra.mxu0 0.0
      %4143 = vmatprep.subr.mxu0 0.0
      %4144 = vmatpush2.msra.mxu0 0.0
      %4145 = vmatprep.subr.mxu0 0.0
      %4146 = vmatpush2.msra.mxu0 0.0
      %4147 = vmatprep.subr.mxu0 0.0
      %4148 = vmatpush2.msra.mxu0 0.0
      %4149 = vmatprep.mubr.f32.mxu0 0.0
      %4150 = vmatmul.mubr.f32.gmra.mxu0 %v4083
      %v4151 = vpop.f32.mrf.mxu0
      %v4152 = vadd.f32 0.0, %v4151
      %v4153 = vpop.f32.mrf.mxu0
      %v4154 = vadd.f32 0.0, %v4153
      %4155 = vdwg.mxu0
      %4156 = vmatprep.subr.mxu0 0.0
      %4157 = vmatpush1.msra.mxu0 0.0
      %4158 = vmatprep.subr.mxu0 0.0
      %4159 = vmatpush1.msra.mxu0 0.0
      %4160 = vmatprep.subr.mxu0 0.0
      %4161 = vmatpush1.msra.mxu0 0.0
      %4162 = vmatprep.subr.mxu0 0.0
      %4163 = vmatpush1.msra.mxu0 0.0
      %4164 = vmatprep.subr.mxu0 0.0
      %4165 = vmatpush1.msra.mxu0 0.0
      %4166 = vmatprep.subr.mxu0 0.0
      %4167 = vmatpush1.msra.mxu0 0.0
      %4168 = vmatprep.subr.mxu0 0.0
      %4169 = vmatpush1.msra.mxu0 0.0
      %4170 = vmatprep.subr.mxu0 0.0
      %4171 = vmatpush1.msra.mxu0 0.0
      %4172 = vmatprep.subr.mxu0 0.0
      %4173 = vmatpush1.msra.mxu0 0.0
      %4174 = vmatprep.subr.mxu0 0.0
      %4175 = vmatpush1.msra.mxu0 0.0
      %4176 = vmatprep.subr.mxu0 0.0
      %4177 = vmatpush1.msra.mxu0 0.0
      %4178 = vmatprep.subr.mxu0 0.0
      %4179 = vmatpush1.msra.mxu0 0.0
      %4180 = vmatprep.subr.mxu0 0.0
      %4181 = vmatpush1.msra.mxu0 0.0
      %4182 = vmatprep.subr.mxu0 0.0
      %4183 = vmatpush1.msra.mxu0 0.0
      %4184 = vmatprep.subr.mxu0 0.0
      %4185 = vmatpush1.msra.mxu0 0.0
      %4186 = vmatprep.subr.mxu0 0.0
      %4187 = vmatpush1.msra.mxu0 %v4077
      %4188 = vmatprep.subr.mxu0 0.0
      %4189 = vmatpush2.msra.mxu0 0.0
      %4190 = vmatprep.subr.mxu0 0.0
      %4191 = vmatpush2.msra.mxu0 0.0
      %4192 = vmatprep.subr.mxu0 0.0
      %4193 = vmatpush2.msra.mxu0 0.0
      %4194 = vmatprep.subr.mxu0 0.0
      %4195 = vmatpush2.msra.mxu0 0.0
      %4196 = vmatprep.subr.mxu0 0.0
      %4197 = vmatpush2.msra.mxu0 0.0
      %4198 = vmatprep.subr.mxu0 0.0
      %4199 = vmatpush2.msra.mxu0 0.0
      %4200 = vmatprep.subr.mxu0 0.0
      %4201 = vmatpush2.msra.mxu0 0.0
      %4202 = vmatprep.subr.mxu0 0.0
      %4203 = vmatpush2.msra.mxu0 0.0
      %4204 = vmatprep.subr.mxu0 0.0
      %4205 = vmatpush2.msra.mxu0 0.0
      %4206 = vmatprep.subr.mxu0 0.0
      %4207 = vmatpush2.msra.mxu0 0.0
      %4208 = vmatprep.subr.mxu0 0.0
      %4209 = vmatpush2.msra.mxu0 0.0
      %4210 = vmatprep.subr.mxu0 0.0
      %4211 = vmatpush2.msra.mxu0 0.0
      %4212 = vmatprep.subr.mxu0 0.0
      %4213 = vmatpush2.msra.mxu0 0.0
      %4214 = vmatprep.subr.mxu0 0.0
      %4215 = vmatpush2.msra.mxu0 0.0
      %4216 = vmatprep.subr.mxu0 0.0
      %4217 = vmatpush2.msra.mxu0 0.0
      %4218 = vmatprep.subr.mxu0 0.0
      %4219 = vmatpush2.msra.mxu0 0.0
      %4220 = vmatprep.mubr.f32.mxu0 0.0
      %4221 = vmatmul.mubr.f32.gmra.mxu0 %v4083
      %v4222 = vpop.f32.mrf.mxu0
      %v4223 = vadd.f32 0.0, %v4222
      %v4224 = vpop.f32.mrf.mxu0
      %4225 = vdwg.mxu0
      %v4226 = vadd.f32 %v4067, %v4152
      %v4227 = vadd.f32 %v4068, %v4154
      %v4228 = vadd.f32 %v4069, %v4223
      %4229 = vrot.lane.b32.xlu0 %v3263, 92
      %v4230 = vpop.permute.xlu0 %4229
      %4231 = vrot.lane.b32.xlu0 %v3264, 92
      %v4232 = vpop.permute.xlu0 %4231
      %4233 = vrot.lane.b32.xlu0 %v3265, 92
      %v4234 = vpop.permute.xlu0 %4233
      %v4235 = vsel %vm1237, %v4230, %v4232
      %v4236 = vsel %vm1237, %v4232, %v4234
      %4240 = vrot.lane.b32.xlu0 %v4235, 32
      %v4241 = vpop.permute.xlu0 %4240
      %v4242 = vsel %vm263, %v4241, %v4234
      %4243 = vrot.lane.b32.xlu0 %v4236, 32
      %v4244 = vpop.permute.xlu0 %4243
      %4245 = vrot.lane.b32.xlu0 %v4242, 32
      %v4246 = vpop.permute.xlu0 %4245
      %v4247 = vsel %vm263, %v4244, %v4241
      %v4248 = vsel %vm263, %v4246, %v4244
      %4249 = vrot.lane.b32.xlu0 %v3262, 80
      %v4250 = vpop.permute.xlu0 %4249
      %4254 = vrot.lane.b32.xlu0 %v4242, 97
      %v4255 = vpop.permute.xlu0 %4254
      %4256 = vrot.lane.b32.xlu0 %v4247, 97
      %v4257 = vpop.permute.xlu0 %4256
      %4258 = vrot.lane.b32.xlu0 %v4248, 97
      %v4259 = vpop.permute.xlu0 %4258
      %v4260 = vsel %vm429, %v4255, %v4257
      %v4261 = vsel %vm429, %v4257, %v4259
      %v4265 = vsel %vm276, %v4250, 0
      %4267 = vmatprep.subr.mxu0 0.0
      %4268 = vmatpush1.msra.mxu0 0.0
      %4269 = vmatprep.subr.mxu0 0.0
      %4270 = vmatpush1.msra.mxu0 0.0
      %4271 = vmatprep.subr.mxu0 0.0
      %4272 = vmatpush1.msra.mxu0 0.0
      %4273 = vmatprep.subr.mxu0 0.0
      %4274 = vmatpush1.msra.mxu0 0.0
      %4275 = vmatprep.subr.mxu0 0.0
      %4276 = vmatpush1.msra.mxu0 0.0
      %4277 = vmatprep.subr.mxu0 0.0
      %4278 = vmatpush1.msra.mxu0 0.0
      %4279 = vmatprep.subr.mxu0 0.0
      %4280 = vmatpush1.msra.mxu0 0.0
      %4281 = vmatprep.subr.mxu0 0.0
      %4282 = vmatpush1.msra.mxu0 0.0
      %4283 = vmatprep.subr.mxu0 0.0
      %4284 = vmatpush1.msra.mxu0 0.0
      %4285 = vmatprep.subr.mxu0 0.0
      %4286 = vmatpush1.msra.mxu0 0.0
      %4287 = vmatprep.subr.mxu0 0.0
      %4288 = vmatpush1.msra.mxu0 0.0
      %4289 = vmatprep.subr.mxu0 0.0
      %4290 = vmatpush1.msra.mxu0 0.0
      %4291 = vmatprep.subr.mxu0 0.0
      %4292 = vmatpush1.msra.mxu0 0.0
      %4293 = vmatprep.subr.mxu0 0.0
      %4294 = vmatpush1.msra.mxu0 0.0
      %4295 = vmatprep.subr.mxu0 0.0
      %4296 = vmatpush1.msra.mxu0 0.0
      %4297 = vmatprep.subr.mxu0 %v4261
      %4298 = vmatpush1.msra.mxu0 %v4260
      %4299 = vmatprep.subr.mxu0 0.0
      %4300 = vmatpush2.msra.mxu0 0.0
      %4301 = vmatprep.subr.mxu0 0.0
      %4302 = vmatpush2.msra.mxu0 0.0
      %4303 = vmatprep.subr.mxu0 0.0
      %4304 = vmatpush2.msra.mxu0 0.0
      %4305 = vmatprep.subr.mxu0 0.0
      %4306 = vmatpush2.msra.mxu0 0.0
      %4307 = vmatprep.subr.mxu0 0.0
      %4308 = vmatpush2.msra.mxu0 0.0
      %4309 = vmatprep.subr.mxu0 0.0
      %4310 = vmatpush2.msra.mxu0 0.0
      %4311 = vmatprep.subr.mxu0 0.0
      %4312 = vmatpush2.msra.mxu0 0.0
      %4313 = vmatprep.subr.mxu0 0.0
      %4314 = vmatpush2.msra.mxu0 0.0
      %4315 = vmatprep.subr.mxu0 0.0
      %4316 = vmatpush2.msra.mxu0 0.0
      %4317 = vmatprep.subr.mxu0 0.0
      %4318 = vmatpush2.msra.mxu0 0.0
      %4319 = vmatprep.subr.mxu0 0.0
      %4320 = vmatpush2.msra.mxu0 0.0
      %4321 = vmatprep.subr.mxu0 0.0
      %4322 = vmatpush2.msra.mxu0 0.0
      %4323 = vmatprep.subr.mxu0 0.0
      %4324 = vmatpush2.msra.mxu0 0.0
      %4325 = vmatprep.subr.mxu0 0.0
      %4326 = vmatpush2.msra.mxu0 0.0
      %4327 = vmatprep.subr.mxu0 0.0
      %4328 = vmatpush2.msra.mxu0 0.0
      %4329 = vmatprep.subr.mxu0 0.0
      %4330 = vmatpush2.msra.mxu0 0.0
      %4331 = vmatprep.mubr.f32.mxu0 0.0
      %4332 = vmatmul.mubr.f32.gmra.mxu0 %v4265
      %v4333 = vpop.f32.mrf.mxu0
      %v4334 = vadd.f32 0.0, %v4333
      %v4335 = vpop.f32.mrf.mxu0
      %v4336 = vadd.f32 0.0, %v4335
      %4337 = vdwg.mxu0
      %4338 = vmatprep.subr.mxu0 0.0
      %4339 = vmatpush1.msra.mxu0 0.0
      %4340 = vmatprep.subr.mxu0 0.0
      %4341 = vmatpush1.msra.mxu0 0.0
      %4342 = vmatprep.subr.mxu0 0.0
      %4343 = vmatpush1.msra.mxu0 0.0
      %4344 = vmatprep.subr.mxu0 0.0
      %4345 = vmatpush1.msra.mxu0 0.0
      %4346 = vmatprep.subr.mxu0 0.0
      %4347 = vmatpush1.msra.mxu0 0.0
      %4348 = vmatprep.subr.mxu0 0.0
      %4349 = vmatpush1.msra.mxu0 0.0
      %4350 = vmatprep.subr.mxu0 0.0
      %4351 = vmatpush1.msra.mxu0 0.0
      %4352 = vmatprep.subr.mxu0 0.0
      %4353 = vmatpush1.msra.mxu0 0.0
      %4354 = vmatprep.subr.mxu0 0.0
      %4355 = vmatpush1.msra.mxu0 0.0
      %4356 = vmatprep.subr.mxu0 0.0
      %4357 = vmatpush1.msra.mxu0 0.0
      %4358 = vmatprep.subr.mxu0 0.0
      %4359 = vmatpush1.msra.mxu0 0.0
      %4360 = vmatprep.subr.mxu0 0.0
      %4361 = vmatpush1.msra.mxu0 0.0
      %4362 = vmatprep.subr.mxu0 0.0
      %4363 = vmatpush1.msra.mxu0 0.0
      %4364 = vmatprep.subr.mxu0 0.0
      %4365 = vmatpush1.msra.mxu0 0.0
      %4366 = vmatprep.subr.mxu0 0.0
      %4367 = vmatpush1.msra.mxu0 0.0
      %4368 = vmatprep.subr.mxu0 0.0
      %4369 = vmatpush1.msra.mxu0 %v4259
      %4370 = vmatprep.subr.mxu0 0.0
      %4371 = vmatpush2.msra.mxu0 0.0
      %4372 = vmatprep.subr.mxu0 0.0
      %4373 = vmatpush2.msra.mxu0 0.0
      %4374 = vmatprep.subr.mxu0 0.0
      %4375 = vmatpush2.msra.mxu0 0.0
      %4376 = vmatprep.subr.mxu0 0.0
      %4377 = vmatpush2.msra.mxu0 0.0
      %4378 = vmatprep.subr.mxu0 0.0
      %4379 = vmatpush2.msra.mxu0 0.0
      %4380 = vmatprep.subr.mxu0 0.0
      %4381 = vmatpush2.msra.mxu0 0.0
      %4382 = vmatprep.subr.mxu0 0.0
      %4383 = vmatpush2.msra.mxu0 0.0
      %4384 = vmatprep.subr.mxu0 0.0
      %4385 = vmatpush2.msra.mxu0 0.0
      %4386 = vmatprep.subr.mxu0 0.0
      %4387 = vmatpush2.msra.mxu0 0.0
      %4388 = vmatprep.subr.mxu0 0.0
      %4389 = vmatpush2.msra.mxu0 0.0
      %4390 = vmatprep.subr.mxu0 0.0
      %4391 = vmatpush2.msra.mxu0 0.0
      %4392 = vmatprep.subr.mxu0 0.0
      %4393 = vmatpush2.msra.mxu0 0.0
      %4394 = vmatprep.subr.mxu0 0.0
      %4395 = vmatpush2.msra.mxu0 0.0
      %4396 = vmatprep.subr.mxu0 0.0
      %4397 = vmatpush2.msra.mxu0 0.0
      %4398 = vmatprep.subr.mxu0 0.0
      %4399 = vmatpush2.msra.mxu0 0.0
      %4400 = vmatprep.subr.mxu0 0.0
      %4401 = vmatpush2.msra.mxu0 0.0
      %4402 = vmatprep.mubr.f32.mxu0 0.0
      %4403 = vmatmul.mubr.f32.gmra.mxu0 %v4265
      %v4404 = vpop.f32.mrf.mxu0
      %v4405 = vadd.f32 0.0, %v4404
      %v4406 = vpop.f32.mrf.mxu0
      %4407 = vdwg.mxu0
      %v4408 = vadd.f32 %v4226, %v4334
      %v4409 = vadd.f32 %v4227, %v4336
      %v4410 = vadd.f32 %v4228, %v4405
      %4411 = vrot.lane.b32.xlu0 %v3262, 72
      %v4412 = vpop.permute.xlu0 %4411
      %v4413 = vsel %vm276, %v4412, 0
      %4415 = vmatprep.subr.mxu0 0.0
      %4416 = vmatpush1.msra.mxu0 0.0
      %4417 = vmatprep.subr.mxu0 0.0
      %4418 = vmatpush1.msra.mxu0 0.0
      %4419 = vmatprep.subr.mxu0 0.0
      %4420 = vmatpush1.msra.mxu0 0.0
      %4421 = vmatprep.subr.mxu0 0.0
      %4422 = vmatpush1.msra.mxu0 0.0
      %4423 = vmatprep.subr.mxu0 0.0
      %4424 = vmatpush1.msra.mxu0 0.0
      %4425 = vmatprep.subr.mxu0 0.0
      %4426 = vmatpush1.msra.mxu0 0.0
      %4427 = vmatprep.subr.mxu0 0.0
      %4428 = vmatpush1.msra.mxu0 0.0
      %4429 = vmatprep.subr.mxu0 0.0
      %4430 = vmatpush1.msra.mxu0 0.0
      %4431 = vmatprep.subr.mxu0 0.0
      %4432 = vmatpush1.msra.mxu0 0.0
      %4433 = vmatprep.subr.mxu0 0.0
      %4434 = vmatpush1.msra.mxu0 0.0
      %4435 = vmatprep.subr.mxu0 0.0
      %4436 = vmatpush1.msra.mxu0 0.0
      %4437 = vmatprep.subr.mxu0 0.0
      %4438 = vmatpush1.msra.mxu0 0.0
      %4439 = vmatprep.subr.mxu0 0.0
      %4440 = vmatpush1.msra.mxu0 0.0
      %4441 = vmatprep.subr.mxu0 0.0
      %4442 = vmatpush1.msra.mxu0 0.0
      %4443 = vmatprep.subr.mxu0 0.0
      %4444 = vmatpush1.msra.mxu0 0.0
      %4445 = vmatprep.subr.mxu0 %v4236
      %4446 = vmatpush1.msra.mxu0 %v4235
      %4447 = vmatprep.subr.mxu0 0.0
      %4448 = vmatpush2.msra.mxu0 0.0
      %4449 = vmatprep.subr.mxu0 0.0
      %4450 = vmatpush2.msra.mxu0 0.0
      %4451 = vmatprep.subr.mxu0 0.0
      %4452 = vmatpush2.msra.mxu0 0.0
      %4453 = vmatprep.subr.mxu0 0.0
      %4454 = vmatpush2.msra.mxu0 0.0
      %4455 = vmatprep.subr.mxu0 0.0
      %4456 = vmatpush2.msra.mxu0 0.0
      %4457 = vmatprep.subr.mxu0 0.0
      %4458 = vmatpush2.msra.mxu0 0.0
      %4459 = vmatprep.subr.mxu0 0.0
      %4460 = vmatpush2.msra.mxu0 0.0
      %4461 = vmatprep.subr.mxu0 0.0
      %4462 = vmatpush2.msra.mxu0 0.0
      %4463 = vmatprep.subr.mxu0 0.0
      %4464 = vmatpush2.msra.mxu0 0.0
      %4465 = vmatprep.subr.mxu0 0.0
      %4466 = vmatpush2.msra.mxu0 0.0
      %4467 = vmatprep.subr.mxu0 0.0
      %4468 = vmatpush2.msra.mxu0 0.0
      %4469 = vmatprep.subr.mxu0 0.0
      %4470 = vmatpush2.msra.mxu0 0.0
      %4471 = vmatprep.subr.mxu0 0.0
      %4472 = vmatpush2.msra.mxu0 0.0
      %4473 = vmatprep.subr.mxu0 0.0
      %4474 = vmatpush2.msra.mxu0 0.0
      %4475 = vmatprep.subr.mxu0 0.0
      %4476 = vmatpush2.msra.mxu0 0.0
      %4477 = vmatprep.subr.mxu0 0.0
      %4478 = vmatpush2.msra.mxu0 0.0
      %4479 = vmatprep.mubr.f32.mxu0 0.0
      %4480 = vmatmul.mubr.f32.gmra.mxu0 %v4413
      %v4481 = vpop.f32.mrf.mxu0
      %v4482 = vadd.f32 0.0, %v4481
      %v4483 = vpop.f32.mrf.mxu0
      %v4484 = vadd.f32 0.0, %v4483
      %4485 = vdwg.mxu0
      %4486 = vmatprep.subr.mxu0 0.0
      %4487 = vmatpush1.msra.mxu0 0.0
      %4488 = vmatprep.subr.mxu0 0.0
      %4489 = vmatpush1.msra.mxu0 0.0
      %4490 = vmatprep.subr.mxu0 0.0
      %4491 = vmatpush1.msra.mxu0 0.0
      %4492 = vmatprep.subr.mxu0 0.0
      %4493 = vmatpush1.msra.mxu0 0.0
      %4494 = vmatprep.subr.mxu0 0.0
      %4495 = vmatpush1.msra.mxu0 0.0
      %4496 = vmatprep.subr.mxu0 0.0
      %4497 = vmatpush1.msra.mxu0 0.0
      %4498 = vmatprep.subr.mxu0 0.0
      %4499 = vmatpush1.msra.mxu0 0.0
      %4500 = vmatprep.subr.mxu0 0.0
      %4501 = vmatpush1.msra.mxu0 0.0
      %4502 = vmatprep.subr.mxu0 0.0
      %4503 = vmatpush1.msra.mxu0 0.0
      %4504 = vmatprep.subr.mxu0 0.0
      %4505 = vmatpush1.msra.mxu0 0.0
      %4506 = vmatprep.subr.mxu0 0.0
      %4507 = vmatpush1.msra.mxu0 0.0
      %4508 = vmatprep.subr.mxu0 0.0
      %4509 = vmatpush1.msra.mxu0 0.0
      %4510 = vmatprep.subr.mxu0 0.0
      %4511 = vmatpush1.msra.mxu0 0.0
      %4512 = vmatprep.subr.mxu0 0.0
      %4513 = vmatpush1.msra.mxu0 0.0
      %4514 = vmatprep.subr.mxu0 0.0
      %4515 = vmatpush1.msra.mxu0 0.0
      %4516 = vmatprep.subr.mxu0 0.0
      %4517 = vmatpush1.msra.mxu0 %v4234
      %4518 = vmatprep.subr.mxu0 0.0
      %4519 = vmatpush2.msra.mxu0 0.0
      %4520 = vmatprep.subr.mxu0 0.0
      %4521 = vmatpush2.msra.mxu0 0.0
      %4522 = vmatprep.subr.mxu0 0.0
      %4523 = vmatpush2.msra.mxu0 0.0
      %4524 = vmatprep.subr.mxu0 0.0
      %4525 = vmatpush2.msra.mxu0 0.0
      %4526 = vmatprep.subr.mxu0 0.0
      %4527 = vmatpush2.msra.mxu0 0.0
      %4528 = vmatprep.subr.mxu0 0.0
      %4529 = vmatpush2.msra.mxu0 0.0
      %4530 = vmatprep.subr.mxu0 0.0
      %4531 = vmatpush2.msra.mxu0 0.0
      %4532 = vmatprep.subr.mxu0 0.0
      %4533 = vmatpush2.msra.mxu0 0.0
      %4534 = vmatprep.subr.mxu0 0.0
      %4535 = vmatpush2.msra.mxu0 0.0
      %4536 = vmatprep.subr.mxu0 0.0
      %4537 = vmatpush2.msra.mxu0 0.0
      %4538 = vmatprep.subr.mxu0 0.0
      %4539 = vmatpush2.msra.mxu0 0.0
      %4540 = vmatprep.subr.mxu0 0.0
      %4541 = vmatpush2.msra.mxu0 0.0
      %4542 = vmatprep.subr.mxu0 0.0
      %4543 = vmatpush2.msra.mxu0 0.0
      %4544 = vmatprep.subr.mxu0 0.0
      %4545 = vmatpush2.msra.mxu0 0.0
      %4546 = vmatprep.subr.mxu0 0.0
      %4547 = vmatpush2.msra.mxu0 0.0
      %4548 = vmatprep.subr.mxu0 0.0
      %4549 = vmatpush2.msra.mxu0 0.0
      %4550 = vmatprep.mubr.f32.mxu0 0.0
      %4551 = vmatmul.mubr.f32.gmra.mxu0 %v4413
      %v4552 = vpop.f32.mrf.mxu0
      %v4553 = vadd.f32 0.0, %v4552
      %v4554 = vpop.f32.mrf.mxu0
      %4555 = vdwg.mxu0
      %v4556 = vadd.f32 %v4408, %v4482
      %v4557 = vadd.f32 %v4409, %v4484
      %v4558 = vadd.f32 %v4410, %v4553
      %4559 = vrot.lane.b32.xlu0 %v3262, 64
      %v4560 = vpop.permute.xlu0 %4559
      %4561 = vrot.lane.b32.xlu0 %v4235, 127
      %v4562 = vpop.permute.xlu0 %4561
      %4563 = vrot.lane.b32.xlu0 %v4236, 127
      %v4564 = vpop.permute.xlu0 %4563
      %4565 = vrot.lane.b32.xlu0 %v4242, 127
      %v4566 = vpop.permute.xlu0 %4565
      %v4567 = vsel %vm588, %v4562, %v4564
      %v4568 = vsel %vm588, %v4564, %v4566
      %v4572 = vsel %vm276, %v4560, 0
      %4574 = vmatprep.subr.mxu0 0.0
      %4575 = vmatpush1.msra.mxu0 0.0
      %4576 = vmatprep.subr.mxu0 0.0
      %4577 = vmatpush1.msra.mxu0 0.0
      %4578 = vmatprep.subr.mxu0 0.0
      %4579 = vmatpush1.msra.mxu0 0.0
      %4580 = vmatprep.subr.mxu0 0.0
      %4581 = vmatpush1.msra.mxu0 0.0
      %4582 = vmatprep.subr.mxu0 0.0
      %4583 = vmatpush1.msra.mxu0 0.0
      %4584 = vmatprep.subr.mxu0 0.0
      %4585 = vmatpush1.msra.mxu0 0.0
      %4586 = vmatprep.subr.mxu0 0.0
      %4587 = vmatpush1.msra.mxu0 0.0
      %4588 = vmatprep.subr.mxu0 0.0
      %4589 = vmatpush1.msra.mxu0 0.0
      %4590 = vmatprep.subr.mxu0 0.0
      %4591 = vmatpush1.msra.mxu0 0.0
      %4592 = vmatprep.subr.mxu0 0.0
      %4593 = vmatpush1.msra.mxu0 0.0
      %4594 = vmatprep.subr.mxu0 0.0
      %4595 = vmatpush1.msra.mxu0 0.0
      %4596 = vmatprep.subr.mxu0 0.0
      %4597 = vmatpush1.msra.mxu0 0.0
      %4598 = vmatprep.subr.mxu0 0.0
      %4599 = vmatpush1.msra.mxu0 0.0
      %4600 = vmatprep.subr.mxu0 0.0
      %4601 = vmatpush1.msra.mxu0 0.0
      %4602 = vmatprep.subr.mxu0 0.0
      %4603 = vmatpush1.msra.mxu0 0.0
      %4604 = vmatprep.subr.mxu0 %v4568
      %4605 = vmatpush1.msra.mxu0 %v4567
      %4606 = vmatprep.subr.mxu0 0.0
      %4607 = vmatpush2.msra.mxu0 0.0
      %4608 = vmatprep.subr.mxu0 0.0
      %4609 = vmatpush2.msra.mxu0 0.0
      %4610 = vmatprep.subr.mxu0 0.0
      %4611 = vmatpush2.msra.mxu0 0.0
      %4612 = vmatprep.subr.mxu0 0.0
      %4613 = vmatpush2.msra.mxu0 0.0
      %4614 = vmatprep.subr.mxu0 0.0
      %4615 = vmatpush2.msra.mxu0 0.0
      %4616 = vmatprep.subr.mxu0 0.0
      %4617 = vmatpush2.msra.mxu0 0.0
      %4618 = vmatprep.subr.mxu0 0.0
      %4619 = vmatpush2.msra.mxu0 0.0
      %4620 = vmatprep.subr.mxu0 0.0
      %4621 = vmatpush2.msra.mxu0 0.0
      %4622 = vmatprep.subr.mxu0 0.0
      %4623 = vmatpush2.msra.mxu0 0.0
      %4624 = vmatprep.subr.mxu0 0.0
      %4625 = vmatpush2.msra.mxu0 0.0
      %4626 = vmatprep.subr.mxu0 0.0
      %4627 = vmatpush2.msra.mxu0 0.0
      %4628 = vmatprep.subr.mxu0 0.0
      %4629 = vmatpush2.msra.mxu0 0.0
      %4630 = vmatprep.subr.mxu0 0.0
      %4631 = vmatpush2.msra.mxu0 0.0
      %4632 = vmatprep.subr.mxu0 0.0
      %4633 = vmatpush2.msra.mxu0 0.0
      %4634 = vmatprep.subr.mxu0 0.0
      %4635 = vmatpush2.msra.mxu0 0.0
      %4636 = vmatprep.subr.mxu0 0.0
      %4637 = vmatpush2.msra.mxu0 0.0
      %4638 = vmatprep.mubr.f32.mxu0 0.0
      %4639 = vmatmul.mubr.f32.gmra.mxu0 %v4572
      %v4640 = vpop.f32.mrf.mxu0
      %v4641 = vadd.f32 0.0, %v4640
      %v4642 = vpop.f32.mrf.mxu0
      %v4643 = vadd.f32 0.0, %v4642
      %4644 = vdwg.mxu0
      %4645 = vmatprep.subr.mxu0 0.0
      %4646 = vmatpush1.msra.mxu0 0.0
      %4647 = vmatprep.subr.mxu0 0.0
      %4648 = vmatpush1.msra.mxu0 0.0
      %4649 = vmatprep.subr.mxu0 0.0
      %4650 = vmatpush1.msra.mxu0 0.0
      %4651 = vmatprep.subr.mxu0 0.0
      %4652 = vmatpush1.msra.mxu0 0.0
      %4653 = vmatprep.subr.mxu0 0.0
      %4654 = vmatpush1.msra.mxu0 0.0
      %4655 = vmatprep.subr.mxu0 0.0
      %4656 = vmatpush1.msra.mxu0 0.0
      %4657 = vmatprep.subr.mxu0 0.0
      %4658 = vmatpush1.msra.mxu0 0.0
      %4659 = vmatprep.subr.mxu0 0.0
      %4660 = vmatpush1.msra.mxu0 0.0
      %4661 = vmatprep.subr.mxu0 0.0
      %4662 = vmatpush1.msra.mxu0 0.0
      %4663 = vmatprep.subr.mxu0 0.0
      %4664 = vmatpush1.msra.mxu0 0.0
      %4665 = vmatprep.subr.mxu0 0.0
      %4666 = vmatpush1.msra.mxu0 0.0
      %4667 = vmatprep.subr.mxu0 0.0
      %4668 = vmatpush1.msra.mxu0 0.0
      %4669 = vmatprep.subr.mxu0 0.0
      %4670 = vmatpush1.msra.mxu0 0.0
      %4671 = vmatprep.subr.mxu0 0.0
      %4672 = vmatpush1.msra.mxu0 0.0
      %4673 = vmatprep.subr.mxu0 0.0
      %4674 = vmatpush1.msra.mxu0 0.0
      %4675 = vmatprep.subr.mxu0 0.0
      %4676 = vmatpush1.msra.mxu0 %v4566
      %4677 = vmatprep.subr.mxu0 0.0
      %4678 = vmatpush2.msra.mxu0 0.0
      %4679 = vmatprep.subr.mxu0 0.0
      %4680 = vmatpush2.msra.mxu0 0.0
      %4681 = vmatprep.subr.mxu0 0.0
      %4682 = vmatpush2.msra.mxu0 0.0
      %4683 = vmatprep.subr.mxu0 0.0
      %4684 = vmatpush2.msra.mxu0 0.0
      %4685 = vmatprep.subr.mxu0 0.0
      %4686 = vmatpush2.msra.mxu0 0.0
      %4687 = vmatprep.subr.mxu0 0.0
      %4688 = vmatpush2.msra.mxu0 0.0
      %4689 = vmatprep.subr.mxu0 0.0
      %4690 = vmatpush2.msra.mxu0 0.0
      %4691 = vmatprep.subr.mxu0 0.0
      %4692 = vmatpush2.msra.mxu0 0.0
      %4693 = vmatprep.subr.mxu0 0.0
      %4694 = vmatpush2.msra.mxu0 0.0
      %4695 = vmatprep.subr.mxu0 0.0
      %4696 = vmatpush2.msra.mxu0 0.0
      %4697 = vmatprep.subr.mxu0 0.0
      %4698 = vmatpush2.msra.mxu0 0.0
      %4699 = vmatprep.subr.mxu0 0.0
      %4700 = vmatpush2.msra.mxu0 0.0
      %4701 = vmatprep.subr.mxu0 0.0
      %4702 = vmatpush2.msra.mxu0 0.0
      %4703 = vmatprep.subr.mxu0 0.0
      %4704 = vmatpush2.msra.mxu0 0.0
      %4705 = vmatprep.subr.mxu0 0.0
      %4706 = vmatpush2.msra.mxu0 0.0
      %4707 = vmatprep.subr.mxu0 0.0
      %4708 = vmatpush2.msra.mxu0 0.0
      %4709 = vmatprep.mubr.f32.mxu0 0.0
      %4710 = vmatmul.mubr.f32.gmra.mxu0 %v4572
      %v4711 = vpop.f32.mrf.mxu0
      %v4712 = vadd.f32 0.0, %v4711
      %v4713 = vpop.f32.mrf.mxu0
      %4714 = vdwg.mxu0
      %v4715 = vadd.f32 %v4556, %v4641
      %v4716 = vadd.f32 %v4557, %v4643
      %v4717 = vadd.f32 %v4558, %v4712
      %s4718 = scalar_lea.vmem %s2, 16
      %v4719 = vld [vmem:[%s4718] sm:$0xff]
      %4721 = vset.pattern.permute.xlu0 0
      %4722 = vperm.xlu0 %4721, %v4719
      %v4723 = vpop.permute.xlu0 %4722
      %v4725 = vadd.f32 %v4715, %v4723
      %v4726 = vadd.f32 %v4716, %v4723
      %v4727 = vadd.f32 %v4717, %v4723
      %v4728 = vmax.f32 %v4725, 0.0
      %v4729 = vmax.f32 %v4726, 0.0
      %v4730 = vmax.f32 %v4727, 0.0
      %v4731 = vmul.f32 %v4728, %v1737
      %v4732 = vmul.f32 %v4729, %v1741
      %v4733 = vmul.f32 %v4730, %v1745
      %4737 = vrot.lane.b32.xlu0 %v4731, 18
      %v4738 = vpop.permute.xlu0 %4737
      %4739 = vrot.lane.b32.xlu0 %v4732, 18
      %v4740 = vpop.permute.xlu0 %4739
      %4741 = vrot.lane.b32.xlu0 %v4733, 18
      %v4742 = vpop.permute.xlu0 %4741
      %v4743 = vsel %vm253, %v4738, %v4740
      %v4744 = vsel %vm253, %v4740, %v4742
      %4748 = vst.msk [vmem:[#allocation2] sm:$0xff] %vm1766, %v4738
      %4749 = vst [vmem:[#allocation2 + $0x8] sm:$0xff] %v4743
      %4750 = vst.msk [vmem:[#allocation2 + $0x10] sm:$0xff] %vm1769, %v4744
      %s4751 = scalar_lea.vmem %s1, 24
      %v4752 = vld [vmem:[%s4751] sm:$0xff]
      %v4753 = vld [vmem:[#allocation2] sm:$0xff]
      %v4754 = vld [vmem:[#allocation2 + $0x8] sm:$0xff]
      %v4755 = vld [vmem:[#allocation2 + $0x10] sm:$0xff]
      %4756 = vrot.lane.b32.xlu0 %v4753, 32
      %v4757 = vpop.permute.xlu0 %4756
      %v4758 = vsel %vm263, %v4757, %v4755
      %4759 = vrot.lane.b32.xlu0 %v4754, 32
      %v4760 = vpop.permute.xlu0 %4759
      %4761 = vrot.lane.b32.xlu0 %v4758, 32
      %v4762 = vpop.permute.xlu0 %4761
      %v4763 = vsel %vm263, %v4760, %v4757
      %v4764 = vsel %vm263, %v4762, %v4760
      %4766 = vrot.lane.b32.xlu0 %v4752, 120
      %v4767 = vpop.permute.xlu0 %4766
      %v4768 = vsel %vm276, %v4767, 0
      %4770 = vmatprep.subr.mxu0 0.0
      %4771 = vmatpush1.msra.mxu0 0.0
      %4772 = vmatprep.subr.mxu0 0.0
      %4773 = vmatpush1.msra.mxu0 0.0
      %4774 = vmatprep.subr.mxu0 0.0
      %4775 = vmatpush1.msra.mxu0 0.0
      %4776 = vmatprep.subr.mxu0 0.0
      %4777 = vmatpush1.msra.mxu0 0.0
      %4778 = vmatprep.subr.mxu0 0.0
      %4779 = vmatpush1.msra.mxu0 0.0
      %4780 = vmatprep.subr.mxu0 0.0
      %4781 = vmatpush1.msra.mxu0 0.0
      %4782 = vmatprep.subr.mxu0 0.0
      %4783 = vmatpush1.msra.mxu0 0.0
      %4784 = vmatprep.subr.mxu0 0.0
      %4785 = vmatpush1.msra.mxu0 0.0
      %4786 = vmatprep.subr.mxu0 0.0
      %4787 = vmatpush1.msra.mxu0 0.0
      %4788 = vmatprep.subr.mxu0 0.0
      %4789 = vmatpush1.msra.mxu0 0.0
      %4790 = vmatprep.subr.mxu0 0.0
      %4791 = vmatpush1.msra.mxu0 0.0
      %4792 = vmatprep.subr.mxu0 0.0
      %4793 = vmatpush1.msra.mxu0 0.0
      %4794 = vmatprep.subr.mxu0 0.0
      %4795 = vmatpush1.msra.mxu0 0.0
      %4796 = vmatprep.subr.mxu0 0.0
      %4797 = vmatpush1.msra.mxu0 0.0
      %4798 = vmatprep.subr.mxu0 0.0
      %4799 = vmatpush1.msra.mxu0 0.0
      %4800 = vmatprep.subr.mxu0 %v4754
      %4801 = vmatpush1.msra.mxu0 %v4753
      %4802 = vmatprep.subr.mxu0 0.0
      %4803 = vmatpush2.msra.mxu0 0.0
      %4804 = vmatprep.subr.mxu0 0.0
      %4805 = vmatpush2.msra.mxu0 0.0
      %4806 = vmatprep.subr.mxu0 0.0
      %4807 = vmatpush2.msra.mxu0 0.0
      %4808 = vmatprep.subr.mxu0 0.0
      %4809 = vmatpush2.msra.mxu0 0.0
      %4810 = vmatprep.subr.mxu0 0.0
      %4811 = vmatpush2.msra.mxu0 0.0
      %4812 = vmatprep.subr.mxu0 0.0
      %4813 = vmatpush2.msra.mxu0 0.0
      %4814 = vmatprep.subr.mxu0 0.0
      %4815 = vmatpush2.msra.mxu0 0.0
      %4816 = vmatprep.subr.mxu0 0.0
      %4817 = vmatpush2.msra.mxu0 0.0
      %4818 = vmatprep.subr.mxu0 0.0
      %4819 = vmatpush2.msra.mxu0 0.0
      %4820 = vmatprep.subr.mxu0 0.0
      %4821 = vmatpush2.msra.mxu0 0.0
      %4822 = vmatprep.subr.mxu0 0.0
      %4823 = vmatpush2.msra.mxu0 0.0
      %4824 = vmatprep.subr.mxu0 0.0
      %4825 = vmatpush2.msra.mxu0 0.0
      %4826 = vmatprep.subr.mxu0 0.0
      %4827 = vmatpush2.msra.mxu0 0.0
      %4828 = vmatprep.subr.mxu0 0.0
      %4829 = vmatpush2.msra.mxu0 0.0
      %4830 = vmatprep.subr.mxu0 0.0
      %4831 = vmatpush2.msra.mxu0 0.0
      %4832 = vmatprep.subr.mxu0 0.0
      %4833 = vmatpush2.msra.mxu0 0.0
      %4834 = vmatprep.mubr.f32.mxu0 0.0
      %4835 = vmatmul.mubr.f32.gmra.mxu0 %v4768
      %v4836 = vpop.f32.mrf.mxu0
      %v4837 = vadd.f32 0.0, %v4836
      %v4838 = vpop.f32.mrf.mxu0
      %v4839 = vadd.f32 0.0, %v4838
      %4840 = vdwg.mxu0
      %4841 = vmatprep.subr.mxu0 0.0
      %4842 = vmatpush1.msra.mxu0 0.0
      %4843 = vmatprep.subr.mxu0 0.0
      %4844 = vmatpush1.msra.mxu0 0.0
      %4845 = vmatprep.subr.mxu0 0.0
      %4846 = vmatpush1.msra.mxu0 0.0
      %4847 = vmatprep.subr.mxu0 0.0
      %4848 = vmatpush1.msra.mxu0 0.0
      %4849 = vmatprep.subr.mxu0 0.0
      %4850 = vmatpush1.msra.mxu0 0.0
      %4851 = vmatprep.subr.mxu0 0.0
      %4852 = vmatpush1.msra.mxu0 0.0
      %4853 = vmatprep.subr.mxu0 0.0
      %4854 = vmatpush1.msra.mxu0 0.0
      %4855 = vmatprep.subr.mxu0 0.0
      %4856 = vmatpush1.msra.mxu0 0.0
      %4857 = vmatprep.subr.mxu0 0.0
      %4858 = vmatpush1.msra.mxu0 0.0
      %4859 = vmatprep.subr.mxu0 0.0
      %4860 = vmatpush1.msra.mxu0 0.0
      %4861 = vmatprep.subr.mxu0 0.0
      %4862 = vmatpush1.msra.mxu0 0.0
      %4863 = vmatprep.subr.mxu0 0.0
      %4864 = vmatpush1.msra.mxu0 0.0
      %4865 = vmatprep.subr.mxu0 0.0
      %4866 = vmatpush1.msra.mxu0 0.0
      %4867 = vmatprep.subr.mxu0 0.0
      %4868 = vmatpush1.msra.mxu0 0.0
      %4869 = vmatprep.subr.mxu0 0.0
      %4870 = vmatpush1.msra.mxu0 0.0
      %4871 = vmatprep.subr.mxu0 0.0
      %4872 = vmatpush1.msra.mxu0 %v4755
      %4873 = vmatprep.subr.mxu0 0.0
      %4874 = vmatpush2.msra.mxu0 0.0
      %4875 = vmatprep.subr.mxu0 0.0
      %4876 = vmatpush2.msra.mxu0 0.0
      %4877 = vmatprep.subr.mxu0 0.0
      %4878 = vmatpush2.msra.mxu0 0.0
      %4879 = vmatprep.subr.mxu0 0.0
      %4880 = vmatpush2.msra.mxu0 0.0
      %4881 = vmatprep.subr.mxu0 0.0
      %4882 = vmatpush2.msra.mxu0 0.0
      %4883 = vmatprep.subr.mxu0 0.0
      %4884 = vmatpush2.msra.mxu0 0.0
      %4885 = vmatprep.subr.mxu0 0.0
      %4886 = vmatpush2.msra.mxu0 0.0
      %4887 = vmatprep.subr.mxu0 0.0
      %4888 = vmatpush2.msra.mxu0 0.0
      %4889 = vmatprep.subr.mxu0 0.0
      %4890 = vmatpush2.msra.mxu0 0.0
      %4891 = vmatprep.subr.mxu0 0.0
      %4892 = vmatpush2.msra.mxu0 0.0
      %4893 = vmatprep.subr.mxu0 0.0
      %4894 = vmatpush2.msra.mxu0 0.0
      %4895 = vmatprep.subr.mxu0 0.0
      %4896 = vmatpush2.msra.mxu0 0.0
      %4897 = vmatprep.subr.mxu0 0.0
      %4898 = vmatpush2.msra.mxu0 0.0
      %4899 = vmatprep.subr.mxu0 0.0
      %4900 = vmatpush2.msra.mxu0 0.0
      %4901 = vmatprep.subr.mxu0 0.0
      %4902 = vmatpush2.msra.mxu0 0.0
      %4903 = vmatprep.subr.mxu0 0.0
      %4904 = vmatpush2.msra.mxu0 0.0
      %4905 = vmatprep.mubr.f32.mxu0 0.0
      %4906 = vmatmul.mubr.f32.gmra.mxu0 %v4768
      %v4907 = vpop.f32.mrf.mxu0
      %v4908 = vadd.f32 0.0, %v4907
      %v4909 = vpop.f32.mrf.mxu0
      %4910 = vdwg.mxu0
      %4914 = vrot.lane.b32.xlu0 %v4758, 97
      %v4915 = vpop.permute.xlu0 %4914
      %4916 = vrot.lane.b32.xlu0 %v4763, 97
      %v4917 = vpop.permute.xlu0 %4916
      %4918 = vrot.lane.b32.xlu0 %v4764, 97
      %v4919 = vpop.permute.xlu0 %4918
      %v4920 = vsel %vm429, %v4915, %v4917
      %v4921 = vsel %vm429, %v4917, %v4919
      %v4925 = vsel %vm276, %v4752, 0
      %4927 = vmatprep.subr.mxu0 0.0
      %4928 = vmatpush1.msra.mxu0 0.0
      %4929 = vmatprep.subr.mxu0 0.0
      %4930 = vmatpush1.msra.mxu0 0.0
      %4931 = vmatprep.subr.mxu0 0.0
      %4932 = vmatpush1.msra.mxu0 0.0
      %4933 = vmatprep.subr.mxu0 0.0
      %4934 = vmatpush1.msra.mxu0 0.0
      %4935 = vmatprep.subr.mxu0 0.0
      %4936 = vmatpush1.msra.mxu0 0.0
      %4937 = vmatprep.subr.mxu0 0.0
      %4938 = vmatpush1.msra.mxu0 0.0
      %4939 = vmatprep.subr.mxu0 0.0
      %4940 = vmatpush1.msra.mxu0 0.0
      %4941 = vmatprep.subr.mxu0 0.0
      %4942 = vmatpush1.msra.mxu0 0.0
      %4943 = vmatprep.subr.mxu0 0.0
      %4944 = vmatpush1.msra.mxu0 0.0
      %4945 = vmatprep.subr.mxu0 0.0
      %4946 = vmatpush1.msra.mxu0 0.0
      %4947 = vmatprep.subr.mxu0 0.0
      %4948 = vmatpush1.msra.mxu0 0.0
      %4949 = vmatprep.subr.mxu0 0.0
      %4950 = vmatpush1.msra.mxu0 0.0
      %4951 = vmatprep.subr.mxu0 0.0
      %4952 = vmatpush1.msra.mxu0 0.0
      %4953 = vmatprep.subr.mxu0 0.0
      %4954 = vmatpush1.msra.mxu0 0.0
      %4955 = vmatprep.subr.mxu0 0.0
      %4956 = vmatpush1.msra.mxu0 0.0
      %4957 = vmatprep.subr.mxu0 %v4921
      %4958 = vmatpush1.msra.mxu0 %v4920
      %4959 = vmatprep.subr.mxu0 0.0
      %4960 = vmatpush2.msra.mxu0 0.0
      %4961 = vmatprep.subr.mxu0 0.0
      %4962 = vmatpush2.msra.mxu0 0.0
      %4963 = vmatprep.subr.mxu0 0.0
      %4964 = vmatpush2.msra.mxu0 0.0
      %4965 = vmatprep.subr.mxu0 0.0
      %4966 = vmatpush2.msra.mxu0 0.0
      %4967 = vmatprep.subr.mxu0 0.0
      %4968 = vmatpush2.msra.mxu0 0.0
      %4969 = vmatprep.subr.mxu0 0.0
      %4970 = vmatpush2.msra.mxu0 0.0
      %4971 = vmatprep.subr.mxu0 0.0
      %4972 = vmatpush2.msra.mxu0 0.0
      %4973 = vmatprep.subr.mxu0 0.0
      %4974 = vmatpush2.msra.mxu0 0.0
      %4975 = vmatprep.subr.mxu0 0.0
      %4976 = vmatpush2.msra.mxu0 0.0
      %4977 = vmatprep.subr.mxu0 0.0
      %4978 = vmatpush2.msra.mxu0 0.0
      %4979 = vmatprep.subr.mxu0 0.0
      %4980 = vmatpush2.msra.mxu0 0.0
      %4981 = vmatprep.subr.mxu0 0.0
      %4982 = vmatpush2.msra.mxu0 0.0
      %4983 = vmatprep.subr.mxu0 0.0
      %4984 = vmatpush2.msra.mxu0 0.0
      %4985 = vmatprep.subr.mxu0 0.0
      %4986 = vmatpush2.msra.mxu0 0.0
      %4987 = vmatprep.subr.mxu0 0.0
      %4988 = vmatpush2.msra.mxu0 0.0
      %4989 = vmatprep.subr.mxu0 0.0
      %4990 = vmatpush2.msra.mxu0 0.0
      %4991 = vmatprep.mubr.f32.mxu0 0.0
      %4992 = vmatmul.mubr.f32.gmra.mxu0 %v4925
      %v4993 = vpop.f32.mrf.mxu0
      %v4994 = vadd.f32 %v4837, %v4993
      %v4995 = vpop.f32.mrf.mxu0
      %v4996 = vadd.f32 %v4839, %v4995
      %4997 = vdwg.mxu0
      %4998 = vmatprep.subr.mxu0 0.0
      %4999 = vmatpush1.msra.mxu0 0.0
      %5000 = vmatprep.subr.mxu0 0.0
      %5001 = vmatpush1.msra.mxu0 0.0
      %5002 = vmatprep.subr.mxu0 0.0
      %5003 = vmatpush1.msra.mxu0 0.0
      %5004 = vmatprep.subr.mxu0 0.0
      %5005 = vmatpush1.msra.mxu0 0.0
      %5006 = vmatprep.subr.mxu0 0.0
      %5007 = vmatpush1.msra.mxu0 0.0
      %5008 = vmatprep.subr.mxu0 0.0
      %5009 = vmatpush1.msra.mxu0 0.0
      %5010 = vmatprep.subr.mxu0 0.0
      %5011 = vmatpush1.msra.mxu0 0.0
      %5012 = vmatprep.subr.mxu0 0.0
      %5013 = vmatpush1.msra.mxu0 0.0
      %5014 = vmatprep.subr.mxu0 0.0
      %5015 = vmatpush1.msra.mxu0 0.0
      %5016 = vmatprep.subr.mxu0 0.0
      %5017 = vmatpush1.msra.mxu0 0.0
      %5018 = vmatprep.subr.mxu0 0.0
      %5019 = vmatpush1.msra.mxu0 0.0
      %5020 = vmatprep.subr.mxu0 0.0
      %5021 = vmatpush1.msra.mxu0 0.0
      %5022 = vmatprep.subr.mxu0 0.0
      %5023 = vmatpush1.msra.mxu0 0.0
      %5024 = vmatprep.subr.mxu0 0.0
      %5025 = vmatpush1.msra.mxu0 0.0
      %5026 = vmatprep.subr.mxu0 0.0
      %5027 = vmatpush1.msra.mxu0 0.0
      %5028 = vmatprep.subr.mxu0 0.0
      %5029 = vmatpush1.msra.mxu0 %v4919
      %5030 = vmatprep.subr.mxu0 0.0
      %5031 = vmatpush2.msra.mxu0 0.0
      %5032 = vmatprep.subr.mxu0 0.0
      %5033 = vmatpush2.msra.mxu0 0.0
      %5034 = vmatprep.subr.mxu0 0.0
      %5035 = vmatpush2.msra.mxu0 0.0
      %5036 = vmatprep.subr.mxu0 0.0
      %5037 = vmatpush2.msra.mxu0 0.0
      %5038 = vmatprep.subr.mxu0 0.0
      %5039 = vmatpush2.msra.mxu0 0.0
      %5040 = vmatprep.subr.mxu0 0.0
      %5041 = vmatpush2.msra.mxu0 0.0
      %5042 = vmatprep.subr.mxu0 0.0
      %5043 = vmatpush2.msra.mxu0 0.0
      %5044 = vmatprep.subr.mxu0 0.0
      %5045 = vmatpush2.msra.mxu0 0.0
      %5046 = vmatprep.subr.mxu0 0.0
      %5047 = vmatpush2.msra.mxu0 0.0
      %5048 = vmatprep.subr.mxu0 0.0
      %5049 = vmatpush2.msra.mxu0 0.0
      %5050 = vmatprep.subr.mxu0 0.0
      %5051 = vmatpush2.msra.mxu0 0.0
      %5052 = vmatprep.subr.mxu0 0.0
      %5053 = vmatpush2.msra.mxu0 0.0
      %5054 = vmatprep.subr.mxu0 0.0
      %5055 = vmatpush2.msra.mxu0 0.0
      %5056 = vmatprep.subr.mxu0 0.0
      %5057 = vmatpush2.msra.mxu0 0.0
      %5058 = vmatprep.subr.mxu0 0.0
      %5059 = vmatpush2.msra.mxu0 0.0
      %5060 = vmatprep.subr.mxu0 0.0
      %5061 = vmatpush2.msra.mxu0 0.0
      %5062 = vmatprep.mubr.f32.mxu0 0.0
      %5063 = vmatmul.mubr.f32.gmra.mxu0 %v4925
      %v5064 = vpop.f32.mrf.mxu0
      %v5065 = vadd.f32 %v4908, %v5064
      %v5066 = vpop.f32.mrf.mxu0
      %5067 = vdwg.mxu0
      %5068 = vrot.lane.b32.xlu0 %v4752, 112
      %v5069 = vpop.permute.xlu0 %5068
      %5072 = vrot.lane.b32.xlu0 %v4753, 127
      %v5073 = vpop.permute.xlu0 %5072
      %5074 = vrot.lane.b32.xlu0 %v4754, 127
      %v5075 = vpop.permute.xlu0 %5074
      %5076 = vrot.lane.b32.xlu0 %v4758, 127
      %v5077 = vpop.permute.xlu0 %5076
      %v5078 = vsel %vm588, %v5073, %v5075
      %v5079 = vsel %vm588, %v5075, %v5077
      %v5083 = vsel %vm276, %v5069, 0
      %5085 = vmatprep.subr.mxu0 0.0
      %5086 = vmatpush1.msra.mxu0 0.0
      %5087 = vmatprep.subr.mxu0 0.0
      %5088 = vmatpush1.msra.mxu0 0.0
      %5089 = vmatprep.subr.mxu0 0.0
      %5090 = vmatpush1.msra.mxu0 0.0
      %5091 = vmatprep.subr.mxu0 0.0
      %5092 = vmatpush1.msra.mxu0 0.0
      %5093 = vmatprep.subr.mxu0 0.0
      %5094 = vmatpush1.msra.mxu0 0.0
      %5095 = vmatprep.subr.mxu0 0.0
      %5096 = vmatpush1.msra.mxu0 0.0
      %5097 = vmatprep.subr.mxu0 0.0
      %5098 = vmatpush1.msra.mxu0 0.0
      %5099 = vmatprep.subr.mxu0 0.0
      %5100 = vmatpush1.msra.mxu0 0.0
      %5101 = vmatprep.subr.mxu0 0.0
      %5102 = vmatpush1.msra.mxu0 0.0
      %5103 = vmatprep.subr.mxu0 0.0
      %5104 = vmatpush1.msra.mxu0 0.0
      %5105 = vmatprep.subr.mxu0 0.0
      %5106 = vmatpush1.msra.mxu0 0.0
      %5107 = vmatprep.subr.mxu0 0.0
      %5108 = vmatpush1.msra.mxu0 0.0
      %5109 = vmatprep.subr.mxu0 0.0
      %5110 = vmatpush1.msra.mxu0 0.0
      %5111 = vmatprep.subr.mxu0 0.0
      %5112 = vmatpush1.msra.mxu0 0.0
      %5113 = vmatprep.subr.mxu0 0.0
      %5114 = vmatpush1.msra.mxu0 0.0
      %5115 = vmatprep.subr.mxu0 %v5079
      %5116 = vmatpush1.msra.mxu0 %v5078
      %5117 = vmatprep.subr.mxu0 0.0
      %5118 = vmatpush2.msra.mxu0 0.0
      %5119 = vmatprep.subr.mxu0 0.0
      %5120 = vmatpush2.msra.mxu0 0.0
      %5121 = vmatprep.subr.mxu0 0.0
      %5122 = vmatpush2.msra.mxu0 0.0
      %5123 = vmatprep.subr.mxu0 0.0
      %5124 = vmatpush2.msra.mxu0 0.0
      %5125 = vmatprep.subr.mxu0 0.0
      %5126 = vmatpush2.msra.mxu0 0.0
      %5127 = vmatprep.subr.mxu0 0.0
      %5128 = vmatpush2.msra.mxu0 0.0
      %5129 = vmatprep.subr.mxu0 0.0
      %5130 = vmatpush2.msra.mxu0 0.0
      %5131 = vmatprep.subr.mxu0 0.0
      %5132 = vmatpush2.msra.mxu0 0.0
      %5133 = vmatprep.subr.mxu0 0.0
      %5134 = vmatpush2.msra.mxu0 0.0
      %5135 = vmatprep.subr.mxu0 0.0
      %5136 = vmatpush2.msra.mxu0 0.0
      %5137 = vmatprep.subr.mxu0 0.0
      %5138 = vmatpush2.msra.mxu0 0.0
      %5139 = vmatprep.subr.mxu0 0.0
      %5140 = vmatpush2.msra.mxu0 0.0
      %5141 = vmatprep.subr.mxu0 0.0
      %5142 = vmatpush2.msra.mxu0 0.0
      %5143 = vmatprep.subr.mxu0 0.0
      %5144 = vmatpush2.msra.mxu0 0.0
      %5145 = vmatprep.subr.mxu0 0.0
      %5146 = vmatpush2.msra.mxu0 0.0
      %5147 = vmatprep.subr.mxu0 0.0
      %5148 = vmatpush2.msra.mxu0 0.0
      %5149 = vmatprep.mubr.f32.mxu0 0.0
      %5150 = vmatmul.mubr.f32.gmra.mxu0 %v5083
      %v5151 = vpop.f32.mrf.mxu0
      %v5152 = vadd.f32 0.0, %v5151
      %v5153 = vpop.f32.mrf.mxu0
      %v5154 = vadd.f32 0.0, %v5153
      %5155 = vdwg.mxu0
      %5156 = vmatprep.subr.mxu0 0.0
      %5157 = vmatpush1.msra.mxu0 0.0
      %5158 = vmatprep.subr.mxu0 0.0
      %5159 = vmatpush1.msra.mxu0 0.0
      %5160 = vmatprep.subr.mxu0 0.0
      %5161 = vmatpush1.msra.mxu0 0.0
      %5162 = vmatprep.subr.mxu0 0.0
      %5163 = vmatpush1.msra.mxu0 0.0
      %5164 = vmatprep.subr.mxu0 0.0
      %5165 = vmatpush1.msra.mxu0 0.0
      %5166 = vmatprep.subr.mxu0 0.0
      %5167 = vmatpush1.msra.mxu0 0.0
      %5168 = vmatprep.subr.mxu0 0.0
      %5169 = vmatpush1.msra.mxu0 0.0
      %5170 = vmatprep.subr.mxu0 0.0
      %5171 = vmatpush1.msra.mxu0 0.0
      %5172 = vmatprep.subr.mxu0 0.0
      %5173 = vmatpush1.msra.mxu0 0.0
      %5174 = vmatprep.subr.mxu0 0.0
      %5175 = vmatpush1.msra.mxu0 0.0
      %5176 = vmatprep.subr.mxu0 0.0
      %5177 = vmatpush1.msra.mxu0 0.0
      %5178 = vmatprep.subr.mxu0 0.0
      %5179 = vmatpush1.msra.mxu0 0.0
      %5180 = vmatprep.subr.mxu0 0.0
      %5181 = vmatpush1.msra.mxu0 0.0
      %5182 = vmatprep.subr.mxu0 0.0
      %5183 = vmatpush1.msra.mxu0 0.0
      %5184 = vmatprep.subr.mxu0 0.0
      %5185 = vmatpush1.msra.mxu0 0.0
      %5186 = vmatprep.subr.mxu0 0.0
      %5187 = vmatpush1.msra.mxu0 %v5077
      %5188 = vmatprep.subr.mxu0 0.0
      %5189 = vmatpush2.msra.mxu0 0.0
      %5190 = vmatprep.subr.mxu0 0.0
      %5191 = vmatpush2.msra.mxu0 0.0
      %5192 = vmatprep.subr.mxu0 0.0
      %5193 = vmatpush2.msra.mxu0 0.0
      %5194 = vmatprep.subr.mxu0 0.0
      %5195 = vmatpush2.msra.mxu0 0.0
      %5196 = vmatprep.subr.mxu0 0.0
      %5197 = vmatpush2.msra.mxu0 0.0
      %5198 = vmatprep.subr.mxu0 0.0
      %5199 = vmatpush2.msra.mxu0 0.0
      %5200 = vmatprep.subr.mxu0 0.0
      %5201 = vmatpush2.msra.mxu0 0.0
      %5202 = vmatprep.subr.mxu0 0.0
      %5203 = vmatpush2.msra.mxu0 0.0
      %5204 = vmatprep.subr.mxu0 0.0
      %5205 = vmatpush2.msra.mxu0 0.0
      %5206 = vmatprep.subr.mxu0 0.0
      %5207 = vmatpush2.msra.mxu0 0.0
      %5208 = vmatprep.subr.mxu0 0.0
      %5209 = vmatpush2.msra.mxu0 0.0
      %5210 = vmatprep.subr.mxu0 0.0
      %5211 = vmatpush2.msra.mxu0 0.0
      %5212 = vmatprep.subr.mxu0 0.0
      %5213 = vmatpush2.msra.mxu0 0.0
      %5214 = vmatprep.subr.mxu0 0.0
      %5215 = vmatpush2.msra.mxu0 0.0
      %5216 = vmatprep.subr.mxu0 0.0
      %5217 = vmatpush2.msra.mxu0 0.0
      %5218 = vmatprep.subr.mxu0 0.0
      %5219 = vmatpush2.msra.mxu0 0.0
      %5220 = vmatprep.mubr.f32.mxu0 0.0
      %5221 = vmatmul.mubr.f32.gmra.mxu0 %v5083
      %v5222 = vpop.f32.mrf.mxu0
      %v5223 = vadd.f32 0.0, %v5222
      %v5224 = vpop.f32.mrf.mxu0
      %5225 = vdwg.mxu0
      %v5226 = vadd.f32 %v4994, %v5152
      %v5227 = vadd.f32 %v4996, %v5154
      %v5228 = vadd.f32 %v5065, %v5223
      %5230 = vrot.lane.b32.xlu0 %v4753, 110
      %v5231 = vpop.permute.xlu0 %5230
      %5232 = vrot.lane.b32.xlu0 %v4754, 110
      %v5233 = vpop.permute.xlu0 %5232
      %5234 = vrot.lane.b32.xlu0 %v4755, 110
      %v5235 = vpop.permute.xlu0 %5234
      %v5236 = vsel %vm747, %v5231, %v5233
      %v5237 = vsel %vm747, %v5233, %v5235
      %5241 = vrot.lane.b32.xlu0 %v5236, 32
      %v5242 = vpop.permute.xlu0 %5241
      %v5243 = vsel %vm263, %v5242, %v5235
      %5244 = vrot.lane.b32.xlu0 %v5237, 32
      %v5245 = vpop.permute.xlu0 %5244
      %5246 = vrot.lane.b32.xlu0 %v5243, 32
      %v5247 = vpop.permute.xlu0 %5246
      %v5248 = vsel %vm263, %v5245, %v5242
      %v5249 = vsel %vm263, %v5247, %v5245
      %5250 = vrot.lane.b32.xlu0 %v4752, 104
      %v5251 = vpop.permute.xlu0 %5250
      %5255 = vrot.lane.b32.xlu0 %v5243, 97
      %v5256 = vpop.permute.xlu0 %5255
      %5257 = vrot.lane.b32.xlu0 %v5248, 97
      %v5258 = vpop.permute.xlu0 %5257
      %5259 = vrot.lane.b32.xlu0 %v5249, 97
      %v5260 = vpop.permute.xlu0 %5259
      %v5261 = vsel %vm429, %v5256, %v5258
      %v5262 = vsel %vm429, %v5258, %v5260
      %v5266 = vsel %vm276, %v5251, 0
      %5268 = vmatprep.subr.mxu0 0.0
      %5269 = vmatpush1.msra.mxu0 0.0
      %5270 = vmatprep.subr.mxu0 0.0
      %5271 = vmatpush1.msra.mxu0 0.0
      %5272 = vmatprep.subr.mxu0 0.0
      %5273 = vmatpush1.msra.mxu0 0.0
      %5274 = vmatprep.subr.mxu0 0.0
      %5275 = vmatpush1.msra.mxu0 0.0
      %5276 = vmatprep.subr.mxu0 0.0
      %5277 = vmatpush1.msra.mxu0 0.0
      %5278 = vmatprep.subr.mxu0 0.0
      %5279 = vmatpush1.msra.mxu0 0.0
      %5280 = vmatprep.subr.mxu0 0.0
      %5281 = vmatpush1.msra.mxu0 0.0
      %5282 = vmatprep.subr.mxu0 0.0
      %5283 = vmatpush1.msra.mxu0 0.0
      %5284 = vmatprep.subr.mxu0 0.0
      %5285 = vmatpush1.msra.mxu0 0.0
      %5286 = vmatprep.subr.mxu0 0.0
      %5287 = vmatpush1.msra.mxu0 0.0
      %5288 = vmatprep.subr.mxu0 0.0
      %5289 = vmatpush1.msra.mxu0 0.0
      %5290 = vmatprep.subr.mxu0 0.0
      %5291 = vmatpush1.msra.mxu0 0.0
      %5292 = vmatprep.subr.mxu0 0.0
      %5293 = vmatpush1.msra.mxu0 0.0
      %5294 = vmatprep.subr.mxu0 0.0
      %5295 = vmatpush1.msra.mxu0 0.0
      %5296 = vmatprep.subr.mxu0 0.0
      %5297 = vmatpush1.msra.mxu0 0.0
      %5298 = vmatprep.subr.mxu0 %v5262
      %5299 = vmatpush1.msra.mxu0 %v5261
      %5300 = vmatprep.subr.mxu0 0.0
      %5301 = vmatpush2.msra.mxu0 0.0
      %5302 = vmatprep.subr.mxu0 0.0
      %5303 = vmatpush2.msra.mxu0 0.0
      %5304 = vmatprep.subr.mxu0 0.0
      %5305 = vmatpush2.msra.mxu0 0.0
      %5306 = vmatprep.subr.mxu0 0.0
      %5307 = vmatpush2.msra.mxu0 0.0
      %5308 = vmatprep.subr.mxu0 0.0
      %5309 = vmatpush2.msra.mxu0 0.0
      %5310 = vmatprep.subr.mxu0 0.0
      %5311 = vmatpush2.msra.mxu0 0.0
      %5312 = vmatprep.subr.mxu0 0.0
      %5313 = vmatpush2.msra.mxu0 0.0
      %5314 = vmatprep.subr.mxu0 0.0
      %5315 = vmatpush2.msra.mxu0 0.0
      %5316 = vmatprep.subr.mxu0 0.0
      %5317 = vmatpush2.msra.mxu0 0.0
      %5318 = vmatprep.subr.mxu0 0.0
      %5319 = vmatpush2.msra.mxu0 0.0
      %5320 = vmatprep.subr.mxu0 0.0
      %5321 = vmatpush2.msra.mxu0 0.0
      %5322 = vmatprep.subr.mxu0 0.0
      %5323 = vmatpush2.msra.mxu0 0.0
      %5324 = vmatprep.subr.mxu0 0.0
      %5325 = vmatpush2.msra.mxu0 0.0
      %5326 = vmatprep.subr.mxu0 0.0
      %5327 = vmatpush2.msra.mxu0 0.0
      %5328 = vmatprep.subr.mxu0 0.0
      %5329 = vmatpush2.msra.mxu0 0.0
      %5330 = vmatprep.subr.mxu0 0.0
      %5331 = vmatpush2.msra.mxu0 0.0
      %5332 = vmatprep.mubr.f32.mxu0 0.0
      %5333 = vmatmul.mubr.f32.gmra.mxu0 %v5266
      %v5334 = vpop.f32.mrf.mxu0
      %v5335 = vadd.f32 0.0, %v5334
      %v5336 = vpop.f32.mrf.mxu0
      %v5337 = vadd.f32 0.0, %v5336
      %5338 = vdwg.mxu0
      %5339 = vmatprep.subr.mxu0 0.0
      %5340 = vmatpush1.msra.mxu0 0.0
      %5341 = vmatprep.subr.mxu0 0.0
      %5342 = vmatpush1.msra.mxu0 0.0
      %5343 = vmatprep.subr.mxu0 0.0
      %5344 = vmatpush1.msra.mxu0 0.0
      %5345 = vmatprep.subr.mxu0 0.0
      %5346 = vmatpush1.msra.mxu0 0.0
      %5347 = vmatprep.subr.mxu0 0.0
      %5348 = vmatpush1.msra.mxu0 0.0
      %5349 = vmatprep.subr.mxu0 0.0
      %5350 = vmatpush1.msra.mxu0 0.0
      %5351 = vmatprep.subr.mxu0 0.0
      %5352 = vmatpush1.msra.mxu0 0.0
      %5353 = vmatprep.subr.mxu0 0.0
      %5354 = vmatpush1.msra.mxu0 0.0
      %5355 = vmatprep.subr.mxu0 0.0
      %5356 = vmatpush1.msra.mxu0 0.0
      %5357 = vmatprep.subr.mxu0 0.0
      %5358 = vmatpush1.msra.mxu0 0.0
      %5359 = vmatprep.subr.mxu0 0.0
      %5360 = vmatpush1.msra.mxu0 0.0
      %5361 = vmatprep.subr.mxu0 0.0
      %5362 = vmatpush1.msra.mxu0 0.0
      %5363 = vmatprep.subr.mxu0 0.0
      %5364 = vmatpush1.msra.mxu0 0.0
      %5365 = vmatprep.subr.mxu0 0.0
      %5366 = vmatpush1.msra.mxu0 0.0
      %5367 = vmatprep.subr.mxu0 0.0
      %5368 = vmatpush1.msra.mxu0 0.0
      %5369 = vmatprep.subr.mxu0 0.0
      %5370 = vmatpush1.msra.mxu0 %v5260
      %5371 = vmatprep.subr.mxu0 0.0
      %5372 = vmatpush2.msra.mxu0 0.0
      %5373 = vmatprep.subr.mxu0 0.0
      %5374 = vmatpush2.msra.mxu0 0.0
      %5375 = vmatprep.subr.mxu0 0.0
      %5376 = vmatpush2.msra.mxu0 0.0
      %5377 = vmatprep.subr.mxu0 0.0
      %5378 = vmatpush2.msra.mxu0 0.0
      %5379 = vmatprep.subr.mxu0 0.0
      %5380 = vmatpush2.msra.mxu0 0.0
      %5381 = vmatprep.subr.mxu0 0.0
      %5382 = vmatpush2.msra.mxu0 0.0
      %5383 = vmatprep.subr.mxu0 0.0
      %5384 = vmatpush2.msra.mxu0 0.0
      %5385 = vmatprep.subr.mxu0 0.0
      %5386 = vmatpush2.msra.mxu0 0.0
      %5387 = vmatprep.subr.mxu0 0.0
      %5388 = vmatpush2.msra.mxu0 0.0
      %5389 = vmatprep.subr.mxu0 0.0
      %5390 = vmatpush2.msra.mxu0 0.0
      %5391 = vmatprep.subr.mxu0 0.0
      %5392 = vmatpush2.msra.mxu0 0.0
      %5393 = vmatprep.subr.mxu0 0.0
      %5394 = vmatpush2.msra.mxu0 0.0
      %5395 = vmatprep.subr.mxu0 0.0
      %5396 = vmatpush2.msra.mxu0 0.0
      %5397 = vmatprep.subr.mxu0 0.0
      %5398 = vmatpush2.msra.mxu0 0.0
      %5399 = vmatprep.subr.mxu0 0.0
      %5400 = vmatpush2.msra.mxu0 0.0
      %5401 = vmatprep.subr.mxu0 0.0
      %5402 = vmatpush2.msra.mxu0 0.0
      %5403 = vmatprep.mubr.f32.mxu0 0.0
      %5404 = vmatmul.mubr.f32.gmra.mxu0 %v5266
      %v5405 = vpop.f32.mrf.mxu0
      %v5406 = vadd.f32 0.0, %v5405
      %v5407 = vpop.f32.mrf.mxu0
      %5408 = vdwg.mxu0
      %v5409 = vadd.f32 %v5226, %v5335
      %v5410 = vadd.f32 %v5227, %v5337
      %v5411 = vadd.f32 %v5228, %v5406
      %5412 = vrot.lane.b32.xlu0 %v4752, 96
      %v5413 = vpop.permute.xlu0 %5412
      %v5414 = vsel %vm276, %v5413, 0
      %5416 = vmatprep.subr.mxu0 0.0
      %5417 = vmatpush1.msra.mxu0 0.0
      %5418 = vmatprep.subr.mxu0 0.0
      %5419 = vmatpush1.msra.mxu0 0.0
      %5420 = vmatprep.subr.mxu0 0.0
      %5421 = vmatpush1.msra.mxu0 0.0
      %5422 = vmatprep.subr.mxu0 0.0
      %5423 = vmatpush1.msra.mxu0 0.0
      %5424 = vmatprep.subr.mxu0 0.0
      %5425 = vmatpush1.msra.mxu0 0.0
      %5426 = vmatprep.subr.mxu0 0.0
      %5427 = vmatpush1.msra.mxu0 0.0
      %5428 = vmatprep.subr.mxu0 0.0
      %5429 = vmatpush1.msra.mxu0 0.0
      %5430 = vmatprep.subr.mxu0 0.0
      %5431 = vmatpush1.msra.mxu0 0.0
      %5432 = vmatprep.subr.mxu0 0.0
      %5433 = vmatpush1.msra.mxu0 0.0
      %5434 = vmatprep.subr.mxu0 0.0
      %5435 = vmatpush1.msra.mxu0 0.0
      %5436 = vmatprep.subr.mxu0 0.0
      %5437 = vmatpush1.msra.mxu0 0.0
      %5438 = vmatprep.subr.mxu0 0.0
      %5439 = vmatpush1.msra.mxu0 0.0
      %5440 = vmatprep.subr.mxu0 0.0
      %5441 = vmatpush1.msra.mxu0 0.0
      %5442 = vmatprep.subr.mxu0 0.0
      %5443 = vmatpush1.msra.mxu0 0.0
      %5444 = vmatprep.subr.mxu0 0.0
      %5445 = vmatpush1.msra.mxu0 0.0
      %5446 = vmatprep.subr.mxu0 %v5237
      %5447 = vmatpush1.msra.mxu0 %v5236
      %5448 = vmatprep.subr.mxu0 0.0
      %5449 = vmatpush2.msra.mxu0 0.0
      %5450 = vmatprep.subr.mxu0 0.0
      %5451 = vmatpush2.msra.mxu0 0.0
      %5452 = vmatprep.subr.mxu0 0.0
      %5453 = vmatpush2.msra.mxu0 0.0
      %5454 = vmatprep.subr.mxu0 0.0
      %5455 = vmatpush2.msra.mxu0 0.0
      %5456 = vmatprep.subr.mxu0 0.0
      %5457 = vmatpush2.msra.mxu0 0.0
      %5458 = vmatprep.subr.mxu0 0.0
      %5459 = vmatpush2.msra.mxu0 0.0
      %5460 = vmatprep.subr.mxu0 0.0
      %5461 = vmatpush2.msra.mxu0 0.0
      %5462 = vmatprep.subr.mxu0 0.0
      %5463 = vmatpush2.msra.mxu0 0.0
      %5464 = vmatprep.subr.mxu0 0.0
      %5465 = vmatpush2.msra.mxu0 0.0
      %5466 = vmatprep.subr.mxu0 0.0
      %5467 = vmatpush2.msra.mxu0 0.0
      %5468 = vmatprep.subr.mxu0 0.0
      %5469 = vmatpush2.msra.mxu0 0.0
      %5470 = vmatprep.subr.mxu0 0.0
      %5471 = vmatpush2.msra.mxu0 0.0
      %5472 = vmatprep.subr.mxu0 0.0
      %5473 = vmatpush2.msra.mxu0 0.0
      %5474 = vmatprep.subr.mxu0 0.0
      %5475 = vmatpush2.msra.mxu0 0.0
      %5476 = vmatprep.subr.mxu0 0.0
      %5477 = vmatpush2.msra.mxu0 0.0
      %5478 = vmatprep.subr.mxu0 0.0
      %5479 = vmatpush2.msra.mxu0 0.0
      %5480 = vmatprep.mubr.f32.mxu0 0.0
      %5481 = vmatmul.mubr.f32.gmra.mxu0 %v5414
      %v5482 = vpop.f32.mrf.mxu0
      %v5483 = vadd.f32 0.0, %v5482
      %v5484 = vpop.f32.mrf.mxu0
      %v5485 = vadd.f32 0.0, %v5484
      %5486 = vdwg.mxu0
      %5487 = vmatprep.subr.mxu0 0.0
      %5488 = vmatpush1.msra.mxu0 0.0
      %5489 = vmatprep.subr.mxu0 0.0
      %5490 = vmatpush1.msra.mxu0 0.0
      %5491 = vmatprep.subr.mxu0 0.0
      %5492 = vmatpush1.msra.mxu0 0.0
      %5493 = vmatprep.subr.mxu0 0.0
      %5494 = vmatpush1.msra.mxu0 0.0
      %5495 = vmatprep.subr.mxu0 0.0
      %5496 = vmatpush1.msra.mxu0 0.0
      %5497 = vmatprep.subr.mxu0 0.0
      %5498 = vmatpush1.msra.mxu0 0.0
      %5499 = vmatprep.subr.mxu0 0.0
      %5500 = vmatpush1.msra.mxu0 0.0
      %5501 = vmatprep.subr.mxu0 0.0
      %5502 = vmatpush1.msra.mxu0 0.0
      %5503 = vmatprep.subr.mxu0 0.0
      %5504 = vmatpush1.msra.mxu0 0.0
      %5505 = vmatprep.subr.mxu0 0.0
      %5506 = vmatpush1.msra.mxu0 0.0
      %5507 = vmatprep.subr.mxu0 0.0
      %5508 = vmatpush1.msra.mxu0 0.0
      %5509 = vmatprep.subr.mxu0 0.0
      %5510 = vmatpush1.msra.mxu0 0.0
      %5511 = vmatprep.subr.mxu0 0.0
      %5512 = vmatpush1.msra.mxu0 0.0
      %5513 = vmatprep.subr.mxu0 0.0
      %5514 = vmatpush1.msra.mxu0 0.0
      %5515 = vmatprep.subr.mxu0 0.0
      %5516 = vmatpush1.msra.mxu0 0.0
      %5517 = vmatprep.subr.mxu0 0.0
      %5518 = vmatpush1.msra.mxu0 %v5235
      %5519 = vmatprep.subr.mxu0 0.0
      %5520 = vmatpush2.msra.mxu0 0.0
      %5521 = vmatprep.subr.mxu0 0.0
      %5522 = vmatpush2.msra.mxu0 0.0
      %5523 = vmatprep.subr.mxu0 0.0
      %5524 = vmatpush2.msra.mxu0 0.0
      %5525 = vmatprep.subr.mxu0 0.0
      %5526 = vmatpush2.msra.mxu0 0.0
      %5527 = vmatprep.subr.mxu0 0.0
      %5528 = vmatpush2.msra.mxu0 0.0
      %5529 = vmatprep.subr.mxu0 0.0
      %5530 = vmatpush2.msra.mxu0 0.0
      %5531 = vmatprep.subr.mxu0 0.0
      %5532 = vmatpush2.msra.mxu0 0.0
      %5533 = vmatprep.subr.mxu0 0.0
      %5534 = vmatpush2.msra.mxu0 0.0
      %5535 = vmatprep.subr.mxu0 0.0
      %5536 = vmatpush2.msra.mxu0 0.0
      %5537 = vmatprep.subr.mxu0 0.0
      %5538 = vmatpush2.msra.mxu0 0.0
      %5539 = vmatprep.subr.mxu0 0.0
      %5540 = vmatpush2.msra.mxu0 0.0
      %5541 = vmatprep.subr.mxu0 0.0
      %5542 = vmatpush2.msra.mxu0 0.0
      %5543 = vmatprep.subr.mxu0 0.0
      %5544 = vmatpush2.msra.mxu0 0.0
      %5545 = vmatprep.subr.mxu0 0.0
      %5546 = vmatpush2.msra.mxu0 0.0
      %5547 = vmatprep.subr.mxu0 0.0
      %5548 = vmatpush2.msra.mxu0 0.0
      %5549 = vmatprep.subr.mxu0 0.0
      %5550 = vmatpush2.msra.mxu0 0.0
      %5551 = vmatprep.mubr.f32.mxu0 0.0
      %5552 = vmatmul.mubr.f32.gmra.mxu0 %v5414
      %v5553 = vpop.f32.mrf.mxu0
      %v5554 = vadd.f32 0.0, %v5553
      %v5555 = vpop.f32.mrf.mxu0
      %5556 = vdwg.mxu0
      %v5557 = vadd.f32 %v5409, %v5483
      %v5558 = vadd.f32 %v5410, %v5485
      %v5559 = vadd.f32 %v5411, %v5554
      %5560 = vrot.lane.b32.xlu0 %v4752, 88
      %v5561 = vpop.permute.xlu0 %5560
      %5562 = vrot.lane.b32.xlu0 %v5236, 127
      %v5563 = vpop.permute.xlu0 %5562
      %5564 = vrot.lane.b32.xlu0 %v5237, 127
      %v5565 = vpop.permute.xlu0 %5564
      %5566 = vrot.lane.b32.xlu0 %v5243, 127
      %v5567 = vpop.permute.xlu0 %5566
      %v5568 = vsel %vm588, %v5563, %v5565
      %v5569 = vsel %vm588, %v5565, %v5567
      %v5573 = vsel %vm276, %v5561, 0
      %5575 = vmatprep.subr.mxu0 0.0
      %5576 = vmatpush1.msra.mxu0 0.0
      %5577 = vmatprep.subr.mxu0 0.0
      %5578 = vmatpush1.msra.mxu0 0.0
      %5579 = vmatprep.subr.mxu0 0.0
      %5580 = vmatpush1.msra.mxu0 0.0
      %5581 = vmatprep.subr.mxu0 0.0
      %5582 = vmatpush1.msra.mxu0 0.0
      %5583 = vmatprep.subr.mxu0 0.0
      %5584 = vmatpush1.msra.mxu0 0.0
      %5585 = vmatprep.subr.mxu0 0.0
      %5586 = vmatpush1.msra.mxu0 0.0
      %5587 = vmatprep.subr.mxu0 0.0
      %5588 = vmatpush1.msra.mxu0 0.0
      %5589 = vmatprep.subr.mxu0 0.0
      %5590 = vmatpush1.msra.mxu0 0.0
      %5591 = vmatprep.subr.mxu0 0.0
      %5592 = vmatpush1.msra.mxu0 0.0
      %5593 = vmatprep.subr.mxu0 0.0
      %5594 = vmatpush1.msra.mxu0 0.0
      %5595 = vmatprep.subr.mxu0 0.0
      %5596 = vmatpush1.msra.mxu0 0.0
      %5597 = vmatprep.subr.mxu0 0.0
      %5598 = vmatpush1.msra.mxu0 0.0
      %5599 = vmatprep.subr.mxu0 0.0
      %5600 = vmatpush1.msra.mxu0 0.0
      %5601 = vmatprep.subr.mxu0 0.0
      %5602 = vmatpush1.msra.mxu0 0.0
      %5603 = vmatprep.subr.mxu0 0.0
      %5604 = vmatpush1.msra.mxu0 0.0
      %5605 = vmatprep.subr.mxu0 %v5569
      %5606 = vmatpush1.msra.mxu0 %v5568
      %5607 = vmatprep.subr.mxu0 0.0
      %5608 = vmatpush2.msra.mxu0 0.0
      %5609 = vmatprep.subr.mxu0 0.0
      %5610 = vmatpush2.msra.mxu0 0.0
      %5611 = vmatprep.subr.mxu0 0.0
      %5612 = vmatpush2.msra.mxu0 0.0
      %5613 = vmatprep.subr.mxu0 0.0
      %5614 = vmatpush2.msra.mxu0 0.0
      %5615 = vmatprep.subr.mxu0 0.0
      %5616 = vmatpush2.msra.mxu0 0.0
      %5617 = vmatprep.subr.mxu0 0.0
      %5618 = vmatpush2.msra.mxu0 0.0
      %5619 = vmatprep.subr.mxu0 0.0
      %5620 = vmatpush2.msra.mxu0 0.0
      %5621 = vmatprep.subr.mxu0 0.0
      %5622 = vmatpush2.msra.mxu0 0.0
      %5623 = vmatprep.subr.mxu0 0.0
      %5624 = vmatpush2.msra.mxu0 0.0
      %5625 = vmatprep.subr.mxu0 0.0
      %5626 = vmatpush2.msra.mxu0 0.0
      %5627 = vmatprep.subr.mxu0 0.0
      %5628 = vmatpush2.msra.mxu0 0.0
      %5629 = vmatprep.subr.mxu0 0.0
      %5630 = vmatpush2.msra.mxu0 0.0
      %5631 = vmatprep.subr.mxu0 0.0
      %5632 = vmatpush2.msra.mxu0 0.0
      %5633 = vmatprep.subr.mxu0 0.0
      %5634 = vmatpush2.msra.mxu0 0.0
      %5635 = vmatprep.subr.mxu0 0.0
      %5636 = vmatpush2.msra.mxu0 0.0
      %5637 = vmatprep.subr.mxu0 0.0
      %5638 = vmatpush2.msra.mxu0 0.0
      %5639 = vmatprep.mubr.f32.mxu0 0.0
      %5640 = vmatmul.mubr.f32.gmra.mxu0 %v5573
      %v5641 = vpop.f32.mrf.mxu0
      %v5642 = vadd.f32 0.0, %v5641
      %v5643 = vpop.f32.mrf.mxu0
      %v5644 = vadd.f32 0.0, %v5643
      %5645 = vdwg.mxu0
      %5646 = vmatprep.subr.mxu0 0.0
      %5647 = vmatpush1.msra.mxu0 0.0
      %5648 = vmatprep.subr.mxu0 0.0
      %5649 = vmatpush1.msra.mxu0 0.0
      %5650 = vmatprep.subr.mxu0 0.0
      %5651 = vmatpush1.msra.mxu0 0.0
      %5652 = vmatprep.subr.mxu0 0.0
      %5653 = vmatpush1.msra.mxu0 0.0
      %5654 = vmatprep.subr.mxu0 0.0
      %5655 = vmatpush1.msra.mxu0 0.0
      %5656 = vmatprep.subr.mxu0 0.0
      %5657 = vmatpush1.msra.mxu0 0.0
      %5658 = vmatprep.subr.mxu0 0.0
      %5659 = vmatpush1.msra.mxu0 0.0
      %5660 = vmatprep.subr.mxu0 0.0
      %5661 = vmatpush1.msra.mxu0 0.0
      %5662 = vmatprep.subr.mxu0 0.0
      %5663 = vmatpush1.msra.mxu0 0.0
      %5664 = vmatprep.subr.mxu0 0.0
      %5665 = vmatpush1.msra.mxu0 0.0
      %5666 = vmatprep.subr.mxu0 0.0
      %5667 = vmatpush1.msra.mxu0 0.0
      %5668 = vmatprep.subr.mxu0 0.0
      %5669 = vmatpush1.msra.mxu0 0.0
      %5670 = vmatprep.subr.mxu0 0.0
      %5671 = vmatpush1.msra.mxu0 0.0
      %5672 = vmatprep.subr.mxu0 0.0
      %5673 = vmatpush1.msra.mxu0 0.0
      %5674 = vmatprep.subr.mxu0 0.0
      %5675 = vmatpush1.msra.mxu0 0.0
      %5676 = vmatprep.subr.mxu0 0.0
      %5677 = vmatpush1.msra.mxu0 %v5567
      %5678 = vmatprep.subr.mxu0 0.0
      %5679 = vmatpush2.msra.mxu0 0.0
      %5680 = vmatprep.subr.mxu0 0.0
      %5681 = vmatpush2.msra.mxu0 0.0
      %5682 = vmatprep.subr.mxu0 0.0
      %5683 = vmatpush2.msra.mxu0 0.0
      %5684 = vmatprep.subr.mxu0 0.0
      %5685 = vmatpush2.msra.mxu0 0.0
      %5686 = vmatprep.subr.mxu0 0.0
      %5687 = vmatpush2.msra.mxu0 0.0
      %5688 = vmatprep.subr.mxu0 0.0
      %5689 = vmatpush2.msra.mxu0 0.0
      %5690 = vmatprep.subr.mxu0 0.0
      %5691 = vmatpush2.msra.mxu0 0.0
      %5692 = vmatprep.subr.mxu0 0.0
      %5693 = vmatpush2.msra.mxu0 0.0
      %5694 = vmatprep.subr.mxu0 0.0
      %5695 = vmatpush2.msra.mxu0 0.0
      %5696 = vmatprep.subr.mxu0 0.0
      %5697 = vmatpush2.msra.mxu0 0.0
      %5698 = vmatprep.subr.mxu0 0.0
      %5699 = vmatpush2.msra.mxu0 0.0
      %5700 = vmatprep.subr.mxu0 0.0
      %5701 = vmatpush2.msra.mxu0 0.0
      %5702 = vmatprep.subr.mxu0 0.0
      %5703 = vmatpush2.msra.mxu0 0.0
      %5704 = vmatprep.subr.mxu0 0.0
      %5705 = vmatpush2.msra.mxu0 0.0
      %5706 = vmatprep.subr.mxu0 0.0
      %5707 = vmatpush2.msra.mxu0 0.0
      %5708 = vmatprep.subr.mxu0 0.0
      %5709 = vmatpush2.msra.mxu0 0.0
      %5710 = vmatprep.mubr.f32.mxu0 0.0
      %5711 = vmatmul.mubr.f32.gmra.mxu0 %v5573
      %v5712 = vpop.f32.mrf.mxu0
      %v5713 = vadd.f32 0.0, %v5712
      %v5714 = vpop.f32.mrf.mxu0
      %5715 = vdwg.mxu0
      %v5716 = vadd.f32 %v5557, %v5642
      %v5717 = vadd.f32 %v5558, %v5644
      %v5718 = vadd.f32 %v5559, %v5713
      %5719 = vrot.lane.b32.xlu0 %v4753, 92
      %v5720 = vpop.permute.xlu0 %5719
      %5721 = vrot.lane.b32.xlu0 %v4754, 92
      %v5722 = vpop.permute.xlu0 %5721
      %5723 = vrot.lane.b32.xlu0 %v4755, 92
      %v5724 = vpop.permute.xlu0 %5723
      %v5725 = vsel %vm1237, %v5720, %v5722
      %v5726 = vsel %vm1237, %v5722, %v5724
      %5730 = vrot.lane.b32.xlu0 %v5725, 32
      %v5731 = vpop.permute.xlu0 %5730
      %v5732 = vsel %vm263, %v5731, %v5724
      %5733 = vrot.lane.b32.xlu0 %v5726, 32
      %v5734 = vpop.permute.xlu0 %5733
      %5735 = vrot.lane.b32.xlu0 %v5732, 32
      %v5736 = vpop.permute.xlu0 %5735
      %v5737 = vsel %vm263, %v5734, %v5731
      %v5738 = vsel %vm263, %v5736, %v5734
      %5739 = vrot.lane.b32.xlu0 %v4752, 80
      %v5740 = vpop.permute.xlu0 %5739
      %5744 = vrot.lane.b32.xlu0 %v5732, 97
      %v5745 = vpop.permute.xlu0 %5744
      %5746 = vrot.lane.b32.xlu0 %v5737, 97
      %v5747 = vpop.permute.xlu0 %5746
      %5748 = vrot.lane.b32.xlu0 %v5738, 97
      %v5749 = vpop.permute.xlu0 %5748
      %v5750 = vsel %vm429, %v5745, %v5747
      %v5751 = vsel %vm429, %v5747, %v5749
      %v5755 = vsel %vm276, %v5740, 0
      %5757 = vmatprep.subr.mxu0 0.0
      %5758 = vmatpush1.msra.mxu0 0.0
      %5759 = vmatprep.subr.mxu0 0.0
      %5760 = vmatpush1.msra.mxu0 0.0
      %5761 = vmatprep.subr.mxu0 0.0
      %5762 = vmatpush1.msra.mxu0 0.0
      %5763 = vmatprep.subr.mxu0 0.0
      %5764 = vmatpush1.msra.mxu0 0.0
      %5765 = vmatprep.subr.mxu0 0.0
      %5766 = vmatpush1.msra.mxu0 0.0
      %5767 = vmatprep.subr.mxu0 0.0
      %5768 = vmatpush1.msra.mxu0 0.0
      %5769 = vmatprep.subr.mxu0 0.0
      %5770 = vmatpush1.msra.mxu0 0.0
      %5771 = vmatprep.subr.mxu0 0.0
      %5772 = vmatpush1.msra.mxu0 0.0
      %5773 = vmatprep.subr.mxu0 0.0
      %5774 = vmatpush1.msra.mxu0 0.0
      %5775 = vmatprep.subr.mxu0 0.0
      %5776 = vmatpush1.msra.mxu0 0.0
      %5777 = vmatprep.subr.mxu0 0.0
      %5778 = vmatpush1.msra.mxu0 0.0
      %5779 = vmatprep.subr.mxu0 0.0
      %5780 = vmatpush1.msra.mxu0 0.0
      %5781 = vmatprep.subr.mxu0 0.0
      %5782 = vmatpush1.msra.mxu0 0.0
      %5783 = vmatprep.subr.mxu0 0.0
      %5784 = vmatpush1.msra.mxu0 0.0
      %5785 = vmatprep.subr.mxu0 0.0
      %5786 = vmatpush1.msra.mxu0 0.0
      %5787 = vmatprep.subr.mxu0 %v5751
      %5788 = vmatpush1.msra.mxu0 %v5750
      %5789 = vmatprep.subr.mxu0 0.0
      %5790 = vmatpush2.msra.mxu0 0.0
      %5791 = vmatprep.subr.mxu0 0.0
      %5792 = vmatpush2.msra.mxu0 0.0
      %5793 = vmatprep.subr.mxu0 0.0
      %5794 = vmatpush2.msra.mxu0 0.0
      %5795 = vmatprep.subr.mxu0 0.0
      %5796 = vmatpush2.msra.mxu0 0.0
      %5797 = vmatprep.subr.mxu0 0.0
      %5798 = vmatpush2.msra.mxu0 0.0
      %5799 = vmatprep.subr.mxu0 0.0
      %5800 = vmatpush2.msra.mxu0 0.0
      %5801 = vmatprep.subr.mxu0 0.0
      %5802 = vmatpush2.msra.mxu0 0.0
      %5803 = vmatprep.subr.mxu0 0.0
      %5804 = vmatpush2.msra.mxu0 0.0
      %5805 = vmatprep.subr.mxu0 0.0
      %5806 = vmatpush2.msra.mxu0 0.0
      %5807 = vmatprep.subr.mxu0 0.0
      %5808 = vmatpush2.msra.mxu0 0.0
      %5809 = vmatprep.subr.mxu0 0.0
      %5810 = vmatpush2.msra.mxu0 0.0
      %5811 = vmatprep.subr.mxu0 0.0
      %5812 = vmatpush2.msra.mxu0 0.0
      %5813 = vmatprep.subr.mxu0 0.0
      %5814 = vmatpush2.msra.mxu0 0.0
      %5815 = vmatprep.subr.mxu0 0.0
      %5816 = vmatpush2.msra.mxu0 0.0
      %5817 = vmatprep.subr.mxu0 0.0
      %5818 = vmatpush2.msra.mxu0 0.0
      %5819 = vmatprep.subr.mxu0 0.0
      %5820 = vmatpush2.msra.mxu0 0.0
      %5821 = vmatprep.mubr.f32.mxu0 0.0
      %5822 = vmatmul.mubr.f32.gmra.mxu0 %v5755
      %v5823 = vpop.f32.mrf.mxu0
      %v5824 = vadd.f32 0.0, %v5823
      %v5825 = vpop.f32.mrf.mxu0
      %v5826 = vadd.f32 0.0, %v5825
      %5827 = vdwg.mxu0
      %5828 = vmatprep.subr.mxu0 0.0
      %5829 = vmatpush1.msra.mxu0 0.0
      %5830 = vmatprep.subr.mxu0 0.0
      %5831 = vmatpush1.msra.mxu0 0.0
      %5832 = vmatprep.subr.mxu0 0.0
      %5833 = vmatpush1.msra.mxu0 0.0
      %5834 = vmatprep.subr.mxu0 0.0
      %5835 = vmatpush1.msra.mxu0 0.0
      %5836 = vmatprep.subr.mxu0 0.0
      %5837 = vmatpush1.msra.mxu0 0.0
      %5838 = vmatprep.subr.mxu0 0.0
      %5839 = vmatpush1.msra.mxu0 0.0
      %5840 = vmatprep.subr.mxu0 0.0
      %5841 = vmatpush1.msra.mxu0 0.0
      %5842 = vmatprep.subr.mxu0 0.0
      %5843 = vmatpush1.msra.mxu0 0.0
      %5844 = vmatprep.subr.mxu0 0.0
      %5845 = vmatpush1.msra.mxu0 0.0
      %5846 = vmatprep.subr.mxu0 0.0
      %5847 = vmatpush1.msra.mxu0 0.0
      %5848 = vmatprep.subr.mxu0 0.0
      %5849 = vmatpush1.msra.mxu0 0.0
      %5850 = vmatprep.subr.mxu0 0.0
      %5851 = vmatpush1.msra.mxu0 0.0
      %5852 = vmatprep.subr.mxu0 0.0
      %5853 = vmatpush1.msra.mxu0 0.0
      %5854 = vmatprep.subr.mxu0 0.0
      %5855 = vmatpush1.msra.mxu0 0.0
      %5856 = vmatprep.subr.mxu0 0.0
      %5857 = vmatpush1.msra.mxu0 0.0
      %5858 = vmatprep.subr.mxu0 0.0
      %5859 = vmatpush1.msra.mxu0 %v5749
      %5860 = vmatprep.subr.mxu0 0.0
      %5861 = vmatpush2.msra.mxu0 0.0
      %5862 = vmatprep.subr.mxu0 0.0
      %5863 = vmatpush2.msra.mxu0 0.0
      %5864 = vmatprep.subr.mxu0 0.0
      %5865 = vmatpush2.msra.mxu0 0.0
      %5866 = vmatprep.subr.mxu0 0.0
      %5867 = vmatpush2.msra.mxu0 0.0
      %5868 = vmatprep.subr.mxu0 0.0
      %5869 = vmatpush2.msra.mxu0 0.0
      %5870 = vmatprep.subr.mxu0 0.0
      %5871 = vmatpush2.msra.mxu0 0.0
      %5872 = vmatprep.subr.mxu0 0.0
      %5873 = vmatpush2.msra.mxu0 0.0
      %5874 = vmatprep.subr.mxu0 0.0
      %5875 = vmatpush2.msra.mxu0 0.0
      %5876 = vmatprep.subr.mxu0 0.0
      %5877 = vmatpush2.msra.mxu0 0.0
      %5878 = vmatprep.subr.mxu0 0.0
      %5879 = vmatpush2.msra.mxu0 0.0
      %5880 = vmatprep.subr.mxu0 0.0
      %5881 = vmatpush2.msra.mxu0 0.0
      %5882 = vmatprep.subr.mxu0 0.0
      %5883 = vmatpush2.msra.mxu0 0.0
      %5884 = vmatprep.subr.mxu0 0.0
      %5885 = vmatpush2.msra.mxu0 0.0
      %5886 = vmatprep.subr.mxu0 0.0
      %5887 = vmatpush2.msra.mxu0 0.0
      %5888 = vmatprep.subr.mxu0 0.0
      %5889 = vmatpush2.msra.mxu0 0.0
      %5890 = vmatprep.subr.mxu0 0.0
      %5891 = vmatpush2.msra.mxu0 0.0
      %5892 = vmatprep.mubr.f32.mxu0 0.0
      %5893 = vmatmul.mubr.f32.gmra.mxu0 %v5755
      %v5894 = vpop.f32.mrf.mxu0
      %v5895 = vadd.f32 0.0, %v5894
      %v5896 = vpop.f32.mrf.mxu0
      %5897 = vdwg.mxu0
      %v5898 = vadd.f32 %v5716, %v5824
      %v5899 = vadd.f32 %v5717, %v5826
      %v5900 = vadd.f32 %v5718, %v5895
      %5901 = vrot.lane.b32.xlu0 %v4752, 72
      %v5902 = vpop.permute.xlu0 %5901
      %v5903 = vsel %vm276, %v5902, 0
      %5905 = vmatprep.subr.mxu0 0.0
      %5906 = vmatpush1.msra.mxu0 0.0
      %5907 = vmatprep.subr.mxu0 0.0
      %5908 = vmatpush1.msra.mxu0 0.0
      %5909 = vmatprep.subr.mxu0 0.0
      %5910 = vmatpush1.msra.mxu0 0.0
      %5911 = vmatprep.subr.mxu0 0.0
      %5912 = vmatpush1.msra.mxu0 0.0
      %5913 = vmatprep.subr.mxu0 0.0
      %5914 = vmatpush1.msra.mxu0 0.0
      %5915 = vmatprep.subr.mxu0 0.0
      %5916 = vmatpush1.msra.mxu0 0.0
      %5917 = vmatprep.subr.mxu0 0.0
      %5918 = vmatpush1.msra.mxu0 0.0
      %5919 = vmatprep.subr.mxu0 0.0
      %5920 = vmatpush1.msra.mxu0 0.0
      %5921 = vmatprep.subr.mxu0 0.0
      %5922 = vmatpush1.msra.mxu0 0.0
      %5923 = vmatprep.subr.mxu0 0.0
      %5924 = vmatpush1.msra.mxu0 0.0
      %5925 = vmatprep.subr.mxu0 0.0
      %5926 = vmatpush1.msra.mxu0 0.0
      %5927 = vmatprep.subr.mxu0 0.0
      %5928 = vmatpush1.msra.mxu0 0.0
      %5929 = vmatprep.subr.mxu0 0.0
      %5930 = vmatpush1.msra.mxu0 0.0
      %5931 = vmatprep.subr.mxu0 0.0
      %5932 = vmatpush1.msra.mxu0 0.0
      %5933 = vmatprep.subr.mxu0 0.0
      %5934 = vmatpush1.msra.mxu0 0.0
      %5935 = vmatprep.subr.mxu0 %v5726
      %5936 = vmatpush1.msra.mxu0 %v5725
      %5937 = vmatprep.subr.mxu0 0.0
      %5938 = vmatpush2.msra.mxu0 0.0
      %5939 = vmatprep.subr.mxu0 0.0
      %5940 = vmatpush2.msra.mxu0 0.0
      %5941 = vmatprep.subr.mxu0 0.0
      %5942 = vmatpush2.msra.mxu0 0.0
      %5943 = vmatprep.subr.mxu0 0.0
      %5944 = vmatpush2.msra.mxu0 0.0
      %5945 = vmatprep.subr.mxu0 0.0
      %5946 = vmatpush2.msra.mxu0 0.0
      %5947 = vmatprep.subr.mxu0 0.0
      %5948 = vmatpush2.msra.mxu0 0.0
      %5949 = vmatprep.subr.mxu0 0.0
      %5950 = vmatpush2.msra.mxu0 0.0
      %5951 = vmatprep.subr.mxu0 0.0
      %5952 = vmatpush2.msra.mxu0 0.0
      %5953 = vmatprep.subr.mxu0 0.0
      %5954 = vmatpush2.msra.mxu0 0.0
      %5955 = vmatprep.subr.mxu0 0.0
      %5956 = vmatpush2.msra.mxu0 0.0
      %5957 = vmatprep.subr.mxu0 0.0
      %5958 = vmatpush2.msra.mxu0 0.0
      %5959 = vmatprep.subr.mxu0 0.0
      %5960 = vmatpush2.msra.mxu0 0.0
      %5961 = vmatprep.subr.mxu0 0.0
      %5962 = vmatpush2.msra.mxu0 0.0
      %5963 = vmatprep.subr.mxu0 0.0
      %5964 = vmatpush2.msra.mxu0 0.0
      %5965 = vmatprep.subr.mxu0 0.0
      %5966 = vmatpush2.msra.mxu0 0.0
      %5967 = vmatprep.subr.mxu0 0.0
      %5968 = vmatpush2.msra.mxu0 0.0
      %5969 = vmatprep.mubr.f32.mxu0 0.0
      %5970 = vmatmul.mubr.f32.gmra.mxu0 %v5903
      %v5971 = vpop.f32.mrf.mxu0
      %v5972 = vadd.f32 0.0, %v5971
      %v5973 = vpop.f32.mrf.mxu0
      %v5974 = vadd.f32 0.0, %v5973
      %5975 = vdwg.mxu0
      %5976 = vmatprep.subr.mxu0 0.0
      %5977 = vmatpush1.msra.mxu0 0.0
      %5978 = vmatprep.subr.mxu0 0.0
      %5979 = vmatpush1.msra.mxu0 0.0
      %5980 = vmatprep.subr.mxu0 0.0
      %5981 = vmatpush1.msra.mxu0 0.0
      %5982 = vmatprep.subr.mxu0 0.0
      %5983 = vmatpush1.msra.mxu0 0.0
      %5984 = vmatprep.subr.mxu0 0.0
      %5985 = vmatpush1.msra.mxu0 0.0
      %5986 = vmatprep.subr.mxu0 0.0
      %5987 = vmatpush1.msra.mxu0 0.0
      %5988 = vmatprep.subr.mxu0 0.0
      %5989 = vmatpush1.msra.mxu0 0.0
      %5990 = vmatprep.subr.mxu0 0.0
      %5991 = vmatpush1.msra.mxu0 0.0
      %5992 = vmatprep.subr.mxu0 0.0
      %5993 = vmatpush1.msra.mxu0 0.0
      %5994 = vmatprep.subr.mxu0 0.0
      %5995 = vmatpush1.msra.mxu0 0.0
      %5996 = vmatprep.subr.mxu0 0.0
      %5997 = vmatpush1.msra.mxu0 0.0
      %5998 = vmatprep.subr.mxu0 0.0
      %5999 = vmatpush1.msra.mxu0 0.0
      %6000 = vmatprep.subr.mxu0 0.0
      %6001 = vmatpush1.msra.mxu0 0.0
      %6002 = vmatprep.subr.mxu0 0.0
      %6003 = vmatpush1.msra.mxu0 0.0
      %6004 = vmatprep.subr.mxu0 0.0
      %6005 = vmatpush1.msra.mxu0 0.0
      %6006 = vmatprep.subr.mxu0 0.0
      %6007 = vmatpush1.msra.mxu0 %v5724
      %6008 = vmatprep.subr.mxu0 0.0
      %6009 = vmatpush2.msra.mxu0 0.0
      %6010 = vmatprep.subr.mxu0 0.0
      %6011 = vmatpush2.msra.mxu0 0.0
      %6012 = vmatprep.subr.mxu0 0.0
      %6013 = vmatpush2.msra.mxu0 0.0
      %6014 = vmatprep.subr.mxu0 0.0
      %6015 = vmatpush2.msra.mxu0 0.0
      %6016 = vmatprep.subr.mxu0 0.0
      %6017 = vmatpush2.msra.mxu0 0.0
      %6018 = vmatprep.subr.mxu0 0.0
      %6019 = vmatpush2.msra.mxu0 0.0
      %6020 = vmatprep.subr.mxu0 0.0
      %6021 = vmatpush2.msra.mxu0 0.0
      %6022 = vmatprep.subr.mxu0 0.0
      %6023 = vmatpush2.msra.mxu0 0.0
      %6024 = vmatprep.subr.mxu0 0.0
      %6025 = vmatpush2.msra.mxu0 0.0
      %6026 = vmatprep.subr.mxu0 0.0
      %6027 = vmatpush2.msra.mxu0 0.0
      %6028 = vmatprep.subr.mxu0 0.0
      %6029 = vmatpush2.msra.mxu0 0.0
      %6030 = vmatprep.subr.mxu0 0.0
      %6031 = vmatpush2.msra.mxu0 0.0
      %6032 = vmatprep.subr.mxu0 0.0
      %6033 = vmatpush2.msra.mxu0 0.0
      %6034 = vmatprep.subr.mxu0 0.0
      %6035 = vmatpush2.msra.mxu0 0.0
      %6036 = vmatprep.subr.mxu0 0.0
      %6037 = vmatpush2.msra.mxu0 0.0
      %6038 = vmatprep.subr.mxu0 0.0
      %6039 = vmatpush2.msra.mxu0 0.0
      %6040 = vmatprep.mubr.f32.mxu0 0.0
      %6041 = vmatmul.mubr.f32.gmra.mxu0 %v5903
      %v6042 = vpop.f32.mrf.mxu0
      %v6043 = vadd.f32 0.0, %v6042
      %v6044 = vpop.f32.mrf.mxu0
      %6045 = vdwg.mxu0
      %v6046 = vadd.f32 %v5898, %v5972
      %v6047 = vadd.f32 %v5899, %v5974
      %v6048 = vadd.f32 %v5900, %v6043
      %6049 = vrot.lane.b32.xlu0 %v4752, 64
      %v6050 = vpop.permute.xlu0 %6049
      %6051 = vrot.lane.b32.xlu0 %v5725, 127
      %v6052 = vpop.permute.xlu0 %6051
      %6053 = vrot.lane.b32.xlu0 %v5726, 127
      %v6054 = vpop.permute.xlu0 %6053
      %6055 = vrot.lane.b32.xlu0 %v5732, 127
      %v6056 = vpop.permute.xlu0 %6055
      %v6057 = vsel %vm588, %v6052, %v6054
      %v6058 = vsel %vm588, %v6054, %v6056
      %v6062 = vsel %vm276, %v6050, 0
      %6064 = vmatprep.subr.mxu0 0.0
      %6065 = vmatpush1.msra.mxu0 0.0
      %6066 = vmatprep.subr.mxu0 0.0
      %6067 = vmatpush1.msra.mxu0 0.0
      %6068 = vmatprep.subr.mxu0 0.0
      %6069 = vmatpush1.msra.mxu0 0.0
      %6070 = vmatprep.subr.mxu0 0.0
      %6071 = vmatpush1.msra.mxu0 0.0
      %6072 = vmatprep.subr.mxu0 0.0
      %6073 = vmatpush1.msra.mxu0 0.0
      %6074 = vmatprep.subr.mxu0 0.0
      %6075 = vmatpush1.msra.mxu0 0.0
      %6076 = vmatprep.subr.mxu0 0.0
      %6077 = vmatpush1.msra.mxu0 0.0
      %6078 = vmatprep.subr.mxu0 0.0
      %6079 = vmatpush1.msra.mxu0 0.0
      %6080 = vmatprep.subr.mxu0 0.0
      %6081 = vmatpush1.msra.mxu0 0.0
      %6082 = vmatprep.subr.mxu0 0.0
      %6083 = vmatpush1.msra.mxu0 0.0
      %6084 = vmatprep.subr.mxu0 0.0
      %6085 = vmatpush1.msra.mxu0 0.0
      %6086 = vmatprep.subr.mxu0 0.0
      %6087 = vmatpush1.msra.mxu0 0.0
      %6088 = vmatprep.subr.mxu0 0.0
      %6089 = vmatpush1.msra.mxu0 0.0
      %6090 = vmatprep.subr.mxu0 0.0
      %6091 = vmatpush1.msra.mxu0 0.0
      %6092 = vmatprep.subr.mxu0 0.0
      %6093 = vmatpush1.msra.mxu0 0.0
      %6094 = vmatprep.subr.mxu0 %v6058
      %6095 = vmatpush1.msra.mxu0 %v6057
      %6096 = vmatprep.subr.mxu0 0.0
      %6097 = vmatpush2.msra.mxu0 0.0
      %6098 = vmatprep.subr.mxu0 0.0
      %6099 = vmatpush2.msra.mxu0 0.0
      %6100 = vmatprep.subr.mxu0 0.0
      %6101 = vmatpush2.msra.mxu0 0.0
      %6102 = vmatprep.subr.mxu0 0.0
      %6103 = vmatpush2.msra.mxu0 0.0
      %6104 = vmatprep.subr.mxu0 0.0
      %6105 = vmatpush2.msra.mxu0 0.0
      %6106 = vmatprep.subr.mxu0 0.0
      %6107 = vmatpush2.msra.mxu0 0.0
      %6108 = vmatprep.subr.mxu0 0.0
      %6109 = vmatpush2.msra.mxu0 0.0
      %6110 = vmatprep.subr.mxu0 0.0
      %6111 = vmatpush2.msra.mxu0 0.0
      %6112 = vmatprep.subr.mxu0 0.0
      %6113 = vmatpush2.msra.mxu0 0.0
      %6114 = vmatprep.subr.mxu0 0.0
      %6115 = vmatpush2.msra.mxu0 0.0
      %6116 = vmatprep.subr.mxu0 0.0
      %6117 = vmatpush2.msra.mxu0 0.0
      %6118 = vmatprep.subr.mxu0 0.0
      %6119 = vmatpush2.msra.mxu0 0.0
      %6120 = vmatprep.subr.mxu0 0.0
      %6121 = vmatpush2.msra.mxu0 0.0
      %6122 = vmatprep.subr.mxu0 0.0
      %6123 = vmatpush2.msra.mxu0 0.0
      %6124 = vmatprep.subr.mxu0 0.0
      %6125 = vmatpush2.msra.mxu0 0.0
      %6126 = vmatprep.subr.mxu0 0.0
      %6127 = vmatpush2.msra.mxu0 0.0
      %6128 = vmatprep.mubr.f32.mxu0 0.0
      %6129 = vmatmul.mubr.f32.gmra.mxu0 %v6062
      %v6130 = vpop.f32.mrf.mxu0
      %v6131 = vadd.f32 0.0, %v6130
      %v6132 = vpop.f32.mrf.mxu0
      %v6133 = vadd.f32 0.0, %v6132
      %6134 = vdwg.mxu0
      %6135 = vmatprep.subr.mxu0 0.0
      %6136 = vmatpush1.msra.mxu0 0.0
      %6137 = vmatprep.subr.mxu0 0.0
      %6138 = vmatpush1.msra.mxu0 0.0
      %6139 = vmatprep.subr.mxu0 0.0
      %6140 = vmatpush1.msra.mxu0 0.0
      %6141 = vmatprep.subr.mxu0 0.0
      %6142 = vmatpush1.msra.mxu0 0.0
      %6143 = vmatprep.subr.mxu0 0.0
      %6144 = vmatpush1.msra.mxu0 0.0
      %6145 = vmatprep.subr.mxu0 0.0
      %6146 = vmatpush1.msra.mxu0 0.0
      %6147 = vmatprep.subr.mxu0 0.0
      %6148 = vmatpush1.msra.mxu0 0.0
      %6149 = vmatprep.subr.mxu0 0.0
      %6150 = vmatpush1.msra.mxu0 0.0
      %6151 = vmatprep.subr.mxu0 0.0
      %6152 = vmatpush1.msra.mxu0 0.0
      %6153 = vmatprep.subr.mxu0 0.0
      %6154 = vmatpush1.msra.mxu0 0.0
      %6155 = vmatprep.subr.mxu0 0.0
      %6156 = vmatpush1.msra.mxu0 0.0
      %6157 = vmatprep.subr.mxu0 0.0
      %6158 = vmatpush1.msra.mxu0 0.0
      %6159 = vmatprep.subr.mxu0 0.0
      %6160 = vmatpush1.msra.mxu0 0.0
      %6161 = vmatprep.subr.mxu0 0.0
      %6162 = vmatpush1.msra.mxu0 0.0
      %6163 = vmatprep.subr.mxu0 0.0
      %6164 = vmatpush1.msra.mxu0 0.0
      %6165 = vmatprep.subr.mxu0 0.0
      %6166 = vmatpush1.msra.mxu0 %v6056
      %6167 = vmatprep.subr.mxu0 0.0
      %6168 = vmatpush2.msra.mxu0 0.0
      %6169 = vmatprep.subr.mxu0 0.0
      %6170 = vmatpush2.msra.mxu0 0.0
      %6171 = vmatprep.subr.mxu0 0.0
      %6172 = vmatpush2.msra.mxu0 0.0
      %6173 = vmatprep.subr.mxu0 0.0
      %6174 = vmatpush2.msra.mxu0 0.0
      %6175 = vmatprep.subr.mxu0 0.0
      %6176 = vmatpush2.msra.mxu0 0.0
      %6177 = vmatprep.subr.mxu0 0.0
      %6178 = vmatpush2.msra.mxu0 0.0
      %6179 = vmatprep.subr.mxu0 0.0
      %6180 = vmatpush2.msra.mxu0 0.0
      %6181 = vmatprep.subr.mxu0 0.0
      %6182 = vmatpush2.msra.mxu0 0.0
      %6183 = vmatprep.subr.mxu0 0.0
      %6184 = vmatpush2.msra.mxu0 0.0
      %6185 = vmatprep.subr.mxu0 0.0
      %6186 = vmatpush2.msra.mxu0 0.0
      %6187 = vmatprep.subr.mxu0 0.0
      %6188 = vmatpush2.msra.mxu0 0.0
      %6189 = vmatprep.subr.mxu0 0.0
      %6190 = vmatpush2.msra.mxu0 0.0
      %6191 = vmatprep.subr.mxu0 0.0
      %6192 = vmatpush2.msra.mxu0 0.0
      %6193 = vmatprep.subr.mxu0 0.0
      %6194 = vmatpush2.msra.mxu0 0.0
      %6195 = vmatprep.subr.mxu0 0.0
      %6196 = vmatpush2.msra.mxu0 0.0
      %6197 = vmatprep.subr.mxu0 0.0
      %6198 = vmatpush2.msra.mxu0 0.0
      %6199 = vmatprep.mubr.f32.mxu0 0.0
      %6200 = vmatmul.mubr.f32.gmra.mxu0 %v6062
      %v6201 = vpop.f32.mrf.mxu0
      %v6202 = vadd.f32 0.0, %v6201
      %v6203 = vpop.f32.mrf.mxu0
      %6204 = vdwg.mxu0
      %v6205 = vadd.f32 %v6046, %v6131
      %v6206 = vadd.f32 %v6047, %v6133
      %v6207 = vadd.f32 %v6048, %v6202
      %s6208 = scalar_lea.vmem %s2, 24
      %v6209 = vld [vmem:[%s6208] sm:$0xff]
      %6211 = vset.pattern.permute.xlu0 0
      %6212 = vperm.xlu0 %6211, %v6209
      %v6213 = vpop.permute.xlu0 %6212
      %v6215 = vadd.f32 %v6205, %v6213
      %v6216 = vadd.f32 %v6206, %v6213
      %v6217 = vadd.f32 %v6207, %v6213
      %v6218 = vmax.f32 %v6215, 0.0
      %v6219 = vmax.f32 %v6216, 0.0
      %v6220 = vmax.f32 %v6217, 0.0
      %v6221 = vld [vmem:[%s3] sm:$0xff]
      %v6222 = vld [vmem:[%s3 + $0x8] sm:$0xff]
      %v6223 = vld [vmem:[%s3 + $0x10] sm:$0x7]
      %v6224 = vld [vmem:[%s4] sm:$0xff]
      %v6225 = vld [vmem:[%s4 + $0x8] sm:$0xff]
      %v6226 = vld [vmem:[%s4 + $0x10] sm:$0x7]
      %6228 = vset.pattern.permute.xlu0 0
      %6229 = vperm.xlu0 %6228, %v6224
      %v6230 = vpop.permute.xlu0 %6229
      %6233 = vset.pattern.permute.xlu0 0
      %6234 = vperm.xlu0 %6233, %v6225
      %v6235 = vpop.permute.xlu0 %6234
      %6238 = vset.pattern.permute.xlu0 0
      %6239 = vperm.xlu0 %6238, %v6226
      %v6240 = vpop.permute.xlu0 %6239
      %v6243 = vsel %vm276, %v6221, 0
      %v6246 = vsel %vm276, %v6222, 0
      %v6249 = vsel %vm276, %v6223, 0
      %6251 = vmatprep.subr.mxu0 0.0
      %6252 = vmatpush1.msra.mxu0 0.0
      %6253 = vmatprep.subr.mxu0 0.0
      %6254 = vmatpush1.msra.mxu0 0.0
      %6255 = vmatprep.subr.mxu0 0.0
      %6256 = vmatpush1.msra.mxu0 0.0
      %6257 = vmatprep.subr.mxu0 0.0
      %6258 = vmatpush1.msra.mxu0 0.0
      %6259 = vmatprep.subr.mxu0 0.0
      %6260 = vmatpush1.msra.mxu0 0.0
      %6261 = vmatprep.subr.mxu0 0.0
      %6262 = vmatpush1.msra.mxu0 0.0
      %6263 = vmatprep.subr.mxu0 0.0
      %6264 = vmatpush1.msra.mxu0 0.0
      %6265 = vmatprep.subr.mxu0 0.0
      %6266 = vmatpush1.msra.mxu0 0.0
      %6267 = vmatprep.subr.mxu0 0.0
      %6268 = vmatpush1.msra.mxu0 0.0
      %6269 = vmatprep.subr.mxu0 0.0
      %6270 = vmatpush1.msra.mxu0 0.0
      %6271 = vmatprep.subr.mxu0 0.0
      %6272 = vmatpush1.msra.mxu0 0.0
      %6273 = vmatprep.subr.mxu0 0.0
      %6274 = vmatpush1.msra.mxu0 0.0
      %6275 = vmatprep.subr.mxu0 0.0
      %6276 = vmatpush1.msra.mxu0 0.0
      %6277 = vmatprep.subr.mxu0 0.0
      %6278 = vmatpush1.msra.mxu0 0.0
      %6279 = vmatprep.subr.mxu0 0.0
      %6280 = vmatpush1.msra.mxu0 0.0
      %6281 = vmatprep.subr.mxu0 %v6219
      %6282 = vmatpush1.msra.mxu0 %v6218
      %6283 = vmatprep.subr.mxu0 0.0
      %6284 = vmatpush2.msra.mxu0 0.0
      %6285 = vmatprep.subr.mxu0 0.0
      %6286 = vmatpush2.msra.mxu0 0.0
      %6287 = vmatprep.subr.mxu0 0.0
      %6288 = vmatpush2.msra.mxu0 0.0
      %6289 = vmatprep.subr.mxu0 0.0
      %6290 = vmatpush2.msra.mxu0 0.0
      %6291 = vmatprep.subr.mxu0 0.0
      %6292 = vmatpush2.msra.mxu0 0.0
      %6293 = vmatprep.subr.mxu0 0.0
      %6294 = vmatpush2.msra.mxu0 0.0
      %6295 = vmatprep.subr.mxu0 0.0
      %6296 = vmatpush2.msra.mxu0 0.0
      %6297 = vmatprep.subr.mxu0 0.0
      %6298 = vmatpush2.msra.mxu0 0.0
      %6299 = vmatprep.subr.mxu0 0.0
      %6300 = vmatpush2.msra.mxu0 0.0
      %6301 = vmatprep.subr.mxu0 0.0
      %6302 = vmatpush2.msra.mxu0 0.0
      %6303 = vmatprep.subr.mxu0 0.0
      %6304 = vmatpush2.msra.mxu0 0.0
      %6305 = vmatprep.subr.mxu0 0.0
      %6306 = vmatpush2.msra.mxu0 0.0
      %6307 = vmatprep.subr.mxu0 0.0
      %6308 = vmatpush2.msra.mxu0 0.0
      %6309 = vmatprep.subr.mxu0 0.0
      %6310 = vmatpush2.msra.mxu0 0.0
      %6311 = vmatprep.subr.mxu0 0.0
      %6312 = vmatpush2.msra.mxu0 0.0
      %6313 = vmatprep.subr.mxu0 0.0
      %6314 = vmatpush2.msra.mxu0 0.0
      %6315 = vmatprep.mubr.f32.mxu0 0.0
      %6316 = vmatmul.mubr.f32.gmra.mxu0 %v6243
      %v6317 = vpop.f32.mrf.mxu0
      %v6318 = vadd.f32 %v6230, %v6317
      %v6319 = vpop.f32.mrf.mxu0
      %v6320 = vadd.f32 %v6230, %v6319
      %6321 = vmatprep.mubr.f32.mxu0 0.0
      %6322 = vmatmul.mubr.f32.gmra.mxu0 %v6246
      %v6323 = vpop.f32.mrf.mxu0
      %v6324 = vadd.f32 %v6235, %v6323
      %v6325 = vpop.f32.mrf.mxu0
      %v6326 = vadd.f32 %v6235, %v6325
      %6327 = vmatprep.mubr.f32.mxu0 0.0
      %6328 = vmatmul.mubr.f32.gmra.mxu0 %v6249
      %v6329 = vpop.f32.mrf.mxu0
      %v6330 = vadd.f32 %v6240, %v6329
      %v6331 = vpop.f32.mrf.mxu0
      %v6332 = vadd.f32 %v6240, %v6331
      %6333 = vdwg.mxu0
      %6334 = vmatprep.subr.mxu0 0.0
      %6335 = vmatpush1.msra.mxu0 0.0
      %6336 = vmatprep.subr.mxu0 0.0
      %6337 = vmatpush1.msra.mxu0 0.0
      %6338 = vmatprep.subr.mxu0 0.0
      %6339 = vmatpush1.msra.mxu0 0.0
      %6340 = vmatprep.subr.mxu0 0.0
      %6341 = vmatpush1.msra.mxu0 0.0
      %6342 = vmatprep.subr.mxu0 0.0
      %6343 = vmatpush1.msra.mxu0 0.0
      %6344 = vmatprep.subr.mxu0 0.0
      %6345 = vmatpush1.msra.mxu0 0.0
      %6346 = vmatprep.subr.mxu0 0.0
      %6347 = vmatpush1.msra.mxu0 0.0
      %6348 = vmatprep.subr.mxu0 0.0
      %6349 = vmatpush1.msra.mxu0 0.0
      %6350 = vmatprep.subr.mxu0 0.0
      %6351 = vmatpush1.msra.mxu0 0.0
      %6352 = vmatprep.subr.mxu0 0.0
      %6353 = vmatpush1.msra.mxu0 0.0
      %6354 = vmatprep.subr.mxu0 0.0
      %6355 = vmatpush1.msra.mxu0 0.0
      %6356 = vmatprep.subr.mxu0 0.0
      %6357 = vmatpush1.msra.mxu0 0.0
      %6358 = vmatprep.subr.mxu0 0.0
      %6359 = vmatpush1.msra.mxu0 0.0
      %6360 = vmatprep.subr.mxu0 0.0
      %6361 = vmatpush1.msra.mxu0 0.0
      %6362 = vmatprep.subr.mxu0 0.0
      %6363 = vmatpush1.msra.mxu0 0.0
      %6364 = vmatprep.subr.mxu0 0.0
      %6365 = vmatpush1.msra.mxu0 %v6220
      %6366 = vmatprep.subr.mxu0 0.0
      %6367 = vmatpush2.msra.mxu0 0.0
      %6368 = vmatprep.subr.mxu0 0.0
      %6369 = vmatpush2.msra.mxu0 0.0
      %6370 = vmatprep.subr.mxu0 0.0
      %6371 = vmatpush2.msra.mxu0 0.0
      %6372 = vmatprep.subr.mxu0 0.0
      %6373 = vmatpush2.msra.mxu0 0.0
      %6374 = vmatprep.subr.mxu0 0.0
      %6375 = vmatpush2.msra.mxu0 0.0
      %6376 = vmatprep.subr.mxu0 0.0
      %6377 = vmatpush2.msra.mxu0 0.0
      %6378 = vmatprep.subr.mxu0 0.0
      %6379 = vmatpush2.msra.mxu0 0.0
      %6380 = vmatprep.subr.mxu0 0.0
      %6381 = vmatpush2.msra.mxu0 0.0
      %6382 = vmatprep.subr.mxu0 0.0
      %6383 = vmatpush2.msra.mxu0 0.0
      %6384 = vmatprep.subr.mxu0 0.0
      %6385 = vmatpush2.msra.mxu0 0.0
      %6386 = vmatprep.subr.mxu0 0.0
      %6387 = vmatpush2.msra.mxu0 0.0
      %6388 = vmatprep.subr.mxu0 0.0
      %6389 = vmatpush2.msra.mxu0 0.0
      %6390 = vmatprep.subr.mxu0 0.0
      %6391 = vmatpush2.msra.mxu0 0.0
      %6392 = vmatprep.subr.mxu0 0.0
      %6393 = vmatpush2.msra.mxu0 0.0
      %6394 = vmatprep.subr.mxu0 0.0
      %6395 = vmatpush2.msra.mxu0 0.0
      %6396 = vmatprep.subr.mxu0 0.0
      %6397 = vmatpush2.msra.mxu0 0.0
      %6398 = vmatprep.mubr.f32.mxu0 0.0
      %6399 = vmatmul.mubr.f32.gmra.mxu0 %v6243
      %v6400 = vpop.f32.mrf.mxu0
      %v6401 = vadd.f32 %v6230, %v6400
      %v6402 = vpop.f32.mrf.mxu0
      %6403 = vmatprep.mubr.f32.mxu0 0.0
      %6404 = vmatmul.mubr.f32.gmra.mxu0 %v6246
      %v6405 = vpop.f32.mrf.mxu0
      %v6406 = vadd.f32 %v6235, %v6405
      %v6407 = vpop.f32.mrf.mxu0
      %6408 = vmatprep.mubr.f32.mxu0 0.0
      %6409 = vmatmul.mubr.f32.gmra.mxu0 %v6249
      %v6410 = vpop.f32.mrf.mxu0
      %v6411 = vadd.f32 %v6240, %v6410
      %v6412 = vpop.f32.mrf.mxu0
      %6413 = vdwg.mxu0
      %6414 = vst [vmem:[%s251] sm:$0xff] %v6318
      %6415 = vst [vmem:[%s251 + $0x8] sm:$0xff] %v6320
      %vm6416 = vcmask 261120
      %6417 = vst.msk [vmem:[%s251 + $0x10] sm:$0xff] %vm6416, %v6401
      %6418 = vst [vmem:[%s251 + $0x18] sm:$0xff] %v6324
      %6419 = vst [vmem:[%s251 + $0x20] sm:$0xff] %v6326
      %6420 = vst.msk [vmem:[%s251 + $0x28] sm:$0xff] %vm6416, %v6406
      %6421 = vst [vmem:[%s251 + $0x30] sm:$0x7] %v6330
      %6422 = vst [vmem:[%s251 + $0x38] sm:$0x7] %v6332
      %vm6423 = vcmask 256000
      %6424 = vst.msk [vmem:[%s251 + $0x40] sm:$0x7] %vm6423, %v6411
      %p6425 = scmp.lt.s32.totalorder %s17, 1
      %s6426 = scalar_select %p6425, %s17, 1
      %s6427 = smul.addr %s6426, 9
      %s6428 = smul.addr %s6427, 8
      %s6429 = scalar_lea.vmem %s6, %s6428
      // Predicated region
      $region45: #{tpu_custom_call.1} parent=43 // pred_check
        %p6430 = pneg %p166
      $region46: #{tpu_custom_call.1} parent=43 // pred_check_branch
        %6432 = sbr.rel (%p6430) target = $region48
      $region47: #{tpu_custom_call.1} parent=43 // pred_region
        _
      $region48: #{tpu_custom_call.1} parent=43 // pred_fallthru
        _
    $region44: #{tpu_custom_call.1} parent=5 // pred_fallthru
      _
    %p6433 = scmp.le.s32.totalorder 2, %s12
    // Predicated region
    $region49: #{tpu_custom_call.1} parent=5 // pred_check
      %p6434 = pneg %p6433
    $region50: #{tpu_custom_call.1} parent=5 // pred_check_branch
      %6436 = sbr.rel (%p6434) target = $region52
    $region51: #{tpu_custom_call.1} parent=5 // pred_region
      %s6437 = ssub.s32 %s12, 2
      // Predicated region
      $region53: #{tpu_custom_call.1} parent=51 // pred_check
        %p6438 = pneg %p172
      $region54: #{tpu_custom_call.1} parent=51 // pred_check_branch
        %6440 = sbr.rel (%p6438) target = $region56
      $region55: #{tpu_custom_call.1} parent=51 // pred_region
        %p6441 = scmp.lt.s32.totalorder %s18, 1
        %s6442 = scalar_select %p6441, %s18, 1
        %s6443 = smul.addr %s6442, 9
        %s6444 = smul.addr %s6443, 8
        %s6445 = scalar_lea.vmem %s6, %s6444
      $region56: #{tpu_custom_call.1} parent=51 // pred_fallthru
        _
    $region52: #{tpu_custom_call.1} parent=5 // pred_fallthru
      _
  $region6: #{tpu_custom_call.1} parent=0 // loop_footer
    %s16 = sadd.s32 1, %s12
  $region7: #{tpu_custom_call.1} parent=0 // loop_footer_branch
    %11 = sbr.rel target = $region3
  $region8: #{tpu_custom_call.1} parent=0 // loop_exit
    _

</llo_original>
